<compile_context>
chip_gen: v7x
topology: tpu7x:2x2x1
jax: 0.10.0
libtpu: 0.0.40
codegen_flags: <defaults>
</compile_context>

<pallas_src>
import jax
import jax.numpy as jnp
from jax.experimental import pallas as pl
from jax.experimental.pallas import tpu as pltpu

BACKBONE_FEATURES = 1408  # efficientnet_b2 classifier[1].in_features
HIDDEN = (1024, 512, 256)
BN_EPS = 1e-5
LANE = 128
BF16_SUBLANE = 16  # bf16 packs 2 rows/sublane -> native tile (16, 128)


def _round_up(x, m):
    return (x + m - 1) // m * m


# ----------------------------- Pallas kernel ------------------------------ #
def _head_kernel(x_ref,
                 w1_ref, t1_ref,
                 w2_ref, t2_ref,
                 w3_ref, t3_ref,
                 w4_ref, b4_ref,
                 o_ref):
    # Eval-mode head: Dropout = identity; BN scale already folded into the
    # weight columns, so each hidden layer is relu(x @ W_folded + shift).
    # bf16 MXU matmuls with f32 accumulation; shift/ReLU stay f32.
    h = jnp.dot(x_ref[...], w1_ref[...], preferred_element_type=jnp.float32)
    h = jnp.maximum(h + t1_ref[...], 0.0)

    h = jnp.dot(h.astype(jnp.bfloat16), w2_ref[...],
                preferred_element_type=jnp.float32)
    h = jnp.maximum(h + t2_ref[...], 0.0)

    h = jnp.dot(h.astype(jnp.bfloat16), w3_ref[...],
                preferred_element_type=jnp.float32)
    h = jnp.maximum(h + t3_ref[...], 0.0)

    # Final Linear(256, num_classes padded to 128 lanes); logits, no activation.
    o = jnp.dot(h.astype(jnp.bfloat16), w4_ref[...],
                preferred_element_type=jnp.float32) + b4_ref[...]
    o_ref[...] = o.astype(o_ref.dtype)


# ------------------------------ parameters -------------------------------- #
def init_params(key, num_classes):
    """Deterministic init mirroring ImprovedMultiLabelClassifier._initialize_weights.

    Linear: kaiming_normal_(mode='fan_out', nonlinearity='relu') -> std = sqrt(2/out),
            bias = 0.
    BatchNorm1d: weight = 1, bias = 0, running_mean = 0, running_var = 1.
    """
    dims = (BACKBONE_FEATURES,) + HIDDEN + (num_classes,)
    params = {}
    for i in range(4):
        key, sub = jax.random.split(key)
        fan_in, fan_out = dims[i], dims[i + 1]
        std = jnp.sqrt(2.0 / fan_out)
        # stored as (in, out) so the kernel does x @ W
        params[f"w{i+1}"] = (jax.random.normal(sub, (fan_in, fan_out),
                                               jnp.float32) * std)
        params[f"b{i+1}"] = jnp.zeros((fan_out,), jnp.float32)
    for i, d in enumerate(HIDDEN, start=1):
        params[f"bn{i}_gamma"] = jnp.ones((d,), jnp.float32)
        params[f"bn{i}_beta"] = jnp.zeros((d,), jnp.float32)
        params[f"bn{i}_mean"] = jnp.zeros((d,), jnp.float32)
        params[f"bn{i}_var"] = jnp.ones((d,), jnp.float32)
    return params


def prepare_head_params(params, num_classes):
    """One-time (offline / cached) weight preparation — keeps the f32->bf16
    cast, BN fold and class-dim padding OUT of the per-call hot path.

    Eval-mode BN fold is exact:  scale = gamma / sqrt(var + eps)
        y = scale * (x @ W + b - mean) + beta = x @ (W * scale) + shift
        shift = beta - mean * scale + b * scale
    """
    n_pad = _round_up(num_classes, LANE)
    prepared = []
    for i in range(1, 4):
        scale = params[f"bn{i}_gamma"] / jnp.sqrt(params[f"bn{i}_var"] + BN_EPS)
        shift = (params[f"bn{i}_beta"] - params[f"bn{i}_mean"] * scale
                 + params[f"b{i}"] * scale)
        w_folded = (params[f"w{i}"] * scale[None, :]).astype(jnp.bfloat16)
        prepared += [w_folded, shift.reshape(1, -1).astype(jnp.float32)]
    # Zero-pad the class dim to 128 so the final matmul / store are lane-dense.
    w4 = jnp.pad(params["w4"],
                 ((0, 0), (0, n_pad - num_classes))).astype(jnp.bfloat16)
    b4 = jnp.pad(params["b4"],
                 (0, n_pad - num_classes)).reshape(1, -1).astype(jnp.float32)
    prepared += [w4, b4]
    return tuple(jax.device_put(p) for p in prepared), n_pad


# ------------------------------- wrapper ----------------------------------- #
def _default_block_b():
    kind = jax.devices()[0].device_kind.lower()
    # v5e (4x128^2 MXU): M=128 already saturates it.  v6e / v7x (2x256^2): 256
    # fills the M dim and halves grid-step count.
    return 128 if any(v in kind for v in ("v2", "v3", "v4", "v5")) else 256


def classifier_head(features, prepared, num_classes, n_pad, *, block_b=None):
    B, F = features.shape
    assert F == BACKBONE_FEATURES
    if block_b is None:
        block_b = _default_block_b()

    # Batch tile: multiple of 16 (bf16 packs 2 rows per sublane).
    tb = min(_round_up(block_b, BF16_SUBLANE), _round_up(B, BF16_SUBLANE))
    b_pad = _round_up(B, tb)

    x = features.astype(jnp.bfloat16)
    if b_pad != B:
        x = jnp.pad(x, ((0, b_pad - B), (0, 0)))

    def resident(arr):
        # Constant block index across the grid -> fetched once, stays in VMEM.
        # Single-buffered: the default second pipeline copy would be wasted.
        return pl.BlockSpec(arr.shape, lambda i: (0, 0),
                            pipeline_mode=pl.Buffered(1))

    in_specs = ([pl.BlockSpec((tb, F), lambda i: (i, 0))]
                + [resident(a) for a in prepared])

    d0, d1, d2, d3 = (BACKBONE_FEATURES,) + HIDDEN
    mac = d0 * d1 + d1 * d2 + d2 * d3 + d3 * n_pad
    weight_bytes = 2 * mac + 4 * (d1 + d2 + d3 + n_pad)      # bf16 W + f32 shifts
    cost = pl.CostEstimate(
        flops=2 * b_pad * mac,
        transcendentals=0,
        bytes_accessed=b_pad * F * 2 + weight_bytes + b_pad * n_pad * 4)

    out = pl.pallas_call(
        _head_kernel,
        out_shape=jax.ShapeDtypeStruct((b_pad, n_pad), jnp.float32),
        grid=(b_pad // tb,),
        in_specs=in_specs,
        out_specs=pl.BlockSpec((tb, n_pad), lambda i: (i, 0)),
        compiler_params=pltpu.CompilerParams(
            dimension_semantics=("parallel",),   # batch rows independent; both TCs on v7x
            vmem_limit_bytes=32 << 20),          # safe on all gens; ~8 MiB actually needed
        cost_estimate=cost,
    )(x, *prepared)

    return out[:B, :num_classes]


# ------------------------------ references --------------------------------- #
def reference_head_f32(features, params):
    h = features
    for i in range(1, 4):
        z = h @ params[f"w{i}"] + params[f"b{i}"]
        z = (params[f"bn{i}_gamma"] * (z - params[f"bn{i}_mean"]) /
             jnp.sqrt(params[f"bn{i}_var"] + BN_EPS) + params[f"bn{i}_beta"])
        h = jnp.maximum(z, 0.0)
    return h @ params["w4"] + params["b4"]


def reference_head_bf16(features, prepared, num_classes):
    """Plain-JAX reference with the kernel's exact numerics (folded bf16 weights)."""
    w1, t1, w2, t2, w3, t3, w4, b4 = prepared
    h = features.astype(jnp.bfloat16)
    for w, t in ((w1, t1), (w2, t2), (w3, t3)):
        z = jnp.dot(h, w, preferred_element_type=jnp.float32)
        h = jnp.maximum(z + t, 0.0).astype(jnp.bfloat16)
    out = jnp.dot(h, w4, preferred_element_type=jnp.float32) + b4
    return out[:, :num_classes]


if __name__ == "__main__":
    num_classes = 10
    batch = 2

    key = jax.random.PRNGKey(0)
    key_x, key_p = jax.random.split(key)
    # Backbone features (see TODO(synk) above): (B, 1408).
    features = jax.random.normal(key_x, (batch, BACKBONE_FEATURES), jnp.float32)
    params = init_params(key_p, num_classes)

    # One-time weight prep (would be cached / done offline in a serving path).
    prepared, n_pad = prepare_head_params(params, num_classes)

    logits = classifier_head(features, prepared, num_classes, n_pad)
    logits = jax.block_until_ready(logits)
    assert logits.shape == (batch, num_classes)

    # Tight check against a reference with matching folded-bf16 numerics.
    ref_bf16 = reference_head_bf16(features, prepared, num_classes)
    assert jnp.allclose(logits, ref_bf16, atol=1e-2, rtol=1e-2)

    # Looser check against the full-f32 reference (bf16 weight quantization only).
    ref_f32 = reference_head_f32(features, params)
    assert jnp.allclose(logits, ref_f32, atol=0.3, rtol=5e-2)

    print("KERNEL_OK")
</pallas_src>

<mosaic_0001>
module attributes {stable_mosaic.version = 11 : i64} {
  func.func @_head_kernel(%arg0: i32, %arg1: memref<16x1408xbf16, #tpu.memory_space<vmem>>, %arg2: memref<1408x1024xbf16, #tpu.memory_space<vmem>>, %arg3: memref<1x1024xf32, #tpu.memory_space<vmem>>, %arg4: memref<1024x512xbf16, #tpu.memory_space<vmem>>, %arg5: memref<1x512xf32, #tpu.memory_space<vmem>>, %arg6: memref<512x256xbf16, #tpu.memory_space<vmem>>, %arg7: memref<1x256xf32, #tpu.memory_space<vmem>>, %arg8: memref<256x128xbf16, #tpu.memory_space<vmem>>, %arg9: memref<1x128xf32, #tpu.memory_space<vmem>>, %arg10: memref<16x128xf32, #tpu.memory_space<vmem>>) attributes {dimension_semantics = [#tpu.dimension_semantics<parallel>], iteration_bounds = array<i64: 1>, scalar_prefetch = 0 : i64, scratch_operands = 0 : i64, tpu.core_type = #tpu.core_type<tc>, window_params = [{transform_indices = @transform_0, window_bounds = array<i64: 16, 1408>}, {pipeline_mode = #tpu.pipeline_mode<synchronous>, transform_indices = @transform_1, window_bounds = array<i64: 1408, 1024>}, {pipeline_mode = #tpu.pipeline_mode<synchronous>, transform_indices = @transform_2, window_bounds = array<i64: 1, 1024>}, {pipeline_mode = #tpu.pipeline_mode<synchronous>, transform_indices = @transform_3, window_bounds = array<i64: 1024, 512>}, {pipeline_mode = #tpu.pipeline_mode<synchronous>, transform_indices = @transform_4, window_bounds = array<i64: 1, 512>}, {pipeline_mode = #tpu.pipeline_mode<synchronous>, transform_indices = @transform_5, window_bounds = array<i64: 512, 256>}, {pipeline_mode = #tpu.pipeline_mode<synchronous>, transform_indices = @transform_6, window_bounds = array<i64: 1, 256>}, {pipeline_mode = #tpu.pipeline_mode<synchronous>, transform_indices = @transform_7, window_bounds = array<i64: 256, 128>}, {pipeline_mode = #tpu.pipeline_mode<synchronous>, transform_indices = @transform_8, window_bounds = array<i64: 1, 128>}, {transform_indices = @transform_9, window_bounds = array<i64: 16, 128>}]} {
    %c0 = arith.constant 0 : index
    %c0_0 = arith.constant 0 : index
    %0 = vector.load %arg1[%c0, %c0_0] : memref<16x1408xbf16, #tpu.memory_space<vmem>>, vector<16x1408xbf16>
    %c0_1 = arith.constant 0 : index
    %c0_2 = arith.constant 0 : index
    %1 = vector.load %arg2[%c0_1, %c0_2] : memref<1408x1024xbf16, #tpu.memory_space<vmem>>, vector<1408x1024xbf16>
    %cst = arith.constant dense<0.000000e+00> : vector<16x1024xf32>
    %2 = tpu.matmul %0, %1, %cst {dimension_numbers = #tpu.dot_dimension_numbers<[1], [0], [0], [1], [0, 0, 1, 1], [], []>} : vector<16x1408xbf16>, vector<1408x1024xbf16>, vector<16x1024xf32> -> vector<16x1024xf32>
    %c0_3 = arith.constant 0 : index
    %c0_4 = arith.constant 0 : index
    %3 = vector.load %arg3[%c0_3, %c0_4] : memref<1x1024xf32, #tpu.memory_space<vmem>>, vector<1x1024xf32>
    %4 = vector.broadcast %3 : vector<1x1024xf32> to vector<16x1024xf32>
    %5 = arith.addf %2, %4 : vector<16x1024xf32>
    %cst_5 = arith.constant 0.000000e+00 : f32
    %6 = vector.broadcast %cst_5 : f32 to vector<16x1024xf32>
    %7 = arith.maximumf %5, %6 : vector<16x1024xf32>
    %8 = arith.truncf %7 : vector<16x1024xf32> to vector<16x1024xbf16>
    %c0_6 = arith.constant 0 : index
    %c0_7 = arith.constant 0 : index
    %9 = vector.load %arg4[%c0_6, %c0_7] : memref<1024x512xbf16, #tpu.memory_space<vmem>>, vector<1024x512xbf16>
    %cst_8 = arith.constant dense<0.000000e+00> : vector<16x512xf32>
    %10 = tpu.matmul %8, %9, %cst_8 {dimension_numbers = #tpu.dot_dimension_numbers<[1], [0], [0], [1], [0, 0, 1, 1], [], []>} : vector<16x1024xbf16>, vector<1024x512xbf16>, vector<16x512xf32> -> vector<16x512xf32>
    %c0_9 = arith.constant 0 : index
    %c0_10 = arith.constant 0 : index
    %11 = vector.load %arg5[%c0_9, %c0_10] : memref<1x512xf32, #tpu.memory_space<vmem>>, vector<1x512xf32>
    %12 = vector.broadcast %11 : vector<1x512xf32> to vector<16x512xf32>
    %13 = arith.addf %10, %12 : vector<16x512xf32>
    %cst_11 = arith.constant 0.000000e+00 : f32
    %14 = vector.broadcast %cst_11 : f32 to vector<16x512xf32>
    %15 = arith.maximumf %13, %14 : vector<16x512xf32>
    %16 = arith.truncf %15 : vector<16x512xf32> to vector<16x512xbf16>
    %c0_12 = arith.constant 0 : index
    %c0_13 = arith.constant 0 : index
    %17 = vector.load %arg6[%c0_12, %c0_13] : memref<512x256xbf16, #tpu.memory_space<vmem>>, vector<512x256xbf16>
    %cst_14 = arith.constant dense<0.000000e+00> : vector<16x256xf32>
    %18 = tpu.matmul %16, %17, %cst_14 {dimension_numbers = #tpu.dot_dimension_numbers<[1], [0], [0], [1], [0, 0, 1, 1], [], []>} : vector<16x512xbf16>, vector<512x256xbf16>, vector<16x256xf32> -> vector<16x256xf32>
    %c0_15 = arith.constant 0 : index
    %c0_16 = arith.constant 0 : index
    %19 = vector.load %arg7[%c0_15, %c0_16] : memref<1x256xf32, #tpu.memory_space<vmem>>, vector<1x256xf32>
    %20 = vector.broadcast %19 : vector<1x256xf32> to vector<16x256xf32>
    %21 = arith.addf %18, %20 : vector<16x256xf32>
    %cst_17 = arith.constant 0.000000e+00 : f32
    %22 = vector.broadcast %cst_17 : f32 to vector<16x256xf32>
    %23 = arith.maximumf %21, %22 : vector<16x256xf32>
    %24 = arith.truncf %23 : vector<16x256xf32> to vector<16x256xbf16>
    %c0_18 = arith.constant 0 : index
    %c0_19 = arith.constant 0 : index
    %25 = vector.load %arg8[%c0_18, %c0_19] : memref<256x128xbf16, #tpu.memory_space<vmem>>, vector<256x128xbf16>
    %cst_20 = arith.constant dense<0.000000e+00> : vector<16x128xf32>
    %26 = tpu.matmul %24, %25, %cst_20 {dimension_numbers = #tpu.dot_dimension_numbers<[1], [0], [0], [1], [0, 0, 1, 1], [], []>} : vector<16x256xbf16>, vector<256x128xbf16>, vector<16x128xf32> -> vector<16x128xf32>
    %c0_21 = arith.constant 0 : index
    %c0_22 = arith.constant 0 : index
    %27 = vector.load %arg9[%c0_21, %c0_22] : memref<1x128xf32, #tpu.memory_space<vmem>>, vector<1x128xf32>
    %28 = vector.broadcast %27 : vector<1x128xf32> to vector<16x128xf32>
    %29 = arith.addf %26, %28 : vector<16x128xf32>
    %c0_23 = arith.constant 0 : index
    %c0_24 = arith.constant 0 : index
    %30 = vector.load %arg10[%c0_23, %c0_24] : memref<16x128xf32, #tpu.memory_space<vmem>>, vector<16x128xf32>
    tpu.vector_store %arg10[%c0_23, %c0_24], %29 {strides = array<i32>} : memref<16x128xf32, #tpu.memory_space<vmem>>, vector<16x128xf32>,
    return
  }
  func.func @transform_0(%arg0: i32) -> (i32, i32) {
    %c0_i32 = arith.constant 0 : i32
    %c0_i32_0 = arith.constant 0 : i32
    return %arg0, %c0_i32 : i32, i32
  }
  func.func @transform_1(%arg0: i32) -> (i32, i32) {
    %c0_i32 = arith.constant 0 : i32
    %c0_i32_0 = arith.constant 0 : i32
    %c0_i32_1 = arith.constant 0 : i32
    return %c0_i32, %c0_i32_0 : i32, i32
  }
  func.func @transform_2(%arg0: i32) -> (i32, i32) {
    %c0_i32 = arith.constant 0 : i32
    %c0_i32_0 = arith.constant 0 : i32
    %c0_i32_1 = arith.constant 0 : i32
    return %c0_i32, %c0_i32_0 : i32, i32
  }
  func.func @transform_3(%arg0: i32) -> (i32, i32) {
    %c0_i32 = arith.constant 0 : i32
    %c0_i32_0 = arith.constant 0 : i32
    %c0_i32_1 = arith.constant 0 : i32
    return %c0_i32, %c0_i32_0 : i32, i32
  }
  func.func @transform_4(%arg0: i32) -> (i32, i32) {
    %c0_i32 = arith.constant 0 : i32
    %c0_i32_0 = arith.constant 0 : i32
    %c0_i32_1 = arith.constant 0 : i32
    return %c0_i32, %c0_i32_0 : i32, i32
  }
  func.func @transform_5(%arg0: i32) -> (i32, i32) {
    %c0_i32 = arith.constant 0 : i32
    %c0_i32_0 = arith.constant 0 : i32
    %c0_i32_1 = arith.constant 0 : i32
    return %c0_i32, %c0_i32_0 : i32, i32
  }
  func.func @transform_6(%arg0: i32) -> (i32, i32) {
    %c0_i32 = arith.constant 0 : i32
    %c0_i32_0 = arith.constant 0 : i32
    %c0_i32_1 = arith.constant 0 : i32
    return %c0_i32, %c0_i32_0 : i32, i32
  }
  func.func @transform_7(%arg0: i32) -> (i32, i32) {
    %c0_i32 = arith.constant 0 : i32
    %c0_i32_0 = arith.constant 0 : i32
    %c0_i32_1 = arith.constant 0 : i32
    return %c0_i32, %c0_i32_0 : i32, i32
  }
  func.func @transform_8(%arg0: i32) -> (i32, i32) {
    %c0_i32 = arith.constant 0 : i32
    %c0_i32_0 = arith.constant 0 : i32
    %c0_i32_1 = arith.constant 0 : i32
    return %c0_i32, %c0_i32_0 : i32, i32
  }
  func.func @transform_9(%arg0: i32) -> (i32, i32) {
    %c0_i32 = arith.constant 0 : i32
    %c0_i32_0 = arith.constant 0 : i32
    return %arg0, %c0_i32 : i32, i32
  }
}

</mosaic_0001>

<llo_original>
// kernel: tpu_custom_call.1
$region0: #{tpu_custom_call.1}
  #allocation0 [shape = 'u32[]', space=smem, size = 0x4, offset = 0x4, fixed_abs, tag = 'smem constant byte address 0x4 - core index']
  #allocation1 [shape = 'u32[144,128]{1,0:T(1,128)}', space=vmem, size = 0x12000, scoped, tag = 'internal scratch']
  %s0 = inlined_call_operand.hbm [shape: bf16[16,1408], index: 0, kind: input, shape index: {}]
  %s1 = inlined_call_operand.hbm [shape: bf16[1408,1024], index: 1, kind: input, shape index: {}]
  %s2 = inlined_call_operand.hbm [shape: f32[1,1024], index: 2, kind: input, shape index: {}]
  %s3 = inlined_call_operand.hbm [shape: bf16[1024,512], index: 3, kind: input, shape index: {}]
  %s4 = inlined_call_operand.hbm [shape: f32[1,512], index: 4, kind: input, shape index: {}]
  %s5 = inlined_call_operand.hbm [shape: bf16[512,256], index: 5, kind: input, shape index: {}]
  %s6 = inlined_call_operand.hbm [shape: f32[1,256], index: 6, kind: input, shape index: {}]
  %s7 = inlined_call_operand.hbm [shape: bf16[256,128], index: 7, kind: input, shape index: {}]
  %s8 = inlined_call_operand.hbm [shape: f32[1,128], index: 8, kind: input, shape index: {}]
  %s9 = inlined_call_operand.hbm [shape: f32[16,128], index: 9, kind: output, shape index: {}]
  %s10 = sld [smem:[#allocation0]]
  $region82: #{tpu_custom_call.1} parent=0
    _
  %s12 = ssub.s32 1, %s10
  %s13 = scalar_select 0, %s12, %s10
  $region1: #{tpu_custom_call.1} parent=0
    #allocation2 [shape = 'u8[45056]{0}', space=vmem, size = 0xb000, scoped, tag = 'input window, operand 0, single buffered']
    #allocation3 [shape = 's32[1]{0}', space=sflag, size = 0x4, scoped, tag = 'scoped memory for tpu_custom_call.1']
    #allocation4 [shape = 's32[1]{0}', space=sflag, size = 0x4, scoped, tag = 'scoped memory for tpu_custom_call.1']
    #allocation5 [shape = 'u8[2883584]{0}', space=vmem, size = 0x2c0000, scoped, tag = 'input window, operand 1, single buffered']
    #allocation6 [shape = 's32[1]{0}', space=sflag, size = 0x4, scoped, tag = 'scoped memory for tpu_custom_call.1']
    #allocation7 [shape = 'u8[4096]{0}', space=vmem, size = 0x1000, scoped, tag = 'input window, operand 2, single buffered']
    #allocation8 [shape = 'u8[1048576]{0}', space=vmem, size = 0x100000, scoped, tag = 'input window, operand 3, single buffered']
    #allocation9 [shape = 's32[1]{0}', space=sflag, size = 0x4, scoped, tag = 'scoped memory for tpu_custom_call.1']
    #allocation10 [shape = 'u8[2048]{0}', space=vmem, size = 0x800, scoped, tag = 'input window, operand 4, single buffered']
    #allocation11 [shape = 'u8[262144]{0}', space=vmem, size = 0x40000, scoped, tag = 'input window, operand 5, single buffered']
    #allocation12 [shape = 's32[1]{0}', space=sflag, size = 0x4, scoped, tag = 'scoped memory for tpu_custom_call.1']
    #allocation13 [shape = 'u8[1024]{0}', space=vmem, size = 0x400, scoped, tag = 'input window, operand 6, single buffered']
    #allocation14 [shape = 'u8[65536]{0}', space=vmem, size = 0x10000, scoped, tag = 'input window, operand 7, single buffered']
    #allocation15 [shape = 's32[1]{0}', space=sflag, size = 0x4, scoped, tag = 'scoped memory for tpu_custom_call.1']
    #allocation16 [shape = 'u8[512]{0}', space=vmem, size = 0x400, scoped, tag = 'input window, operand 8, single buffered']
    #allocation17 [shape = 'u8[8192]{0}', space=vmem, size = 0x2000, scoped, tag = 'output window, operand 0, single buffered']
    %14 = vsyncpa [#allocation3], 0
    %15 = vsyncpa [#allocation6], 0
    %16 = vsyncpa [#allocation9], 0
    %17 = vsyncpa [#allocation12], 0
    %18 = vsyncpa [#allocation15], 0
    %19 = vsyncpa [#allocation4], 0
    // Predicated region
    $region2: #{tpu_custom_call.1} parent=1 // pred_check
      _
    $region3: #{tpu_custom_call.1} parent=1 // pred_check_branch
      %21 = sbr.rel (0) target = $region5
    $region4: #{tpu_custom_call.1} parent=1 // pred_region
      %s23 = ssub.s32 1408, 1408
      %24 = vsyncadd [#allocation3], %s23
      %s25 = sshll.u32 [#allocation2], 4
      %s26 = int_to_ptr.vmem [resolvable:$true] %s25
      %31 = dma.hbm_to_vmem [thread:$0]  %s0, 1408, %s26, [#allocation3], 704, 704, 44
    $region5: #{tpu_custom_call.1} parent=1 // pred_fallthru
      _
    // Predicated region
    $region6: #{tpu_custom_call.1} parent=1 // pred_check
      _
    $region7: #{tpu_custom_call.1} parent=1 // pred_check_branch
      %33 = sbr.rel (0) target = $region9
    $region8: #{tpu_custom_call.1} parent=1 // pred_region
      %s35 = ssub.s32 90112, 90112
      %36 = vsyncadd [#allocation6], %s35
      %s37 = sshll.u32 [#allocation5], 4
      %s38 = int_to_ptr.vmem [resolvable:$true] %s37
      %43 = dma.hbm_to_vmem [thread:$0]  %s1, 90112, %s38, [#allocation6], 512, 512, 32
    $region9: #{tpu_custom_call.1} parent=1 // pred_fallthru
      _
    // Predicated region
    $region10: #{tpu_custom_call.1} parent=1 // pred_check
      _
    $region11: #{tpu_custom_call.1} parent=1 // pred_check_branch
      %45 = sbr.rel (0) target = $region13
    $region12: #{tpu_custom_call.1} parent=1 // pred_region
      %s47 = ssub.s32 128, 128
      %48 = vsyncadd [#allocation6], %s47
      %s50 = sshll.u32 [#allocation7], 4
      %s51 = int_to_ptr.vmem [resolvable:$true] %s50
      %53 = dma.hbm_to_vmem [thread:$0]  %s2, 128, %s51, [#allocation6]
    $region13: #{tpu_custom_call.1} parent=1 // pred_fallthru
      _
    // Predicated region
    $region14: #{tpu_custom_call.1} parent=1 // pred_check
      _
    $region15: #{tpu_custom_call.1} parent=1 // pred_check_branch
      %55 = sbr.rel (0) target = $region17
    $region16: #{tpu_custom_call.1} parent=1 // pred_region
      %s57 = ssub.s32 32768, 32768
      %58 = vsyncadd [#allocation9], %s57
      %s59 = sshll.u32 [#allocation8], 4
      %s60 = int_to_ptr.vmem [resolvable:$true] %s59
      %65 = dma.hbm_to_vmem [thread:$0]  %s3, 32768, %s60, [#allocation9], 256, 256, 16
    $region17: #{tpu_custom_call.1} parent=1 // pred_fallthru
      _
    // Predicated region
    $region18: #{tpu_custom_call.1} parent=1 // pred_check
      _
    $region19: #{tpu_custom_call.1} parent=1 // pred_check_branch
      %67 = sbr.rel (0) target = $region21
    $region20: #{tpu_custom_call.1} parent=1 // pred_region
      %s69 = ssub.s32 64, 64
      %70 = vsyncadd [#allocation9], %s69
      %s72 = sshll.u32 [#allocation10], 4
      %s73 = int_to_ptr.vmem [resolvable:$true] %s72
      %75 = dma.hbm_to_vmem [thread:$0]  %s4, 64, %s73, [#allocation9]
    $region21: #{tpu_custom_call.1} parent=1 // pred_fallthru
      _
    // Predicated region
    $region22: #{tpu_custom_call.1} parent=1 // pred_check
      _
    $region23: #{tpu_custom_call.1} parent=1 // pred_check_branch
      %77 = sbr.rel (0) target = $region25
    $region24: #{tpu_custom_call.1} parent=1 // pred_region
      %s79 = ssub.s32 8192, 8192
      %80 = vsyncadd [#allocation12], %s79
      %s81 = sshll.u32 [#allocation11], 4
      %s82 = int_to_ptr.vmem [resolvable:$true] %s81
      %87 = dma.hbm_to_vmem [thread:$0]  %s5, 8192, %s82, [#allocation12], 128, 128, 8
    $region25: #{tpu_custom_call.1} parent=1 // pred_fallthru
      _
    // Predicated region
    $region26: #{tpu_custom_call.1} parent=1 // pred_check
      _
    $region27: #{tpu_custom_call.1} parent=1 // pred_check_branch
      %89 = sbr.rel (0) target = $region29
    $region28: #{tpu_custom_call.1} parent=1 // pred_region
      %s91 = ssub.s32 32, 32
      %92 = vsyncadd [#allocation12], %s91
      %s94 = sshll.u32 [#allocation13], 4
      %s95 = int_to_ptr.vmem [resolvable:$true] %s94
      %97 = dma.hbm_to_vmem [thread:$0]  %s6, 32, %s95, [#allocation12]
    $region29: #{tpu_custom_call.1} parent=1 // pred_fallthru
      _
    // Predicated region
    $region30: #{tpu_custom_call.1} parent=1 // pred_check
      _
    $region31: #{tpu_custom_call.1} parent=1 // pred_check_branch
      %99 = sbr.rel (0) target = $region33
    $region32: #{tpu_custom_call.1} parent=1 // pred_region
      %s101 = ssub.s32 2048, 2048
      %102 = vsyncadd [#allocation15], %s101
      %s103 = sshll.u32 [#allocation14], 4
      %s104 = int_to_ptr.vmem [resolvable:$true] %s103
      %109 = dma.hbm_to_vmem [thread:$0]  %s7, 2048, %s104, [#allocation15], 64, 64, 4
    $region33: #{tpu_custom_call.1} parent=1 // pred_fallthru
      _
    // Predicated region
    $region34: #{tpu_custom_call.1} parent=1 // pred_check
      _
    $region35: #{tpu_custom_call.1} parent=1 // pred_check_branch
      %111 = sbr.rel (0) target = $region37
    $region36: #{tpu_custom_call.1} parent=1 // pred_region
      %s113 = ssub.s32 16, 16
      %114 = vsyncadd [#allocation15], %s113
      %s116 = sshll.u32 [#allocation16], 4
      %s117 = int_to_ptr.vmem [resolvable:$true] %s116
      %119 = dma.hbm_to_vmem [thread:$0]  %s8, 16, %s117, [#allocation15]
    $region37: #{tpu_custom_call.1} parent=1 // pred_fallthru
      _
    // Predicated region
    $region38: #{tpu_custom_call.1} parent=1 // pred_check
      _
    $region39: #{tpu_custom_call.1} parent=1 // pred_check_branch
      %121 = sbr.rel (0) target = $region41
    $region40: #{tpu_custom_call.1} parent=1 // pred_region
      %122 = dma.done [#allocation3], 1408
    $region41: #{tpu_custom_call.1} parent=1 // pred_fallthru
      _
    // Predicated region
    $region42: #{tpu_custom_call.1} parent=1 // pred_check
      _
    $region43: #{tpu_custom_call.1} parent=1 // pred_check_branch
      %124 = sbr.rel (0) target = $region45
    $region44: #{tpu_custom_call.1} parent=1 // pred_region
      %125 = dma.done [#allocation6], 90112
    $region45: #{tpu_custom_call.1} parent=1 // pred_fallthru
      _
    // Predicated region
    $region46: #{tpu_custom_call.1} parent=1 // pred_check
      _
    $region47: #{tpu_custom_call.1} parent=1 // pred_check_branch
      %127 = sbr.rel (0) target = $region49
    $region48: #{tpu_custom_call.1} parent=1 // pred_region
      %128 = dma.done [#allocation6], 128
    $region49: #{tpu_custom_call.1} parent=1 // pred_fallthru
      _
    // Predicated region
    $region50: #{tpu_custom_call.1} parent=1 // pred_check
      _
    $region51: #{tpu_custom_call.1} parent=1 // pred_check_branch
      %130 = sbr.rel (0) target = $region53
    $region52: #{tpu_custom_call.1} parent=1 // pred_region
      %131 = dma.done [#allocation9], 32768
    $region53: #{tpu_custom_call.1} parent=1 // pred_fallthru
      _
    // Predicated region
    $region54: #{tpu_custom_call.1} parent=1 // pred_check
      _
    $region55: #{tpu_custom_call.1} parent=1 // pred_check_branch
      %133 = sbr.rel (0) target = $region57
    $region56: #{tpu_custom_call.1} parent=1 // pred_region
      %134 = dma.done [#allocation9], 64
    $region57: #{tpu_custom_call.1} parent=1 // pred_fallthru
      _
    // Predicated region
    $region58: #{tpu_custom_call.1} parent=1 // pred_check
      _
    $region59: #{tpu_custom_call.1} parent=1 // pred_check_branch
      %136 = sbr.rel (0) target = $region61
    $region60: #{tpu_custom_call.1} parent=1 // pred_region
      %137 = dma.done [#allocation12], 8192
    $region61: #{tpu_custom_call.1} parent=1 // pred_fallthru
      _
    // Predicated region
    $region62: #{tpu_custom_call.1} parent=1 // pred_check
      _
    $region63: #{tpu_custom_call.1} parent=1 // pred_check_branch
      %139 = sbr.rel (0) target = $region65
    $region64: #{tpu_custom_call.1} parent=1 // pred_region
      %140 = dma.done [#allocation12], 32
    $region65: #{tpu_custom_call.1} parent=1 // pred_fallthru
      _
    // Predicated region
    $region66: #{tpu_custom_call.1} parent=1 // pred_check
      _
    $region67: #{tpu_custom_call.1} parent=1 // pred_check_branch
      %142 = sbr.rel (0) target = $region69
    $region68: #{tpu_custom_call.1} parent=1 // pred_region
      %143 = dma.done [#allocation15], 2048
    $region69: #{tpu_custom_call.1} parent=1 // pred_fallthru
      _
    // Predicated region
    $region70: #{tpu_custom_call.1} parent=1 // pred_check
      _
    $region71: #{tpu_custom_call.1} parent=1 // pred_check_branch
      %145 = sbr.rel (0) target = $region73
    $region72: #{tpu_custom_call.1} parent=1 // pred_region
      %146 = dma.done [#allocation15], 16
    $region73: #{tpu_custom_call.1} parent=1 // pred_fallthru
      _
    %v148 = vld [vmem:[#allocation2] sm:$0xff]
    %v149 = vld [vmem:[#allocation2 + $0x8] sm:$0xff]
    %v150 = vld [vmem:[#allocation2 + $0x10] sm:$0xff]
    %v151 = vld [vmem:[#allocation2 + $0x18] sm:$0xff]
    %v152 = vld [vmem:[#allocation2 + $0x20] sm:$0xff]
    %v153 = vld [vmem:[#allocation2 + $0x28] sm:$0xf]
    %v154 = vld [vmem:[#allocation2 + $0x2c] sm:$0xff]
    %v155 = vld [vmem:[#allocation2 + $0x34] sm:$0xff]
    %v156 = vld [vmem:[#allocation2 + $0x3c] sm:$0xff]
    %v157 = vld [vmem:[#allocation2 + $0x44] sm:$0xff]
    %v158 = vld [vmem:[#allocation2 + $0x4c] sm:$0xff]
    %v159 = vld [vmem:[#allocation2 + $0x54] sm:$0xf]
    %v160 = vld [vmem:[#allocation5] sm:$0xff]
    %v161 = vld [vmem:[#allocation5 + $0x8] sm:$0xff]
    %v162 = vld [vmem:[#allocation5 + $0x10] sm:$0xff]
    %v163 = vld [vmem:[#allocation5 + $0x18] sm:$0xff]
    %v164 = vld [vmem:[#allocation5 + $0x20] sm:$0xff]
    %v165 = vld [vmem:[#allocation5 + $0x28] sm:$0xff]
    %v166 = vld [vmem:[#allocation5 + $0x30] sm:$0xff]
    %v167 = vld [vmem:[#allocation5 + $0x38] sm:$0xff]
    %v168 = vld [vmem:[#allocation5 + $0x40] sm:$0xff]
    %v169 = vld [vmem:[#allocation5 + $0x48] sm:$0xff]
    %v170 = vld [vmem:[#allocation5 + $0x50] sm:$0xff]
    %v171 = vld [vmem:[#allocation5 + $0x58] sm:$0xff]
    %v172 = vld [vmem:[#allocation5 + $0x60] sm:$0xff]
    %v173 = vld [vmem:[#allocation5 + $0x68] sm:$0xff]
    %v174 = vld [vmem:[#allocation5 + $0x70] sm:$0xff]
    %v175 = vld [vmem:[#allocation5 + $0x78] sm:$0xff]
    %v176 = vld [vmem:[#allocation5 + $0x80] sm:$0xff]
    %v177 = vld [vmem:[#allocation5 + $0x88] sm:$0xff]
    %v178 = vld [vmem:[#allocation5 + $0x90] sm:$0xff]
    %v179 = vld [vmem:[#allocation5 + $0x98] sm:$0xff]
    %v180 = vld [vmem:[#allocation5 + $0xa0] sm:$0xff]
    %v181 = vld [vmem:[#allocation5 + $0xa8] sm:$0xff]
    %v182 = vld [vmem:[#allocation5 + $0xb0] sm:$0xff]
    %v183 = vld [vmem:[#allocation5 + $0xb8] sm:$0xff]
    %v184 = vld [vmem:[#allocation5 + $0xc0] sm:$0xff]
    %v185 = vld [vmem:[#allocation5 + $0xc8] sm:$0xff]
    %v186 = vld [vmem:[#allocation5 + $0xd0] sm:$0xff]
    %v187 = vld [vmem:[#allocation5 + $0xd8] sm:$0xff]
    %v188 = vld [vmem:[#allocation5 + $0xe0] sm:$0xff]
    %v189 = vld [vmem:[#allocation5 + $0xe8] sm:$0xff]
    %v190 = vld [vmem:[#allocation5 + $0xf0] sm:$0xff]
    %v191 = vld [vmem:[#allocation5 + $0xf8] sm:$0xff]
    %v192 = vld [vmem:[#allocation5 + $0x100] sm:$0xff]
    %v193 = vld [vmem:[#allocation5 + $0x108] sm:$0xff]
    %v194 = vld [vmem:[#allocation5 + $0x110] sm:$0xff]
    %v195 = vld [vmem:[#allocation5 + $0x118] sm:$0xff]
    %v196 = vld [vmem:[#allocation5 + $0x120] sm:$0xff]
    %v197 = vld [vmem:[#allocation5 + $0x128] sm:$0xff]
    %v198 = vld [vmem:[#allocation5 + $0x130] sm:$0xff]
    %v199 = vld [vmem:[#allocation5 + $0x138] sm:$0xff]
    %v200 = vld [vmem:[#allocation5 + $0x140] sm:$0xff]
    %v201 = vld [vmem:[#allocation5 + $0x148] sm:$0xff]
    %v202 = vld [vmem:[#allocation5 + $0x150] sm:$0xff]
    %v203 = vld [vmem:[#allocation5 + $0x158] sm:$0xff]
    %v204 = vld [vmem:[#allocation5 + $0x160] sm:$0xff]
    %v205 = vld [vmem:[#allocation5 + $0x168] sm:$0xff]
    %v206 = vld [vmem:[#allocation5 + $0x170] sm:$0xff]
    %v207 = vld [vmem:[#allocation5 + $0x178] sm:$0xff]
    %v208 = vld [vmem:[#allocation5 + $0x180] sm:$0xff]
    %v209 = vld [vmem:[#allocation5 + $0x188] sm:$0xff]
    %v210 = vld [vmem:[#allocation5 + $0x190] sm:$0xff]
    %v211 = vld [vmem:[#allocation5 + $0x198] sm:$0xff]
    %v212 = vld [vmem:[#allocation5 + $0x1a0] sm:$0xff]
    %v213 = vld [vmem:[#allocation5 + $0x1a8] sm:$0xff]
    %v214 = vld [vmem:[#allocation5 + $0x1b0] sm:$0xff]
    %v215 = vld [vmem:[#allocation5 + $0x1b8] sm:$0xff]
    %v216 = vld [vmem:[#allocation5 + $0x1c0] sm:$0xff]
    %v217 = vld [vmem:[#allocation5 + $0x1c8] sm:$0xff]
    %v218 = vld [vmem:[#allocation5 + $0x1d0] sm:$0xff]
    %v219 = vld [vmem:[#allocation5 + $0x1d8] sm:$0xff]
    %v220 = vld [vmem:[#allocation5 + $0x1e0] sm:$0xff]
    %v221 = vld [vmem:[#allocation5 + $0x1e8] sm:$0xff]
    %v222 = vld [vmem:[#allocation5 + $0x1f0] sm:$0xff]
    %v223 = vld [vmem:[#allocation5 + $0x1f8] sm:$0xff]
    %v224 = vld [vmem:[#allocation5 + $0x200] sm:$0xff]
    %v225 = vld [vmem:[#allocation5 + $0x208] sm:$0xff]
    %v226 = vld [vmem:[#allocation5 + $0x210] sm:$0xff]
    %v227 = vld [vmem:[#allocation5 + $0x218] sm:$0xff]
    %v228 = vld [vmem:[#allocation5 + $0x220] sm:$0xff]
    %v229 = vld [vmem:[#allocation5 + $0x228] sm:$0xff]
    %v230 = vld [vmem:[#allocation5 + $0x230] sm:$0xff]
    %v231 = vld [vmem:[#allocation5 + $0x238] sm:$0xff]
    %v232 = vld [vmem:[#allocation5 + $0x240] sm:$0xff]
    %v233 = vld [vmem:[#allocation5 + $0x248] sm:$0xff]
    %v234 = vld [vmem:[#allocation5 + $0x250] sm:$0xff]
    %v235 = vld [vmem:[#allocation5 + $0x258] sm:$0xff]
    %v236 = vld [vmem:[#allocation5 + $0x260] sm:$0xff]
    %v237 = vld [vmem:[#allocation5 + $0x268] sm:$0xff]
    %v238 = vld [vmem:[#allocation5 + $0x270] sm:$0xff]
    %v239 = vld [vmem:[#allocation5 + $0x278] sm:$0xff]
    %v240 = vld [vmem:[#allocation5 + $0x280] sm:$0xff]
    %v241 = vld [vmem:[#allocation5 + $0x288] sm:$0xff]
    %v242 = vld [vmem:[#allocation5 + $0x290] sm:$0xff]
    %v243 = vld [vmem:[#allocation5 + $0x298] sm:$0xff]
    %v244 = vld [vmem:[#allocation5 + $0x2a0] sm:$0xff]
    %v245 = vld [vmem:[#allocation5 + $0x2a8] sm:$0xff]
    %v246 = vld [vmem:[#allocation5 + $0x2b0] sm:$0xff]
    %v247 = vld [vmem:[#allocation5 + $0x2b8] sm:$0xff]
    %v248 = vld [vmem:[#allocation5 + $0x2c0] sm:$0xff]
    %v249 = vld [vmem:[#allocation5 + $0x2c8] sm:$0xff]
    %v250 = vld [vmem:[#allocation5 + $0x2d0] sm:$0xff]
    %v251 = vld [vmem:[#allocation5 + $0x2d8] sm:$0xff]
    %v252 = vld [vmem:[#allocation5 + $0x2e0] sm:$0xff]
    %v253 = vld [vmem:[#allocation5 + $0x2e8] sm:$0xff]
    %v254 = vld [vmem:[#allocation5 + $0x2f0] sm:$0xff]
    %v255 = vld [vmem:[#allocation5 + $0x2f8] sm:$0xff]
    %v256 = vld [vmem:[#allocation5 + $0x300] sm:$0xff]
    %v257 = vld [vmem:[#allocation5 + $0x308] sm:$0xff]
    %v258 = vld [vmem:[#allocation5 + $0x310] sm:$0xff]
    %v259 = vld [vmem:[#allocation5 + $0x318] sm:$0xff]
    %v260 = vld [vmem:[#allocation5 + $0x320] sm:$0xff]
    %v261 = vld [vmem:[#allocation5 + $0x328] sm:$0xff]
    %v262 = vld [vmem:[#allocation5 + $0x330] sm:$0xff]
    %v263 = vld [vmem:[#allocation5 + $0x338] sm:$0xff]
    %v264 = vld [vmem:[#allocation5 + $0x340] sm:$0xff]
    %v265 = vld [vmem:[#allocation5 + $0x348] sm:$0xff]
    %v266 = vld [vmem:[#allocation5 + $0x350] sm:$0xff]
    %v267 = vld [vmem:[#allocation5 + $0x358] sm:$0xff]
    %v268 = vld [vmem:[#allocation5 + $0x360] sm:$0xff]
    %v269 = vld [vmem:[#allocation5 + $0x368] sm:$0xff]
    %v270 = vld [vmem:[#allocation5 + $0x370] sm:$0xff]
    %v271 = vld [vmem:[#allocation5 + $0x378] sm:$0xff]
    %v272 = vld [vmem:[#allocation5 + $0x380] sm:$0xff]
    %v273 = vld [vmem:[#allocation5 + $0x388] sm:$0xff]
    %v274 = vld [vmem:[#allocation5 + $0x390] sm:$0xff]
    %v275 = vld [vmem:[#allocation5 + $0x398] sm:$0xff]
    %v276 = vld [vmem:[#allocation5 + $0x3a0] sm:$0xff]
    %v277 = vld [vmem:[#allocation5 + $0x3a8] sm:$0xff]
    %v278 = vld [vmem:[#allocation5 + $0x3b0] sm:$0xff]
    %v279 = vld [vmem:[#allocation5 + $0x3b8] sm:$0xff]
    %v280 = vld [vmem:[#allocation5 + $0x3c0] sm:$0xff]
    %v281 = vld [vmem:[#allocation5 + $0x3c8] sm:$0xff]
    %v282 = vld [vmem:[#allocation5 + $0x3d0] sm:$0xff]
    %v283 = vld [vmem:[#allocation5 + $0x3d8] sm:$0xff]
    %v284 = vld [vmem:[#allocation5 + $0x3e0] sm:$0xff]
    %v285 = vld [vmem:[#allocation5 + $0x3e8] sm:$0xff]
    %v286 = vld [vmem:[#allocation5 + $0x3f0] sm:$0xff]
    %v287 = vld [vmem:[#allocation5 + $0x3f8] sm:$0xff]
    %v288 = vld [vmem:[#allocation5 + $0x400] sm:$0xff]
    %v289 = vld [vmem:[#allocation5 + $0x408] sm:$0xff]
    %v290 = vld [vmem:[#allocation5 + $0x410] sm:$0xff]
    %v291 = vld [vmem:[#allocation5 + $0x418] sm:$0xff]
    %v292 = vld [vmem:[#allocation5 + $0x420] sm:$0xff]
    %v293 = vld [vmem:[#allocation5 + $0x428] sm:$0xff]
    %v294 = vld [vmem:[#allocation5 + $0x430] sm:$0xff]
    %v295 = vld [vmem:[#allocation5 + $0x438] sm:$0xff]
    %v296 = vld [vmem:[#allocation5 + $0x440] sm:$0xff]
    %v297 = vld [vmem:[#allocation5 + $0x448] sm:$0xff]
    %v298 = vld [vmem:[#allocation5 + $0x450] sm:$0xff]
    %v299 = vld [vmem:[#allocation5 + $0x458] sm:$0xff]
    %v300 = vld [vmem:[#allocation5 + $0x460] sm:$0xff]
    %v301 = vld [vmem:[#allocation5 + $0x468] sm:$0xff]
    %v302 = vld [vmem:[#allocation5 + $0x470] sm:$0xff]
    %v303 = vld [vmem:[#allocation5 + $0x478] sm:$0xff]
    %v304 = vld [vmem:[#allocation5 + $0x480] sm:$0xff]
    %v305 = vld [vmem:[#allocation5 + $0x488] sm:$0xff]
    %v306 = vld [vmem:[#allocation5 + $0x490] sm:$0xff]
    %v307 = vld [vmem:[#allocation5 + $0x498] sm:$0xff]
    %v308 = vld [vmem:[#allocation5 + $0x4a0] sm:$0xff]
    %v309 = vld [vmem:[#allocation5 + $0x4a8] sm:$0xff]
    %v310 = vld [vmem:[#allocation5 + $0x4b0] sm:$0xff]
    %v311 = vld [vmem:[#allocation5 + $0x4b8] sm:$0xff]
    %v312 = vld [vmem:[#allocation5 + $0x4c0] sm:$0xff]
    %v313 = vld [vmem:[#allocation5 + $0x4c8] sm:$0xff]
    %v314 = vld [vmem:[#allocation5 + $0x4d0] sm:$0xff]
    %v315 = vld [vmem:[#allocation5 + $0x4d8] sm:$0xff]
    %v316 = vld [vmem:[#allocation5 + $0x4e0] sm:$0xff]
    %v317 = vld [vmem:[#allocation5 + $0x4e8] sm:$0xff]
    %v318 = vld [vmem:[#allocation5 + $0x4f0] sm:$0xff]
    %v319 = vld [vmem:[#allocation5 + $0x4f8] sm:$0xff]
    %v320 = vld [vmem:[#allocation5 + $0x500] sm:$0xff]
    %v321 = vld [vmem:[#allocation5 + $0x508] sm:$0xff]
    %v322 = vld [vmem:[#allocation5 + $0x510] sm:$0xff]
    %v323 = vld [vmem:[#allocation5 + $0x518] sm:$0xff]
    %v324 = vld [vmem:[#allocation5 + $0x520] sm:$0xff]
    %v325 = vld [vmem:[#allocation5 + $0x528] sm:$0xff]
    %v326 = vld [vmem:[#allocation5 + $0x530] sm:$0xff]
    %v327 = vld [vmem:[#allocation5 + $0x538] sm:$0xff]
    %v328 = vld [vmem:[#allocation5 + $0x540] sm:$0xff]
    %v329 = vld [vmem:[#allocation5 + $0x548] sm:$0xff]
    %v330 = vld [vmem:[#allocation5 + $0x550] sm:$0xff]
    %v331 = vld [vmem:[#allocation5 + $0x558] sm:$0xff]
    %v332 = vld [vmem:[#allocation5 + $0x560] sm:$0xff]
    %v333 = vld [vmem:[#allocation5 + $0x568] sm:$0xff]
    %v334 = vld [vmem:[#allocation5 + $0x570] sm:$0xff]
    %v335 = vld [vmem:[#allocation5 + $0x578] sm:$0xff]
    %v336 = vld [vmem:[#allocation5 + $0x580] sm:$0xff]
    %v337 = vld [vmem:[#allocation5 + $0x588] sm:$0xff]
    %v338 = vld [vmem:[#allocation5 + $0x590] sm:$0xff]
    %v339 = vld [vmem:[#allocation5 + $0x598] sm:$0xff]
    %v340 = vld [vmem:[#allocation5 + $0x5a0] sm:$0xff]
    %v341 = vld [vmem:[#allocation5 + $0x5a8] sm:$0xff]
    %v342 = vld [vmem:[#allocation5 + $0x5b0] sm:$0xff]
    %v343 = vld [vmem:[#allocation5 + $0x5b8] sm:$0xff]
    %v344 = vld [vmem:[#allocation5 + $0x5c0] sm:$0xff]
    %v345 = vld [vmem:[#allocation5 + $0x5c8] sm:$0xff]
    %v346 = vld [vmem:[#allocation5 + $0x5d0] sm:$0xff]
    %v347 = vld [vmem:[#allocation5 + $0x5d8] sm:$0xff]
    %v348 = vld [vmem:[#allocation5 + $0x5e0] sm:$0xff]
    %v349 = vld [vmem:[#allocation5 + $0x5e8] sm:$0xff]
    %v350 = vld [vmem:[#allocation5 + $0x5f0] sm:$0xff]
    %v351 = vld [vmem:[#allocation5 + $0x5f8] sm:$0xff]
    %v352 = vld [vmem:[#allocation5 + $0x600] sm:$0xff]
    %v353 = vld [vmem:[#allocation5 + $0x608] sm:$0xff]
    %v354 = vld [vmem:[#allocation5 + $0x610] sm:$0xff]
    %v355 = vld [vmem:[#allocation5 + $0x618] sm:$0xff]
    %v356 = vld [vmem:[#allocation5 + $0x620] sm:$0xff]
    %v357 = vld [vmem:[#allocation5 + $0x628] sm:$0xff]
    %v358 = vld [vmem:[#allocation5 + $0x630] sm:$0xff]
    %v359 = vld [vmem:[#allocation5 + $0x638] sm:$0xff]
    %v360 = vld [vmem:[#allocation5 + $0x640] sm:$0xff]
    %v361 = vld [vmem:[#allocation5 + $0x648] sm:$0xff]
    %v362 = vld [vmem:[#allocation5 + $0x650] sm:$0xff]
    %v363 = vld [vmem:[#allocation5 + $0x658] sm:$0xff]
    %v364 = vld [vmem:[#allocation5 + $0x660] sm:$0xff]
    %v365 = vld [vmem:[#allocation5 + $0x668] sm:$0xff]
    %v366 = vld [vmem:[#allocation5 + $0x670] sm:$0xff]
    %v367 = vld [vmem:[#allocation5 + $0x678] sm:$0xff]
    %v368 = vld [vmem:[#allocation5 + $0x680] sm:$0xff]
    %v369 = vld [vmem:[#allocation5 + $0x688] sm:$0xff]
    %v370 = vld [vmem:[#allocation5 + $0x690] sm:$0xff]
    %v371 = vld [vmem:[#allocation5 + $0x698] sm:$0xff]
    %v372 = vld [vmem:[#allocation5 + $0x6a0] sm:$0xff]
    %v373 = vld [vmem:[#allocation5 + $0x6a8] sm:$0xff]
    %v374 = vld [vmem:[#allocation5 + $0x6b0] sm:$0xff]
    %v375 = vld [vmem:[#allocation5 + $0x6b8] sm:$0xff]
    %v376 = vld [vmem:[#allocation5 + $0x6c0] sm:$0xff]
    %v377 = vld [vmem:[#allocation5 + $0x6c8] sm:$0xff]
    %v378 = vld [vmem:[#allocation5 + $0x6d0] sm:$0xff]
    %v379 = vld [vmem:[#allocation5 + $0x6d8] sm:$0xff]
    %v380 = vld [vmem:[#allocation5 + $0x6e0] sm:$0xff]
    %v381 = vld [vmem:[#allocation5 + $0x6e8] sm:$0xff]
    %v382 = vld [vmem:[#allocation5 + $0x6f0] sm:$0xff]
    %v383 = vld [vmem:[#allocation5 + $0x6f8] sm:$0xff]
    %v384 = vld [vmem:[#allocation5 + $0x700] sm:$0xff]
    %v385 = vld [vmem:[#allocation5 + $0x708] sm:$0xff]
    %v386 = vld [vmem:[#allocation5 + $0x710] sm:$0xff]
    %v387 = vld [vmem:[#allocation5 + $0x718] sm:$0xff]
    %v388 = vld [vmem:[#allocation5 + $0x720] sm:$0xff]
    %v389 = vld [vmem:[#allocation5 + $0x728] sm:$0xff]
    %v390 = vld [vmem:[#allocation5 + $0x730] sm:$0xff]
    %v391 = vld [vmem:[#allocation5 + $0x738] sm:$0xff]
    %v392 = vld [vmem:[#allocation5 + $0x740] sm:$0xff]
    %v393 = vld [vmem:[#allocation5 + $0x748] sm:$0xff]
    %v394 = vld [vmem:[#allocation5 + $0x750] sm:$0xff]
    %v395 = vld [vmem:[#allocation5 + $0x758] sm:$0xff]
    %v396 = vld [vmem:[#allocation5 + $0x760] sm:$0xff]
    %v397 = vld [vmem:[#allocation5 + $0x768] sm:$0xff]
    %v398 = vld [vmem:[#allocation5 + $0x770] sm:$0xff]
    %v399 = vld [vmem:[#allocation5 + $0x778] sm:$0xff]
    %v400 = vld [vmem:[#allocation5 + $0x780] sm:$0xff]
    %v401 = vld [vmem:[#allocation5 + $0x788] sm:$0xff]
    %v402 = vld [vmem:[#allocation5 + $0x790] sm:$0xff]
    %v403 = vld [vmem:[#allocation5 + $0x798] sm:$0xff]
    %v404 = vld [vmem:[#allocation5 + $0x7a0] sm:$0xff]
    %v405 = vld [vmem:[#allocation5 + $0x7a8] sm:$0xff]
    %v406 = vld [vmem:[#allocation5 + $0x7b0] sm:$0xff]
    %v407 = vld [vmem:[#allocation5 + $0x7b8] sm:$0xff]
    %v408 = vld [vmem:[#allocation5 + $0x7c0] sm:$0xff]
    %v409 = vld [vmem:[#allocation5 + $0x7c8] sm:$0xff]
    %v410 = vld [vmem:[#allocation5 + $0x7d0] sm:$0xff]
    %v411 = vld [vmem:[#allocation5 + $0x7d8] sm:$0xff]
    %v412 = vld [vmem:[#allocation5 + $0x7e0] sm:$0xff]
    %v413 = vld [vmem:[#allocation5 + $0x7e8] sm:$0xff]
    %v414 = vld [vmem:[#allocation5 + $0x7f0] sm:$0xff]
    %v415 = vld [vmem:[#allocation5 + $0x7f8] sm:$0xff]
    %v416 = vld [vmem:[#allocation5 + $0x800] sm:$0xff]
    %v417 = vld [vmem:[#allocation5 + $0x808] sm:$0xff]
    %v418 = vld [vmem:[#allocation5 + $0x810] sm:$0xff]
    %v419 = vld [vmem:[#allocation5 + $0x818] sm:$0xff]
    %v420 = vld [vmem:[#allocation5 + $0x820] sm:$0xff]
    %v421 = vld [vmem:[#allocation5 + $0x828] sm:$0xff]
    %v422 = vld [vmem:[#allocation5 + $0x830] sm:$0xff]
    %v423 = vld [vmem:[#allocation5 + $0x838] sm:$0xff]
    %v424 = vld [vmem:[#allocation5 + $0x840] sm:$0xff]
    %v425 = vld [vmem:[#allocation5 + $0x848] sm:$0xff]
    %v426 = vld [vmem:[#allocation5 + $0x850] sm:$0xff]
    %v427 = vld [vmem:[#allocation5 + $0x858] sm:$0xff]
    %v428 = vld [vmem:[#allocation5 + $0x860] sm:$0xff]
    %v429 = vld [vmem:[#allocation5 + $0x868] sm:$0xff]
    %v430 = vld [vmem:[#allocation5 + $0x870] sm:$0xff]
    %v431 = vld [vmem:[#allocation5 + $0x878] sm:$0xff]
    %v432 = vld [vmem:[#allocation5 + $0x880] sm:$0xff]
    %v433 = vld [vmem:[#allocation5 + $0x888] sm:$0xff]
    %v434 = vld [vmem:[#allocation5 + $0x890] sm:$0xff]
    %v435 = vld [vmem:[#allocation5 + $0x898] sm:$0xff]
    %v436 = vld [vmem:[#allocation5 + $0x8a0] sm:$0xff]
    %v437 = vld [vmem:[#allocation5 + $0x8a8] sm:$0xff]
    %v438 = vld [vmem:[#allocation5 + $0x8b0] sm:$0xff]
    %v439 = vld [vmem:[#allocation5 + $0x8b8] sm:$0xff]
    %v440 = vld [vmem:[#allocation5 + $0x8c0] sm:$0xff]
    %v441 = vld [vmem:[#allocation5 + $0x8c8] sm:$0xff]
    %v442 = vld [vmem:[#allocation5 + $0x8d0] sm:$0xff]
    %v443 = vld [vmem:[#allocation5 + $0x8d8] sm:$0xff]
    %v444 = vld [vmem:[#allocation5 + $0x8e0] sm:$0xff]
    %v445 = vld [vmem:[#allocation5 + $0x8e8] sm:$0xff]
    %v446 = vld [vmem:[#allocation5 + $0x8f0] sm:$0xff]
    %v447 = vld [vmem:[#allocation5 + $0x8f8] sm:$0xff]
    %v448 = vld [vmem:[#allocation5 + $0x900] sm:$0xff]
    %v449 = vld [vmem:[#allocation5 + $0x908] sm:$0xff]
    %v450 = vld [vmem:[#allocation5 + $0x910] sm:$0xff]
    %v451 = vld [vmem:[#allocation5 + $0x918] sm:$0xff]
    %v452 = vld [vmem:[#allocation5 + $0x920] sm:$0xff]
    %v453 = vld [vmem:[#allocation5 + $0x928] sm:$0xff]
    %v454 = vld [vmem:[#allocation5 + $0x930] sm:$0xff]
    %v455 = vld [vmem:[#allocation5 + $0x938] sm:$0xff]
    %v456 = vld [vmem:[#allocation5 + $0x940] sm:$0xff]
    %v457 = vld [vmem:[#allocation5 + $0x948] sm:$0xff]
    %v458 = vld [vmem:[#allocation5 + $0x950] sm:$0xff]
    %v459 = vld [vmem:[#allocation5 + $0x958] sm:$0xff]
    %v460 = vld [vmem:[#allocation5 + $0x960] sm:$0xff]
    %v461 = vld [vmem:[#allocation5 + $0x968] sm:$0xff]
    %v462 = vld [vmem:[#allocation5 + $0x970] sm:$0xff]
    %v463 = vld [vmem:[#allocation5 + $0x978] sm:$0xff]
    %v464 = vld [vmem:[#allocation5 + $0x980] sm:$0xff]
    %v465 = vld [vmem:[#allocation5 + $0x988] sm:$0xff]
    %v466 = vld [vmem:[#allocation5 + $0x990] sm:$0xff]
    %v467 = vld [vmem:[#allocation5 + $0x998] sm:$0xff]
    %v468 = vld [vmem:[#allocation5 + $0x9a0] sm:$0xff]
    %v469 = vld [vmem:[#allocation5 + $0x9a8] sm:$0xff]
    %v470 = vld [vmem:[#allocation5 + $0x9b0] sm:$0xff]
    %v471 = vld [vmem:[#allocation5 + $0x9b8] sm:$0xff]
    %v472 = vld [vmem:[#allocation5 + $0x9c0] sm:$0xff]
    %v473 = vld [vmem:[#allocation5 + $0x9c8] sm:$0xff]
    %v474 = vld [vmem:[#allocation5 + $0x9d0] sm:$0xff]
    %v475 = vld [vmem:[#allocation5 + $0x9d8] sm:$0xff]
    %v476 = vld [vmem:[#allocation5 + $0x9e0] sm:$0xff]
    %v477 = vld [vmem:[#allocation5 + $0x9e8] sm:$0xff]
    %v478 = vld [vmem:[#allocation5 + $0x9f0] sm:$0xff]
    %v479 = vld [vmem:[#allocation5 + $0x9f8] sm:$0xff]
    %v480 = vld [vmem:[#allocation5 + $0xa00] sm:$0xff]
    %v481 = vld [vmem:[#allocation5 + $0xa08] sm:$0xff]
    %v482 = vld [vmem:[#allocation5 + $0xa10] sm:$0xff]
    %v483 = vld [vmem:[#allocation5 + $0xa18] sm:$0xff]
    %v484 = vld [vmem:[#allocation5 + $0xa20] sm:$0xff]
    %v485 = vld [vmem:[#allocation5 + $0xa28] sm:$0xff]
    %v486 = vld [vmem:[#allocation5 + $0xa30] sm:$0xff]
    %v487 = vld [vmem:[#allocation5 + $0xa38] sm:$0xff]
    %v488 = vld [vmem:[#allocation5 + $0xa40] sm:$0xff]
    %v489 = vld [vmem:[#allocation5 + $0xa48] sm:$0xff]
    %v490 = vld [vmem:[#allocation5 + $0xa50] sm:$0xff]
    %v491 = vld [vmem:[#allocation5 + $0xa58] sm:$0xff]
    %v492 = vld [vmem:[#allocation5 + $0xa60] sm:$0xff]
    %v493 = vld [vmem:[#allocation5 + $0xa68] sm:$0xff]
    %v494 = vld [vmem:[#allocation5 + $0xa70] sm:$0xff]
    %v495 = vld [vmem:[#allocation5 + $0xa78] sm:$0xff]
    %v496 = vld [vmem:[#allocation5 + $0xa80] sm:$0xff]
    %v497 = vld [vmem:[#allocation5 + $0xa88] sm:$0xff]
    %v498 = vld [vmem:[#allocation5 + $0xa90] sm:$0xff]
    %v499 = vld [vmem:[#allocation5 + $0xa98] sm:$0xff]
    %v500 = vld [vmem:[#allocation5 + $0xaa0] sm:$0xff]
    %v501 = vld [vmem:[#allocation5 + $0xaa8] sm:$0xff]
    %v502 = vld [vmem:[#allocation5 + $0xab0] sm:$0xff]
    %v503 = vld [vmem:[#allocation5 + $0xab8] sm:$0xff]
    %v504 = vld [vmem:[#allocation5 + $0xac0] sm:$0xff]
    %v505 = vld [vmem:[#allocation5 + $0xac8] sm:$0xff]
    %v506 = vld [vmem:[#allocation5 + $0xad0] sm:$0xff]
    %v507 = vld [vmem:[#allocation5 + $0xad8] sm:$0xff]
    %v508 = vld [vmem:[#allocation5 + $0xae0] sm:$0xff]
    %v509 = vld [vmem:[#allocation5 + $0xae8] sm:$0xff]
    %v510 = vld [vmem:[#allocation5 + $0xaf0] sm:$0xff]
    %v511 = vld [vmem:[#allocation5 + $0xaf8] sm:$0xff]
    %v512 = vld [vmem:[#allocation5 + $0xb00] sm:$0xff]
    %v513 = vld [vmem:[#allocation5 + $0xb08] sm:$0xff]
    %v514 = vld [vmem:[#allocation5 + $0xb10] sm:$0xff]
    %v515 = vld [vmem:[#allocation5 + $0xb18] sm:$0xff]
    %v516 = vld [vmem:[#allocation5 + $0xb20] sm:$0xff]
    %v517 = vld [vmem:[#allocation5 + $0xb28] sm:$0xff]
    %v518 = vld [vmem:[#allocation5 + $0xb30] sm:$0xff]
    %v519 = vld [vmem:[#allocation5 + $0xb38] sm:$0xff]
    %v520 = vld [vmem:[#allocation5 + $0xb40] sm:$0xff]
    %v521 = vld [vmem:[#allocation5 + $0xb48] sm:$0xff]
    %v522 = vld [vmem:[#allocation5 + $0xb50] sm:$0xff]
    %v523 = vld [vmem:[#allocation5 + $0xb58] sm:$0xff]
    %v524 = vld [vmem:[#allocation5 + $0xb60] sm:$0xff]
    %v525 = vld [vmem:[#allocation5 + $0xb68] sm:$0xff]
    %v526 = vld [vmem:[#allocation5 + $0xb70] sm:$0xff]
    %v527 = vld [vmem:[#allocation5 + $0xb78] sm:$0xff]
    %v528 = vld [vmem:[#allocation5 + $0xb80] sm:$0xff]
    %v529 = vld [vmem:[#allocation5 + $0xb88] sm:$0xff]
    %v530 = vld [vmem:[#allocation5 + $0xb90] sm:$0xff]
    %v531 = vld [vmem:[#allocation5 + $0xb98] sm:$0xff]
    %v532 = vld [vmem:[#allocation5 + $0xba0] sm:$0xff]
    %v533 = vld [vmem:[#allocation5 + $0xba8] sm:$0xff]
    %v534 = vld [vmem:[#allocation5 + $0xbb0] sm:$0xff]
    %v535 = vld [vmem:[#allocation5 + $0xbb8] sm:$0xff]
    %v536 = vld [vmem:[#allocation5 + $0xbc0] sm:$0xff]
    %v537 = vld [vmem:[#allocation5 + $0xbc8] sm:$0xff]
    %v538 = vld [vmem:[#allocation5 + $0xbd0] sm:$0xff]
    %v539 = vld [vmem:[#allocation5 + $0xbd8] sm:$0xff]
    %v540 = vld [vmem:[#allocation5 + $0xbe0] sm:$0xff]
    %v541 = vld [vmem:[#allocation5 + $0xbe8] sm:$0xff]
    %v542 = vld [vmem:[#allocation5 + $0xbf0] sm:$0xff]
    %v543 = vld [vmem:[#allocation5 + $0xbf8] sm:$0xff]
    %v544 = vld [vmem:[#allocation5 + $0xc00] sm:$0xff]
    %v545 = vld [vmem:[#allocation5 + $0xc08] sm:$0xff]
    %v546 = vld [vmem:[#allocation5 + $0xc10] sm:$0xff]
    %v547 = vld [vmem:[#allocation5 + $0xc18] sm:$0xff]
    %v548 = vld [vmem:[#allocation5 + $0xc20] sm:$0xff]
    %v549 = vld [vmem:[#allocation5 + $0xc28] sm:$0xff]
    %v550 = vld [vmem:[#allocation5 + $0xc30] sm:$0xff]
    %v551 = vld [vmem:[#allocation5 + $0xc38] sm:$0xff]
    %v552 = vld [vmem:[#allocation5 + $0xc40] sm:$0xff]
    %v553 = vld [vmem:[#allocation5 + $0xc48] sm:$0xff]
    %v554 = vld [vmem:[#allocation5 + $0xc50] sm:$0xff]
    %v555 = vld [vmem:[#allocation5 + $0xc58] sm:$0xff]
    %v556 = vld [vmem:[#allocation5 + $0xc60] sm:$0xff]
    %v557 = vld [vmem:[#allocation5 + $0xc68] sm:$0xff]
    %v558 = vld [vmem:[#allocation5 + $0xc70] sm:$0xff]
    %v559 = vld [vmem:[#allocation5 + $0xc78] sm:$0xff]
    %v560 = vld [vmem:[#allocation5 + $0xc80] sm:$0xff]
    %v561 = vld [vmem:[#allocation5 + $0xc88] sm:$0xff]
    %v562 = vld [vmem:[#allocation5 + $0xc90] sm:$0xff]
    %v563 = vld [vmem:[#allocation5 + $0xc98] sm:$0xff]
    %v564 = vld [vmem:[#allocation5 + $0xca0] sm:$0xff]
    %v565 = vld [vmem:[#allocation5 + $0xca8] sm:$0xff]
    %v566 = vld [vmem:[#allocation5 + $0xcb0] sm:$0xff]
    %v567 = vld [vmem:[#allocation5 + $0xcb8] sm:$0xff]
    %v568 = vld [vmem:[#allocation5 + $0xcc0] sm:$0xff]
    %v569 = vld [vmem:[#allocation5 + $0xcc8] sm:$0xff]
    %v570 = vld [vmem:[#allocation5 + $0xcd0] sm:$0xff]
    %v571 = vld [vmem:[#allocation5 + $0xcd8] sm:$0xff]
    %v572 = vld [vmem:[#allocation5 + $0xce0] sm:$0xff]
    %v573 = vld [vmem:[#allocation5 + $0xce8] sm:$0xff]
    %v574 = vld [vmem:[#allocation5 + $0xcf0] sm:$0xff]
    %v575 = vld [vmem:[#allocation5 + $0xcf8] sm:$0xff]
    %v576 = vld [vmem:[#allocation5 + $0xd00] sm:$0xff]
    %v577 = vld [vmem:[#allocation5 + $0xd08] sm:$0xff]
    %v578 = vld [vmem:[#allocation5 + $0xd10] sm:$0xff]
    %v579 = vld [vmem:[#allocation5 + $0xd18] sm:$0xff]
    %v580 = vld [vmem:[#allocation5 + $0xd20] sm:$0xff]
    %v581 = vld [vmem:[#allocation5 + $0xd28] sm:$0xff]
    %v582 = vld [vmem:[#allocation5 + $0xd30] sm:$0xff]
    %v583 = vld [vmem:[#allocation5 + $0xd38] sm:$0xff]
    %v584 = vld [vmem:[#allocation5 + $0xd40] sm:$0xff]
    %v585 = vld [vmem:[#allocation5 + $0xd48] sm:$0xff]
    %v586 = vld [vmem:[#allocation5 + $0xd50] sm:$0xff]
    %v587 = vld [vmem:[#allocation5 + $0xd58] sm:$0xff]
    %v588 = vld [vmem:[#allocation5 + $0xd60] sm:$0xff]
    %v589 = vld [vmem:[#allocation5 + $0xd68] sm:$0xff]
    %v590 = vld [vmem:[#allocation5 + $0xd70] sm:$0xff]
    %v591 = vld [vmem:[#allocation5 + $0xd78] sm:$0xff]
    %v592 = vld [vmem:[#allocation5 + $0xd80] sm:$0xff]
    %v593 = vld [vmem:[#allocation5 + $0xd88] sm:$0xff]
    %v594 = vld [vmem:[#allocation5 + $0xd90] sm:$0xff]
    %v595 = vld [vmem:[#allocation5 + $0xd98] sm:$0xff]
    %v596 = vld [vmem:[#allocation5 + $0xda0] sm:$0xff]
    %v597 = vld [vmem:[#allocation5 + $0xda8] sm:$0xff]
    %v598 = vld [vmem:[#allocation5 + $0xdb0] sm:$0xff]
    %v599 = vld [vmem:[#allocation5 + $0xdb8] sm:$0xff]
    %v600 = vld [vmem:[#allocation5 + $0xdc0] sm:$0xff]
    %v601 = vld [vmem:[#allocation5 + $0xdc8] sm:$0xff]
    %v602 = vld [vmem:[#allocation5 + $0xdd0] sm:$0xff]
    %v603 = vld [vmem:[#allocation5 + $0xdd8] sm:$0xff]
    %v604 = vld [vmem:[#allocation5 + $0xde0] sm:$0xff]
    %v605 = vld [vmem:[#allocation5 + $0xde8] sm:$0xff]
    %v606 = vld [vmem:[#allocation5 + $0xdf0] sm:$0xff]
    %v607 = vld [vmem:[#allocation5 + $0xdf8] sm:$0xff]
    %v608 = vld [vmem:[#allocation5 + $0xe00] sm:$0xff]
    %v609 = vld [vmem:[#allocation5 + $0xe08] sm:$0xff]
    %v610 = vld [vmem:[#allocation5 + $0xe10] sm:$0xff]
    %v611 = vld [vmem:[#allocation5 + $0xe18] sm:$0xff]
    %v612 = vld [vmem:[#allocation5 + $0xe20] sm:$0xff]
    %v613 = vld [vmem:[#allocation5 + $0xe28] sm:$0xff]
    %v614 = vld [vmem:[#allocation5 + $0xe30] sm:$0xff]
    %v615 = vld [vmem:[#allocation5 + $0xe38] sm:$0xff]
    %v616 = vld [vmem:[#allocation5 + $0xe40] sm:$0xff]
    %v617 = vld [vmem:[#allocation5 + $0xe48] sm:$0xff]
    %v618 = vld [vmem:[#allocation5 + $0xe50] sm:$0xff]
    %v619 = vld [vmem:[#allocation5 + $0xe58] sm:$0xff]
    %v620 = vld [vmem:[#allocation5 + $0xe60] sm:$0xff]
    %v621 = vld [vmem:[#allocation5 + $0xe68] sm:$0xff]
    %v622 = vld [vmem:[#allocation5 + $0xe70] sm:$0xff]
    %v623 = vld [vmem:[#allocation5 + $0xe78] sm:$0xff]
    %v624 = vld [vmem:[#allocation5 + $0xe80] sm:$0xff]
    %v625 = vld [vmem:[#allocation5 + $0xe88] sm:$0xff]
    %v626 = vld [vmem:[#allocation5 + $0xe90] sm:$0xff]
    %v627 = vld [vmem:[#allocation5 + $0xe98] sm:$0xff]
    %v628 = vld [vmem:[#allocation5 + $0xea0] sm:$0xff]
    %v629 = vld [vmem:[#allocation5 + $0xea8] sm:$0xff]
    %v630 = vld [vmem:[#allocation5 + $0xeb0] sm:$0xff]
    %v631 = vld [vmem:[#allocation5 + $0xeb8] sm:$0xff]
    %v632 = vld [vmem:[#allocation5 + $0xec0] sm:$0xff]
    %v633 = vld [vmem:[#allocation5 + $0xec8] sm:$0xff]
    %v634 = vld [vmem:[#allocation5 + $0xed0] sm:$0xff]
    %v635 = vld [vmem:[#allocation5 + $0xed8] sm:$0xff]
    %v636 = vld [vmem:[#allocation5 + $0xee0] sm:$0xff]
    %v637 = vld [vmem:[#allocation5 + $0xee8] sm:$0xff]
    %v638 = vld [vmem:[#allocation5 + $0xef0] sm:$0xff]
    %v639 = vld [vmem:[#allocation5 + $0xef8] sm:$0xff]
    %v640 = vld [vmem:[#allocation5 + $0xf00] sm:$0xff]
    %v641 = vld [vmem:[#allocation5 + $0xf08] sm:$0xff]
    %v642 = vld [vmem:[#allocation5 + $0xf10] sm:$0xff]
    %v643 = vld [vmem:[#allocation5 + $0xf18] sm:$0xff]
    %v644 = vld [vmem:[#allocation5 + $0xf20] sm:$0xff]
    %v645 = vld [vmem:[#allocation5 + $0xf28] sm:$0xff]
    %v646 = vld [vmem:[#allocation5 + $0xf30] sm:$0xff]
    %v647 = vld [vmem:[#allocation5 + $0xf38] sm:$0xff]
    %v648 = vld [vmem:[#allocation5 + $0xf40] sm:$0xff]
    %v649 = vld [vmem:[#allocation5 + $0xf48] sm:$0xff]
    %v650 = vld [vmem:[#allocation5 + $0xf50] sm:$0xff]
    %v651 = vld [vmem:[#allocation5 + $0xf58] sm:$0xff]
    %v652 = vld [vmem:[#allocation5 + $0xf60] sm:$0xff]
    %v653 = vld [vmem:[#allocation5 + $0xf68] sm:$0xff]
    %v654 = vld [vmem:[#allocation5 + $0xf70] sm:$0xff]
    %v655 = vld [vmem:[#allocation5 + $0xf78] sm:$0xff]
    %v656 = vld [vmem:[#allocation5 + $0xf80] sm:$0xff]
    %v657 = vld [vmem:[#allocation5 + $0xf88] sm:$0xff]
    %v658 = vld [vmem:[#allocation5 + $0xf90] sm:$0xff]
    %v659 = vld [vmem:[#allocation5 + $0xf98] sm:$0xff]
    %v660 = vld [vmem:[#allocation5 + $0xfa0] sm:$0xff]
    %v661 = vld [vmem:[#allocation5 + $0xfa8] sm:$0xff]
    %v662 = vld [vmem:[#allocation5 + $0xfb0] sm:$0xff]
    %v663 = vld [vmem:[#allocation5 + $0xfb8] sm:$0xff]
    %v664 = vld [vmem:[#allocation5 + $0xfc0] sm:$0xff]
    %v665 = vld [vmem:[#allocation5 + $0xfc8] sm:$0xff]
    %v666 = vld [vmem:[#allocation5 + $0xfd0] sm:$0xff]
    %v667 = vld [vmem:[#allocation5 + $0xfd8] sm:$0xff]
    %v668 = vld [vmem:[#allocation5 + $0xfe0] sm:$0xff]
    %v669 = vld [vmem:[#allocation5 + $0xfe8] sm:$0xff]
    %v670 = vld [vmem:[#allocation5 + $0xff0] sm:$0xff]
    %v671 = vld [vmem:[#allocation5 + $0xff8] sm:$0xff]
    %v672 = vld [vmem:[#allocation5 + $0x1000] sm:$0xff]
    %v673 = vld [vmem:[#allocation5 + $0x1008] sm:$0xff]
    %v674 = vld [vmem:[#allocation5 + $0x1010] sm:$0xff]
    %v675 = vld [vmem:[#allocation5 + $0x1018] sm:$0xff]
    %v676 = vld [vmem:[#allocation5 + $0x1020] sm:$0xff]
    %v677 = vld [vmem:[#allocation5 + $0x1028] sm:$0xff]
    %v678 = vld [vmem:[#allocation5 + $0x1030] sm:$0xff]
    %v679 = vld [vmem:[#allocation5 + $0x1038] sm:$0xff]
    %v680 = vld [vmem:[#allocation5 + $0x1040] sm:$0xff]
    %v681 = vld [vmem:[#allocation5 + $0x1048] sm:$0xff]
    %v682 = vld [vmem:[#allocation5 + $0x1050] sm:$0xff]
    %v683 = vld [vmem:[#allocation5 + $0x1058] sm:$0xff]
    %v684 = vld [vmem:[#allocation5 + $0x1060] sm:$0xff]
    %v685 = vld [vmem:[#allocation5 + $0x1068] sm:$0xff]
    %v686 = vld [vmem:[#allocation5 + $0x1070] sm:$0xff]
    %v687 = vld [vmem:[#allocation5 + $0x1078] sm:$0xff]
    %v688 = vld [vmem:[#allocation5 + $0x1080] sm:$0xff]
    %v689 = vld [vmem:[#allocation5 + $0x1088] sm:$0xff]
    %v690 = vld [vmem:[#allocation5 + $0x1090] sm:$0xff]
    %v691 = vld [vmem:[#allocation5 + $0x1098] sm:$0xff]
    %v692 = vld [vmem:[#allocation5 + $0x10a0] sm:$0xff]
    %v693 = vld [vmem:[#allocation5 + $0x10a8] sm:$0xff]
    %v694 = vld [vmem:[#allocation5 + $0x10b0] sm:$0xff]
    %v695 = vld [vmem:[#allocation5 + $0x10b8] sm:$0xff]
    %v696 = vld [vmem:[#allocation5 + $0x10c0] sm:$0xff]
    %v697 = vld [vmem:[#allocation5 + $0x10c8] sm:$0xff]
    %v698 = vld [vmem:[#allocation5 + $0x10d0] sm:$0xff]
    %v699 = vld [vmem:[#allocation5 + $0x10d8] sm:$0xff]
    %v700 = vld [vmem:[#allocation5 + $0x10e0] sm:$0xff]
    %v701 = vld [vmem:[#allocation5 + $0x10e8] sm:$0xff]
    %v702 = vld [vmem:[#allocation5 + $0x10f0] sm:$0xff]
    %v703 = vld [vmem:[#allocation5 + $0x10f8] sm:$0xff]
    %v704 = vld [vmem:[#allocation5 + $0x1100] sm:$0xff]
    %v705 = vld [vmem:[#allocation5 + $0x1108] sm:$0xff]
    %v706 = vld [vmem:[#allocation5 + $0x1110] sm:$0xff]
    %v707 = vld [vmem:[#allocation5 + $0x1118] sm:$0xff]
    %v708 = vld [vmem:[#allocation5 + $0x1120] sm:$0xff]
    %v709 = vld [vmem:[#allocation5 + $0x1128] sm:$0xff]
    %v710 = vld [vmem:[#allocation5 + $0x1130] sm:$0xff]
    %v711 = vld [vmem:[#allocation5 + $0x1138] sm:$0xff]
    %v712 = vld [vmem:[#allocation5 + $0x1140] sm:$0xff]
    %v713 = vld [vmem:[#allocation5 + $0x1148] sm:$0xff]
    %v714 = vld [vmem:[#allocation5 + $0x1150] sm:$0xff]
    %v715 = vld [vmem:[#allocation5 + $0x1158] sm:$0xff]
    %v716 = vld [vmem:[#allocation5 + $0x1160] sm:$0xff]
    %v717 = vld [vmem:[#allocation5 + $0x1168] sm:$0xff]
    %v718 = vld [vmem:[#allocation5 + $0x1170] sm:$0xff]
    %v719 = vld [vmem:[#allocation5 + $0x1178] sm:$0xff]
    %v720 = vld [vmem:[#allocation5 + $0x1180] sm:$0xff]
    %v721 = vld [vmem:[#allocation5 + $0x1188] sm:$0xff]
    %v722 = vld [vmem:[#allocation5 + $0x1190] sm:$0xff]
    %v723 = vld [vmem:[#allocation5 + $0x1198] sm:$0xff]
    %v724 = vld [vmem:[#allocation5 + $0x11a0] sm:$0xff]
    %v725 = vld [vmem:[#allocation5 + $0x11a8] sm:$0xff]
    %v726 = vld [vmem:[#allocation5 + $0x11b0] sm:$0xff]
    %v727 = vld [vmem:[#allocation5 + $0x11b8] sm:$0xff]
    %v728 = vld [vmem:[#allocation5 + $0x11c0] sm:$0xff]
    %v729 = vld [vmem:[#allocation5 + $0x11c8] sm:$0xff]
    %v730 = vld [vmem:[#allocation5 + $0x11d0] sm:$0xff]
    %v731 = vld [vmem:[#allocation5 + $0x11d8] sm:$0xff]
    %v732 = vld [vmem:[#allocation5 + $0x11e0] sm:$0xff]
    %v733 = vld [vmem:[#allocation5 + $0x11e8] sm:$0xff]
    %v734 = vld [vmem:[#allocation5 + $0x11f0] sm:$0xff]
    %v735 = vld [vmem:[#allocation5 + $0x11f8] sm:$0xff]
    %v736 = vld [vmem:[#allocation5 + $0x1200] sm:$0xff]
    %v737 = vld [vmem:[#allocation5 + $0x1208] sm:$0xff]
    %v738 = vld [vmem:[#allocation5 + $0x1210] sm:$0xff]
    %v739 = vld [vmem:[#allocation5 + $0x1218] sm:$0xff]
    %v740 = vld [vmem:[#allocation5 + $0x1220] sm:$0xff]
    %v741 = vld [vmem:[#allocation5 + $0x1228] sm:$0xff]
    %v742 = vld [vmem:[#allocation5 + $0x1230] sm:$0xff]
    %v743 = vld [vmem:[#allocation5 + $0x1238] sm:$0xff]
    %v744 = vld [vmem:[#allocation5 + $0x1240] sm:$0xff]
    %v745 = vld [vmem:[#allocation5 + $0x1248] sm:$0xff]
    %v746 = vld [vmem:[#allocation5 + $0x1250] sm:$0xff]
    %v747 = vld [vmem:[#allocation5 + $0x1258] sm:$0xff]
    %v748 = vld [vmem:[#allocation5 + $0x1260] sm:$0xff]
    %v749 = vld [vmem:[#allocation5 + $0x1268] sm:$0xff]
    %v750 = vld [vmem:[#allocation5 + $0x1270] sm:$0xff]
    %v751 = vld [vmem:[#allocation5 + $0x1278] sm:$0xff]
    %v752 = vld [vmem:[#allocation5 + $0x1280] sm:$0xff]
    %v753 = vld [vmem:[#allocation5 + $0x1288] sm:$0xff]
    %v754 = vld [vmem:[#allocation5 + $0x1290] sm:$0xff]
    %v755 = vld [vmem:[#allocation5 + $0x1298] sm:$0xff]
    %v756 = vld [vmem:[#allocation5 + $0x12a0] sm:$0xff]
    %v757 = vld [vmem:[#allocation5 + $0x12a8] sm:$0xff]
    %v758 = vld [vmem:[#allocation5 + $0x12b0] sm:$0xff]
    %v759 = vld [vmem:[#allocation5 + $0x12b8] sm:$0xff]
    %v760 = vld [vmem:[#allocation5 + $0x12c0] sm:$0xff]
    %v761 = vld [vmem:[#allocation5 + $0x12c8] sm:$0xff]
    %v762 = vld [vmem:[#allocation5 + $0x12d0] sm:$0xff]
    %v763 = vld [vmem:[#allocation5 + $0x12d8] sm:$0xff]
    %v764 = vld [vmem:[#allocation5 + $0x12e0] sm:$0xff]
    %v765 = vld [vmem:[#allocation5 + $0x12e8] sm:$0xff]
    %v766 = vld [vmem:[#allocation5 + $0x12f0] sm:$0xff]
    %v767 = vld [vmem:[#allocation5 + $0x12f8] sm:$0xff]
    %v768 = vld [vmem:[#allocation5 + $0x1300] sm:$0xff]
    %v769 = vld [vmem:[#allocation5 + $0x1308] sm:$0xff]
    %v770 = vld [vmem:[#allocation5 + $0x1310] sm:$0xff]
    %v771 = vld [vmem:[#allocation5 + $0x1318] sm:$0xff]
    %v772 = vld [vmem:[#allocation5 + $0x1320] sm:$0xff]
    %v773 = vld [vmem:[#allocation5 + $0x1328] sm:$0xff]
    %v774 = vld [vmem:[#allocation5 + $0x1330] sm:$0xff]
    %v775 = vld [vmem:[#allocation5 + $0x1338] sm:$0xff]
    %v776 = vld [vmem:[#allocation5 + $0x1340] sm:$0xff]
    %v777 = vld [vmem:[#allocation5 + $0x1348] sm:$0xff]
    %v778 = vld [vmem:[#allocation5 + $0x1350] sm:$0xff]
    %v779 = vld [vmem:[#allocation5 + $0x1358] sm:$0xff]
    %v780 = vld [vmem:[#allocation5 + $0x1360] sm:$0xff]
    %v781 = vld [vmem:[#allocation5 + $0x1368] sm:$0xff]
    %v782 = vld [vmem:[#allocation5 + $0x1370] sm:$0xff]
    %v783 = vld [vmem:[#allocation5 + $0x1378] sm:$0xff]
    %v784 = vld [vmem:[#allocation5 + $0x1380] sm:$0xff]
    %v785 = vld [vmem:[#allocation5 + $0x1388] sm:$0xff]
    %v786 = vld [vmem:[#allocation5 + $0x1390] sm:$0xff]
    %v787 = vld [vmem:[#allocation5 + $0x1398] sm:$0xff]
    %v788 = vld [vmem:[#allocation5 + $0x13a0] sm:$0xff]
    %v789 = vld [vmem:[#allocation5 + $0x13a8] sm:$0xff]
    %v790 = vld [vmem:[#allocation5 + $0x13b0] sm:$0xff]
    %v791 = vld [vmem:[#allocation5 + $0x13b8] sm:$0xff]
    %v792 = vld [vmem:[#allocation5 + $0x13c0] sm:$0xff]
    %v793 = vld [vmem:[#allocation5 + $0x13c8] sm:$0xff]
    %v794 = vld [vmem:[#allocation5 + $0x13d0] sm:$0xff]
    %v795 = vld [vmem:[#allocation5 + $0x13d8] sm:$0xff]
    %v796 = vld [vmem:[#allocation5 + $0x13e0] sm:$0xff]
    %v797 = vld [vmem:[#allocation5 + $0x13e8] sm:$0xff]
    %v798 = vld [vmem:[#allocation5 + $0x13f0] sm:$0xff]
    %v799 = vld [vmem:[#allocation5 + $0x13f8] sm:$0xff]
    %v800 = vld [vmem:[#allocation5 + $0x1400] sm:$0xff]
    %v801 = vld [vmem:[#allocation5 + $0x1408] sm:$0xff]
    %v802 = vld [vmem:[#allocation5 + $0x1410] sm:$0xff]
    %v803 = vld [vmem:[#allocation5 + $0x1418] sm:$0xff]
    %v804 = vld [vmem:[#allocation5 + $0x1420] sm:$0xff]
    %v805 = vld [vmem:[#allocation5 + $0x1428] sm:$0xff]
    %v806 = vld [vmem:[#allocation5 + $0x1430] sm:$0xff]
    %v807 = vld [vmem:[#allocation5 + $0x1438] sm:$0xff]
    %v808 = vld [vmem:[#allocation5 + $0x1440] sm:$0xff]
    %v809 = vld [vmem:[#allocation5 + $0x1448] sm:$0xff]
    %v810 = vld [vmem:[#allocation5 + $0x1450] sm:$0xff]
    %v811 = vld [vmem:[#allocation5 + $0x1458] sm:$0xff]
    %v812 = vld [vmem:[#allocation5 + $0x1460] sm:$0xff]
    %v813 = vld [vmem:[#allocation5 + $0x1468] sm:$0xff]
    %v814 = vld [vmem:[#allocation5 + $0x1470] sm:$0xff]
    %v815 = vld [vmem:[#allocation5 + $0x1478] sm:$0xff]
    %v816 = vld [vmem:[#allocation5 + $0x1480] sm:$0xff]
    %v817 = vld [vmem:[#allocation5 + $0x1488] sm:$0xff]
    %v818 = vld [vmem:[#allocation5 + $0x1490] sm:$0xff]
    %v819 = vld [vmem:[#allocation5 + $0x1498] sm:$0xff]
    %v820 = vld [vmem:[#allocation5 + $0x14a0] sm:$0xff]
    %v821 = vld [vmem:[#allocation5 + $0x14a8] sm:$0xff]
    %v822 = vld [vmem:[#allocation5 + $0x14b0] sm:$0xff]
    %v823 = vld [vmem:[#allocation5 + $0x14b8] sm:$0xff]
    %v824 = vld [vmem:[#allocation5 + $0x14c0] sm:$0xff]
    %v825 = vld [vmem:[#allocation5 + $0x14c8] sm:$0xff]
    %v826 = vld [vmem:[#allocation5 + $0x14d0] sm:$0xff]
    %v827 = vld [vmem:[#allocation5 + $0x14d8] sm:$0xff]
    %v828 = vld [vmem:[#allocation5 + $0x14e0] sm:$0xff]
    %v829 = vld [vmem:[#allocation5 + $0x14e8] sm:$0xff]
    %v830 = vld [vmem:[#allocation5 + $0x14f0] sm:$0xff]
    %v831 = vld [vmem:[#allocation5 + $0x14f8] sm:$0xff]
    %v832 = vld [vmem:[#allocation5 + $0x1500] sm:$0xff]
    %v833 = vld [vmem:[#allocation5 + $0x1508] sm:$0xff]
    %v834 = vld [vmem:[#allocation5 + $0x1510] sm:$0xff]
    %v835 = vld [vmem:[#allocation5 + $0x1518] sm:$0xff]
    %v836 = vld [vmem:[#allocation5 + $0x1520] sm:$0xff]
    %v837 = vld [vmem:[#allocation5 + $0x1528] sm:$0xff]
    %v838 = vld [vmem:[#allocation5 + $0x1530] sm:$0xff]
    %v839 = vld [vmem:[#allocation5 + $0x1538] sm:$0xff]
    %v840 = vld [vmem:[#allocation5 + $0x1540] sm:$0xff]
    %v841 = vld [vmem:[#allocation5 + $0x1548] sm:$0xff]
    %v842 = vld [vmem:[#allocation5 + $0x1550] sm:$0xff]
    %v843 = vld [vmem:[#allocation5 + $0x1558] sm:$0xff]
    %v844 = vld [vmem:[#allocation5 + $0x1560] sm:$0xff]
    %v845 = vld [vmem:[#allocation5 + $0x1568] sm:$0xff]
    %v846 = vld [vmem:[#allocation5 + $0x1570] sm:$0xff]
    %v847 = vld [vmem:[#allocation5 + $0x1578] sm:$0xff]
    %v848 = vld [vmem:[#allocation5 + $0x1580] sm:$0xff]
    %v849 = vld [vmem:[#allocation5 + $0x1588] sm:$0xff]
    %v850 = vld [vmem:[#allocation5 + $0x1590] sm:$0xff]
    %v851 = vld [vmem:[#allocation5 + $0x1598] sm:$0xff]
    %v852 = vld [vmem:[#allocation5 + $0x15a0] sm:$0xff]
    %v853 = vld [vmem:[#allocation5 + $0x15a8] sm:$0xff]
    %v854 = vld [vmem:[#allocation5 + $0x15b0] sm:$0xff]
    %v855 = vld [vmem:[#allocation5 + $0x15b8] sm:$0xff]
    %v856 = vld [vmem:[#allocation5 + $0x15c0] sm:$0xff]
    %v857 = vld [vmem:[#allocation5 + $0x15c8] sm:$0xff]
    %v858 = vld [vmem:[#allocation5 + $0x15d0] sm:$0xff]
    %v859 = vld [vmem:[#allocation5 + $0x15d8] sm:$0xff]
    %v860 = vld [vmem:[#allocation5 + $0x15e0] sm:$0xff]
    %v861 = vld [vmem:[#allocation5 + $0x15e8] sm:$0xff]
    %v862 = vld [vmem:[#allocation5 + $0x15f0] sm:$0xff]
    %v863 = vld [vmem:[#allocation5 + $0x15f8] sm:$0xff]
    %v864 = vld [vmem:[#allocation7] sm:$0xff]
    %v866 = vlaneseq
    %v867 = vshrl.u32 %v866, 7
    %v868 = vsub.s32 0, %v867
    %v869 = vrot.slane %v864, %v868
    %v870 = vlaneseq
    %v871 = vshrl.u32 %v870, 7
    %v872 = vsub.s32 1, %v871
    %v873 = vrot.slane %v864, %v872
    %v874 = vlaneseq
    %v875 = vshrl.u32 %v874, 7
    %v876 = vsub.s32 2, %v875
    %v877 = vrot.slane %v864, %v876
    %v878 = vlaneseq
    %v879 = vshrl.u32 %v878, 7
    %v880 = vsub.s32 3, %v879
    %v881 = vrot.slane %v864, %v880
    %v882 = vlaneseq
    %v883 = vshrl.u32 %v882, 7
    %v884 = vsub.s32 4, %v883
    %v885 = vrot.slane %v864, %v884
    %v886 = vlaneseq
    %v887 = vshrl.u32 %v886, 7
    %v888 = vsub.s32 5, %v887
    %v889 = vrot.slane %v864, %v888
    %v890 = vlaneseq
    %v891 = vshrl.u32 %v890, 7
    %v892 = vsub.s32 6, %v891
    %v893 = vrot.slane %v864, %v892
    %v894 = vlaneseq
    %v895 = vshrl.u32 %v894, 7
    %v896 = vsub.s32 7, %v895
    %v897 = vrot.slane %v864, %v896
    %v918 = vunpack.c.l.b16 %v148
    %v919 = vunpack.c.h.b16 %v148
    %v920 = vunpack.c.l.b16 %v149
    %v921 = vunpack.c.h.b16 %v149
    %v922 = vunpack.c.l.b16 %v150
    %v923 = vunpack.c.h.b16 %v150
    %v924 = vunpack.c.l.b16 %v151
    %v925 = vunpack.c.h.b16 %v151
    %v926 = vunpack.c.l.b16 %v152
    %v927 = vunpack.c.h.b16 %v152
    %v928 = vunpack.c.l.b16 %v153
    %v929 = vunpack.c.l.b16 %v154
    %v930 = vunpack.c.h.b16 %v154
    %v931 = vunpack.c.l.b16 %v155
    %v932 = vunpack.c.h.b16 %v155
    %v933 = vunpack.c.l.b16 %v156
    %v934 = vunpack.c.h.b16 %v156
    %v935 = vunpack.c.l.b16 %v157
    %v936 = vunpack.c.h.b16 %v157
    %v937 = vunpack.c.l.b16 %v158
    %v938 = vunpack.c.h.b16 %v158
    %v939 = vunpack.c.l.b16 %v159
    %v940 = vpack.c.b16 %v929, %v918
    %v941 = vpack.c.b16 %v930, %v919
    %v942 = vpack.c.b16 %v931, %v920
    %v943 = vpack.c.b16 %v932, %v921
    %v944 = vpack.c.b16 %v933, %v922
    %v945 = vpack.c.b16 %v934, %v923
    %v946 = vpack.c.b16 %v935, %v924
    %v947 = vpack.c.b16 %v936, %v925
    %v948 = vpack.c.b16 %v937, %v926
    %v949 = vpack.c.b16 %v938, %v927
    %v950 = vpack.c.b16 %v939, %v928
    %v1666 = vunpack.c.l.b16 %v160
    %v1667 = vunpack.c.h.b16 %v160
    %v1668 = vunpack.c.l.b16 %v161
    %v1669 = vunpack.c.h.b16 %v161
    %v1670 = vunpack.c.l.b16 %v162
    %v1671 = vunpack.c.h.b16 %v162
    %v1672 = vunpack.c.l.b16 %v163
    %v1673 = vunpack.c.h.b16 %v163
    %v1674 = vunpack.c.l.b16 %v164
    %v1675 = vunpack.c.h.b16 %v164
    %v1676 = vunpack.c.l.b16 %v165
    %v1677 = vunpack.c.h.b16 %v165
    %v1678 = vunpack.c.l.b16 %v166
    %v1679 = vunpack.c.h.b16 %v166
    %v1680 = vunpack.c.l.b16 %v167
    %v1681 = vunpack.c.h.b16 %v167
    %v1682 = vunpack.c.l.b16 %v168
    %v1683 = vunpack.c.h.b16 %v168
    %v1684 = vunpack.c.l.b16 %v169
    %v1685 = vunpack.c.h.b16 %v169
    %v1686 = vunpack.c.l.b16 %v170
    %v1687 = vunpack.c.h.b16 %v170
    %v1688 = vunpack.c.l.b16 %v171
    %v1689 = vunpack.c.h.b16 %v171
    %v1690 = vunpack.c.l.b16 %v172
    %v1691 = vunpack.c.h.b16 %v172
    %v1692 = vunpack.c.l.b16 %v173
    %v1693 = vunpack.c.h.b16 %v173
    %v1694 = vunpack.c.l.b16 %v174
    %v1695 = vunpack.c.h.b16 %v174
    %v1696 = vunpack.c.l.b16 %v175
    %v1697 = vunpack.c.h.b16 %v175
    %v1698 = vunpack.c.l.b16 %v176
    %v1699 = vunpack.c.h.b16 %v176
    %v1700 = vunpack.c.l.b16 %v177
    %v1701 = vunpack.c.h.b16 %v177
    %v1702 = vunpack.c.l.b16 %v178
    %v1703 = vunpack.c.h.b16 %v178
    %v1704 = vunpack.c.l.b16 %v179
    %v1705 = vunpack.c.h.b16 %v179
    %v1706 = vunpack.c.l.b16 %v180
    %v1707 = vunpack.c.h.b16 %v180
    %v1708 = vunpack.c.l.b16 %v181
    %v1709 = vunpack.c.h.b16 %v181
    %v1710 = vunpack.c.l.b16 %v182
    %v1711 = vunpack.c.h.b16 %v182
    %v1712 = vunpack.c.l.b16 %v183
    %v1713 = vunpack.c.h.b16 %v183
    %v1714 = vunpack.c.l.b16 %v184
    %v1715 = vunpack.c.h.b16 %v184
    %v1716 = vunpack.c.l.b16 %v185
    %v1717 = vunpack.c.h.b16 %v185
    %v1718 = vunpack.c.l.b16 %v186
    %v1719 = vunpack.c.h.b16 %v186
    %v1720 = vunpack.c.l.b16 %v187
    %v1721 = vunpack.c.h.b16 %v187
    %v1722 = vunpack.c.l.b16 %v188
    %v1723 = vunpack.c.h.b16 %v188
    %v1724 = vunpack.c.l.b16 %v189
    %v1725 = vunpack.c.h.b16 %v189
    %v1726 = vunpack.c.l.b16 %v190
    %v1727 = vunpack.c.h.b16 %v190
    %v1728 = vunpack.c.l.b16 %v191
    %v1729 = vunpack.c.h.b16 %v191
    %v1730 = vunpack.c.l.b16 %v192
    %v1731 = vunpack.c.h.b16 %v192
    %v1732 = vunpack.c.l.b16 %v193
    %v1733 = vunpack.c.h.b16 %v193
    %v1734 = vunpack.c.l.b16 %v194
    %v1735 = vunpack.c.h.b16 %v194
    %v1736 = vunpack.c.l.b16 %v195
    %v1737 = vunpack.c.h.b16 %v195
    %v1738 = vunpack.c.l.b16 %v196
    %v1739 = vunpack.c.h.b16 %v196
    %v1740 = vunpack.c.l.b16 %v197
    %v1741 = vunpack.c.h.b16 %v197
    %v1742 = vunpack.c.l.b16 %v198
    %v1743 = vunpack.c.h.b16 %v198
    %v1744 = vunpack.c.l.b16 %v199
    %v1745 = vunpack.c.h.b16 %v199
    %v1746 = vunpack.c.l.b16 %v200
    %v1747 = vunpack.c.h.b16 %v200
    %v1748 = vunpack.c.l.b16 %v201
    %v1749 = vunpack.c.h.b16 %v201
    %v1750 = vunpack.c.l.b16 %v202
    %v1751 = vunpack.c.h.b16 %v202
    %v1752 = vunpack.c.l.b16 %v203
    %v1753 = vunpack.c.h.b16 %v203
    %v1754 = vunpack.c.l.b16 %v204
    %v1755 = vunpack.c.h.b16 %v204
    %v1756 = vunpack.c.l.b16 %v205
    %v1757 = vunpack.c.h.b16 %v205
    %v1758 = vunpack.c.l.b16 %v206
    %v1759 = vunpack.c.h.b16 %v206
    %v1760 = vunpack.c.l.b16 %v207
    %v1761 = vunpack.c.h.b16 %v207
    %v1762 = vunpack.c.l.b16 %v208
    %v1763 = vunpack.c.h.b16 %v208
    %v1764 = vunpack.c.l.b16 %v209
    %v1765 = vunpack.c.h.b16 %v209
    %v1766 = vunpack.c.l.b16 %v210
    %v1767 = vunpack.c.h.b16 %v210
    %v1768 = vunpack.c.l.b16 %v211
    %v1769 = vunpack.c.h.b16 %v211
    %v1770 = vunpack.c.l.b16 %v212
    %v1771 = vunpack.c.h.b16 %v212
    %v1772 = vunpack.c.l.b16 %v213
    %v1773 = vunpack.c.h.b16 %v213
    %v1774 = vunpack.c.l.b16 %v214
    %v1775 = vunpack.c.h.b16 %v214
    %v1776 = vunpack.c.l.b16 %v215
    %v1777 = vunpack.c.h.b16 %v215
    %v1778 = vunpack.c.l.b16 %v216
    %v1779 = vunpack.c.h.b16 %v216
    %v1780 = vunpack.c.l.b16 %v217
    %v1781 = vunpack.c.h.b16 %v217
    %v1782 = vunpack.c.l.b16 %v218
    %v1783 = vunpack.c.h.b16 %v218
    %v1784 = vunpack.c.l.b16 %v219
    %v1785 = vunpack.c.h.b16 %v219
    %v1786 = vunpack.c.l.b16 %v220
    %v1787 = vunpack.c.h.b16 %v220
    %v1788 = vunpack.c.l.b16 %v221
    %v1789 = vunpack.c.h.b16 %v221
    %v1790 = vunpack.c.l.b16 %v222
    %v1791 = vunpack.c.h.b16 %v222
    %v1792 = vunpack.c.l.b16 %v223
    %v1793 = vunpack.c.h.b16 %v223
    %v1794 = vunpack.c.l.b16 %v224
    %v1795 = vunpack.c.h.b16 %v224
    %v1796 = vunpack.c.l.b16 %v225
    %v1797 = vunpack.c.h.b16 %v225
    %v1798 = vunpack.c.l.b16 %v226
    %v1799 = vunpack.c.h.b16 %v226
    %v1800 = vunpack.c.l.b16 %v227
    %v1801 = vunpack.c.h.b16 %v227
    %v1802 = vunpack.c.l.b16 %v228
    %v1803 = vunpack.c.h.b16 %v228
    %v1804 = vunpack.c.l.b16 %v229
    %v1805 = vunpack.c.h.b16 %v229
    %v1806 = vunpack.c.l.b16 %v230
    %v1807 = vunpack.c.h.b16 %v230
    %v1808 = vunpack.c.l.b16 %v231
    %v1809 = vunpack.c.h.b16 %v231
    %v1810 = vunpack.c.l.b16 %v232
    %v1811 = vunpack.c.h.b16 %v232
    %v1812 = vunpack.c.l.b16 %v233
    %v1813 = vunpack.c.h.b16 %v233
    %v1814 = vunpack.c.l.b16 %v234
    %v1815 = vunpack.c.h.b16 %v234
    %v1816 = vunpack.c.l.b16 %v235
    %v1817 = vunpack.c.h.b16 %v235
    %v1818 = vunpack.c.l.b16 %v236
    %v1819 = vunpack.c.h.b16 %v236
    %v1820 = vunpack.c.l.b16 %v237
    %v1821 = vunpack.c.h.b16 %v237
    %v1822 = vunpack.c.l.b16 %v238
    %v1823 = vunpack.c.h.b16 %v238
    %v1824 = vunpack.c.l.b16 %v239
    %v1825 = vunpack.c.h.b16 %v239
    %v1826 = vunpack.c.l.b16 %v240
    %v1827 = vunpack.c.h.b16 %v240
    %v1828 = vunpack.c.l.b16 %v241
    %v1829 = vunpack.c.h.b16 %v241
    %v1830 = vunpack.c.l.b16 %v242
    %v1831 = vunpack.c.h.b16 %v242
    %v1832 = vunpack.c.l.b16 %v243
    %v1833 = vunpack.c.h.b16 %v243
    %v1834 = vunpack.c.l.b16 %v244
    %v1835 = vunpack.c.h.b16 %v244
    %v1836 = vunpack.c.l.b16 %v245
    %v1837 = vunpack.c.h.b16 %v245
    %v1838 = vunpack.c.l.b16 %v246
    %v1839 = vunpack.c.h.b16 %v246
    %v1840 = vunpack.c.l.b16 %v247
    %v1841 = vunpack.c.h.b16 %v247
    %v1842 = vunpack.c.l.b16 %v248
    %v1843 = vunpack.c.h.b16 %v248
    %v1844 = vunpack.c.l.b16 %v249
    %v1845 = vunpack.c.h.b16 %v249
    %v1846 = vunpack.c.l.b16 %v250
    %v1847 = vunpack.c.h.b16 %v250
    %v1848 = vunpack.c.l.b16 %v251
    %v1849 = vunpack.c.h.b16 %v251
    %v1850 = vunpack.c.l.b16 %v252
    %v1851 = vunpack.c.h.b16 %v252
    %v1852 = vunpack.c.l.b16 %v253
    %v1853 = vunpack.c.h.b16 %v253
    %v1854 = vunpack.c.l.b16 %v254
    %v1855 = vunpack.c.h.b16 %v254
    %v1856 = vunpack.c.l.b16 %v255
    %v1857 = vunpack.c.h.b16 %v255
    %v1858 = vunpack.c.l.b16 %v256
    %v1859 = vunpack.c.h.b16 %v256
    %v1860 = vunpack.c.l.b16 %v257
    %v1861 = vunpack.c.h.b16 %v257
    %v1862 = vunpack.c.l.b16 %v258
    %v1863 = vunpack.c.h.b16 %v258
    %v1864 = vunpack.c.l.b16 %v259
    %v1865 = vunpack.c.h.b16 %v259
    %v1866 = vunpack.c.l.b16 %v260
    %v1867 = vunpack.c.h.b16 %v260
    %v1868 = vunpack.c.l.b16 %v261
    %v1869 = vunpack.c.h.b16 %v261
    %v1870 = vunpack.c.l.b16 %v262
    %v1871 = vunpack.c.h.b16 %v262
    %v1872 = vunpack.c.l.b16 %v263
    %v1873 = vunpack.c.h.b16 %v263
    %v1874 = vunpack.c.l.b16 %v264
    %v1875 = vunpack.c.h.b16 %v264
    %v1876 = vunpack.c.l.b16 %v265
    %v1877 = vunpack.c.h.b16 %v265
    %v1878 = vunpack.c.l.b16 %v266
    %v1879 = vunpack.c.h.b16 %v266
    %v1880 = vunpack.c.l.b16 %v267
    %v1881 = vunpack.c.h.b16 %v267
    %v1882 = vunpack.c.l.b16 %v268
    %v1883 = vunpack.c.h.b16 %v268
    %v1884 = vunpack.c.l.b16 %v269
    %v1885 = vunpack.c.h.b16 %v269
    %v1886 = vunpack.c.l.b16 %v270
    %v1887 = vunpack.c.h.b16 %v270
    %v1888 = vunpack.c.l.b16 %v271
    %v1889 = vunpack.c.h.b16 %v271
    %v1890 = vunpack.c.l.b16 %v272
    %v1891 = vunpack.c.h.b16 %v272
    %v1892 = vunpack.c.l.b16 %v273
    %v1893 = vunpack.c.h.b16 %v273
    %v1894 = vunpack.c.l.b16 %v274
    %v1895 = vunpack.c.h.b16 %v274
    %v1896 = vunpack.c.l.b16 %v275
    %v1897 = vunpack.c.h.b16 %v275
    %v1898 = vunpack.c.l.b16 %v276
    %v1899 = vunpack.c.h.b16 %v276
    %v1900 = vunpack.c.l.b16 %v277
    %v1901 = vunpack.c.h.b16 %v277
    %v1902 = vunpack.c.l.b16 %v278
    %v1903 = vunpack.c.h.b16 %v278
    %v1904 = vunpack.c.l.b16 %v279
    %v1905 = vunpack.c.h.b16 %v279
    %v1906 = vunpack.c.l.b16 %v280
    %v1907 = vunpack.c.h.b16 %v280
    %v1908 = vunpack.c.l.b16 %v281
    %v1909 = vunpack.c.h.b16 %v281
    %v1910 = vunpack.c.l.b16 %v282
    %v1911 = vunpack.c.h.b16 %v282
    %v1912 = vunpack.c.l.b16 %v283
    %v1913 = vunpack.c.h.b16 %v283
    %v1914 = vunpack.c.l.b16 %v284
    %v1915 = vunpack.c.h.b16 %v284
    %v1916 = vunpack.c.l.b16 %v285
    %v1917 = vunpack.c.h.b16 %v285
    %v1918 = vunpack.c.l.b16 %v286
    %v1919 = vunpack.c.h.b16 %v286
    %v1920 = vunpack.c.l.b16 %v287
    %v1921 = vunpack.c.h.b16 %v287
    %v1922 = vunpack.c.l.b16 %v288
    %v1923 = vunpack.c.h.b16 %v288
    %v1924 = vunpack.c.l.b16 %v289
    %v1925 = vunpack.c.h.b16 %v289
    %v1926 = vunpack.c.l.b16 %v290
    %v1927 = vunpack.c.h.b16 %v290
    %v1928 = vunpack.c.l.b16 %v291
    %v1929 = vunpack.c.h.b16 %v291
    %v1930 = vunpack.c.l.b16 %v292
    %v1931 = vunpack.c.h.b16 %v292
    %v1932 = vunpack.c.l.b16 %v293
    %v1933 = vunpack.c.h.b16 %v293
    %v1934 = vunpack.c.l.b16 %v294
    %v1935 = vunpack.c.h.b16 %v294
    %v1936 = vunpack.c.l.b16 %v295
    %v1937 = vunpack.c.h.b16 %v295
    %v1938 = vunpack.c.l.b16 %v296
    %v1939 = vunpack.c.h.b16 %v296
    %v1940 = vunpack.c.l.b16 %v297
    %v1941 = vunpack.c.h.b16 %v297
    %v1942 = vunpack.c.l.b16 %v298
    %v1943 = vunpack.c.h.b16 %v298
    %v1944 = vunpack.c.l.b16 %v299
    %v1945 = vunpack.c.h.b16 %v299
    %v1946 = vunpack.c.l.b16 %v300
    %v1947 = vunpack.c.h.b16 %v300
    %v1948 = vunpack.c.l.b16 %v301
    %v1949 = vunpack.c.h.b16 %v301
    %v1950 = vunpack.c.l.b16 %v302
    %v1951 = vunpack.c.h.b16 %v302
    %v1952 = vunpack.c.l.b16 %v303
    %v1953 = vunpack.c.h.b16 %v303
    %v1954 = vunpack.c.l.b16 %v304
    %v1955 = vunpack.c.h.b16 %v304
    %v1956 = vunpack.c.l.b16 %v305
    %v1957 = vunpack.c.h.b16 %v305
    %v1958 = vunpack.c.l.b16 %v306
    %v1959 = vunpack.c.h.b16 %v306
    %v1960 = vunpack.c.l.b16 %v307
    %v1961 = vunpack.c.h.b16 %v307
    %v1962 = vunpack.c.l.b16 %v308
    %v1963 = vunpack.c.h.b16 %v308
    %v1964 = vunpack.c.l.b16 %v309
    %v1965 = vunpack.c.h.b16 %v309
    %v1966 = vunpack.c.l.b16 %v310
    %v1967 = vunpack.c.h.b16 %v310
    %v1968 = vunpack.c.l.b16 %v311
    %v1969 = vunpack.c.h.b16 %v311
    %v1970 = vunpack.c.l.b16 %v312
    %v1971 = vunpack.c.h.b16 %v312
    %v1972 = vunpack.c.l.b16 %v313
    %v1973 = vunpack.c.h.b16 %v313
    %v1974 = vunpack.c.l.b16 %v314
    %v1975 = vunpack.c.h.b16 %v314
    %v1976 = vunpack.c.l.b16 %v315
    %v1977 = vunpack.c.h.b16 %v315
    %v1978 = vunpack.c.l.b16 %v316
    %v1979 = vunpack.c.h.b16 %v316
    %v1980 = vunpack.c.l.b16 %v317
    %v1981 = vunpack.c.h.b16 %v317
    %v1982 = vunpack.c.l.b16 %v318
    %v1983 = vunpack.c.h.b16 %v318
    %v1984 = vunpack.c.l.b16 %v319
    %v1985 = vunpack.c.h.b16 %v319
    %v1986 = vunpack.c.l.b16 %v320
    %v1987 = vunpack.c.h.b16 %v320
    %v1988 = vunpack.c.l.b16 %v321
    %v1989 = vunpack.c.h.b16 %v321
    %v1990 = vunpack.c.l.b16 %v322
    %v1991 = vunpack.c.h.b16 %v322
    %v1992 = vunpack.c.l.b16 %v323
    %v1993 = vunpack.c.h.b16 %v323
    %v1994 = vunpack.c.l.b16 %v324
    %v1995 = vunpack.c.h.b16 %v324
    %v1996 = vunpack.c.l.b16 %v325
    %v1997 = vunpack.c.h.b16 %v325
    %v1998 = vunpack.c.l.b16 %v326
    %v1999 = vunpack.c.h.b16 %v326
    %v2000 = vunpack.c.l.b16 %v327
    %v2001 = vunpack.c.h.b16 %v327
    %v2002 = vunpack.c.l.b16 %v328
    %v2003 = vunpack.c.h.b16 %v328
    %v2004 = vunpack.c.l.b16 %v329
    %v2005 = vunpack.c.h.b16 %v329
    %v2006 = vunpack.c.l.b16 %v330
    %v2007 = vunpack.c.h.b16 %v330
    %v2008 = vunpack.c.l.b16 %v331
    %v2009 = vunpack.c.h.b16 %v331
    %v2010 = vunpack.c.l.b16 %v332
    %v2011 = vunpack.c.h.b16 %v332
    %v2012 = vunpack.c.l.b16 %v333
    %v2013 = vunpack.c.h.b16 %v333
    %v2014 = vunpack.c.l.b16 %v334
    %v2015 = vunpack.c.h.b16 %v334
    %v2016 = vunpack.c.l.b16 %v335
    %v2017 = vunpack.c.h.b16 %v335
    %v2018 = vunpack.c.l.b16 %v336
    %v2019 = vunpack.c.h.b16 %v336
    %v2020 = vunpack.c.l.b16 %v337
    %v2021 = vunpack.c.h.b16 %v337
    %v2022 = vunpack.c.l.b16 %v338
    %v2023 = vunpack.c.h.b16 %v338
    %v2024 = vunpack.c.l.b16 %v339
    %v2025 = vunpack.c.h.b16 %v339
    %v2026 = vunpack.c.l.b16 %v340
    %v2027 = vunpack.c.h.b16 %v340
    %v2028 = vunpack.c.l.b16 %v341
    %v2029 = vunpack.c.h.b16 %v341
    %v2030 = vunpack.c.l.b16 %v342
    %v2031 = vunpack.c.h.b16 %v342
    %v2032 = vunpack.c.l.b16 %v343
    %v2033 = vunpack.c.h.b16 %v343
    %v2034 = vunpack.c.l.b16 %v344
    %v2035 = vunpack.c.h.b16 %v344
    %v2036 = vunpack.c.l.b16 %v345
    %v2037 = vunpack.c.h.b16 %v345
    %v2038 = vunpack.c.l.b16 %v346
    %v2039 = vunpack.c.h.b16 %v346
    %v2040 = vunpack.c.l.b16 %v347
    %v2041 = vunpack.c.h.b16 %v347
    %v2042 = vunpack.c.l.b16 %v348
    %v2043 = vunpack.c.h.b16 %v348
    %v2044 = vunpack.c.l.b16 %v349
    %v2045 = vunpack.c.h.b16 %v349
    %v2046 = vunpack.c.l.b16 %v350
    %v2047 = vunpack.c.h.b16 %v350
    %v2048 = vunpack.c.l.b16 %v351
    %v2049 = vunpack.c.h.b16 %v351
    %v2050 = vunpack.c.l.b16 %v352
    %v2051 = vunpack.c.h.b16 %v352
    %v2052 = vunpack.c.l.b16 %v353
    %v2053 = vunpack.c.h.b16 %v353
    %v2054 = vunpack.c.l.b16 %v354
    %v2055 = vunpack.c.h.b16 %v354
    %v2056 = vunpack.c.l.b16 %v355
    %v2057 = vunpack.c.h.b16 %v355
    %v2058 = vunpack.c.l.b16 %v356
    %v2059 = vunpack.c.h.b16 %v356
    %v2060 = vunpack.c.l.b16 %v357
    %v2061 = vunpack.c.h.b16 %v357
    %v2062 = vunpack.c.l.b16 %v358
    %v2063 = vunpack.c.h.b16 %v358
    %v2064 = vunpack.c.l.b16 %v359
    %v2065 = vunpack.c.h.b16 %v359
    %v2066 = vunpack.c.l.b16 %v360
    %v2067 = vunpack.c.h.b16 %v360
    %v2068 = vunpack.c.l.b16 %v361
    %v2069 = vunpack.c.h.b16 %v361
    %v2070 = vunpack.c.l.b16 %v362
    %v2071 = vunpack.c.h.b16 %v362
    %v2072 = vunpack.c.l.b16 %v363
    %v2073 = vunpack.c.h.b16 %v363
    %v2074 = vunpack.c.l.b16 %v364
    %v2075 = vunpack.c.h.b16 %v364
    %v2076 = vunpack.c.l.b16 %v365
    %v2077 = vunpack.c.h.b16 %v365
    %v2078 = vunpack.c.l.b16 %v366
    %v2079 = vunpack.c.h.b16 %v366
    %v2080 = vunpack.c.l.b16 %v367
    %v2081 = vunpack.c.h.b16 %v367
    %v2082 = vunpack.c.l.b16 %v368
    %v2083 = vunpack.c.h.b16 %v368
    %v2084 = vunpack.c.l.b16 %v369
    %v2085 = vunpack.c.h.b16 %v369
    %v2086 = vunpack.c.l.b16 %v370
    %v2087 = vunpack.c.h.b16 %v370
    %v2088 = vunpack.c.l.b16 %v371
    %v2089 = vunpack.c.h.b16 %v371
    %v2090 = vunpack.c.l.b16 %v372
    %v2091 = vunpack.c.h.b16 %v372
    %v2092 = vunpack.c.l.b16 %v373
    %v2093 = vunpack.c.h.b16 %v373
    %v2094 = vunpack.c.l.b16 %v374
    %v2095 = vunpack.c.h.b16 %v374
    %v2096 = vunpack.c.l.b16 %v375
    %v2097 = vunpack.c.h.b16 %v375
    %v2098 = vunpack.c.l.b16 %v376
    %v2099 = vunpack.c.h.b16 %v376
    %v2100 = vunpack.c.l.b16 %v377
    %v2101 = vunpack.c.h.b16 %v377
    %v2102 = vunpack.c.l.b16 %v378
    %v2103 = vunpack.c.h.b16 %v378
    %v2104 = vunpack.c.l.b16 %v379
    %v2105 = vunpack.c.h.b16 %v379
    %v2106 = vunpack.c.l.b16 %v380
    %v2107 = vunpack.c.h.b16 %v380
    %v2108 = vunpack.c.l.b16 %v381
    %v2109 = vunpack.c.h.b16 %v381
    %v2110 = vunpack.c.l.b16 %v382
    %v2111 = vunpack.c.h.b16 %v382
    %v2112 = vunpack.c.l.b16 %v383
    %v2113 = vunpack.c.h.b16 %v383
    %v2114 = vunpack.c.l.b16 %v384
    %v2115 = vunpack.c.h.b16 %v384
    %v2116 = vunpack.c.l.b16 %v385
    %v2117 = vunpack.c.h.b16 %v385
    %v2118 = vunpack.c.l.b16 %v386
    %v2119 = vunpack.c.h.b16 %v386
    %v2120 = vunpack.c.l.b16 %v387
    %v2121 = vunpack.c.h.b16 %v387
    %v2122 = vunpack.c.l.b16 %v388
    %v2123 = vunpack.c.h.b16 %v388
    %v2124 = vunpack.c.l.b16 %v389
    %v2125 = vunpack.c.h.b16 %v389
    %v2126 = vunpack.c.l.b16 %v390
    %v2127 = vunpack.c.h.b16 %v390
    %v2128 = vunpack.c.l.b16 %v391
    %v2129 = vunpack.c.h.b16 %v391
    %v2130 = vunpack.c.l.b16 %v392
    %v2131 = vunpack.c.h.b16 %v392
    %v2132 = vunpack.c.l.b16 %v393
    %v2133 = vunpack.c.h.b16 %v393
    %v2134 = vunpack.c.l.b16 %v394
    %v2135 = vunpack.c.h.b16 %v394
    %v2136 = vunpack.c.l.b16 %v395
    %v2137 = vunpack.c.h.b16 %v395
    %v2138 = vunpack.c.l.b16 %v396
    %v2139 = vunpack.c.h.b16 %v396
    %v2140 = vunpack.c.l.b16 %v397
    %v2141 = vunpack.c.h.b16 %v397
    %v2142 = vunpack.c.l.b16 %v398
    %v2143 = vunpack.c.h.b16 %v398
    %v2144 = vunpack.c.l.b16 %v399
    %v2145 = vunpack.c.h.b16 %v399
    %v2146 = vunpack.c.l.b16 %v400
    %v2147 = vunpack.c.h.b16 %v400
    %v2148 = vunpack.c.l.b16 %v401
    %v2149 = vunpack.c.h.b16 %v401
    %v2150 = vunpack.c.l.b16 %v402
    %v2151 = vunpack.c.h.b16 %v402
    %v2152 = vunpack.c.l.b16 %v403
    %v2153 = vunpack.c.h.b16 %v403
    %v2154 = vunpack.c.l.b16 %v404
    %v2155 = vunpack.c.h.b16 %v404
    %v2156 = vunpack.c.l.b16 %v405
    %v2157 = vunpack.c.h.b16 %v405
    %v2158 = vunpack.c.l.b16 %v406
    %v2159 = vunpack.c.h.b16 %v406
    %v2160 = vunpack.c.l.b16 %v407
    %v2161 = vunpack.c.h.b16 %v407
    %v2162 = vunpack.c.l.b16 %v408
    %v2163 = vunpack.c.h.b16 %v408
    %v2164 = vunpack.c.l.b16 %v409
    %v2165 = vunpack.c.h.b16 %v409
    %v2166 = vunpack.c.l.b16 %v410
    %v2167 = vunpack.c.h.b16 %v410
    %v2168 = vunpack.c.l.b16 %v411
    %v2169 = vunpack.c.h.b16 %v411
    %v2170 = vunpack.c.l.b16 %v412
    %v2171 = vunpack.c.h.b16 %v412
    %v2172 = vunpack.c.l.b16 %v413
    %v2173 = vunpack.c.h.b16 %v413
    %v2174 = vunpack.c.l.b16 %v414
    %v2175 = vunpack.c.h.b16 %v414
    %v2176 = vunpack.c.l.b16 %v415
    %v2177 = vunpack.c.h.b16 %v415
    %v2178 = vunpack.c.l.b16 %v416
    %v2179 = vunpack.c.h.b16 %v416
    %v2180 = vunpack.c.l.b16 %v417
    %v2181 = vunpack.c.h.b16 %v417
    %v2182 = vunpack.c.l.b16 %v418
    %v2183 = vunpack.c.h.b16 %v418
    %v2184 = vunpack.c.l.b16 %v419
    %v2185 = vunpack.c.h.b16 %v419
    %v2186 = vunpack.c.l.b16 %v420
    %v2187 = vunpack.c.h.b16 %v420
    %v2188 = vunpack.c.l.b16 %v421
    %v2189 = vunpack.c.h.b16 %v421
    %v2190 = vunpack.c.l.b16 %v422
    %v2191 = vunpack.c.h.b16 %v422
    %v2192 = vunpack.c.l.b16 %v423
    %v2193 = vunpack.c.h.b16 %v423
    %v2194 = vunpack.c.l.b16 %v424
    %v2195 = vunpack.c.h.b16 %v424
    %v2196 = vunpack.c.l.b16 %v425
    %v2197 = vunpack.c.h.b16 %v425
    %v2198 = vunpack.c.l.b16 %v426
    %v2199 = vunpack.c.h.b16 %v426
    %v2200 = vunpack.c.l.b16 %v427
    %v2201 = vunpack.c.h.b16 %v427
    %v2202 = vunpack.c.l.b16 %v428
    %v2203 = vunpack.c.h.b16 %v428
    %v2204 = vunpack.c.l.b16 %v429
    %v2205 = vunpack.c.h.b16 %v429
    %v2206 = vunpack.c.l.b16 %v430
    %v2207 = vunpack.c.h.b16 %v430
    %v2208 = vunpack.c.l.b16 %v431
    %v2209 = vunpack.c.h.b16 %v431
    %v2210 = vunpack.c.l.b16 %v432
    %v2211 = vunpack.c.h.b16 %v432
    %v2212 = vunpack.c.l.b16 %v433
    %v2213 = vunpack.c.h.b16 %v433
    %v2214 = vunpack.c.l.b16 %v434
    %v2215 = vunpack.c.h.b16 %v434
    %v2216 = vunpack.c.l.b16 %v435
    %v2217 = vunpack.c.h.b16 %v435
    %v2218 = vunpack.c.l.b16 %v436
    %v2219 = vunpack.c.h.b16 %v436
    %v2220 = vunpack.c.l.b16 %v437
    %v2221 = vunpack.c.h.b16 %v437
    %v2222 = vunpack.c.l.b16 %v438
    %v2223 = vunpack.c.h.b16 %v438
    %v2224 = vunpack.c.l.b16 %v439
    %v2225 = vunpack.c.h.b16 %v439
    %v2226 = vunpack.c.l.b16 %v440
    %v2227 = vunpack.c.h.b16 %v440
    %v2228 = vunpack.c.l.b16 %v441
    %v2229 = vunpack.c.h.b16 %v441
    %v2230 = vunpack.c.l.b16 %v442
    %v2231 = vunpack.c.h.b16 %v442
    %v2232 = vunpack.c.l.b16 %v443
    %v2233 = vunpack.c.h.b16 %v443
    %v2234 = vunpack.c.l.b16 %v444
    %v2235 = vunpack.c.h.b16 %v444
    %v2236 = vunpack.c.l.b16 %v445
    %v2237 = vunpack.c.h.b16 %v445
    %v2238 = vunpack.c.l.b16 %v446
    %v2239 = vunpack.c.h.b16 %v446
    %v2240 = vunpack.c.l.b16 %v447
    %v2241 = vunpack.c.h.b16 %v447
    %v2242 = vunpack.c.l.b16 %v448
    %v2243 = vunpack.c.h.b16 %v448
    %v2244 = vunpack.c.l.b16 %v449
    %v2245 = vunpack.c.h.b16 %v449
    %v2246 = vunpack.c.l.b16 %v450
    %v2247 = vunpack.c.h.b16 %v450
    %v2248 = vunpack.c.l.b16 %v451
    %v2249 = vunpack.c.h.b16 %v451
    %v2250 = vunpack.c.l.b16 %v452
    %v2251 = vunpack.c.h.b16 %v452
    %v2252 = vunpack.c.l.b16 %v453
    %v2253 = vunpack.c.h.b16 %v453
    %v2254 = vunpack.c.l.b16 %v454
    %v2255 = vunpack.c.h.b16 %v454
    %v2256 = vunpack.c.l.b16 %v455
    %v2257 = vunpack.c.h.b16 %v455
    %v2258 = vunpack.c.l.b16 %v456
    %v2259 = vunpack.c.h.b16 %v456
    %v2260 = vunpack.c.l.b16 %v457
    %v2261 = vunpack.c.h.b16 %v457
    %v2262 = vunpack.c.l.b16 %v458
    %v2263 = vunpack.c.h.b16 %v458
    %v2264 = vunpack.c.l.b16 %v459
    %v2265 = vunpack.c.h.b16 %v459
    %v2266 = vunpack.c.l.b16 %v460
    %v2267 = vunpack.c.h.b16 %v460
    %v2268 = vunpack.c.l.b16 %v461
    %v2269 = vunpack.c.h.b16 %v461
    %v2270 = vunpack.c.l.b16 %v462
    %v2271 = vunpack.c.h.b16 %v462
    %v2272 = vunpack.c.l.b16 %v463
    %v2273 = vunpack.c.h.b16 %v463
    %v2274 = vunpack.c.l.b16 %v464
    %v2275 = vunpack.c.h.b16 %v464
    %v2276 = vunpack.c.l.b16 %v465
    %v2277 = vunpack.c.h.b16 %v465
    %v2278 = vunpack.c.l.b16 %v466
    %v2279 = vunpack.c.h.b16 %v466
    %v2280 = vunpack.c.l.b16 %v467
    %v2281 = vunpack.c.h.b16 %v467
    %v2282 = vunpack.c.l.b16 %v468
    %v2283 = vunpack.c.h.b16 %v468
    %v2284 = vunpack.c.l.b16 %v469
    %v2285 = vunpack.c.h.b16 %v469
    %v2286 = vunpack.c.l.b16 %v470
    %v2287 = vunpack.c.h.b16 %v470
    %v2288 = vunpack.c.l.b16 %v471
    %v2289 = vunpack.c.h.b16 %v471
    %v2290 = vunpack.c.l.b16 %v472
    %v2291 = vunpack.c.h.b16 %v472
    %v2292 = vunpack.c.l.b16 %v473
    %v2293 = vunpack.c.h.b16 %v473
    %v2294 = vunpack.c.l.b16 %v474
    %v2295 = vunpack.c.h.b16 %v474
    %v2296 = vunpack.c.l.b16 %v475
    %v2297 = vunpack.c.h.b16 %v475
    %v2298 = vunpack.c.l.b16 %v476
    %v2299 = vunpack.c.h.b16 %v476
    %v2300 = vunpack.c.l.b16 %v477
    %v2301 = vunpack.c.h.b16 %v477
    %v2302 = vunpack.c.l.b16 %v478
    %v2303 = vunpack.c.h.b16 %v478
    %v2304 = vunpack.c.l.b16 %v479
    %v2305 = vunpack.c.h.b16 %v479
    %v2306 = vunpack.c.l.b16 %v480
    %v2307 = vunpack.c.h.b16 %v480
    %v2308 = vunpack.c.l.b16 %v481
    %v2309 = vunpack.c.h.b16 %v481
    %v2310 = vunpack.c.l.b16 %v482
    %v2311 = vunpack.c.h.b16 %v482
    %v2312 = vunpack.c.l.b16 %v483
    %v2313 = vunpack.c.h.b16 %v483
    %v2314 = vunpack.c.l.b16 %v484
    %v2315 = vunpack.c.h.b16 %v484
    %v2316 = vunpack.c.l.b16 %v485
    %v2317 = vunpack.c.h.b16 %v485
    %v2318 = vunpack.c.l.b16 %v486
    %v2319 = vunpack.c.h.b16 %v486
    %v2320 = vunpack.c.l.b16 %v487
    %v2321 = vunpack.c.h.b16 %v487
    %v2322 = vunpack.c.l.b16 %v488
    %v2323 = vunpack.c.h.b16 %v488
    %v2324 = vunpack.c.l.b16 %v489
    %v2325 = vunpack.c.h.b16 %v489
    %v2326 = vunpack.c.l.b16 %v490
    %v2327 = vunpack.c.h.b16 %v490
    %v2328 = vunpack.c.l.b16 %v491
    %v2329 = vunpack.c.h.b16 %v491
    %v2330 = vunpack.c.l.b16 %v492
    %v2331 = vunpack.c.h.b16 %v492
    %v2332 = vunpack.c.l.b16 %v493
    %v2333 = vunpack.c.h.b16 %v493
    %v2334 = vunpack.c.l.b16 %v494
    %v2335 = vunpack.c.h.b16 %v494
    %v2336 = vunpack.c.l.b16 %v495
    %v2337 = vunpack.c.h.b16 %v495
    %v2338 = vunpack.c.l.b16 %v496
    %v2339 = vunpack.c.h.b16 %v496
    %v2340 = vunpack.c.l.b16 %v497
    %v2341 = vunpack.c.h.b16 %v497
    %v2342 = vunpack.c.l.b16 %v498
    %v2343 = vunpack.c.h.b16 %v498
    %v2344 = vunpack.c.l.b16 %v499
    %v2345 = vunpack.c.h.b16 %v499
    %v2346 = vunpack.c.l.b16 %v500
    %v2347 = vunpack.c.h.b16 %v500
    %v2348 = vunpack.c.l.b16 %v501
    %v2349 = vunpack.c.h.b16 %v501
    %v2350 = vunpack.c.l.b16 %v502
    %v2351 = vunpack.c.h.b16 %v502
    %v2352 = vunpack.c.l.b16 %v503
    %v2353 = vunpack.c.h.b16 %v503
    %v2354 = vunpack.c.l.b16 %v504
    %v2355 = vunpack.c.h.b16 %v504
    %v2356 = vunpack.c.l.b16 %v505
    %v2357 = vunpack.c.h.b16 %v505
    %v2358 = vunpack.c.l.b16 %v506
    %v2359 = vunpack.c.h.b16 %v506
    %v2360 = vunpack.c.l.b16 %v507
    %v2361 = vunpack.c.h.b16 %v507
    %v2362 = vunpack.c.l.b16 %v508
    %v2363 = vunpack.c.h.b16 %v508
    %v2364 = vunpack.c.l.b16 %v509
    %v2365 = vunpack.c.h.b16 %v509
    %v2366 = vunpack.c.l.b16 %v510
    %v2367 = vunpack.c.h.b16 %v510
    %v2368 = vunpack.c.l.b16 %v511
    %v2369 = vunpack.c.h.b16 %v511
    %v2370 = vunpack.c.l.b16 %v512
    %v2371 = vunpack.c.h.b16 %v512
    %v2372 = vunpack.c.l.b16 %v513
    %v2373 = vunpack.c.h.b16 %v513
    %v2374 = vunpack.c.l.b16 %v514
    %v2375 = vunpack.c.h.b16 %v514
    %v2376 = vunpack.c.l.b16 %v515
    %v2377 = vunpack.c.h.b16 %v515
    %v2378 = vunpack.c.l.b16 %v516
    %v2379 = vunpack.c.h.b16 %v516
    %v2380 = vunpack.c.l.b16 %v517
    %v2381 = vunpack.c.h.b16 %v517
    %v2382 = vunpack.c.l.b16 %v518
    %v2383 = vunpack.c.h.b16 %v518
    %v2384 = vunpack.c.l.b16 %v519
    %v2385 = vunpack.c.h.b16 %v519
    %v2386 = vunpack.c.l.b16 %v520
    %v2387 = vunpack.c.h.b16 %v520
    %v2388 = vunpack.c.l.b16 %v521
    %v2389 = vunpack.c.h.b16 %v521
    %v2390 = vunpack.c.l.b16 %v522
    %v2391 = vunpack.c.h.b16 %v522
    %v2392 = vunpack.c.l.b16 %v523
    %v2393 = vunpack.c.h.b16 %v523
    %v2394 = vunpack.c.l.b16 %v524
    %v2395 = vunpack.c.h.b16 %v524
    %v2396 = vunpack.c.l.b16 %v525
    %v2397 = vunpack.c.h.b16 %v525
    %v2398 = vunpack.c.l.b16 %v526
    %v2399 = vunpack.c.h.b16 %v526
    %v2400 = vunpack.c.l.b16 %v527
    %v2401 = vunpack.c.h.b16 %v527
    %v2402 = vunpack.c.l.b16 %v528
    %v2403 = vunpack.c.h.b16 %v528
    %v2404 = vunpack.c.l.b16 %v529
    %v2405 = vunpack.c.h.b16 %v529
    %v2406 = vunpack.c.l.b16 %v530
    %v2407 = vunpack.c.h.b16 %v530
    %v2408 = vunpack.c.l.b16 %v531
    %v2409 = vunpack.c.h.b16 %v531
    %v2410 = vunpack.c.l.b16 %v532
    %v2411 = vunpack.c.h.b16 %v532
    %v2412 = vunpack.c.l.b16 %v533
    %v2413 = vunpack.c.h.b16 %v533
    %v2414 = vunpack.c.l.b16 %v534
    %v2415 = vunpack.c.h.b16 %v534
    %v2416 = vunpack.c.l.b16 %v535
    %v2417 = vunpack.c.h.b16 %v535
    %v2418 = vunpack.c.l.b16 %v536
    %v2419 = vunpack.c.h.b16 %v536
    %v2420 = vunpack.c.l.b16 %v537
    %v2421 = vunpack.c.h.b16 %v537
    %v2422 = vunpack.c.l.b16 %v538
    %v2423 = vunpack.c.h.b16 %v538
    %v2424 = vunpack.c.l.b16 %v539
    %v2425 = vunpack.c.h.b16 %v539
    %v2426 = vunpack.c.l.b16 %v540
    %v2427 = vunpack.c.h.b16 %v540
    %v2428 = vunpack.c.l.b16 %v541
    %v2429 = vunpack.c.h.b16 %v541
    %v2430 = vunpack.c.l.b16 %v542
    %v2431 = vunpack.c.h.b16 %v542
    %v2432 = vunpack.c.l.b16 %v543
    %v2433 = vunpack.c.h.b16 %v543
    %v2434 = vunpack.c.l.b16 %v544
    %v2435 = vunpack.c.h.b16 %v544
    %v2436 = vunpack.c.l.b16 %v545
    %v2437 = vunpack.c.h.b16 %v545
    %v2438 = vunpack.c.l.b16 %v546
    %v2439 = vunpack.c.h.b16 %v546
    %v2440 = vunpack.c.l.b16 %v547
    %v2441 = vunpack.c.h.b16 %v547
    %v2442 = vunpack.c.l.b16 %v548
    %v2443 = vunpack.c.h.b16 %v548
    %v2444 = vunpack.c.l.b16 %v549
    %v2445 = vunpack.c.h.b16 %v549
    %v2446 = vunpack.c.l.b16 %v550
    %v2447 = vunpack.c.h.b16 %v550
    %v2448 = vunpack.c.l.b16 %v551
    %v2449 = vunpack.c.h.b16 %v551
    %v2450 = vunpack.c.l.b16 %v552
    %v2451 = vunpack.c.h.b16 %v552
    %v2452 = vunpack.c.l.b16 %v553
    %v2453 = vunpack.c.h.b16 %v553
    %v2454 = vunpack.c.l.b16 %v554
    %v2455 = vunpack.c.h.b16 %v554
    %v2456 = vunpack.c.l.b16 %v555
    %v2457 = vunpack.c.h.b16 %v555
    %v2458 = vunpack.c.l.b16 %v556
    %v2459 = vunpack.c.h.b16 %v556
    %v2460 = vunpack.c.l.b16 %v557
    %v2461 = vunpack.c.h.b16 %v557
    %v2462 = vunpack.c.l.b16 %v558
    %v2463 = vunpack.c.h.b16 %v558
    %v2464 = vunpack.c.l.b16 %v559
    %v2465 = vunpack.c.h.b16 %v559
    %v2466 = vunpack.c.l.b16 %v560
    %v2467 = vunpack.c.h.b16 %v560
    %v2468 = vunpack.c.l.b16 %v561
    %v2469 = vunpack.c.h.b16 %v561
    %v2470 = vunpack.c.l.b16 %v562
    %v2471 = vunpack.c.h.b16 %v562
    %v2472 = vunpack.c.l.b16 %v563
    %v2473 = vunpack.c.h.b16 %v563
    %v2474 = vunpack.c.l.b16 %v564
    %v2475 = vunpack.c.h.b16 %v564
    %v2476 = vunpack.c.l.b16 %v565
    %v2477 = vunpack.c.h.b16 %v565
    %v2478 = vunpack.c.l.b16 %v566
    %v2479 = vunpack.c.h.b16 %v566
    %v2480 = vunpack.c.l.b16 %v567
    %v2481 = vunpack.c.h.b16 %v567
    %v2482 = vunpack.c.l.b16 %v568
    %v2483 = vunpack.c.h.b16 %v568
    %v2484 = vunpack.c.l.b16 %v569
    %v2485 = vunpack.c.h.b16 %v569
    %v2486 = vunpack.c.l.b16 %v570
    %v2487 = vunpack.c.h.b16 %v570
    %v2488 = vunpack.c.l.b16 %v571
    %v2489 = vunpack.c.h.b16 %v571
    %v2490 = vunpack.c.l.b16 %v572
    %v2491 = vunpack.c.h.b16 %v572
    %v2492 = vunpack.c.l.b16 %v573
    %v2493 = vunpack.c.h.b16 %v573
    %v2494 = vunpack.c.l.b16 %v574
    %v2495 = vunpack.c.h.b16 %v574
    %v2496 = vunpack.c.l.b16 %v575
    %v2497 = vunpack.c.h.b16 %v575
    %v2498 = vunpack.c.l.b16 %v576
    %v2499 = vunpack.c.h.b16 %v576
    %v2500 = vunpack.c.l.b16 %v577
    %v2501 = vunpack.c.h.b16 %v577
    %v2502 = vunpack.c.l.b16 %v578
    %v2503 = vunpack.c.h.b16 %v578
    %v2504 = vunpack.c.l.b16 %v579
    %v2505 = vunpack.c.h.b16 %v579
    %v2506 = vunpack.c.l.b16 %v580
    %v2507 = vunpack.c.h.b16 %v580
    %v2508 = vunpack.c.l.b16 %v581
    %v2509 = vunpack.c.h.b16 %v581
    %v2510 = vunpack.c.l.b16 %v582
    %v2511 = vunpack.c.h.b16 %v582
    %v2512 = vunpack.c.l.b16 %v583
    %v2513 = vunpack.c.h.b16 %v583
    %v2514 = vunpack.c.l.b16 %v584
    %v2515 = vunpack.c.h.b16 %v584
    %v2516 = vunpack.c.l.b16 %v585
    %v2517 = vunpack.c.h.b16 %v585
    %v2518 = vunpack.c.l.b16 %v586
    %v2519 = vunpack.c.h.b16 %v586
    %v2520 = vunpack.c.l.b16 %v587
    %v2521 = vunpack.c.h.b16 %v587
    %v2522 = vunpack.c.l.b16 %v588
    %v2523 = vunpack.c.h.b16 %v588
    %v2524 = vunpack.c.l.b16 %v589
    %v2525 = vunpack.c.h.b16 %v589
    %v2526 = vunpack.c.l.b16 %v590
    %v2527 = vunpack.c.h.b16 %v590
    %v2528 = vunpack.c.l.b16 %v591
    %v2529 = vunpack.c.h.b16 %v591
    %v2530 = vunpack.c.l.b16 %v592
    %v2531 = vunpack.c.h.b16 %v592
    %v2532 = vunpack.c.l.b16 %v593
    %v2533 = vunpack.c.h.b16 %v593
    %v2534 = vunpack.c.l.b16 %v594
    %v2535 = vunpack.c.h.b16 %v594
    %v2536 = vunpack.c.l.b16 %v595
    %v2537 = vunpack.c.h.b16 %v595
    %v2538 = vunpack.c.l.b16 %v596
    %v2539 = vunpack.c.h.b16 %v596
    %v2540 = vunpack.c.l.b16 %v597
    %v2541 = vunpack.c.h.b16 %v597
    %v2542 = vunpack.c.l.b16 %v598
    %v2543 = vunpack.c.h.b16 %v598
    %v2544 = vunpack.c.l.b16 %v599
    %v2545 = vunpack.c.h.b16 %v599
    %v2546 = vunpack.c.l.b16 %v600
    %v2547 = vunpack.c.h.b16 %v600
    %v2548 = vunpack.c.l.b16 %v601
    %v2549 = vunpack.c.h.b16 %v601
    %v2550 = vunpack.c.l.b16 %v602
    %v2551 = vunpack.c.h.b16 %v602
    %v2552 = vunpack.c.l.b16 %v603
    %v2553 = vunpack.c.h.b16 %v603
    %v2554 = vunpack.c.l.b16 %v604
    %v2555 = vunpack.c.h.b16 %v604
    %v2556 = vunpack.c.l.b16 %v605
    %v2557 = vunpack.c.h.b16 %v605
    %v2558 = vunpack.c.l.b16 %v606
    %v2559 = vunpack.c.h.b16 %v606
    %v2560 = vunpack.c.l.b16 %v607
    %v2561 = vunpack.c.h.b16 %v607
    %v2562 = vunpack.c.l.b16 %v608
    %v2563 = vunpack.c.h.b16 %v608
    %v2564 = vunpack.c.l.b16 %v609
    %v2565 = vunpack.c.h.b16 %v609
    %v2566 = vunpack.c.l.b16 %v610
    %v2567 = vunpack.c.h.b16 %v610
    %v2568 = vunpack.c.l.b16 %v611
    %v2569 = vunpack.c.h.b16 %v611
    %v2570 = vunpack.c.l.b16 %v612
    %v2571 = vunpack.c.h.b16 %v612
    %v2572 = vunpack.c.l.b16 %v613
    %v2573 = vunpack.c.h.b16 %v613
    %v2574 = vunpack.c.l.b16 %v614
    %v2575 = vunpack.c.h.b16 %v614
    %v2576 = vunpack.c.l.b16 %v615
    %v2577 = vunpack.c.h.b16 %v615
    %v2578 = vunpack.c.l.b16 %v616
    %v2579 = vunpack.c.h.b16 %v616
    %v2580 = vunpack.c.l.b16 %v617
    %v2581 = vunpack.c.h.b16 %v617
    %v2582 = vunpack.c.l.b16 %v618
    %v2583 = vunpack.c.h.b16 %v618
    %v2584 = vunpack.c.l.b16 %v619
    %v2585 = vunpack.c.h.b16 %v619
    %v2586 = vunpack.c.l.b16 %v620
    %v2587 = vunpack.c.h.b16 %v620
    %v2588 = vunpack.c.l.b16 %v621
    %v2589 = vunpack.c.h.b16 %v621
    %v2590 = vunpack.c.l.b16 %v622
    %v2591 = vunpack.c.h.b16 %v622
    %v2592 = vunpack.c.l.b16 %v623
    %v2593 = vunpack.c.h.b16 %v623
    %v2594 = vunpack.c.l.b16 %v624
    %v2595 = vunpack.c.h.b16 %v624
    %v2596 = vunpack.c.l.b16 %v625
    %v2597 = vunpack.c.h.b16 %v625
    %v2598 = vunpack.c.l.b16 %v626
    %v2599 = vunpack.c.h.b16 %v626
    %v2600 = vunpack.c.l.b16 %v627
    %v2601 = vunpack.c.h.b16 %v627
    %v2602 = vunpack.c.l.b16 %v628
    %v2603 = vunpack.c.h.b16 %v628
    %v2604 = vunpack.c.l.b16 %v629
    %v2605 = vunpack.c.h.b16 %v629
    %v2606 = vunpack.c.l.b16 %v630
    %v2607 = vunpack.c.h.b16 %v630
    %v2608 = vunpack.c.l.b16 %v631
    %v2609 = vunpack.c.h.b16 %v631
    %v2610 = vunpack.c.l.b16 %v632
    %v2611 = vunpack.c.h.b16 %v632
    %v2612 = vunpack.c.l.b16 %v633
    %v2613 = vunpack.c.h.b16 %v633
    %v2614 = vunpack.c.l.b16 %v634
    %v2615 = vunpack.c.h.b16 %v634
    %v2616 = vunpack.c.l.b16 %v635
    %v2617 = vunpack.c.h.b16 %v635
    %v2618 = vunpack.c.l.b16 %v636
    %v2619 = vunpack.c.h.b16 %v636
    %v2620 = vunpack.c.l.b16 %v637
    %v2621 = vunpack.c.h.b16 %v637
    %v2622 = vunpack.c.l.b16 %v638
    %v2623 = vunpack.c.h.b16 %v638
    %v2624 = vunpack.c.l.b16 %v639
    %v2625 = vunpack.c.h.b16 %v639
    %v2626 = vunpack.c.l.b16 %v640
    %v2627 = vunpack.c.h.b16 %v640
    %v2628 = vunpack.c.l.b16 %v641
    %v2629 = vunpack.c.h.b16 %v641
    %v2630 = vunpack.c.l.b16 %v642
    %v2631 = vunpack.c.h.b16 %v642
    %v2632 = vunpack.c.l.b16 %v643
    %v2633 = vunpack.c.h.b16 %v643
    %v2634 = vunpack.c.l.b16 %v644
    %v2635 = vunpack.c.h.b16 %v644
    %v2636 = vunpack.c.l.b16 %v645
    %v2637 = vunpack.c.h.b16 %v645
    %v2638 = vunpack.c.l.b16 %v646
    %v2639 = vunpack.c.h.b16 %v646
    %v2640 = vunpack.c.l.b16 %v647
    %v2641 = vunpack.c.h.b16 %v647
    %v2642 = vunpack.c.l.b16 %v648
    %v2643 = vunpack.c.h.b16 %v648
    %v2644 = vunpack.c.l.b16 %v649
    %v2645 = vunpack.c.h.b16 %v649
    %v2646 = vunpack.c.l.b16 %v650
    %v2647 = vunpack.c.h.b16 %v650
    %v2648 = vunpack.c.l.b16 %v651
    %v2649 = vunpack.c.h.b16 %v651
    %v2650 = vunpack.c.l.b16 %v652
    %v2651 = vunpack.c.h.b16 %v652
    %v2652 = vunpack.c.l.b16 %v653
    %v2653 = vunpack.c.h.b16 %v653
    %v2654 = vunpack.c.l.b16 %v654
    %v2655 = vunpack.c.h.b16 %v654
    %v2656 = vunpack.c.l.b16 %v655
    %v2657 = vunpack.c.h.b16 %v655
    %v2658 = vunpack.c.l.b16 %v656
    %v2659 = vunpack.c.h.b16 %v656
    %v2660 = vunpack.c.l.b16 %v657
    %v2661 = vunpack.c.h.b16 %v657
    %v2662 = vunpack.c.l.b16 %v658
    %v2663 = vunpack.c.h.b16 %v658
    %v2664 = vunpack.c.l.b16 %v659
    %v2665 = vunpack.c.h.b16 %v659
    %v2666 = vunpack.c.l.b16 %v660
    %v2667 = vunpack.c.h.b16 %v660
    %v2668 = vunpack.c.l.b16 %v661
    %v2669 = vunpack.c.h.b16 %v661
    %v2670 = vunpack.c.l.b16 %v662
    %v2671 = vunpack.c.h.b16 %v662
    %v2672 = vunpack.c.l.b16 %v663
    %v2673 = vunpack.c.h.b16 %v663
    %v2674 = vunpack.c.l.b16 %v664
    %v2675 = vunpack.c.h.b16 %v664
    %v2676 = vunpack.c.l.b16 %v665
    %v2677 = vunpack.c.h.b16 %v665
    %v2678 = vunpack.c.l.b16 %v666
    %v2679 = vunpack.c.h.b16 %v666
    %v2680 = vunpack.c.l.b16 %v667
    %v2681 = vunpack.c.h.b16 %v667
    %v2682 = vunpack.c.l.b16 %v668
    %v2683 = vunpack.c.h.b16 %v668
    %v2684 = vunpack.c.l.b16 %v669
    %v2685 = vunpack.c.h.b16 %v669
    %v2686 = vunpack.c.l.b16 %v670
    %v2687 = vunpack.c.h.b16 %v670
    %v2688 = vunpack.c.l.b16 %v671
    %v2689 = vunpack.c.h.b16 %v671
    %v2690 = vunpack.c.l.b16 %v672
    %v2691 = vunpack.c.h.b16 %v672
    %v2692 = vunpack.c.l.b16 %v673
    %v2693 = vunpack.c.h.b16 %v673
    %v2694 = vunpack.c.l.b16 %v674
    %v2695 = vunpack.c.h.b16 %v674
    %v2696 = vunpack.c.l.b16 %v675
    %v2697 = vunpack.c.h.b16 %v675
    %v2698 = vunpack.c.l.b16 %v676
    %v2699 = vunpack.c.h.b16 %v676
    %v2700 = vunpack.c.l.b16 %v677
    %v2701 = vunpack.c.h.b16 %v677
    %v2702 = vunpack.c.l.b16 %v678
    %v2703 = vunpack.c.h.b16 %v678
    %v2704 = vunpack.c.l.b16 %v679
    %v2705 = vunpack.c.h.b16 %v679
    %v2706 = vunpack.c.l.b16 %v680
    %v2707 = vunpack.c.h.b16 %v680
    %v2708 = vunpack.c.l.b16 %v681
    %v2709 = vunpack.c.h.b16 %v681
    %v2710 = vunpack.c.l.b16 %v682
    %v2711 = vunpack.c.h.b16 %v682
    %v2712 = vunpack.c.l.b16 %v683
    %v2713 = vunpack.c.h.b16 %v683
    %v2714 = vunpack.c.l.b16 %v684
    %v2715 = vunpack.c.h.b16 %v684
    %v2716 = vunpack.c.l.b16 %v685
    %v2717 = vunpack.c.h.b16 %v685
    %v2718 = vunpack.c.l.b16 %v686
    %v2719 = vunpack.c.h.b16 %v686
    %v2720 = vunpack.c.l.b16 %v687
    %v2721 = vunpack.c.h.b16 %v687
    %v2722 = vunpack.c.l.b16 %v688
    %v2723 = vunpack.c.h.b16 %v688
    %v2724 = vunpack.c.l.b16 %v689
    %v2725 = vunpack.c.h.b16 %v689
    %v2726 = vunpack.c.l.b16 %v690
    %v2727 = vunpack.c.h.b16 %v690
    %v2728 = vunpack.c.l.b16 %v691
    %v2729 = vunpack.c.h.b16 %v691
    %v2730 = vunpack.c.l.b16 %v692
    %v2731 = vunpack.c.h.b16 %v692
    %v2732 = vunpack.c.l.b16 %v693
    %v2733 = vunpack.c.h.b16 %v693
    %v2734 = vunpack.c.l.b16 %v694
    %v2735 = vunpack.c.h.b16 %v694
    %v2736 = vunpack.c.l.b16 %v695
    %v2737 = vunpack.c.h.b16 %v695
    %v2738 = vunpack.c.l.b16 %v696
    %v2739 = vunpack.c.h.b16 %v696
    %v2740 = vunpack.c.l.b16 %v697
    %v2741 = vunpack.c.h.b16 %v697
    %v2742 = vunpack.c.l.b16 %v698
    %v2743 = vunpack.c.h.b16 %v698
    %v2744 = vunpack.c.l.b16 %v699
    %v2745 = vunpack.c.h.b16 %v699
    %v2746 = vunpack.c.l.b16 %v700
    %v2747 = vunpack.c.h.b16 %v700
    %v2748 = vunpack.c.l.b16 %v701
    %v2749 = vunpack.c.h.b16 %v701
    %v2750 = vunpack.c.l.b16 %v702
    %v2751 = vunpack.c.h.b16 %v702
    %v2752 = vunpack.c.l.b16 %v703
    %v2753 = vunpack.c.h.b16 %v703
    %v2754 = vunpack.c.l.b16 %v704
    %v2755 = vunpack.c.h.b16 %v704
    %v2756 = vunpack.c.l.b16 %v705
    %v2757 = vunpack.c.h.b16 %v705
    %v2758 = vunpack.c.l.b16 %v706
    %v2759 = vunpack.c.h.b16 %v706
    %v2760 = vunpack.c.l.b16 %v707
    %v2761 = vunpack.c.h.b16 %v707
    %v2762 = vunpack.c.l.b16 %v708
    %v2763 = vunpack.c.h.b16 %v708
    %v2764 = vunpack.c.l.b16 %v709
    %v2765 = vunpack.c.h.b16 %v709
    %v2766 = vunpack.c.l.b16 %v710
    %v2767 = vunpack.c.h.b16 %v710
    %v2768 = vunpack.c.l.b16 %v711
    %v2769 = vunpack.c.h.b16 %v711
    %v2770 = vunpack.c.l.b16 %v712
    %v2771 = vunpack.c.h.b16 %v712
    %v2772 = vunpack.c.l.b16 %v713
    %v2773 = vunpack.c.h.b16 %v713
    %v2774 = vunpack.c.l.b16 %v714
    %v2775 = vunpack.c.h.b16 %v714
    %v2776 = vunpack.c.l.b16 %v715
    %v2777 = vunpack.c.h.b16 %v715
    %v2778 = vunpack.c.l.b16 %v716
    %v2779 = vunpack.c.h.b16 %v716
    %v2780 = vunpack.c.l.b16 %v717
    %v2781 = vunpack.c.h.b16 %v717
    %v2782 = vunpack.c.l.b16 %v718
    %v2783 = vunpack.c.h.b16 %v718
    %v2784 = vunpack.c.l.b16 %v719
    %v2785 = vunpack.c.h.b16 %v719
    %v2786 = vunpack.c.l.b16 %v720
    %v2787 = vunpack.c.h.b16 %v720
    %v2788 = vunpack.c.l.b16 %v721
    %v2789 = vunpack.c.h.b16 %v721
    %v2790 = vunpack.c.l.b16 %v722
    %v2791 = vunpack.c.h.b16 %v722
    %v2792 = vunpack.c.l.b16 %v723
    %v2793 = vunpack.c.h.b16 %v723
    %v2794 = vunpack.c.l.b16 %v724
    %v2795 = vunpack.c.h.b16 %v724
    %v2796 = vunpack.c.l.b16 %v725
    %v2797 = vunpack.c.h.b16 %v725
    %v2798 = vunpack.c.l.b16 %v726
    %v2799 = vunpack.c.h.b16 %v726
    %v2800 = vunpack.c.l.b16 %v727
    %v2801 = vunpack.c.h.b16 %v727
    %v2802 = vunpack.c.l.b16 %v728
    %v2803 = vunpack.c.h.b16 %v728
    %v2804 = vunpack.c.l.b16 %v729
    %v2805 = vunpack.c.h.b16 %v729
    %v2806 = vunpack.c.l.b16 %v730
    %v2807 = vunpack.c.h.b16 %v730
    %v2808 = vunpack.c.l.b16 %v731
    %v2809 = vunpack.c.h.b16 %v731
    %v2810 = vunpack.c.l.b16 %v732
    %v2811 = vunpack.c.h.b16 %v732
    %v2812 = vunpack.c.l.b16 %v733
    %v2813 = vunpack.c.h.b16 %v733
    %v2814 = vunpack.c.l.b16 %v734
    %v2815 = vunpack.c.h.b16 %v734
    %v2816 = vunpack.c.l.b16 %v735
    %v2817 = vunpack.c.h.b16 %v735
    %v2818 = vunpack.c.l.b16 %v736
    %v2819 = vunpack.c.h.b16 %v736
    %v2820 = vunpack.c.l.b16 %v737
    %v2821 = vunpack.c.h.b16 %v737
    %v2822 = vunpack.c.l.b16 %v738
    %v2823 = vunpack.c.h.b16 %v738
    %v2824 = vunpack.c.l.b16 %v739
    %v2825 = vunpack.c.h.b16 %v739
    %v2826 = vunpack.c.l.b16 %v740
    %v2827 = vunpack.c.h.b16 %v740
    %v2828 = vunpack.c.l.b16 %v741
    %v2829 = vunpack.c.h.b16 %v741
    %v2830 = vunpack.c.l.b16 %v742
    %v2831 = vunpack.c.h.b16 %v742
    %v2832 = vunpack.c.l.b16 %v743
    %v2833 = vunpack.c.h.b16 %v743
    %v2834 = vunpack.c.l.b16 %v744
    %v2835 = vunpack.c.h.b16 %v744
    %v2836 = vunpack.c.l.b16 %v745
    %v2837 = vunpack.c.h.b16 %v745
    %v2838 = vunpack.c.l.b16 %v746
    %v2839 = vunpack.c.h.b16 %v746
    %v2840 = vunpack.c.l.b16 %v747
    %v2841 = vunpack.c.h.b16 %v747
    %v2842 = vunpack.c.l.b16 %v748
    %v2843 = vunpack.c.h.b16 %v748
    %v2844 = vunpack.c.l.b16 %v749
    %v2845 = vunpack.c.h.b16 %v749
    %v2846 = vunpack.c.l.b16 %v750
    %v2847 = vunpack.c.h.b16 %v750
    %v2848 = vunpack.c.l.b16 %v751
    %v2849 = vunpack.c.h.b16 %v751
    %v2850 = vunpack.c.l.b16 %v752
    %v2851 = vunpack.c.h.b16 %v752
    %v2852 = vunpack.c.l.b16 %v753
    %v2853 = vunpack.c.h.b16 %v753
    %v2854 = vunpack.c.l.b16 %v754
    %v2855 = vunpack.c.h.b16 %v754
    %v2856 = vunpack.c.l.b16 %v755
    %v2857 = vunpack.c.h.b16 %v755
    %v2858 = vunpack.c.l.b16 %v756
    %v2859 = vunpack.c.h.b16 %v756
    %v2860 = vunpack.c.l.b16 %v757
    %v2861 = vunpack.c.h.b16 %v757
    %v2862 = vunpack.c.l.b16 %v758
    %v2863 = vunpack.c.h.b16 %v758
    %v2864 = vunpack.c.l.b16 %v759
    %v2865 = vunpack.c.h.b16 %v759
    %v2866 = vunpack.c.l.b16 %v760
    %v2867 = vunpack.c.h.b16 %v760
    %v2868 = vunpack.c.l.b16 %v761
    %v2869 = vunpack.c.h.b16 %v761
    %v2870 = vunpack.c.l.b16 %v762
    %v2871 = vunpack.c.h.b16 %v762
    %v2872 = vunpack.c.l.b16 %v763
    %v2873 = vunpack.c.h.b16 %v763
    %v2874 = vunpack.c.l.b16 %v764
    %v2875 = vunpack.c.h.b16 %v764
    %v2876 = vunpack.c.l.b16 %v765
    %v2877 = vunpack.c.h.b16 %v765
    %v2878 = vunpack.c.l.b16 %v766
    %v2879 = vunpack.c.h.b16 %v766
    %v2880 = vunpack.c.l.b16 %v767
    %v2881 = vunpack.c.h.b16 %v767
    %v2882 = vunpack.c.l.b16 %v768
    %v2883 = vunpack.c.h.b16 %v768
    %v2884 = vunpack.c.l.b16 %v769
    %v2885 = vunpack.c.h.b16 %v769
    %v2886 = vunpack.c.l.b16 %v770
    %v2887 = vunpack.c.h.b16 %v770
    %v2888 = vunpack.c.l.b16 %v771
    %v2889 = vunpack.c.h.b16 %v771
    %v2890 = vunpack.c.l.b16 %v772
    %v2891 = vunpack.c.h.b16 %v772
    %v2892 = vunpack.c.l.b16 %v773
    %v2893 = vunpack.c.h.b16 %v773
    %v2894 = vunpack.c.l.b16 %v774
    %v2895 = vunpack.c.h.b16 %v774
    %v2896 = vunpack.c.l.b16 %v775
    %v2897 = vunpack.c.h.b16 %v775
    %v2898 = vunpack.c.l.b16 %v776
    %v2899 = vunpack.c.h.b16 %v776
    %v2900 = vunpack.c.l.b16 %v777
    %v2901 = vunpack.c.h.b16 %v777
    %v2902 = vunpack.c.l.b16 %v778
    %v2903 = vunpack.c.h.b16 %v778
    %v2904 = vunpack.c.l.b16 %v779
    %v2905 = vunpack.c.h.b16 %v779
    %v2906 = vunpack.c.l.b16 %v780
    %v2907 = vunpack.c.h.b16 %v780
    %v2908 = vunpack.c.l.b16 %v781
    %v2909 = vunpack.c.h.b16 %v781
    %v2910 = vunpack.c.l.b16 %v782
    %v2911 = vunpack.c.h.b16 %v782
    %v2912 = vunpack.c.l.b16 %v783
    %v2913 = vunpack.c.h.b16 %v783
    %v2914 = vunpack.c.l.b16 %v784
    %v2915 = vunpack.c.h.b16 %v784
    %v2916 = vunpack.c.l.b16 %v785
    %v2917 = vunpack.c.h.b16 %v785
    %v2918 = vunpack.c.l.b16 %v786
    %v2919 = vunpack.c.h.b16 %v786
    %v2920 = vunpack.c.l.b16 %v787
    %v2921 = vunpack.c.h.b16 %v787
    %v2922 = vunpack.c.l.b16 %v788
    %v2923 = vunpack.c.h.b16 %v788
    %v2924 = vunpack.c.l.b16 %v789
    %v2925 = vunpack.c.h.b16 %v789
    %v2926 = vunpack.c.l.b16 %v790
    %v2927 = vunpack.c.h.b16 %v790
    %v2928 = vunpack.c.l.b16 %v791
    %v2929 = vunpack.c.h.b16 %v791
    %v2930 = vunpack.c.l.b16 %v792
    %v2931 = vunpack.c.h.b16 %v792
    %v2932 = vunpack.c.l.b16 %v793
    %v2933 = vunpack.c.h.b16 %v793
    %v2934 = vunpack.c.l.b16 %v794
    %v2935 = vunpack.c.h.b16 %v794
    %v2936 = vunpack.c.l.b16 %v795
    %v2937 = vunpack.c.h.b16 %v795
    %v2938 = vunpack.c.l.b16 %v796
    %v2939 = vunpack.c.h.b16 %v796
    %v2940 = vunpack.c.l.b16 %v797
    %v2941 = vunpack.c.h.b16 %v797
    %v2942 = vunpack.c.l.b16 %v798
    %v2943 = vunpack.c.h.b16 %v798
    %v2944 = vunpack.c.l.b16 %v799
    %v2945 = vunpack.c.h.b16 %v799
    %v2946 = vunpack.c.l.b16 %v800
    %v2947 = vunpack.c.h.b16 %v800
    %v2948 = vunpack.c.l.b16 %v801
    %v2949 = vunpack.c.h.b16 %v801
    %v2950 = vunpack.c.l.b16 %v802
    %v2951 = vunpack.c.h.b16 %v802
    %v2952 = vunpack.c.l.b16 %v803
    %v2953 = vunpack.c.h.b16 %v803
    %v2954 = vunpack.c.l.b16 %v804
    %v2955 = vunpack.c.h.b16 %v804
    %v2956 = vunpack.c.l.b16 %v805
    %v2957 = vunpack.c.h.b16 %v805
    %v2958 = vunpack.c.l.b16 %v806
    %v2959 = vunpack.c.h.b16 %v806
    %v2960 = vunpack.c.l.b16 %v807
    %v2961 = vunpack.c.h.b16 %v807
    %v2962 = vunpack.c.l.b16 %v808
    %v2963 = vunpack.c.h.b16 %v808
    %v2964 = vunpack.c.l.b16 %v809
    %v2965 = vunpack.c.h.b16 %v809
    %v2966 = vunpack.c.l.b16 %v810
    %v2967 = vunpack.c.h.b16 %v810
    %v2968 = vunpack.c.l.b16 %v811
    %v2969 = vunpack.c.h.b16 %v811
    %v2970 = vunpack.c.l.b16 %v812
    %v2971 = vunpack.c.h.b16 %v812
    %v2972 = vunpack.c.l.b16 %v813
    %v2973 = vunpack.c.h.b16 %v813
    %v2974 = vunpack.c.l.b16 %v814
    %v2975 = vunpack.c.h.b16 %v814
    %v2976 = vunpack.c.l.b16 %v815
    %v2977 = vunpack.c.h.b16 %v815
    %v2978 = vunpack.c.l.b16 %v816
    %v2979 = vunpack.c.h.b16 %v816
    %v2980 = vunpack.c.l.b16 %v817
    %v2981 = vunpack.c.h.b16 %v817
    %v2982 = vunpack.c.l.b16 %v818
    %v2983 = vunpack.c.h.b16 %v818
    %v2984 = vunpack.c.l.b16 %v819
    %v2985 = vunpack.c.h.b16 %v819
    %v2986 = vunpack.c.l.b16 %v820
    %v2987 = vunpack.c.h.b16 %v820
    %v2988 = vunpack.c.l.b16 %v821
    %v2989 = vunpack.c.h.b16 %v821
    %v2990 = vunpack.c.l.b16 %v822
    %v2991 = vunpack.c.h.b16 %v822
    %v2992 = vunpack.c.l.b16 %v823
    %v2993 = vunpack.c.h.b16 %v823
    %v2994 = vunpack.c.l.b16 %v824
    %v2995 = vunpack.c.h.b16 %v824
    %v2996 = vunpack.c.l.b16 %v825
    %v2997 = vunpack.c.h.b16 %v825
    %v2998 = vunpack.c.l.b16 %v826
    %v2999 = vunpack.c.h.b16 %v826
    %v3000 = vunpack.c.l.b16 %v827
    %v3001 = vunpack.c.h.b16 %v827
    %v3002 = vunpack.c.l.b16 %v828
    %v3003 = vunpack.c.h.b16 %v828
    %v3004 = vunpack.c.l.b16 %v829
    %v3005 = vunpack.c.h.b16 %v829
    %v3006 = vunpack.c.l.b16 %v830
    %v3007 = vunpack.c.h.b16 %v830
    %v3008 = vunpack.c.l.b16 %v831
    %v3009 = vunpack.c.h.b16 %v831
    %v3010 = vunpack.c.l.b16 %v832
    %v3011 = vunpack.c.h.b16 %v832
    %v3012 = vunpack.c.l.b16 %v833
    %v3013 = vunpack.c.h.b16 %v833
    %v3014 = vunpack.c.l.b16 %v834
    %v3015 = vunpack.c.h.b16 %v834
    %v3016 = vunpack.c.l.b16 %v835
    %v3017 = vunpack.c.h.b16 %v835
    %v3018 = vunpack.c.l.b16 %v836
    %v3019 = vunpack.c.h.b16 %v836
    %v3020 = vunpack.c.l.b16 %v837
    %v3021 = vunpack.c.h.b16 %v837
    %v3022 = vunpack.c.l.b16 %v838
    %v3023 = vunpack.c.h.b16 %v838
    %v3024 = vunpack.c.l.b16 %v839
    %v3025 = vunpack.c.h.b16 %v839
    %v3026 = vunpack.c.l.b16 %v840
    %v3027 = vunpack.c.h.b16 %v840
    %v3028 = vunpack.c.l.b16 %v841
    %v3029 = vunpack.c.h.b16 %v841
    %v3030 = vunpack.c.l.b16 %v842
    %v3031 = vunpack.c.h.b16 %v842
    %v3032 = vunpack.c.l.b16 %v843
    %v3033 = vunpack.c.h.b16 %v843
    %v3034 = vunpack.c.l.b16 %v844
    %v3035 = vunpack.c.h.b16 %v844
    %v3036 = vunpack.c.l.b16 %v845
    %v3037 = vunpack.c.h.b16 %v845
    %v3038 = vunpack.c.l.b16 %v846
    %v3039 = vunpack.c.h.b16 %v846
    %v3040 = vunpack.c.l.b16 %v847
    %v3041 = vunpack.c.h.b16 %v847
    %v3042 = vunpack.c.l.b16 %v848
    %v3043 = vunpack.c.h.b16 %v848
    %v3044 = vunpack.c.l.b16 %v849
    %v3045 = vunpack.c.h.b16 %v849
    %v3046 = vunpack.c.l.b16 %v850
    %v3047 = vunpack.c.h.b16 %v850
    %v3048 = vunpack.c.l.b16 %v851
    %v3049 = vunpack.c.h.b16 %v851
    %v3050 = vunpack.c.l.b16 %v852
    %v3051 = vunpack.c.h.b16 %v852
    %v3052 = vunpack.c.l.b16 %v853
    %v3053 = vunpack.c.h.b16 %v853
    %v3054 = vunpack.c.l.b16 %v854
    %v3055 = vunpack.c.h.b16 %v854
    %v3056 = vunpack.c.l.b16 %v855
    %v3057 = vunpack.c.h.b16 %v855
    %v3058 = vunpack.c.l.b16 %v856
    %v3059 = vunpack.c.h.b16 %v856
    %v3060 = vunpack.c.l.b16 %v857
    %v3061 = vunpack.c.h.b16 %v857
    %v3062 = vunpack.c.l.b16 %v858
    %v3063 = vunpack.c.h.b16 %v858
    %v3064 = vunpack.c.l.b16 %v859
    %v3065 = vunpack.c.h.b16 %v859
    %v3066 = vunpack.c.l.b16 %v860
    %v3067 = vunpack.c.h.b16 %v860
    %v3068 = vunpack.c.l.b16 %v861
    %v3069 = vunpack.c.h.b16 %v861
    %v3070 = vunpack.c.l.b16 %v862
    %v3071 = vunpack.c.h.b16 %v862
    %v3072 = vunpack.c.l.b16 %v863
    %v3073 = vunpack.c.h.b16 %v863
    %v3074 = vpack.c.b16 %v1674, %v1666
    %v3075 = vpack.c.b16 %v1675, %v1667
    %v3076 = vpack.c.b16 %v1676, %v1668
    %v3077 = vpack.c.b16 %v1677, %v1669
    %v3078 = vpack.c.b16 %v1678, %v1670
    %v3079 = vpack.c.b16 %v1679, %v1671
    %v3080 = vpack.c.b16 %v1680, %v1672
    %v3081 = vpack.c.b16 %v1681, %v1673
    %v3082 = vpack.c.b16 %v1690, %v1682
    %v3083 = vpack.c.b16 %v1691, %v1683
    %v3084 = vpack.c.b16 %v1692, %v1684
    %v3085 = vpack.c.b16 %v1693, %v1685
    %v3086 = vpack.c.b16 %v1694, %v1686
    %v3087 = vpack.c.b16 %v1695, %v1687
    %v3088 = vpack.c.b16 %v1696, %v1688
    %v3089 = vpack.c.b16 %v1697, %v1689
    %v3090 = vpack.c.b16 %v1706, %v1698
    %v3091 = vpack.c.b16 %v1707, %v1699
    %v3092 = vpack.c.b16 %v1708, %v1700
    %v3093 = vpack.c.b16 %v1709, %v1701
    %v3094 = vpack.c.b16 %v1710, %v1702
    %v3095 = vpack.c.b16 %v1711, %v1703
    %v3096 = vpack.c.b16 %v1712, %v1704
    %v3097 = vpack.c.b16 %v1713, %v1705
    %v3098 = vpack.c.b16 %v1722, %v1714
    %v3099 = vpack.c.b16 %v1723, %v1715
    %v3100 = vpack.c.b16 %v1724, %v1716
    %v3101 = vpack.c.b16 %v1725, %v1717
    %v3102 = vpack.c.b16 %v1726, %v1718
    %v3103 = vpack.c.b16 %v1727, %v1719
    %v3104 = vpack.c.b16 %v1728, %v1720
    %v3105 = vpack.c.b16 %v1729, %v1721
    %v3106 = vpack.c.b16 %v1738, %v1730
    %v3107 = vpack.c.b16 %v1739, %v1731
    %v3108 = vpack.c.b16 %v1740, %v1732
    %v3109 = vpack.c.b16 %v1741, %v1733
    %v3110 = vpack.c.b16 %v1742, %v1734
    %v3111 = vpack.c.b16 %v1743, %v1735
    %v3112 = vpack.c.b16 %v1744, %v1736
    %v3113 = vpack.c.b16 %v1745, %v1737
    %v3114 = vpack.c.b16 %v1754, %v1746
    %v3115 = vpack.c.b16 %v1755, %v1747
    %v3116 = vpack.c.b16 %v1756, %v1748
    %v3117 = vpack.c.b16 %v1757, %v1749
    %v3118 = vpack.c.b16 %v1758, %v1750
    %v3119 = vpack.c.b16 %v1759, %v1751
    %v3120 = vpack.c.b16 %v1760, %v1752
    %v3121 = vpack.c.b16 %v1761, %v1753
    %v3122 = vpack.c.b16 %v1770, %v1762
    %v3123 = vpack.c.b16 %v1771, %v1763
    %v3124 = vpack.c.b16 %v1772, %v1764
    %v3125 = vpack.c.b16 %v1773, %v1765
    %v3126 = vpack.c.b16 %v1774, %v1766
    %v3127 = vpack.c.b16 %v1775, %v1767
    %v3128 = vpack.c.b16 %v1776, %v1768
    %v3129 = vpack.c.b16 %v1777, %v1769
    %v3130 = vpack.c.b16 %v1786, %v1778
    %v3131 = vpack.c.b16 %v1787, %v1779
    %v3132 = vpack.c.b16 %v1788, %v1780
    %v3133 = vpack.c.b16 %v1789, %v1781
    %v3134 = vpack.c.b16 %v1790, %v1782
    %v3135 = vpack.c.b16 %v1791, %v1783
    %v3136 = vpack.c.b16 %v1792, %v1784
    %v3137 = vpack.c.b16 %v1793, %v1785
    %v3138 = vpack.c.b16 %v1802, %v1794
    %v3139 = vpack.c.b16 %v1803, %v1795
    %v3140 = vpack.c.b16 %v1804, %v1796
    %v3141 = vpack.c.b16 %v1805, %v1797
    %v3142 = vpack.c.b16 %v1806, %v1798
    %v3143 = vpack.c.b16 %v1807, %v1799
    %v3144 = vpack.c.b16 %v1808, %v1800
    %v3145 = vpack.c.b16 %v1809, %v1801
    %v3146 = vpack.c.b16 %v1818, %v1810
    %v3147 = vpack.c.b16 %v1819, %v1811
    %v3148 = vpack.c.b16 %v1820, %v1812
    %v3149 = vpack.c.b16 %v1821, %v1813
    %v3150 = vpack.c.b16 %v1822, %v1814
    %v3151 = vpack.c.b16 %v1823, %v1815
    %v3152 = vpack.c.b16 %v1824, %v1816
    %v3153 = vpack.c.b16 %v1825, %v1817
    %v3154 = vpack.c.b16 %v1834, %v1826
    %v3155 = vpack.c.b16 %v1835, %v1827
    %v3156 = vpack.c.b16 %v1836, %v1828
    %v3157 = vpack.c.b16 %v1837, %v1829
    %v3158 = vpack.c.b16 %v1838, %v1830
    %v3159 = vpack.c.b16 %v1839, %v1831
    %v3160 = vpack.c.b16 %v1840, %v1832
    %v3161 = vpack.c.b16 %v1841, %v1833
    %v3162 = vpack.c.b16 %v1850, %v1842
    %v3163 = vpack.c.b16 %v1851, %v1843
    %v3164 = vpack.c.b16 %v1852, %v1844
    %v3165 = vpack.c.b16 %v1853, %v1845
    %v3166 = vpack.c.b16 %v1854, %v1846
    %v3167 = vpack.c.b16 %v1855, %v1847
    %v3168 = vpack.c.b16 %v1856, %v1848
    %v3169 = vpack.c.b16 %v1857, %v1849
    %v3170 = vpack.c.b16 %v1866, %v1858
    %v3171 = vpack.c.b16 %v1867, %v1859
    %v3172 = vpack.c.b16 %v1868, %v1860
    %v3173 = vpack.c.b16 %v1869, %v1861
    %v3174 = vpack.c.b16 %v1870, %v1862
    %v3175 = vpack.c.b16 %v1871, %v1863
    %v3176 = vpack.c.b16 %v1872, %v1864
    %v3177 = vpack.c.b16 %v1873, %v1865
    %v3178 = vpack.c.b16 %v1882, %v1874
    %v3179 = vpack.c.b16 %v1883, %v1875
    %v3180 = vpack.c.b16 %v1884, %v1876
    %v3181 = vpack.c.b16 %v1885, %v1877
    %v3182 = vpack.c.b16 %v1886, %v1878
    %v3183 = vpack.c.b16 %v1887, %v1879
    %v3184 = vpack.c.b16 %v1888, %v1880
    %v3185 = vpack.c.b16 %v1889, %v1881
    %v3186 = vpack.c.b16 %v1898, %v1890
    %v3187 = vpack.c.b16 %v1899, %v1891
    %v3188 = vpack.c.b16 %v1900, %v1892
    %v3189 = vpack.c.b16 %v1901, %v1893
    %v3190 = vpack.c.b16 %v1902, %v1894
    %v3191 = vpack.c.b16 %v1903, %v1895
    %v3192 = vpack.c.b16 %v1904, %v1896
    %v3193 = vpack.c.b16 %v1905, %v1897
    %v3194 = vpack.c.b16 %v1914, %v1906
    %v3195 = vpack.c.b16 %v1915, %v1907
    %v3196 = vpack.c.b16 %v1916, %v1908
    %v3197 = vpack.c.b16 %v1917, %v1909
    %v3198 = vpack.c.b16 %v1918, %v1910
    %v3199 = vpack.c.b16 %v1919, %v1911
    %v3200 = vpack.c.b16 %v1920, %v1912
    %v3201 = vpack.c.b16 %v1921, %v1913
    %v3202 = vpack.c.b16 %v1930, %v1922
    %v3203 = vpack.c.b16 %v1931, %v1923
    %v3204 = vpack.c.b16 %v1932, %v1924
    %v3205 = vpack.c.b16 %v1933, %v1925
    %v3206 = vpack.c.b16 %v1934, %v1926
    %v3207 = vpack.c.b16 %v1935, %v1927
    %v3208 = vpack.c.b16 %v1936, %v1928
    %v3209 = vpack.c.b16 %v1937, %v1929
    %v3210 = vpack.c.b16 %v1946, %v1938
    %v3211 = vpack.c.b16 %v1947, %v1939
    %v3212 = vpack.c.b16 %v1948, %v1940
    %v3213 = vpack.c.b16 %v1949, %v1941
    %v3214 = vpack.c.b16 %v1950, %v1942
    %v3215 = vpack.c.b16 %v1951, %v1943
    %v3216 = vpack.c.b16 %v1952, %v1944
    %v3217 = vpack.c.b16 %v1953, %v1945
    %v3218 = vpack.c.b16 %v1962, %v1954
    %v3219 = vpack.c.b16 %v1963, %v1955
    %v3220 = vpack.c.b16 %v1964, %v1956
    %v3221 = vpack.c.b16 %v1965, %v1957
    %v3222 = vpack.c.b16 %v1966, %v1958
    %v3223 = vpack.c.b16 %v1967, %v1959
    %v3224 = vpack.c.b16 %v1968, %v1960
    %v3225 = vpack.c.b16 %v1969, %v1961
    %v3226 = vpack.c.b16 %v1978, %v1970
    %v3227 = vpack.c.b16 %v1979, %v1971
    %v3228 = vpack.c.b16 %v1980, %v1972
    %v3229 = vpack.c.b16 %v1981, %v1973
    %v3230 = vpack.c.b16 %v1982, %v1974
    %v3231 = vpack.c.b16 %v1983, %v1975
    %v3232 = vpack.c.b16 %v1984, %v1976
    %v3233 = vpack.c.b16 %v1985, %v1977
    %v3234 = vpack.c.b16 %v1994, %v1986
    %v3235 = vpack.c.b16 %v1995, %v1987
    %v3236 = vpack.c.b16 %v1996, %v1988
    %v3237 = vpack.c.b16 %v1997, %v1989
    %v3238 = vpack.c.b16 %v1998, %v1990
    %v3239 = vpack.c.b16 %v1999, %v1991
    %v3240 = vpack.c.b16 %v2000, %v1992
    %v3241 = vpack.c.b16 %v2001, %v1993
    %v3242 = vpack.c.b16 %v2010, %v2002
    %v3243 = vpack.c.b16 %v2011, %v2003
    %v3244 = vpack.c.b16 %v2012, %v2004
    %v3245 = vpack.c.b16 %v2013, %v2005
    %v3246 = vpack.c.b16 %v2014, %v2006
    %v3247 = vpack.c.b16 %v2015, %v2007
    %v3248 = vpack.c.b16 %v2016, %v2008
    %v3249 = vpack.c.b16 %v2017, %v2009
    %v3250 = vpack.c.b16 %v2026, %v2018
    %v3251 = vpack.c.b16 %v2027, %v2019
    %v3252 = vpack.c.b16 %v2028, %v2020
    %v3253 = vpack.c.b16 %v2029, %v2021
    %v3254 = vpack.c.b16 %v2030, %v2022
    %v3255 = vpack.c.b16 %v2031, %v2023
    %v3256 = vpack.c.b16 %v2032, %v2024
    %v3257 = vpack.c.b16 %v2033, %v2025
    %v3258 = vpack.c.b16 %v2042, %v2034
    %v3259 = vpack.c.b16 %v2043, %v2035
    %v3260 = vpack.c.b16 %v2044, %v2036
    %v3261 = vpack.c.b16 %v2045, %v2037
    %v3262 = vpack.c.b16 %v2046, %v2038
    %v3263 = vpack.c.b16 %v2047, %v2039
    %v3264 = vpack.c.b16 %v2048, %v2040
    %v3265 = vpack.c.b16 %v2049, %v2041
    %v3266 = vpack.c.b16 %v2058, %v2050
    %v3267 = vpack.c.b16 %v2059, %v2051
    %v3268 = vpack.c.b16 %v2060, %v2052
    %v3269 = vpack.c.b16 %v2061, %v2053
    %v3270 = vpack.c.b16 %v2062, %v2054
    %v3271 = vpack.c.b16 %v2063, %v2055
    %v3272 = vpack.c.b16 %v2064, %v2056
    %v3273 = vpack.c.b16 %v2065, %v2057
    %v3274 = vpack.c.b16 %v2074, %v2066
    %v3275 = vpack.c.b16 %v2075, %v2067
    %v3276 = vpack.c.b16 %v2076, %v2068
    %v3277 = vpack.c.b16 %v2077, %v2069
    %v3278 = vpack.c.b16 %v2078, %v2070
    %v3279 = vpack.c.b16 %v2079, %v2071
    %v3280 = vpack.c.b16 %v2080, %v2072
    %v3281 = vpack.c.b16 %v2081, %v2073
    %v3282 = vpack.c.b16 %v2090, %v2082
    %v3283 = vpack.c.b16 %v2091, %v2083
    %v3284 = vpack.c.b16 %v2092, %v2084
    %v3285 = vpack.c.b16 %v2093, %v2085
    %v3286 = vpack.c.b16 %v2094, %v2086
    %v3287 = vpack.c.b16 %v2095, %v2087
    %v3288 = vpack.c.b16 %v2096, %v2088
    %v3289 = vpack.c.b16 %v2097, %v2089
    %v3290 = vpack.c.b16 %v2106, %v2098
    %v3291 = vpack.c.b16 %v2107, %v2099
    %v3292 = vpack.c.b16 %v2108, %v2100
    %v3293 = vpack.c.b16 %v2109, %v2101
    %v3294 = vpack.c.b16 %v2110, %v2102
    %v3295 = vpack.c.b16 %v2111, %v2103
    %v3296 = vpack.c.b16 %v2112, %v2104
    %v3297 = vpack.c.b16 %v2113, %v2105
    %v3298 = vpack.c.b16 %v2122, %v2114
    %v3299 = vpack.c.b16 %v2123, %v2115
    %v3300 = vpack.c.b16 %v2124, %v2116
    %v3301 = vpack.c.b16 %v2125, %v2117
    %v3302 = vpack.c.b16 %v2126, %v2118
    %v3303 = vpack.c.b16 %v2127, %v2119
    %v3304 = vpack.c.b16 %v2128, %v2120
    %v3305 = vpack.c.b16 %v2129, %v2121
    %v3306 = vpack.c.b16 %v2138, %v2130
    %v3307 = vpack.c.b16 %v2139, %v2131
    %v3308 = vpack.c.b16 %v2140, %v2132
    %v3309 = vpack.c.b16 %v2141, %v2133
    %v3310 = vpack.c.b16 %v2142, %v2134
    %v3311 = vpack.c.b16 %v2143, %v2135
    %v3312 = vpack.c.b16 %v2144, %v2136
    %v3313 = vpack.c.b16 %v2145, %v2137
    %v3314 = vpack.c.b16 %v2154, %v2146
    %v3315 = vpack.c.b16 %v2155, %v2147
    %v3316 = vpack.c.b16 %v2156, %v2148
    %v3317 = vpack.c.b16 %v2157, %v2149
    %v3318 = vpack.c.b16 %v2158, %v2150
    %v3319 = vpack.c.b16 %v2159, %v2151
    %v3320 = vpack.c.b16 %v2160, %v2152
    %v3321 = vpack.c.b16 %v2161, %v2153
    %v3322 = vpack.c.b16 %v2170, %v2162
    %v3323 = vpack.c.b16 %v2171, %v2163
    %v3324 = vpack.c.b16 %v2172, %v2164
    %v3325 = vpack.c.b16 %v2173, %v2165
    %v3326 = vpack.c.b16 %v2174, %v2166
    %v3327 = vpack.c.b16 %v2175, %v2167
    %v3328 = vpack.c.b16 %v2176, %v2168
    %v3329 = vpack.c.b16 %v2177, %v2169
    %v3330 = vpack.c.b16 %v2186, %v2178
    %v3331 = vpack.c.b16 %v2187, %v2179
    %v3332 = vpack.c.b16 %v2188, %v2180
    %v3333 = vpack.c.b16 %v2189, %v2181
    %v3334 = vpack.c.b16 %v2190, %v2182
    %v3335 = vpack.c.b16 %v2191, %v2183
    %v3336 = vpack.c.b16 %v2192, %v2184
    %v3337 = vpack.c.b16 %v2193, %v2185
    %v3338 = vpack.c.b16 %v2202, %v2194
    %v3339 = vpack.c.b16 %v2203, %v2195
    %v3340 = vpack.c.b16 %v2204, %v2196
    %v3341 = vpack.c.b16 %v2205, %v2197
    %v3342 = vpack.c.b16 %v2206, %v2198
    %v3343 = vpack.c.b16 %v2207, %v2199
    %v3344 = vpack.c.b16 %v2208, %v2200
    %v3345 = vpack.c.b16 %v2209, %v2201
    %v3346 = vpack.c.b16 %v2218, %v2210
    %v3347 = vpack.c.b16 %v2219, %v2211
    %v3348 = vpack.c.b16 %v2220, %v2212
    %v3349 = vpack.c.b16 %v2221, %v2213
    %v3350 = vpack.c.b16 %v2222, %v2214
    %v3351 = vpack.c.b16 %v2223, %v2215
    %v3352 = vpack.c.b16 %v2224, %v2216
    %v3353 = vpack.c.b16 %v2225, %v2217
    %v3354 = vpack.c.b16 %v2234, %v2226
    %v3355 = vpack.c.b16 %v2235, %v2227
    %v3356 = vpack.c.b16 %v2236, %v2228
    %v3357 = vpack.c.b16 %v2237, %v2229
    %v3358 = vpack.c.b16 %v2238, %v2230
    %v3359 = vpack.c.b16 %v2239, %v2231
    %v3360 = vpack.c.b16 %v2240, %v2232
    %v3361 = vpack.c.b16 %v2241, %v2233
    %v3362 = vpack.c.b16 %v2250, %v2242
    %v3363 = vpack.c.b16 %v2251, %v2243
    %v3364 = vpack.c.b16 %v2252, %v2244
    %v3365 = vpack.c.b16 %v2253, %v2245
    %v3366 = vpack.c.b16 %v2254, %v2246
    %v3367 = vpack.c.b16 %v2255, %v2247
    %v3368 = vpack.c.b16 %v2256, %v2248
    %v3369 = vpack.c.b16 %v2257, %v2249
    %v3370 = vpack.c.b16 %v2266, %v2258
    %v3371 = vpack.c.b16 %v2267, %v2259
    %v3372 = vpack.c.b16 %v2268, %v2260
    %v3373 = vpack.c.b16 %v2269, %v2261
    %v3374 = vpack.c.b16 %v2270, %v2262
    %v3375 = vpack.c.b16 %v2271, %v2263
    %v3376 = vpack.c.b16 %v2272, %v2264
    %v3377 = vpack.c.b16 %v2273, %v2265
    %v3378 = vpack.c.b16 %v2282, %v2274
    %v3379 = vpack.c.b16 %v2283, %v2275
    %v3380 = vpack.c.b16 %v2284, %v2276
    %v3381 = vpack.c.b16 %v2285, %v2277
    %v3382 = vpack.c.b16 %v2286, %v2278
    %v3383 = vpack.c.b16 %v2287, %v2279
    %v3384 = vpack.c.b16 %v2288, %v2280
    %v3385 = vpack.c.b16 %v2289, %v2281
    %v3386 = vpack.c.b16 %v2298, %v2290
    %v3387 = vpack.c.b16 %v2299, %v2291
    %v3388 = vpack.c.b16 %v2300, %v2292
    %v3389 = vpack.c.b16 %v2301, %v2293
    %v3390 = vpack.c.b16 %v2302, %v2294
    %v3391 = vpack.c.b16 %v2303, %v2295
    %v3392 = vpack.c.b16 %v2304, %v2296
    %v3393 = vpack.c.b16 %v2305, %v2297
    %v3394 = vpack.c.b16 %v2314, %v2306
    %v3395 = vpack.c.b16 %v2315, %v2307
    %v3396 = vpack.c.b16 %v2316, %v2308
    %v3397 = vpack.c.b16 %v2317, %v2309
    %v3398 = vpack.c.b16 %v2318, %v2310
    %v3399 = vpack.c.b16 %v2319, %v2311
    %v3400 = vpack.c.b16 %v2320, %v2312
    %v3401 = vpack.c.b16 %v2321, %v2313
    %v3402 = vpack.c.b16 %v2330, %v2322
    %v3403 = vpack.c.b16 %v2331, %v2323
    %v3404 = vpack.c.b16 %v2332, %v2324
    %v3405 = vpack.c.b16 %v2333, %v2325
    %v3406 = vpack.c.b16 %v2334, %v2326
    %v3407 = vpack.c.b16 %v2335, %v2327
    %v3408 = vpack.c.b16 %v2336, %v2328
    %v3409 = vpack.c.b16 %v2337, %v2329
    %v3410 = vpack.c.b16 %v2346, %v2338
    %v3411 = vpack.c.b16 %v2347, %v2339
    %v3412 = vpack.c.b16 %v2348, %v2340
    %v3413 = vpack.c.b16 %v2349, %v2341
    %v3414 = vpack.c.b16 %v2350, %v2342
    %v3415 = vpack.c.b16 %v2351, %v2343
    %v3416 = vpack.c.b16 %v2352, %v2344
    %v3417 = vpack.c.b16 %v2353, %v2345
    %v3418 = vpack.c.b16 %v2362, %v2354
    %v3419 = vpack.c.b16 %v2363, %v2355
    %v3420 = vpack.c.b16 %v2364, %v2356
    %v3421 = vpack.c.b16 %v2365, %v2357
    %v3422 = vpack.c.b16 %v2366, %v2358
    %v3423 = vpack.c.b16 %v2367, %v2359
    %v3424 = vpack.c.b16 %v2368, %v2360
    %v3425 = vpack.c.b16 %v2369, %v2361
    %v3426 = vpack.c.b16 %v2378, %v2370
    %v3427 = vpack.c.b16 %v2379, %v2371
    %v3428 = vpack.c.b16 %v2380, %v2372
    %v3429 = vpack.c.b16 %v2381, %v2373
    %v3430 = vpack.c.b16 %v2382, %v2374
    %v3431 = vpack.c.b16 %v2383, %v2375
    %v3432 = vpack.c.b16 %v2384, %v2376
    %v3433 = vpack.c.b16 %v2385, %v2377
    %v3434 = vpack.c.b16 %v2394, %v2386
    %v3435 = vpack.c.b16 %v2395, %v2387
    %v3436 = vpack.c.b16 %v2396, %v2388
    %v3437 = vpack.c.b16 %v2397, %v2389
    %v3438 = vpack.c.b16 %v2398, %v2390
    %v3439 = vpack.c.b16 %v2399, %v2391
    %v3440 = vpack.c.b16 %v2400, %v2392
    %v3441 = vpack.c.b16 %v2401, %v2393
    %v3442 = vpack.c.b16 %v2410, %v2402
    %v3443 = vpack.c.b16 %v2411, %v2403
    %v3444 = vpack.c.b16 %v2412, %v2404
    %v3445 = vpack.c.b16 %v2413, %v2405
    %v3446 = vpack.c.b16 %v2414, %v2406
    %v3447 = vpack.c.b16 %v2415, %v2407
    %v3448 = vpack.c.b16 %v2416, %v2408
    %v3449 = vpack.c.b16 %v2417, %v2409
    %v3450 = vpack.c.b16 %v2426, %v2418
    %v3451 = vpack.c.b16 %v2427, %v2419
    %v3452 = vpack.c.b16 %v2428, %v2420
    %v3453 = vpack.c.b16 %v2429, %v2421
    %v3454 = vpack.c.b16 %v2430, %v2422
    %v3455 = vpack.c.b16 %v2431, %v2423
    %v3456 = vpack.c.b16 %v2432, %v2424
    %v3457 = vpack.c.b16 %v2433, %v2425
    %v3458 = vpack.c.b16 %v2442, %v2434
    %v3459 = vpack.c.b16 %v2443, %v2435
    %v3460 = vpack.c.b16 %v2444, %v2436
    %v3461 = vpack.c.b16 %v2445, %v2437
    %v3462 = vpack.c.b16 %v2446, %v2438
    %v3463 = vpack.c.b16 %v2447, %v2439
    %v3464 = vpack.c.b16 %v2448, %v2440
    %v3465 = vpack.c.b16 %v2449, %v2441
    %v3466 = vpack.c.b16 %v2458, %v2450
    %v3467 = vpack.c.b16 %v2459, %v2451
    %v3468 = vpack.c.b16 %v2460, %v2452
    %v3469 = vpack.c.b16 %v2461, %v2453
    %v3470 = vpack.c.b16 %v2462, %v2454
    %v3471 = vpack.c.b16 %v2463, %v2455
    %v3472 = vpack.c.b16 %v2464, %v2456
    %v3473 = vpack.c.b16 %v2465, %v2457
    %v3474 = vpack.c.b16 %v2474, %v2466
    %v3475 = vpack.c.b16 %v2475, %v2467
    %v3476 = vpack.c.b16 %v2476, %v2468
    %v3477 = vpack.c.b16 %v2477, %v2469
    %v3478 = vpack.c.b16 %v2478, %v2470
    %v3479 = vpack.c.b16 %v2479, %v2471
    %v3480 = vpack.c.b16 %v2480, %v2472
    %v3481 = vpack.c.b16 %v2481, %v2473
    %v3482 = vpack.c.b16 %v2490, %v2482
    %v3483 = vpack.c.b16 %v2491, %v2483
    %v3484 = vpack.c.b16 %v2492, %v2484
    %v3485 = vpack.c.b16 %v2493, %v2485
    %v3486 = vpack.c.b16 %v2494, %v2486
    %v3487 = vpack.c.b16 %v2495, %v2487
    %v3488 = vpack.c.b16 %v2496, %v2488
    %v3489 = vpack.c.b16 %v2497, %v2489
    %v3490 = vpack.c.b16 %v2506, %v2498
    %v3491 = vpack.c.b16 %v2507, %v2499
    %v3492 = vpack.c.b16 %v2508, %v2500
    %v3493 = vpack.c.b16 %v2509, %v2501
    %v3494 = vpack.c.b16 %v2510, %v2502
    %v3495 = vpack.c.b16 %v2511, %v2503
    %v3496 = vpack.c.b16 %v2512, %v2504
    %v3497 = vpack.c.b16 %v2513, %v2505
    %v3498 = vpack.c.b16 %v2522, %v2514
    %v3499 = vpack.c.b16 %v2523, %v2515
    %v3500 = vpack.c.b16 %v2524, %v2516
    %v3501 = vpack.c.b16 %v2525, %v2517
    %v3502 = vpack.c.b16 %v2526, %v2518
    %v3503 = vpack.c.b16 %v2527, %v2519
    %v3504 = vpack.c.b16 %v2528, %v2520
    %v3505 = vpack.c.b16 %v2529, %v2521
    %v3506 = vpack.c.b16 %v2538, %v2530
    %v3507 = vpack.c.b16 %v2539, %v2531
    %v3508 = vpack.c.b16 %v2540, %v2532
    %v3509 = vpack.c.b16 %v2541, %v2533
    %v3510 = vpack.c.b16 %v2542, %v2534
    %v3511 = vpack.c.b16 %v2543, %v2535
    %v3512 = vpack.c.b16 %v2544, %v2536
    %v3513 = vpack.c.b16 %v2545, %v2537
    %v3514 = vpack.c.b16 %v2554, %v2546
    %v3515 = vpack.c.b16 %v2555, %v2547
    %v3516 = vpack.c.b16 %v2556, %v2548
    %v3517 = vpack.c.b16 %v2557, %v2549
    %v3518 = vpack.c.b16 %v2558, %v2550
    %v3519 = vpack.c.b16 %v2559, %v2551
    %v3520 = vpack.c.b16 %v2560, %v2552
    %v3521 = vpack.c.b16 %v2561, %v2553
    %v3522 = vpack.c.b16 %v2570, %v2562
    %v3523 = vpack.c.b16 %v2571, %v2563
    %v3524 = vpack.c.b16 %v2572, %v2564
    %v3525 = vpack.c.b16 %v2573, %v2565
    %v3526 = vpack.c.b16 %v2574, %v2566
    %v3527 = vpack.c.b16 %v2575, %v2567
    %v3528 = vpack.c.b16 %v2576, %v2568
    %v3529 = vpack.c.b16 %v2577, %v2569
    %v3530 = vpack.c.b16 %v2586, %v2578
    %v3531 = vpack.c.b16 %v2587, %v2579
    %v3532 = vpack.c.b16 %v2588, %v2580
    %v3533 = vpack.c.b16 %v2589, %v2581
    %v3534 = vpack.c.b16 %v2590, %v2582
    %v3535 = vpack.c.b16 %v2591, %v2583
    %v3536 = vpack.c.b16 %v2592, %v2584
    %v3537 = vpack.c.b16 %v2593, %v2585
    %v3538 = vpack.c.b16 %v2602, %v2594
    %v3539 = vpack.c.b16 %v2603, %v2595
    %v3540 = vpack.c.b16 %v2604, %v2596
    %v3541 = vpack.c.b16 %v2605, %v2597
    %v3542 = vpack.c.b16 %v2606, %v2598
    %v3543 = vpack.c.b16 %v2607, %v2599
    %v3544 = vpack.c.b16 %v2608, %v2600
    %v3545 = vpack.c.b16 %v2609, %v2601
    %v3546 = vpack.c.b16 %v2618, %v2610
    %v3547 = vpack.c.b16 %v2619, %v2611
    %v3548 = vpack.c.b16 %v2620, %v2612
    %v3549 = vpack.c.b16 %v2621, %v2613
    %v3550 = vpack.c.b16 %v2622, %v2614
    %v3551 = vpack.c.b16 %v2623, %v2615
    %v3552 = vpack.c.b16 %v2624, %v2616
    %v3553 = vpack.c.b16 %v2625, %v2617
    %v3554 = vpack.c.b16 %v2634, %v2626
    %v3555 = vpack.c.b16 %v2635, %v2627
    %v3556 = vpack.c.b16 %v2636, %v2628
    %v3557 = vpack.c.b16 %v2637, %v2629
    %v3558 = vpack.c.b16 %v2638, %v2630
    %v3559 = vpack.c.b16 %v2639, %v2631
    %v3560 = vpack.c.b16 %v2640, %v2632
    %v3561 = vpack.c.b16 %v2641, %v2633
    %v3562 = vpack.c.b16 %v2650, %v2642
    %v3563 = vpack.c.b16 %v2651, %v2643
    %v3564 = vpack.c.b16 %v2652, %v2644
    %v3565 = vpack.c.b16 %v2653, %v2645
    %v3566 = vpack.c.b16 %v2654, %v2646
    %v3567 = vpack.c.b16 %v2655, %v2647
    %v3568 = vpack.c.b16 %v2656, %v2648
    %v3569 = vpack.c.b16 %v2657, %v2649
    %v3570 = vpack.c.b16 %v2666, %v2658
    %v3571 = vpack.c.b16 %v2667, %v2659
    %v3572 = vpack.c.b16 %v2668, %v2660
    %v3573 = vpack.c.b16 %v2669, %v2661
    %v3574 = vpack.c.b16 %v2670, %v2662
    %v3575 = vpack.c.b16 %v2671, %v2663
    %v3576 = vpack.c.b16 %v2672, %v2664
    %v3577 = vpack.c.b16 %v2673, %v2665
    %v3578 = vpack.c.b16 %v2682, %v2674
    %v3579 = vpack.c.b16 %v2683, %v2675
    %v3580 = vpack.c.b16 %v2684, %v2676
    %v3581 = vpack.c.b16 %v2685, %v2677
    %v3582 = vpack.c.b16 %v2686, %v2678
    %v3583 = vpack.c.b16 %v2687, %v2679
    %v3584 = vpack.c.b16 %v2688, %v2680
    %v3585 = vpack.c.b16 %v2689, %v2681
    %v3586 = vpack.c.b16 %v2698, %v2690
    %v3587 = vpack.c.b16 %v2699, %v2691
    %v3588 = vpack.c.b16 %v2700, %v2692
    %v3589 = vpack.c.b16 %v2701, %v2693
    %v3590 = vpack.c.b16 %v2702, %v2694
    %v3591 = vpack.c.b16 %v2703, %v2695
    %v3592 = vpack.c.b16 %v2704, %v2696
    %v3593 = vpack.c.b16 %v2705, %v2697
    %v3594 = vpack.c.b16 %v2714, %v2706
    %v3595 = vpack.c.b16 %v2715, %v2707
    %v3596 = vpack.c.b16 %v2716, %v2708
    %v3597 = vpack.c.b16 %v2717, %v2709
    %v3598 = vpack.c.b16 %v2718, %v2710
    %v3599 = vpack.c.b16 %v2719, %v2711
    %v3600 = vpack.c.b16 %v2720, %v2712
    %v3601 = vpack.c.b16 %v2721, %v2713
    %v3602 = vpack.c.b16 %v2730, %v2722
    %v3603 = vpack.c.b16 %v2731, %v2723
    %v3604 = vpack.c.b16 %v2732, %v2724
    %v3605 = vpack.c.b16 %v2733, %v2725
    %v3606 = vpack.c.b16 %v2734, %v2726
    %v3607 = vpack.c.b16 %v2735, %v2727
    %v3608 = vpack.c.b16 %v2736, %v2728
    %v3609 = vpack.c.b16 %v2737, %v2729
    %v3610 = vpack.c.b16 %v2746, %v2738
    %v3611 = vpack.c.b16 %v2747, %v2739
    %v3612 = vpack.c.b16 %v2748, %v2740
    %v3613 = vpack.c.b16 %v2749, %v2741
    %v3614 = vpack.c.b16 %v2750, %v2742
    %v3615 = vpack.c.b16 %v2751, %v2743
    %v3616 = vpack.c.b16 %v2752, %v2744
    %v3617 = vpack.c.b16 %v2753, %v2745
    %v3618 = vpack.c.b16 %v2762, %v2754
    %v3619 = vpack.c.b16 %v2763, %v2755
    %v3620 = vpack.c.b16 %v2764, %v2756
    %v3621 = vpack.c.b16 %v2765, %v2757
    %v3622 = vpack.c.b16 %v2766, %v2758
    %v3623 = vpack.c.b16 %v2767, %v2759
    %v3624 = vpack.c.b16 %v2768, %v2760
    %v3625 = vpack.c.b16 %v2769, %v2761
    %v3626 = vpack.c.b16 %v2778, %v2770
    %v3627 = vpack.c.b16 %v2779, %v2771
    %v3628 = vpack.c.b16 %v2780, %v2772
    %v3629 = vpack.c.b16 %v2781, %v2773
    %v3630 = vpack.c.b16 %v2782, %v2774
    %v3631 = vpack.c.b16 %v2783, %v2775
    %v3632 = vpack.c.b16 %v2784, %v2776
    %v3633 = vpack.c.b16 %v2785, %v2777
    %v3634 = vpack.c.b16 %v2794, %v2786
    %v3635 = vpack.c.b16 %v2795, %v2787
    %v3636 = vpack.c.b16 %v2796, %v2788
    %v3637 = vpack.c.b16 %v2797, %v2789
    %v3638 = vpack.c.b16 %v2798, %v2790
    %v3639 = vpack.c.b16 %v2799, %v2791
    %v3640 = vpack.c.b16 %v2800, %v2792
    %v3641 = vpack.c.b16 %v2801, %v2793
    %v3642 = vpack.c.b16 %v2810, %v2802
    %v3643 = vpack.c.b16 %v2811, %v2803
    %v3644 = vpack.c.b16 %v2812, %v2804
    %v3645 = vpack.c.b16 %v2813, %v2805
    %v3646 = vpack.c.b16 %v2814, %v2806
    %v3647 = vpack.c.b16 %v2815, %v2807
    %v3648 = vpack.c.b16 %v2816, %v2808
    %v3649 = vpack.c.b16 %v2817, %v2809
    %v3650 = vpack.c.b16 %v2826, %v2818
    %v3651 = vpack.c.b16 %v2827, %v2819
    %v3652 = vpack.c.b16 %v2828, %v2820
    %v3653 = vpack.c.b16 %v2829, %v2821
    %v3654 = vpack.c.b16 %v2830, %v2822
    %v3655 = vpack.c.b16 %v2831, %v2823
    %v3656 = vpack.c.b16 %v2832, %v2824
    %v3657 = vpack.c.b16 %v2833, %v2825
    %v3658 = vpack.c.b16 %v2842, %v2834
    %v3659 = vpack.c.b16 %v2843, %v2835
    %v3660 = vpack.c.b16 %v2844, %v2836
    %v3661 = vpack.c.b16 %v2845, %v2837
    %v3662 = vpack.c.b16 %v2846, %v2838
    %v3663 = vpack.c.b16 %v2847, %v2839
    %v3664 = vpack.c.b16 %v2848, %v2840
    %v3665 = vpack.c.b16 %v2849, %v2841
    %v3666 = vpack.c.b16 %v2858, %v2850
    %v3667 = vpack.c.b16 %v2859, %v2851
    %v3668 = vpack.c.b16 %v2860, %v2852
    %v3669 = vpack.c.b16 %v2861, %v2853
    %v3670 = vpack.c.b16 %v2862, %v2854
    %v3671 = vpack.c.b16 %v2863, %v2855
    %v3672 = vpack.c.b16 %v2864, %v2856
    %v3673 = vpack.c.b16 %v2865, %v2857
    %v3674 = vpack.c.b16 %v2874, %v2866
    %v3675 = vpack.c.b16 %v2875, %v2867
    %v3676 = vpack.c.b16 %v2876, %v2868
    %v3677 = vpack.c.b16 %v2877, %v2869
    %v3678 = vpack.c.b16 %v2878, %v2870
    %v3679 = vpack.c.b16 %v2879, %v2871
    %v3680 = vpack.c.b16 %v2880, %v2872
    %v3681 = vpack.c.b16 %v2881, %v2873
    %v3682 = vpack.c.b16 %v2890, %v2882
    %v3683 = vpack.c.b16 %v2891, %v2883
    %v3684 = vpack.c.b16 %v2892, %v2884
    %v3685 = vpack.c.b16 %v2893, %v2885
    %v3686 = vpack.c.b16 %v2894, %v2886
    %v3687 = vpack.c.b16 %v2895, %v2887
    %v3688 = vpack.c.b16 %v2896, %v2888
    %v3689 = vpack.c.b16 %v2897, %v2889
    %v3690 = vpack.c.b16 %v2906, %v2898
    %v3691 = vpack.c.b16 %v2907, %v2899
    %v3692 = vpack.c.b16 %v2908, %v2900
    %v3693 = vpack.c.b16 %v2909, %v2901
    %v3694 = vpack.c.b16 %v2910, %v2902
    %v3695 = vpack.c.b16 %v2911, %v2903
    %v3696 = vpack.c.b16 %v2912, %v2904
    %v3697 = vpack.c.b16 %v2913, %v2905
    %v3698 = vpack.c.b16 %v2922, %v2914
    %v3699 = vpack.c.b16 %v2923, %v2915
    %v3700 = vpack.c.b16 %v2924, %v2916
    %v3701 = vpack.c.b16 %v2925, %v2917
    %v3702 = vpack.c.b16 %v2926, %v2918
    %v3703 = vpack.c.b16 %v2927, %v2919
    %v3704 = vpack.c.b16 %v2928, %v2920
    %v3705 = vpack.c.b16 %v2929, %v2921
    %v3706 = vpack.c.b16 %v2938, %v2930
    %v3707 = vpack.c.b16 %v2939, %v2931
    %v3708 = vpack.c.b16 %v2940, %v2932
    %v3709 = vpack.c.b16 %v2941, %v2933
    %v3710 = vpack.c.b16 %v2942, %v2934
    %v3711 = vpack.c.b16 %v2943, %v2935
    %v3712 = vpack.c.b16 %v2944, %v2936
    %v3713 = vpack.c.b16 %v2945, %v2937
    %v3714 = vpack.c.b16 %v2954, %v2946
    %v3715 = vpack.c.b16 %v2955, %v2947
    %v3716 = vpack.c.b16 %v2956, %v2948
    %v3717 = vpack.c.b16 %v2957, %v2949
    %v3718 = vpack.c.b16 %v2958, %v2950
    %v3719 = vpack.c.b16 %v2959, %v2951
    %v3720 = vpack.c.b16 %v2960, %v2952
    %v3721 = vpack.c.b16 %v2961, %v2953
    %v3722 = vpack.c.b16 %v2970, %v2962
    %v3723 = vpack.c.b16 %v2971, %v2963
    %v3724 = vpack.c.b16 %v2972, %v2964
    %v3725 = vpack.c.b16 %v2973, %v2965
    %v3726 = vpack.c.b16 %v2974, %v2966
    %v3727 = vpack.c.b16 %v2975, %v2967
    %v3728 = vpack.c.b16 %v2976, %v2968
    %v3729 = vpack.c.b16 %v2977, %v2969
    %v3730 = vpack.c.b16 %v2986, %v2978
    %v3731 = vpack.c.b16 %v2987, %v2979
    %v3732 = vpack.c.b16 %v2988, %v2980
    %v3733 = vpack.c.b16 %v2989, %v2981
    %v3734 = vpack.c.b16 %v2990, %v2982
    %v3735 = vpack.c.b16 %v2991, %v2983
    %v3736 = vpack.c.b16 %v2992, %v2984
    %v3737 = vpack.c.b16 %v2993, %v2985
    %v3738 = vpack.c.b16 %v3002, %v2994
    %v3739 = vpack.c.b16 %v3003, %v2995
    %v3740 = vpack.c.b16 %v3004, %v2996
    %v3741 = vpack.c.b16 %v3005, %v2997
    %v3742 = vpack.c.b16 %v3006, %v2998
    %v3743 = vpack.c.b16 %v3007, %v2999
    %v3744 = vpack.c.b16 %v3008, %v3000
    %v3745 = vpack.c.b16 %v3009, %v3001
    %v3746 = vpack.c.b16 %v3018, %v3010
    %v3747 = vpack.c.b16 %v3019, %v3011
    %v3748 = vpack.c.b16 %v3020, %v3012
    %v3749 = vpack.c.b16 %v3021, %v3013
    %v3750 = vpack.c.b16 %v3022, %v3014
    %v3751 = vpack.c.b16 %v3023, %v3015
    %v3752 = vpack.c.b16 %v3024, %v3016
    %v3753 = vpack.c.b16 %v3025, %v3017
    %v3754 = vpack.c.b16 %v3034, %v3026
    %v3755 = vpack.c.b16 %v3035, %v3027
    %v3756 = vpack.c.b16 %v3036, %v3028
    %v3757 = vpack.c.b16 %v3037, %v3029
    %v3758 = vpack.c.b16 %v3038, %v3030
    %v3759 = vpack.c.b16 %v3039, %v3031
    %v3760 = vpack.c.b16 %v3040, %v3032
    %v3761 = vpack.c.b16 %v3041, %v3033
    %v3762 = vpack.c.b16 %v3050, %v3042
    %v3763 = vpack.c.b16 %v3051, %v3043
    %v3764 = vpack.c.b16 %v3052, %v3044
    %v3765 = vpack.c.b16 %v3053, %v3045
    %v3766 = vpack.c.b16 %v3054, %v3046
    %v3767 = vpack.c.b16 %v3055, %v3047
    %v3768 = vpack.c.b16 %v3056, %v3048
    %v3769 = vpack.c.b16 %v3057, %v3049
    %v3770 = vpack.c.b16 %v3066, %v3058
    %v3771 = vpack.c.b16 %v3067, %v3059
    %v3772 = vpack.c.b16 %v3068, %v3060
    %v3773 = vpack.c.b16 %v3069, %v3061
    %v3774 = vpack.c.b16 %v3070, %v3062
    %v3775 = vpack.c.b16 %v3071, %v3063
    %v3776 = vpack.c.b16 %v3072, %v3064
    %v3777 = vpack.c.b16 %v3073, %v3065
    %4482 = vmatprep.subr.bf16.mxu0 %v3075
    %4483 = vmatpush1.bf16.msra.mxu0 %v3074
    %4484 = vmatprep.subr.bf16.mxu0 %v3083
    %4485 = vmatpush1.bf16.msra.mxu0 %v3082
    %4486 = vmatprep.subr.bf16.mxu0 %v3091
    %4487 = vmatpush1.bf16.msra.mxu0 %v3090
    %4488 = vmatprep.subr.bf16.mxu0 %v3099
    %4489 = vmatpush1.bf16.msra.mxu0 %v3098
    %4490 = vmatprep.subr.bf16.mxu0 %v3107
    %4491 = vmatpush1.bf16.msra.mxu0 %v3106
    %4492 = vmatprep.subr.bf16.mxu0 %v3115
    %4493 = vmatpush1.bf16.msra.mxu0 %v3114
    %4494 = vmatprep.subr.bf16.mxu0 %v3123
    %4495 = vmatpush1.bf16.msra.mxu0 %v3122
    %4496 = vmatprep.subr.bf16.mxu0 %v3131
    %4497 = vmatpush1.bf16.msra.mxu0 %v3130
    %4498 = vmatprep.subr.bf16.mxu0 %v3139
    %4499 = vmatpush1.bf16.msra.mxu0 %v3138
    %4500 = vmatprep.subr.bf16.mxu0 %v3147
    %4501 = vmatpush1.bf16.msra.mxu0 %v3146
    %4502 = vmatprep.subr.bf16.mxu0 %v3155
    %4503 = vmatpush1.bf16.msra.mxu0 %v3154
    %4504 = vmatprep.subr.bf16.mxu0 %v3163
    %4505 = vmatpush1.bf16.msra.mxu0 %v3162
    %4506 = vmatprep.subr.bf16.mxu0 %v3171
    %4507 = vmatpush1.bf16.msra.mxu0 %v3170
    %4508 = vmatprep.subr.bf16.mxu0 %v3179
    %4509 = vmatpush1.bf16.msra.mxu0 %v3178
    %4510 = vmatprep.subr.bf16.mxu0 %v3187
    %4511 = vmatpush1.bf16.msra.mxu0 %v3186
    %4512 = vmatprep.subr.bf16.mxu0 %v3195
    %4513 = vmatpush1.bf16.msra.mxu0 %v3194
    %4514 = vmatprep.mubr.bf16.mxu0 %v941
    %4515 = vmatmul.mubr.bf16.gmra.mrb[0].mxu0 %v940
    %v4516 = vpop.f32.mrb[0].mxu0
    %v4517 = vadd.f32 %v869, %v4516
    %v4518 = vpop.f32.mrb[0].mxu0
    %v4519 = vadd.f32 %v873, %v4518
    %v4520 = vpop.f32.mrb[0].mxu0
    %v4521 = vadd.f32 %v869, %v4520
    %v4522 = vpop.f32.mrb[0].mxu0
    %v4523 = vadd.f32 %v873, %v4522
    %4524 = vdwg.mxu0
    %4525 = vmatprep.subr.bf16.mxu0 %v3203
    %4526 = vmatpush1.bf16.msra.mxu0 %v3202
    %4527 = vmatprep.subr.bf16.mxu0 %v3211
    %4528 = vmatpush1.bf16.msra.mxu0 %v3210
    %4529 = vmatprep.subr.bf16.mxu0 %v3219
    %4530 = vmatpush1.bf16.msra.mxu0 %v3218
    %4531 = vmatprep.subr.bf16.mxu0 %v3227
    %4532 = vmatpush1.bf16.msra.mxu0 %v3226
    %4533 = vmatprep.subr.bf16.mxu0 %v3235
    %4534 = vmatpush1.bf16.msra.mxu0 %v3234
    %4535 = vmatprep.subr.bf16.mxu0 %v3243
    %4536 = vmatpush1.bf16.msra.mxu0 %v3242
    %4537 = vmatprep.subr.bf16.mxu0 %v3251
    %4538 = vmatpush1.bf16.msra.mxu0 %v3250
    %4539 = vmatprep.subr.bf16.mxu0 %v3259
    %4540 = vmatpush1.bf16.msra.mxu0 %v3258
    %4541 = vmatprep.subr.bf16.mxu0 %v3267
    %4542 = vmatpush1.bf16.msra.mxu0 %v3266
    %4543 = vmatprep.subr.bf16.mxu0 %v3275
    %4544 = vmatpush1.bf16.msra.mxu0 %v3274
    %4545 = vmatprep.subr.bf16.mxu0 %v3283
    %4546 = vmatpush1.bf16.msra.mxu0 %v3282
    %4547 = vmatprep.subr.bf16.mxu0 %v3291
    %4548 = vmatpush1.bf16.msra.mxu0 %v3290
    %4549 = vmatprep.subr.bf16.mxu0 %v3299
    %4550 = vmatpush1.bf16.msra.mxu0 %v3298
    %4551 = vmatprep.subr.bf16.mxu0 %v3307
    %4552 = vmatpush1.bf16.msra.mxu0 %v3306
    %4553 = vmatprep.subr.bf16.mxu0 %v3315
    %4554 = vmatpush1.bf16.msra.mxu0 %v3314
    %4555 = vmatprep.subr.bf16.mxu0 %v3323
    %4556 = vmatpush1.bf16.msra.mxu0 %v3322
    %4557 = vmatprep.mubr.bf16.mxu0 %v943
    %4558 = vmatmul.mubr.bf16.gmra.mrb[0].mxu0 %v942
    %v4559 = vpop.f32.mrb[0].mxu0
    %v4560 = vadd.f32 %v4517, %v4559
    %v4561 = vpop.f32.mrb[0].mxu0
    %v4562 = vadd.f32 %v4519, %v4561
    %v4563 = vpop.f32.mrb[0].mxu0
    %v4564 = vadd.f32 %v4521, %v4563
    %v4565 = vpop.f32.mrb[0].mxu0
    %v4566 = vadd.f32 %v4523, %v4565
    %4567 = vdwg.mxu0
    %4568 = vmatprep.subr.bf16.mxu0 %v3331
    %4569 = vmatpush1.bf16.msra.mxu0 %v3330
    %4570 = vmatprep.subr.bf16.mxu0 %v3339
    %4571 = vmatpush1.bf16.msra.mxu0 %v3338
    %4572 = vmatprep.subr.bf16.mxu0 %v3347
    %4573 = vmatpush1.bf16.msra.mxu0 %v3346
    %4574 = vmatprep.subr.bf16.mxu0 %v3355
    %4575 = vmatpush1.bf16.msra.mxu0 %v3354
    %4576 = vmatprep.subr.bf16.mxu0 %v3363
    %4577 = vmatpush1.bf16.msra.mxu0 %v3362
    %4578 = vmatprep.subr.bf16.mxu0 %v3371
    %4579 = vmatpush1.bf16.msra.mxu0 %v3370
    %4580 = vmatprep.subr.bf16.mxu0 %v3379
    %4581 = vmatpush1.bf16.msra.mxu0 %v3378
    %4582 = vmatprep.subr.bf16.mxu0 %v3387
    %4583 = vmatpush1.bf16.msra.mxu0 %v3386
    %4584 = vmatprep.subr.bf16.mxu0 %v3395
    %4585 = vmatpush1.bf16.msra.mxu0 %v3394
    %4586 = vmatprep.subr.bf16.mxu0 %v3403
    %4587 = vmatpush1.bf16.msra.mxu0 %v3402
    %4588 = vmatprep.subr.bf16.mxu0 %v3411
    %4589 = vmatpush1.bf16.msra.mxu0 %v3410
    %4590 = vmatprep.subr.bf16.mxu0 %v3419
    %4591 = vmatpush1.bf16.msra.mxu0 %v3418
    %4592 = vmatprep.subr.bf16.mxu0 %v3427
    %4593 = vmatpush1.bf16.msra.mxu0 %v3426
    %4594 = vmatprep.subr.bf16.mxu0 %v3435
    %4595 = vmatpush1.bf16.msra.mxu0 %v3434
    %4596 = vmatprep.subr.bf16.mxu0 %v3443
    %4597 = vmatpush1.bf16.msra.mxu0 %v3442
    %4598 = vmatprep.subr.bf16.mxu0 %v3451
    %4599 = vmatpush1.bf16.msra.mxu0 %v3450
    %4600 = vmatprep.mubr.bf16.mxu0 %v945
    %4601 = vmatmul.mubr.bf16.gmra.mrb[0].mxu0 %v944
    %v4602 = vpop.f32.mrb[0].mxu0
    %v4603 = vadd.f32 %v4560, %v4602
    %v4604 = vpop.f32.mrb[0].mxu0
    %v4605 = vadd.f32 %v4562, %v4604
    %v4606 = vpop.f32.mrb[0].mxu0
    %v4607 = vadd.f32 %v4564, %v4606
    %v4608 = vpop.f32.mrb[0].mxu0
    %v4609 = vadd.f32 %v4566, %v4608
    %4610 = vdwg.mxu0
    %4611 = vmatprep.subr.bf16.mxu0 %v3459
    %4612 = vmatpush1.bf16.msra.mxu0 %v3458
    %4613 = vmatprep.subr.bf16.mxu0 %v3467
    %4614 = vmatpush1.bf16.msra.mxu0 %v3466
    %4615 = vmatprep.subr.bf16.mxu0 %v3475
    %4616 = vmatpush1.bf16.msra.mxu0 %v3474
    %4617 = vmatprep.subr.bf16.mxu0 %v3483
    %4618 = vmatpush1.bf16.msra.mxu0 %v3482
    %4619 = vmatprep.subr.bf16.mxu0 %v3491
    %4620 = vmatpush1.bf16.msra.mxu0 %v3490
    %4621 = vmatprep.subr.bf16.mxu0 %v3499
    %4622 = vmatpush1.bf16.msra.mxu0 %v3498
    %4623 = vmatprep.subr.bf16.mxu0 %v3507
    %4624 = vmatpush1.bf16.msra.mxu0 %v3506
    %4625 = vmatprep.subr.bf16.mxu0 %v3515
    %4626 = vmatpush1.bf16.msra.mxu0 %v3514
    %4627 = vmatprep.subr.bf16.mxu0 %v3523
    %4628 = vmatpush1.bf16.msra.mxu0 %v3522
    %4629 = vmatprep.subr.bf16.mxu0 %v3531
    %4630 = vmatpush1.bf16.msra.mxu0 %v3530
    %4631 = vmatprep.subr.bf16.mxu0 %v3539
    %4632 = vmatpush1.bf16.msra.mxu0 %v3538
    %4633 = vmatprep.subr.bf16.mxu0 %v3547
    %4634 = vmatpush1.bf16.msra.mxu0 %v3546
    %4635 = vmatprep.subr.bf16.mxu0 %v3555
    %4636 = vmatpush1.bf16.msra.mxu0 %v3554
    %4637 = vmatprep.subr.bf16.mxu0 %v3563
    %4638 = vmatpush1.bf16.msra.mxu0 %v3562
    %4639 = vmatprep.subr.bf16.mxu0 %v3571
    %4640 = vmatpush1.bf16.msra.mxu0 %v3570
    %4641 = vmatprep.subr.bf16.mxu0 %v3579
    %4642 = vmatpush1.bf16.msra.mxu0 %v3578
    %4643 = vmatprep.mubr.bf16.mxu0 %v947
    %4644 = vmatmul.mubr.bf16.gmra.mrb[0].mxu0 %v946
    %v4645 = vpop.f32.mrb[0].mxu0
    %v4646 = vadd.f32 %v4603, %v4645
    %v4647 = vpop.f32.mrb[0].mxu0
    %v4648 = vadd.f32 %v4605, %v4647
    %v4649 = vpop.f32.mrb[0].mxu0
    %v4650 = vadd.f32 %v4607, %v4649
    %v4651 = vpop.f32.mrb[0].mxu0
    %v4652 = vadd.f32 %v4609, %v4651
    %4653 = vdwg.mxu0
    %4654 = vmatprep.subr.bf16.mxu0 %v3587
    %4655 = vmatpush1.bf16.msra.mxu0 %v3586
    %4656 = vmatprep.subr.bf16.mxu0 %v3595
    %4657 = vmatpush1.bf16.msra.mxu0 %v3594
    %4658 = vmatprep.subr.bf16.mxu0 %v3603
    %4659 = vmatpush1.bf16.msra.mxu0 %v3602
    %4660 = vmatprep.subr.bf16.mxu0 %v3611
    %4661 = vmatpush1.bf16.msra.mxu0 %v3610
    %4662 = vmatprep.subr.bf16.mxu0 %v3619
    %4663 = vmatpush1.bf16.msra.mxu0 %v3618
    %4664 = vmatprep.subr.bf16.mxu0 %v3627
    %4665 = vmatpush1.bf16.msra.mxu0 %v3626
    %4666 = vmatprep.subr.bf16.mxu0 %v3635
    %4667 = vmatpush1.bf16.msra.mxu0 %v3634
    %4668 = vmatprep.subr.bf16.mxu0 %v3643
    %4669 = vmatpush1.bf16.msra.mxu0 %v3642
    %4670 = vmatprep.subr.bf16.mxu0 %v3651
    %4671 = vmatpush1.bf16.msra.mxu0 %v3650
    %4672 = vmatprep.subr.bf16.mxu0 %v3659
    %4673 = vmatpush1.bf16.msra.mxu0 %v3658
    %4674 = vmatprep.subr.bf16.mxu0 %v3667
    %4675 = vmatpush1.bf16.msra.mxu0 %v3666
    %4676 = vmatprep.subr.bf16.mxu0 %v3675
    %4677 = vmatpush1.bf16.msra.mxu0 %v3674
    %4678 = vmatprep.subr.bf16.mxu0 %v3683
    %4679 = vmatpush1.bf16.msra.mxu0 %v3682
    %4680 = vmatprep.subr.bf16.mxu0 %v3691
    %4681 = vmatpush1.bf16.msra.mxu0 %v3690
    %4682 = vmatprep.subr.bf16.mxu0 %v3699
    %4683 = vmatpush1.bf16.msra.mxu0 %v3698
    %4684 = vmatprep.subr.bf16.mxu0 %v3707
    %4685 = vmatpush1.bf16.msra.mxu0 %v3706
    %4686 = vmatprep.mubr.bf16.mxu0 %v949
    %4687 = vmatmul.mubr.bf16.gmra.mrb[0].mxu0 %v948
    %v4688 = vpop.f32.mrb[0].mxu0
    %v4689 = vadd.f32 %v4646, %v4688
    %v4690 = vpop.f32.mrb[0].mxu0
    %v4691 = vadd.f32 %v4648, %v4690
    %v4692 = vpop.f32.mrb[0].mxu0
    %v4693 = vadd.f32 %v4650, %v4692
    %v4694 = vpop.f32.mrb[0].mxu0
    %v4695 = vadd.f32 %v4652, %v4694
    %4696 = vdwg.mxu0
    %4697 = vmatprep.subr.bf16.mxu0 %v3715
    %4698 = vmatpush1.bf16.msra.mxu0 %v3714
    %4699 = vmatprep.subr.bf16.mxu0 %v3723
    %4700 = vmatpush1.bf16.msra.mxu0 %v3722
    %4701 = vmatprep.subr.bf16.mxu0 %v3731
    %4702 = vmatpush1.bf16.msra.mxu0 %v3730
    %4703 = vmatprep.subr.bf16.mxu0 %v3739
    %4704 = vmatpush1.bf16.msra.mxu0 %v3738
    %4705 = vmatprep.subr.bf16.mxu0 %v3747
    %4706 = vmatpush1.bf16.msra.mxu0 %v3746
    %4707 = vmatprep.subr.bf16.mxu0 %v3755
    %4708 = vmatpush1.bf16.msra.mxu0 %v3754
    %4709 = vmatprep.subr.bf16.mxu0 %v3763
    %4710 = vmatpush1.bf16.msra.mxu0 %v3762
    %4711 = vmatprep.subr.bf16.mxu0 %v3771
    %4712 = vmatpush1.bf16.msra.mxu0 %v3770
    %4713 = vmatprep.subr.bf16.mxu0 0
    %4714 = vmatpush1.bf16.msra.mxu0 0
    %4715 = vmatprep.subr.bf16.mxu0 0
    %4716 = vmatpush1.bf16.msra.mxu0 0
    %4717 = vmatprep.subr.bf16.mxu0 0
    %4718 = vmatpush1.bf16.msra.mxu0 0
    %4719 = vmatprep.subr.bf16.mxu0 0
    %4720 = vmatpush1.bf16.msra.mxu0 0
    %4721 = vmatprep.subr.bf16.mxu0 0
    %4722 = vmatpush1.bf16.msra.mxu0 0
    %4723 = vmatprep.subr.bf16.mxu0 0
    %4724 = vmatpush1.bf16.msra.mxu0 0
    %4725 = vmatprep.subr.bf16.mxu0 0
    %4726 = vmatpush1.bf16.msra.mxu0 0
    %4727 = vmatprep.subr.bf16.mxu0 0
    %4728 = vmatpush1.bf16.msra.mxu0 0
    %4729 = vmatprep.mubr.bf16.mxu0 0
    %4730 = vmatmul.mubr.bf16.gmra.mrb[0].mxu0 %v950
    %v4731 = vpop.f32.mrb[0].mxu0
    %v4732 = vadd.f32 %v4689, %v4731
    %v4733 = vpop.f32.mrb[0].mxu0
    %v4734 = vadd.f32 %v4691, %v4733
    %v4735 = vpop.f32.mrb[0].mxu0
    %v4736 = vadd.f32 %v4693, %v4735
    %v4737 = vpop.f32.mrb[0].mxu0
    %v4738 = vadd.f32 %v4695, %v4737
    %4739 = vdwg.mxu0
    %4740 = vmatprep.subr.bf16.mxu0 %v3077
    %4741 = vmatpush1.bf16.msra.mxu0 %v3076
    %4742 = vmatprep.subr.bf16.mxu0 %v3085
    %4743 = vmatpush1.bf16.msra.mxu0 %v3084
    %4744 = vmatprep.subr.bf16.mxu0 %v3093
    %4745 = vmatpush1.bf16.msra.mxu0 %v3092
    %4746 = vmatprep.subr.bf16.mxu0 %v3101
    %4747 = vmatpush1.bf16.msra.mxu0 %v3100
    %4748 = vmatprep.subr.bf16.mxu0 %v3109
    %4749 = vmatpush1.bf16.msra.mxu0 %v3108
    %4750 = vmatprep.subr.bf16.mxu0 %v3117
    %4751 = vmatpush1.bf16.msra.mxu0 %v3116
    %4752 = vmatprep.subr.bf16.mxu0 %v3125
    %4753 = vmatpush1.bf16.msra.mxu0 %v3124
    %4754 = vmatprep.subr.bf16.mxu0 %v3133
    %4755 = vmatpush1.bf16.msra.mxu0 %v3132
    %4756 = vmatprep.subr.bf16.mxu0 %v3141
    %4757 = vmatpush1.bf16.msra.mxu0 %v3140
    %4758 = vmatprep.subr.bf16.mxu0 %v3149
    %4759 = vmatpush1.bf16.msra.mxu0 %v3148
    %4760 = vmatprep.subr.bf16.mxu0 %v3157
    %4761 = vmatpush1.bf16.msra.mxu0 %v3156
    %4762 = vmatprep.subr.bf16.mxu0 %v3165
    %4763 = vmatpush1.bf16.msra.mxu0 %v3164
    %4764 = vmatprep.subr.bf16.mxu0 %v3173
    %4765 = vmatpush1.bf16.msra.mxu0 %v3172
    %4766 = vmatprep.subr.bf16.mxu0 %v3181
    %4767 = vmatpush1.bf16.msra.mxu0 %v3180
    %4768 = vmatprep.subr.bf16.mxu0 %v3189
    %4769 = vmatpush1.bf16.msra.mxu0 %v3188
    %4770 = vmatprep.subr.bf16.mxu0 %v3197
    %4771 = vmatpush1.bf16.msra.mxu0 %v3196
    %4772 = vmatprep.mubr.bf16.mxu0 %v941
    %4773 = vmatmul.mubr.bf16.gmra.mrb[0].mxu0 %v940
    %v4774 = vpop.f32.mrb[0].mxu0
    %v4775 = vadd.f32 %v877, %v4774
    %v4776 = vpop.f32.mrb[0].mxu0
    %v4777 = vadd.f32 %v881, %v4776
    %v4778 = vpop.f32.mrb[0].mxu0
    %v4779 = vadd.f32 %v877, %v4778
    %v4780 = vpop.f32.mrb[0].mxu0
    %v4781 = vadd.f32 %v881, %v4780
    %4782 = vdwg.mxu0
    %4783 = vmatprep.subr.bf16.mxu0 %v3205
    %4784 = vmatpush1.bf16.msra.mxu0 %v3204
    %4785 = vmatprep.subr.bf16.mxu0 %v3213
    %4786 = vmatpush1.bf16.msra.mxu0 %v3212
    %4787 = vmatprep.subr.bf16.mxu0 %v3221
    %4788 = vmatpush1.bf16.msra.mxu0 %v3220
    %4789 = vmatprep.subr.bf16.mxu0 %v3229
    %4790 = vmatpush1.bf16.msra.mxu0 %v3228
    %4791 = vmatprep.subr.bf16.mxu0 %v3237
    %4792 = vmatpush1.bf16.msra.mxu0 %v3236
    %4793 = vmatprep.subr.bf16.mxu0 %v3245
    %4794 = vmatpush1.bf16.msra.mxu0 %v3244
    %4795 = vmatprep.subr.bf16.mxu0 %v3253
    %4796 = vmatpush1.bf16.msra.mxu0 %v3252
    %4797 = vmatprep.subr.bf16.mxu0 %v3261
    %4798 = vmatpush1.bf16.msra.mxu0 %v3260
    %4799 = vmatprep.subr.bf16.mxu0 %v3269
    %4800 = vmatpush1.bf16.msra.mxu0 %v3268
    %4801 = vmatprep.subr.bf16.mxu0 %v3277
    %4802 = vmatpush1.bf16.msra.mxu0 %v3276
    %4803 = vmatprep.subr.bf16.mxu0 %v3285
    %4804 = vmatpush1.bf16.msra.mxu0 %v3284
    %4805 = vmatprep.subr.bf16.mxu0 %v3293
    %4806 = vmatpush1.bf16.msra.mxu0 %v3292
    %4807 = vmatprep.subr.bf16.mxu0 %v3301
    %4808 = vmatpush1.bf16.msra.mxu0 %v3300
    %4809 = vmatprep.subr.bf16.mxu0 %v3309
    %4810 = vmatpush1.bf16.msra.mxu0 %v3308
    %4811 = vmatprep.subr.bf16.mxu0 %v3317
    %4812 = vmatpush1.bf16.msra.mxu0 %v3316
    %4813 = vmatprep.subr.bf16.mxu0 %v3325
    %4814 = vmatpush1.bf16.msra.mxu0 %v3324
    %4815 = vmatprep.mubr.bf16.mxu0 %v943
    %4816 = vmatmul.mubr.bf16.gmra.mrb[0].mxu0 %v942
    %v4817 = vpop.f32.mrb[0].mxu0
    %v4818 = vadd.f32 %v4775, %v4817
    %v4819 = vpop.f32.mrb[0].mxu0
    %v4820 = vadd.f32 %v4777, %v4819
    %v4821 = vpop.f32.mrb[0].mxu0
    %v4822 = vadd.f32 %v4779, %v4821
    %v4823 = vpop.f32.mrb[0].mxu0
    %v4824 = vadd.f32 %v4781, %v4823
    %4825 = vdwg.mxu0
    %4826 = vmatprep.subr.bf16.mxu0 %v3333
    %4827 = vmatpush1.bf16.msra.mxu0 %v3332
    %4828 = vmatprep.subr.bf16.mxu0 %v3341
    %4829 = vmatpush1.bf16.msra.mxu0 %v3340
    %4830 = vmatprep.subr.bf16.mxu0 %v3349
    %4831 = vmatpush1.bf16.msra.mxu0 %v3348
    %4832 = vmatprep.subr.bf16.mxu0 %v3357
    %4833 = vmatpush1.bf16.msra.mxu0 %v3356
    %4834 = vmatprep.subr.bf16.mxu0 %v3365
    %4835 = vmatpush1.bf16.msra.mxu0 %v3364
    %4836 = vmatprep.subr.bf16.mxu0 %v3373
    %4837 = vmatpush1.bf16.msra.mxu0 %v3372
    %4838 = vmatprep.subr.bf16.mxu0 %v3381
    %4839 = vmatpush1.bf16.msra.mxu0 %v3380
    %4840 = vmatprep.subr.bf16.mxu0 %v3389
    %4841 = vmatpush1.bf16.msra.mxu0 %v3388
    %4842 = vmatprep.subr.bf16.mxu0 %v3397
    %4843 = vmatpush1.bf16.msra.mxu0 %v3396
    %4844 = vmatprep.subr.bf16.mxu0 %v3405
    %4845 = vmatpush1.bf16.msra.mxu0 %v3404
    %4846 = vmatprep.subr.bf16.mxu0 %v3413
    %4847 = vmatpush1.bf16.msra.mxu0 %v3412
    %4848 = vmatprep.subr.bf16.mxu0 %v3421
    %4849 = vmatpush1.bf16.msra.mxu0 %v3420
    %4850 = vmatprep.subr.bf16.mxu0 %v3429
    %4851 = vmatpush1.bf16.msra.mxu0 %v3428
    %4852 = vmatprep.subr.bf16.mxu0 %v3437
    %4853 = vmatpush1.bf16.msra.mxu0 %v3436
    %4854 = vmatprep.subr.bf16.mxu0 %v3445
    %4855 = vmatpush1.bf16.msra.mxu0 %v3444
    %4856 = vmatprep.subr.bf16.mxu0 %v3453
    %4857 = vmatpush1.bf16.msra.mxu0 %v3452
    %4858 = vmatprep.mubr.bf16.mxu0 %v945
    %4859 = vmatmul.mubr.bf16.gmra.mrb[0].mxu0 %v944
    %v4860 = vpop.f32.mrb[0].mxu0
    %v4861 = vadd.f32 %v4818, %v4860
    %v4862 = vpop.f32.mrb[0].mxu0
    %v4863 = vadd.f32 %v4820, %v4862
    %v4864 = vpop.f32.mrb[0].mxu0
    %v4865 = vadd.f32 %v4822, %v4864
    %v4866 = vpop.f32.mrb[0].mxu0
    %v4867 = vadd.f32 %v4824, %v4866
    %4868 = vdwg.mxu0
    %4869 = vmatprep.subr.bf16.mxu0 %v3461
    %4870 = vmatpush1.bf16.msra.mxu0 %v3460
    %4871 = vmatprep.subr.bf16.mxu0 %v3469
    %4872 = vmatpush1.bf16.msra.mxu0 %v3468
    %4873 = vmatprep.subr.bf16.mxu0 %v3477
    %4874 = vmatpush1.bf16.msra.mxu0 %v3476
    %4875 = vmatprep.subr.bf16.mxu0 %v3485
    %4876 = vmatpush1.bf16.msra.mxu0 %v3484
    %4877 = vmatprep.subr.bf16.mxu0 %v3493
    %4878 = vmatpush1.bf16.msra.mxu0 %v3492
    %4879 = vmatprep.subr.bf16.mxu0 %v3501
    %4880 = vmatpush1.bf16.msra.mxu0 %v3500
    %4881 = vmatprep.subr.bf16.mxu0 %v3509
    %4882 = vmatpush1.bf16.msra.mxu0 %v3508
    %4883 = vmatprep.subr.bf16.mxu0 %v3517
    %4884 = vmatpush1.bf16.msra.mxu0 %v3516
    %4885 = vmatprep.subr.bf16.mxu0 %v3525
    %4886 = vmatpush1.bf16.msra.mxu0 %v3524
    %4887 = vmatprep.subr.bf16.mxu0 %v3533
    %4888 = vmatpush1.bf16.msra.mxu0 %v3532
    %4889 = vmatprep.subr.bf16.mxu0 %v3541
    %4890 = vmatpush1.bf16.msra.mxu0 %v3540
    %4891 = vmatprep.subr.bf16.mxu0 %v3549
    %4892 = vmatpush1.bf16.msra.mxu0 %v3548
    %4893 = vmatprep.subr.bf16.mxu0 %v3557
    %4894 = vmatpush1.bf16.msra.mxu0 %v3556
    %4895 = vmatprep.subr.bf16.mxu0 %v3565
    %4896 = vmatpush1.bf16.msra.mxu0 %v3564
    %4897 = vmatprep.subr.bf16.mxu0 %v3573
    %4898 = vmatpush1.bf16.msra.mxu0 %v3572
    %4899 = vmatprep.subr.bf16.mxu0 %v3581
    %4900 = vmatpush1.bf16.msra.mxu0 %v3580
    %4901 = vmatprep.mubr.bf16.mxu0 %v947
    %4902 = vmatmul.mubr.bf16.gmra.mrb[0].mxu0 %v946
    %v4903 = vpop.f32.mrb[0].mxu0
    %v4904 = vadd.f32 %v4861, %v4903
    %v4905 = vpop.f32.mrb[0].mxu0
    %v4906 = vadd.f32 %v4863, %v4905
    %v4907 = vpop.f32.mrb[0].mxu0
    %v4908 = vadd.f32 %v4865, %v4907
    %v4909 = vpop.f32.mrb[0].mxu0
    %v4910 = vadd.f32 %v4867, %v4909
    %4911 = vdwg.mxu0
    %4912 = vmatprep.subr.bf16.mxu0 %v3589
    %4913 = vmatpush1.bf16.msra.mxu0 %v3588
    %4914 = vmatprep.subr.bf16.mxu0 %v3597
    %4915 = vmatpush1.bf16.msra.mxu0 %v3596
    %4916 = vmatprep.subr.bf16.mxu0 %v3605
    %4917 = vmatpush1.bf16.msra.mxu0 %v3604
    %4918 = vmatprep.subr.bf16.mxu0 %v3613
    %4919 = vmatpush1.bf16.msra.mxu0 %v3612
    %4920 = vmatprep.subr.bf16.mxu0 %v3621
    %4921 = vmatpush1.bf16.msra.mxu0 %v3620
    %4922 = vmatprep.subr.bf16.mxu0 %v3629
    %4923 = vmatpush1.bf16.msra.mxu0 %v3628
    %4924 = vmatprep.subr.bf16.mxu0 %v3637
    %4925 = vmatpush1.bf16.msra.mxu0 %v3636
    %4926 = vmatprep.subr.bf16.mxu0 %v3645
    %4927 = vmatpush1.bf16.msra.mxu0 %v3644
    %4928 = vmatprep.subr.bf16.mxu0 %v3653
    %4929 = vmatpush1.bf16.msra.mxu0 %v3652
    %4930 = vmatprep.subr.bf16.mxu0 %v3661
    %4931 = vmatpush1.bf16.msra.mxu0 %v3660
    %4932 = vmatprep.subr.bf16.mxu0 %v3669
    %4933 = vmatpush1.bf16.msra.mxu0 %v3668
    %4934 = vmatprep.subr.bf16.mxu0 %v3677
    %4935 = vmatpush1.bf16.msra.mxu0 %v3676
    %4936 = vmatprep.subr.bf16.mxu0 %v3685
    %4937 = vmatpush1.bf16.msra.mxu0 %v3684
    %4938 = vmatprep.subr.bf16.mxu0 %v3693
    %4939 = vmatpush1.bf16.msra.mxu0 %v3692
    %4940 = vmatprep.subr.bf16.mxu0 %v3701
    %4941 = vmatpush1.bf16.msra.mxu0 %v3700
    %4942 = vmatprep.subr.bf16.mxu0 %v3709
    %4943 = vmatpush1.bf16.msra.mxu0 %v3708
    %4944 = vmatprep.mubr.bf16.mxu0 %v949
    %4945 = vmatmul.mubr.bf16.gmra.mrb[0].mxu0 %v948
    %v4946 = vpop.f32.mrb[0].mxu0
    %v4947 = vadd.f32 %v4904, %v4946
    %v4948 = vpop.f32.mrb[0].mxu0
    %v4949 = vadd.f32 %v4906, %v4948
    %v4950 = vpop.f32.mrb[0].mxu0
    %v4951 = vadd.f32 %v4908, %v4950
    %v4952 = vpop.f32.mrb[0].mxu0
    %v4953 = vadd.f32 %v4910, %v4952
    %4954 = vdwg.mxu0
    %4955 = vmatprep.subr.bf16.mxu0 %v3717
    %4956 = vmatpush1.bf16.msra.mxu0 %v3716
    %4957 = vmatprep.subr.bf16.mxu0 %v3725
    %4958 = vmatpush1.bf16.msra.mxu0 %v3724
    %4959 = vmatprep.subr.bf16.mxu0 %v3733
    %4960 = vmatpush1.bf16.msra.mxu0 %v3732
    %4961 = vmatprep.subr.bf16.mxu0 %v3741
    %4962 = vmatpush1.bf16.msra.mxu0 %v3740
    %4963 = vmatprep.subr.bf16.mxu0 %v3749
    %4964 = vmatpush1.bf16.msra.mxu0 %v3748
    %4965 = vmatprep.subr.bf16.mxu0 %v3757
    %4966 = vmatpush1.bf16.msra.mxu0 %v3756
    %4967 = vmatprep.subr.bf16.mxu0 %v3765
    %4968 = vmatpush1.bf16.msra.mxu0 %v3764
    %4969 = vmatprep.subr.bf16.mxu0 %v3773
    %4970 = vmatpush1.bf16.msra.mxu0 %v3772
    %4971 = vmatprep.subr.bf16.mxu0 0
    %4972 = vmatpush1.bf16.msra.mxu0 0
    %4973 = vmatprep.subr.bf16.mxu0 0
    %4974 = vmatpush1.bf16.msra.mxu0 0
    %4975 = vmatprep.subr.bf16.mxu0 0
    %4976 = vmatpush1.bf16.msra.mxu0 0
    %4977 = vmatprep.subr.bf16.mxu0 0
    %4978 = vmatpush1.bf16.msra.mxu0 0
    %4979 = vmatprep.subr.bf16.mxu0 0
    %4980 = vmatpush1.bf16.msra.mxu0 0
    %4981 = vmatprep.subr.bf16.mxu0 0
    %4982 = vmatpush1.bf16.msra.mxu0 0
    %4983 = vmatprep.subr.bf16.mxu0 0
    %4984 = vmatpush1.bf16.msra.mxu0 0
    %4985 = vmatprep.subr.bf16.mxu0 0
    %4986 = vmatpush1.bf16.msra.mxu0 0
    %4987 = vmatprep.mubr.bf16.mxu0 0
    %4988 = vmatmul.mubr.bf16.gmra.mrb[0].mxu0 %v950
    %v4989 = vpop.f32.mrb[0].mxu0
    %v4990 = vadd.f32 %v4947, %v4989
    %v4991 = vpop.f32.mrb[0].mxu0
    %v4992 = vadd.f32 %v4949, %v4991
    %v4993 = vpop.f32.mrb[0].mxu0
    %v4994 = vadd.f32 %v4951, %v4993
    %v4995 = vpop.f32.mrb[0].mxu0
    %v4996 = vadd.f32 %v4953, %v4995
    %4997 = vdwg.mxu0
    %4998 = vmatprep.subr.bf16.mxu0 %v3079
    %4999 = vmatpush1.bf16.msra.mxu0 %v3078
    %5000 = vmatprep.subr.bf16.mxu0 %v3087
    %5001 = vmatpush1.bf16.msra.mxu0 %v3086
    %5002 = vmatprep.subr.bf16.mxu0 %v3095
    %5003 = vmatpush1.bf16.msra.mxu0 %v3094
    %5004 = vmatprep.subr.bf16.mxu0 %v3103
    %5005 = vmatpush1.bf16.msra.mxu0 %v3102
    %5006 = vmatprep.subr.bf16.mxu0 %v3111
    %5007 = vmatpush1.bf16.msra.mxu0 %v3110
    %5008 = vmatprep.subr.bf16.mxu0 %v3119
    %5009 = vmatpush1.bf16.msra.mxu0 %v3118
    %5010 = vmatprep.subr.bf16.mxu0 %v3127
    %5011 = vmatpush1.bf16.msra.mxu0 %v3126
    %5012 = vmatprep.subr.bf16.mxu0 %v3135
    %5013 = vmatpush1.bf16.msra.mxu0 %v3134
    %5014 = vmatprep.subr.bf16.mxu0 %v3143
    %5015 = vmatpush1.bf16.msra.mxu0 %v3142
    %5016 = vmatprep.subr.bf16.mxu0 %v3151
    %5017 = vmatpush1.bf16.msra.mxu0 %v3150
    %5018 = vmatprep.subr.bf16.mxu0 %v3159
    %5019 = vmatpush1.bf16.msra.mxu0 %v3158
    %5020 = vmatprep.subr.bf16.mxu0 %v3167
    %5021 = vmatpush1.bf16.msra.mxu0 %v3166
    %5022 = vmatprep.subr.bf16.mxu0 %v3175
    %5023 = vmatpush1.bf16.msra.mxu0 %v3174
    %5024 = vmatprep.subr.bf16.mxu0 %v3183
    %5025 = vmatpush1.bf16.msra.mxu0 %v3182
    %5026 = vmatprep.subr.bf16.mxu0 %v3191
    %5027 = vmatpush1.bf16.msra.mxu0 %v3190
    %5028 = vmatprep.subr.bf16.mxu0 %v3199
    %5029 = vmatpush1.bf16.msra.mxu0 %v3198
    %5030 = vmatprep.mubr.bf16.mxu0 %v941
    %5031 = vmatmul.mubr.bf16.gmra.mrb[0].mxu0 %v940
    %v5032 = vpop.f32.mrb[0].mxu0
    %v5033 = vadd.f32 %v885, %v5032
    %v5034 = vpop.f32.mrb[0].mxu0
    %v5035 = vadd.f32 %v889, %v5034
    %v5036 = vpop.f32.mrb[0].mxu0
    %v5037 = vadd.f32 %v885, %v5036
    %v5038 = vpop.f32.mrb[0].mxu0
    %v5039 = vadd.f32 %v889, %v5038
    %5040 = vdwg.mxu0
    %5041 = vmatprep.subr.bf16.mxu0 %v3207
    %5042 = vmatpush1.bf16.msra.mxu0 %v3206
    %5043 = vmatprep.subr.bf16.mxu0 %v3215
    %5044 = vmatpush1.bf16.msra.mxu0 %v3214
    %5045 = vmatprep.subr.bf16.mxu0 %v3223
    %5046 = vmatpush1.bf16.msra.mxu0 %v3222
    %5047 = vmatprep.subr.bf16.mxu0 %v3231
    %5048 = vmatpush1.bf16.msra.mxu0 %v3230
    %5049 = vmatprep.subr.bf16.mxu0 %v3239
    %5050 = vmatpush1.bf16.msra.mxu0 %v3238
    %5051 = vmatprep.subr.bf16.mxu0 %v3247
    %5052 = vmatpush1.bf16.msra.mxu0 %v3246
    %5053 = vmatprep.subr.bf16.mxu0 %v3255
    %5054 = vmatpush1.bf16.msra.mxu0 %v3254
    %5055 = vmatprep.subr.bf16.mxu0 %v3263
    %5056 = vmatpush1.bf16.msra.mxu0 %v3262
    %5057 = vmatprep.subr.bf16.mxu0 %v3271
    %5058 = vmatpush1.bf16.msra.mxu0 %v3270
    %5059 = vmatprep.subr.bf16.mxu0 %v3279
    %5060 = vmatpush1.bf16.msra.mxu0 %v3278
    %5061 = vmatprep.subr.bf16.mxu0 %v3287
    %5062 = vmatpush1.bf16.msra.mxu0 %v3286
    %5063 = vmatprep.subr.bf16.mxu0 %v3295
    %5064 = vmatpush1.bf16.msra.mxu0 %v3294
    %5065 = vmatprep.subr.bf16.mxu0 %v3303
    %5066 = vmatpush1.bf16.msra.mxu0 %v3302
    %5067 = vmatprep.subr.bf16.mxu0 %v3311
    %5068 = vmatpush1.bf16.msra.mxu0 %v3310
    %5069 = vmatprep.subr.bf16.mxu0 %v3319
    %5070 = vmatpush1.bf16.msra.mxu0 %v3318
    %5071 = vmatprep.subr.bf16.mxu0 %v3327
    %5072 = vmatpush1.bf16.msra.mxu0 %v3326
    %5073 = vmatprep.mubr.bf16.mxu0 %v943
    %5074 = vmatmul.mubr.bf16.gmra.mrb[0].mxu0 %v942
    %v5075 = vpop.f32.mrb[0].mxu0
    %v5076 = vadd.f32 %v5033, %v5075
    %v5077 = vpop.f32.mrb[0].mxu0
    %v5078 = vadd.f32 %v5035, %v5077
    %v5079 = vpop.f32.mrb[0].mxu0
    %v5080 = vadd.f32 %v5037, %v5079
    %v5081 = vpop.f32.mrb[0].mxu0
    %v5082 = vadd.f32 %v5039, %v5081
    %5083 = vdwg.mxu0
    %5084 = vmatprep.subr.bf16.mxu0 %v3335
    %5085 = vmatpush1.bf16.msra.mxu0 %v3334
    %5086 = vmatprep.subr.bf16.mxu0 %v3343
    %5087 = vmatpush1.bf16.msra.mxu0 %v3342
    %5088 = vmatprep.subr.bf16.mxu0 %v3351
    %5089 = vmatpush1.bf16.msra.mxu0 %v3350
    %5090 = vmatprep.subr.bf16.mxu0 %v3359
    %5091 = vmatpush1.bf16.msra.mxu0 %v3358
    %5092 = vmatprep.subr.bf16.mxu0 %v3367
    %5093 = vmatpush1.bf16.msra.mxu0 %v3366
    %5094 = vmatprep.subr.bf16.mxu0 %v3375
    %5095 = vmatpush1.bf16.msra.mxu0 %v3374
    %5096 = vmatprep.subr.bf16.mxu0 %v3383
    %5097 = vmatpush1.bf16.msra.mxu0 %v3382
    %5098 = vmatprep.subr.bf16.mxu0 %v3391
    %5099 = vmatpush1.bf16.msra.mxu0 %v3390
    %5100 = vmatprep.subr.bf16.mxu0 %v3399
    %5101 = vmatpush1.bf16.msra.mxu0 %v3398
    %5102 = vmatprep.subr.bf16.mxu0 %v3407
    %5103 = vmatpush1.bf16.msra.mxu0 %v3406
    %5104 = vmatprep.subr.bf16.mxu0 %v3415
    %5105 = vmatpush1.bf16.msra.mxu0 %v3414
    %5106 = vmatprep.subr.bf16.mxu0 %v3423
    %5107 = vmatpush1.bf16.msra.mxu0 %v3422
    %5108 = vmatprep.subr.bf16.mxu0 %v3431
    %5109 = vmatpush1.bf16.msra.mxu0 %v3430
    %5110 = vmatprep.subr.bf16.mxu0 %v3439
    %5111 = vmatpush1.bf16.msra.mxu0 %v3438
    %5112 = vmatprep.subr.bf16.mxu0 %v3447
    %5113 = vmatpush1.bf16.msra.mxu0 %v3446
    %5114 = vmatprep.subr.bf16.mxu0 %v3455
    %5115 = vmatpush1.bf16.msra.mxu0 %v3454
    %5116 = vmatprep.mubr.bf16.mxu0 %v945
    %5117 = vmatmul.mubr.bf16.gmra.mrb[0].mxu0 %v944
    %v5118 = vpop.f32.mrb[0].mxu0
    %v5119 = vadd.f32 %v5076, %v5118
    %v5120 = vpop.f32.mrb[0].mxu0
    %v5121 = vadd.f32 %v5078, %v5120
    %v5122 = vpop.f32.mrb[0].mxu0
    %v5123 = vadd.f32 %v5080, %v5122
    %v5124 = vpop.f32.mrb[0].mxu0
    %v5125 = vadd.f32 %v5082, %v5124
    %5126 = vdwg.mxu0
    %5127 = vmatprep.subr.bf16.mxu0 %v3463
    %5128 = vmatpush1.bf16.msra.mxu0 %v3462
    %5129 = vmatprep.subr.bf16.mxu0 %v3471
    %5130 = vmatpush1.bf16.msra.mxu0 %v3470
    %5131 = vmatprep.subr.bf16.mxu0 %v3479
    %5132 = vmatpush1.bf16.msra.mxu0 %v3478
    %5133 = vmatprep.subr.bf16.mxu0 %v3487
    %5134 = vmatpush1.bf16.msra.mxu0 %v3486
    %5135 = vmatprep.subr.bf16.mxu0 %v3495
    %5136 = vmatpush1.bf16.msra.mxu0 %v3494
    %5137 = vmatprep.subr.bf16.mxu0 %v3503
    %5138 = vmatpush1.bf16.msra.mxu0 %v3502
    %5139 = vmatprep.subr.bf16.mxu0 %v3511
    %5140 = vmatpush1.bf16.msra.mxu0 %v3510
    %5141 = vmatprep.subr.bf16.mxu0 %v3519
    %5142 = vmatpush1.bf16.msra.mxu0 %v3518
    %5143 = vmatprep.subr.bf16.mxu0 %v3527
    %5144 = vmatpush1.bf16.msra.mxu0 %v3526
    %5145 = vmatprep.subr.bf16.mxu0 %v3535
    %5146 = vmatpush1.bf16.msra.mxu0 %v3534
    %5147 = vmatprep.subr.bf16.mxu0 %v3543
    %5148 = vmatpush1.bf16.msra.mxu0 %v3542
    %5149 = vmatprep.subr.bf16.mxu0 %v3551
    %5150 = vmatpush1.bf16.msra.mxu0 %v3550
    %5151 = vmatprep.subr.bf16.mxu0 %v3559
    %5152 = vmatpush1.bf16.msra.mxu0 %v3558
    %5153 = vmatprep.subr.bf16.mxu0 %v3567
    %5154 = vmatpush1.bf16.msra.mxu0 %v3566
    %5155 = vmatprep.subr.bf16.mxu0 %v3575
    %5156 = vmatpush1.bf16.msra.mxu0 %v3574
    %5157 = vmatprep.subr.bf16.mxu0 %v3583
    %5158 = vmatpush1.bf16.msra.mxu0 %v3582
    %5159 = vmatprep.mubr.bf16.mxu0 %v947
    %5160 = vmatmul.mubr.bf16.gmra.mrb[0].mxu0 %v946
    %v5161 = vpop.f32.mrb[0].mxu0
    %v5162 = vadd.f32 %v5119, %v5161
    %v5163 = vpop.f32.mrb[0].mxu0
    %v5164 = vadd.f32 %v5121, %v5163
    %v5165 = vpop.f32.mrb[0].mxu0
    %v5166 = vadd.f32 %v5123, %v5165
    %v5167 = vpop.f32.mrb[0].mxu0
    %v5168 = vadd.f32 %v5125, %v5167
    %5169 = vdwg.mxu0
    %5170 = vmatprep.subr.bf16.mxu0 %v3591
    %5171 = vmatpush1.bf16.msra.mxu0 %v3590
    %5172 = vmatprep.subr.bf16.mxu0 %v3599
    %5173 = vmatpush1.bf16.msra.mxu0 %v3598
    %5174 = vmatprep.subr.bf16.mxu0 %v3607
    %5175 = vmatpush1.bf16.msra.mxu0 %v3606
    %5176 = vmatprep.subr.bf16.mxu0 %v3615
    %5177 = vmatpush1.bf16.msra.mxu0 %v3614
    %5178 = vmatprep.subr.bf16.mxu0 %v3623
    %5179 = vmatpush1.bf16.msra.mxu0 %v3622
    %5180 = vmatprep.subr.bf16.mxu0 %v3631
    %5181 = vmatpush1.bf16.msra.mxu0 %v3630
    %5182 = vmatprep.subr.bf16.mxu0 %v3639
    %5183 = vmatpush1.bf16.msra.mxu0 %v3638
    %5184 = vmatprep.subr.bf16.mxu0 %v3647
    %5185 = vmatpush1.bf16.msra.mxu0 %v3646
    %5186 = vmatprep.subr.bf16.mxu0 %v3655
    %5187 = vmatpush1.bf16.msra.mxu0 %v3654
    %5188 = vmatprep.subr.bf16.mxu0 %v3663
    %5189 = vmatpush1.bf16.msra.mxu0 %v3662
    %5190 = vmatprep.subr.bf16.mxu0 %v3671
    %5191 = vmatpush1.bf16.msra.mxu0 %v3670
    %5192 = vmatprep.subr.bf16.mxu0 %v3679
    %5193 = vmatpush1.bf16.msra.mxu0 %v3678
    %5194 = vmatprep.subr.bf16.mxu0 %v3687
    %5195 = vmatpush1.bf16.msra.mxu0 %v3686
    %5196 = vmatprep.subr.bf16.mxu0 %v3695
    %5197 = vmatpush1.bf16.msra.mxu0 %v3694
    %5198 = vmatprep.subr.bf16.mxu0 %v3703
    %5199 = vmatpush1.bf16.msra.mxu0 %v3702
    %5200 = vmatprep.subr.bf16.mxu0 %v3711
    %5201 = vmatpush1.bf16.msra.mxu0 %v3710
    %5202 = vmatprep.mubr.bf16.mxu0 %v949
    %5203 = vmatmul.mubr.bf16.gmra.mrb[0].mxu0 %v948
    %v5204 = vpop.f32.mrb[0].mxu0
    %v5205 = vadd.f32 %v5162, %v5204
    %v5206 = vpop.f32.mrb[0].mxu0
    %v5207 = vadd.f32 %v5164, %v5206
    %v5208 = vpop.f32.mrb[0].mxu0
    %v5209 = vadd.f32 %v5166, %v5208
    %v5210 = vpop.f32.mrb[0].mxu0
    %v5211 = vadd.f32 %v5168, %v5210
    %5212 = vdwg.mxu0
    %5213 = vmatprep.subr.bf16.mxu0 %v3719
    %5214 = vmatpush1.bf16.msra.mxu0 %v3718
    %5215 = vmatprep.subr.bf16.mxu0 %v3727
    %5216 = vmatpush1.bf16.msra.mxu0 %v3726
    %5217 = vmatprep.subr.bf16.mxu0 %v3735
    %5218 = vmatpush1.bf16.msra.mxu0 %v3734
    %5219 = vmatprep.subr.bf16.mxu0 %v3743
    %5220 = vmatpush1.bf16.msra.mxu0 %v3742
    %5221 = vmatprep.subr.bf16.mxu0 %v3751
    %5222 = vmatpush1.bf16.msra.mxu0 %v3750
    %5223 = vmatprep.subr.bf16.mxu0 %v3759
    %5224 = vmatpush1.bf16.msra.mxu0 %v3758
    %5225 = vmatprep.subr.bf16.mxu0 %v3767
    %5226 = vmatpush1.bf16.msra.mxu0 %v3766
    %5227 = vmatprep.subr.bf16.mxu0 %v3775
    %5228 = vmatpush1.bf16.msra.mxu0 %v3774
    %5229 = vmatprep.subr.bf16.mxu0 0
    %5230 = vmatpush1.bf16.msra.mxu0 0
    %5231 = vmatprep.subr.bf16.mxu0 0
    %5232 = vmatpush1.bf16.msra.mxu0 0
    %5233 = vmatprep.subr.bf16.mxu0 0
    %5234 = vmatpush1.bf16.msra.mxu0 0
    %5235 = vmatprep.subr.bf16.mxu0 0
    %5236 = vmatpush1.bf16.msra.mxu0 0
    %5237 = vmatprep.subr.bf16.mxu0 0
    %5238 = vmatpush1.bf16.msra.mxu0 0
    %5239 = vmatprep.subr.bf16.mxu0 0
    %5240 = vmatpush1.bf16.msra.mxu0 0
    %5241 = vmatprep.subr.bf16.mxu0 0
    %5242 = vmatpush1.bf16.msra.mxu0 0
    %5243 = vmatprep.subr.bf16.mxu0 0
    %5244 = vmatpush1.bf16.msra.mxu0 0
    %5245 = vmatprep.mubr.bf16.mxu0 0
    %5246 = vmatmul.mubr.bf16.gmra.mrb[0].mxu0 %v950
    %v5247 = vpop.f32.mrb[0].mxu0
    %v5248 = vadd.f32 %v5205, %v5247
    %v5249 = vpop.f32.mrb[0].mxu0
    %v5250 = vadd.f32 %v5207, %v5249
    %v5251 = vpop.f32.mrb[0].mxu0
    %v5252 = vadd.f32 %v5209, %v5251
    %v5253 = vpop.f32.mrb[0].mxu0
    %v5254 = vadd.f32 %v5211, %v5253
    %5255 = vdwg.mxu0
    %5256 = vmatprep.subr.bf16.mxu0 %v3081
    %5257 = vmatpush1.bf16.msra.mxu0 %v3080
    %5258 = vmatprep.subr.bf16.mxu0 %v3089
    %5259 = vmatpush1.bf16.msra.mxu0 %v3088
    %5260 = vmatprep.subr.bf16.mxu0 %v3097
    %5261 = vmatpush1.bf16.msra.mxu0 %v3096
    %5262 = vmatprep.subr.bf16.mxu0 %v3105
    %5263 = vmatpush1.bf16.msra.mxu0 %v3104
    %5264 = vmatprep.subr.bf16.mxu0 %v3113
    %5265 = vmatpush1.bf16.msra.mxu0 %v3112
    %5266 = vmatprep.subr.bf16.mxu0 %v3121
    %5267 = vmatpush1.bf16.msra.mxu0 %v3120
    %5268 = vmatprep.subr.bf16.mxu0 %v3129
    %5269 = vmatpush1.bf16.msra.mxu0 %v3128
    %5270 = vmatprep.subr.bf16.mxu0 %v3137
    %5271 = vmatpush1.bf16.msra.mxu0 %v3136
    %5272 = vmatprep.subr.bf16.mxu0 %v3145
    %5273 = vmatpush1.bf16.msra.mxu0 %v3144
    %5274 = vmatprep.subr.bf16.mxu0 %v3153
    %5275 = vmatpush1.bf16.msra.mxu0 %v3152
    %5276 = vmatprep.subr.bf16.mxu0 %v3161
    %5277 = vmatpush1.bf16.msra.mxu0 %v3160
    %5278 = vmatprep.subr.bf16.mxu0 %v3169
    %5279 = vmatpush1.bf16.msra.mxu0 %v3168
    %5280 = vmatprep.subr.bf16.mxu0 %v3177
    %5281 = vmatpush1.bf16.msra.mxu0 %v3176
    %5282 = vmatprep.subr.bf16.mxu0 %v3185
    %5283 = vmatpush1.bf16.msra.mxu0 %v3184
    %5284 = vmatprep.subr.bf16.mxu0 %v3193
    %5285 = vmatpush1.bf16.msra.mxu0 %v3192
    %5286 = vmatprep.subr.bf16.mxu0 %v3201
    %5287 = vmatpush1.bf16.msra.mxu0 %v3200
    %5288 = vmatprep.mubr.bf16.mxu0 %v941
    %5289 = vmatmul.mubr.bf16.gmra.mrb[0].mxu0 %v940
    %v5290 = vpop.f32.mrb[0].mxu0
    %v5291 = vadd.f32 %v893, %v5290
    %v5292 = vpop.f32.mrb[0].mxu0
    %v5293 = vadd.f32 %v897, %v5292
    %v5294 = vpop.f32.mrb[0].mxu0
    %v5295 = vadd.f32 %v893, %v5294
    %v5296 = vpop.f32.mrb[0].mxu0
    %v5297 = vadd.f32 %v897, %v5296
    %5298 = vdwg.mxu0
    %5299 = vmatprep.subr.bf16.mxu0 %v3209
    %5300 = vmatpush1.bf16.msra.mxu0 %v3208
    %5301 = vmatprep.subr.bf16.mxu0 %v3217
    %5302 = vmatpush1.bf16.msra.mxu0 %v3216
    %5303 = vmatprep.subr.bf16.mxu0 %v3225
    %5304 = vmatpush1.bf16.msra.mxu0 %v3224
    %5305 = vmatprep.subr.bf16.mxu0 %v3233
    %5306 = vmatpush1.bf16.msra.mxu0 %v3232
    %5307 = vmatprep.subr.bf16.mxu0 %v3241
    %5308 = vmatpush1.bf16.msra.mxu0 %v3240
    %5309 = vmatprep.subr.bf16.mxu0 %v3249
    %5310 = vmatpush1.bf16.msra.mxu0 %v3248
    %5311 = vmatprep.subr.bf16.mxu0 %v3257
    %5312 = vmatpush1.bf16.msra.mxu0 %v3256
    %5313 = vmatprep.subr.bf16.mxu0 %v3265
    %5314 = vmatpush1.bf16.msra.mxu0 %v3264
    %5315 = vmatprep.subr.bf16.mxu0 %v3273
    %5316 = vmatpush1.bf16.msra.mxu0 %v3272
    %5317 = vmatprep.subr.bf16.mxu0 %v3281
    %5318 = vmatpush1.bf16.msra.mxu0 %v3280
    %5319 = vmatprep.subr.bf16.mxu0 %v3289
    %5320 = vmatpush1.bf16.msra.mxu0 %v3288
    %5321 = vmatprep.subr.bf16.mxu0 %v3297
    %5322 = vmatpush1.bf16.msra.mxu0 %v3296
    %5323 = vmatprep.subr.bf16.mxu0 %v3305
    %5324 = vmatpush1.bf16.msra.mxu0 %v3304
    %5325 = vmatprep.subr.bf16.mxu0 %v3313
    %5326 = vmatpush1.bf16.msra.mxu0 %v3312
    %5327 = vmatprep.subr.bf16.mxu0 %v3321
    %5328 = vmatpush1.bf16.msra.mxu0 %v3320
    %5329 = vmatprep.subr.bf16.mxu0 %v3329
    %5330 = vmatpush1.bf16.msra.mxu0 %v3328
    %5331 = vmatprep.mubr.bf16.mxu0 %v943
    %5332 = vmatmul.mubr.bf16.gmra.mrb[0].mxu0 %v942
    %v5333 = vpop.f32.mrb[0].mxu0
    %v5334 = vadd.f32 %v5291, %v5333
    %v5335 = vpop.f32.mrb[0].mxu0
    %v5336 = vadd.f32 %v5293, %v5335
    %v5337 = vpop.f32.mrb[0].mxu0
    %v5338 = vadd.f32 %v5295, %v5337
    %v5339 = vpop.f32.mrb[0].mxu0
    %v5340 = vadd.f32 %v5297, %v5339
    %5341 = vdwg.mxu0
    %5342 = vmatprep.subr.bf16.mxu0 %v3337
    %5343 = vmatpush1.bf16.msra.mxu0 %v3336
    %5344 = vmatprep.subr.bf16.mxu0 %v3345
    %5345 = vmatpush1.bf16.msra.mxu0 %v3344
    %5346 = vmatprep.subr.bf16.mxu0 %v3353
    %5347 = vmatpush1.bf16.msra.mxu0 %v3352
    %5348 = vmatprep.subr.bf16.mxu0 %v3361
    %5349 = vmatpush1.bf16.msra.mxu0 %v3360
    %5350 = vmatprep.subr.bf16.mxu0 %v3369
    %5351 = vmatpush1.bf16.msra.mxu0 %v3368
    %5352 = vmatprep.subr.bf16.mxu0 %v3377
    %5353 = vmatpush1.bf16.msra.mxu0 %v3376
    %5354 = vmatprep.subr.bf16.mxu0 %v3385
    %5355 = vmatpush1.bf16.msra.mxu0 %v3384
    %5356 = vmatprep.subr.bf16.mxu0 %v3393
    %5357 = vmatpush1.bf16.msra.mxu0 %v3392
    %5358 = vmatprep.subr.bf16.mxu0 %v3401
    %5359 = vmatpush1.bf16.msra.mxu0 %v3400
    %5360 = vmatprep.subr.bf16.mxu0 %v3409
    %5361 = vmatpush1.bf16.msra.mxu0 %v3408
    %5362 = vmatprep.subr.bf16.mxu0 %v3417
    %5363 = vmatpush1.bf16.msra.mxu0 %v3416
    %5364 = vmatprep.subr.bf16.mxu0 %v3425
    %5365 = vmatpush1.bf16.msra.mxu0 %v3424
    %5366 = vmatprep.subr.bf16.mxu0 %v3433
    %5367 = vmatpush1.bf16.msra.mxu0 %v3432
    %5368 = vmatprep.subr.bf16.mxu0 %v3441
    %5369 = vmatpush1.bf16.msra.mxu0 %v3440
    %5370 = vmatprep.subr.bf16.mxu0 %v3449
    %5371 = vmatpush1.bf16.msra.mxu0 %v3448
    %5372 = vmatprep.subr.bf16.mxu0 %v3457
    %5373 = vmatpush1.bf16.msra.mxu0 %v3456
    %5374 = vmatprep.mubr.bf16.mxu0 %v945
    %5375 = vmatmul.mubr.bf16.gmra.mrb[0].mxu0 %v944
    %v5376 = vpop.f32.mrb[0].mxu0
    %v5377 = vadd.f32 %v5334, %v5376
    %v5378 = vpop.f32.mrb[0].mxu0
    %v5379 = vadd.f32 %v5336, %v5378
    %v5380 = vpop.f32.mrb[0].mxu0
    %v5381 = vadd.f32 %v5338, %v5380
    %v5382 = vpop.f32.mrb[0].mxu0
    %v5383 = vadd.f32 %v5340, %v5382
    %5384 = vdwg.mxu0
    %5385 = vmatprep.subr.bf16.mxu0 %v3465
    %5386 = vmatpush1.bf16.msra.mxu0 %v3464
    %5387 = vmatprep.subr.bf16.mxu0 %v3473
    %5388 = vmatpush1.bf16.msra.mxu0 %v3472
    %5389 = vmatprep.subr.bf16.mxu0 %v3481
    %5390 = vmatpush1.bf16.msra.mxu0 %v3480
    %5391 = vmatprep.subr.bf16.mxu0 %v3489
    %5392 = vmatpush1.bf16.msra.mxu0 %v3488
    %5393 = vmatprep.subr.bf16.mxu0 %v3497
    %5394 = vmatpush1.bf16.msra.mxu0 %v3496
    %5395 = vmatprep.subr.bf16.mxu0 %v3505
    %5396 = vmatpush1.bf16.msra.mxu0 %v3504
    %5397 = vmatprep.subr.bf16.mxu0 %v3513
    %5398 = vmatpush1.bf16.msra.mxu0 %v3512
    %5399 = vmatprep.subr.bf16.mxu0 %v3521
    %5400 = vmatpush1.bf16.msra.mxu0 %v3520
    %5401 = vmatprep.subr.bf16.mxu0 %v3529
    %5402 = vmatpush1.bf16.msra.mxu0 %v3528
    %5403 = vmatprep.subr.bf16.mxu0 %v3537
    %5404 = vmatpush1.bf16.msra.mxu0 %v3536
    %5405 = vmatprep.subr.bf16.mxu0 %v3545
    %5406 = vmatpush1.bf16.msra.mxu0 %v3544
    %5407 = vmatprep.subr.bf16.mxu0 %v3553
    %5408 = vmatpush1.bf16.msra.mxu0 %v3552
    %5409 = vmatprep.subr.bf16.mxu0 %v3561
    %5410 = vmatpush1.bf16.msra.mxu0 %v3560
    %5411 = vmatprep.subr.bf16.mxu0 %v3569
    %5412 = vmatpush1.bf16.msra.mxu0 %v3568
    %5413 = vmatprep.subr.bf16.mxu0 %v3577
    %5414 = vmatpush1.bf16.msra.mxu0 %v3576
    %5415 = vmatprep.subr.bf16.mxu0 %v3585
    %5416 = vmatpush1.bf16.msra.mxu0 %v3584
    %5417 = vmatprep.mubr.bf16.mxu0 %v947
    %5418 = vmatmul.mubr.bf16.gmra.mrb[0].mxu0 %v946
    %v5419 = vpop.f32.mrb[0].mxu0
    %v5420 = vadd.f32 %v5377, %v5419
    %v5421 = vpop.f32.mrb[0].mxu0
    %v5422 = vadd.f32 %v5379, %v5421
    %v5423 = vpop.f32.mrb[0].mxu0
    %v5424 = vadd.f32 %v5381, %v5423
    %v5425 = vpop.f32.mrb[0].mxu0
    %v5426 = vadd.f32 %v5383, %v5425
    %5427 = vdwg.mxu0
    %5428 = vmatprep.subr.bf16.mxu0 %v3593
    %5429 = vmatpush1.bf16.msra.mxu0 %v3592
    %5430 = vmatprep.subr.bf16.mxu0 %v3601
    %5431 = vmatpush1.bf16.msra.mxu0 %v3600
    %5432 = vmatprep.subr.bf16.mxu0 %v3609
    %5433 = vmatpush1.bf16.msra.mxu0 %v3608
    %5434 = vmatprep.subr.bf16.mxu0 %v3617
    %5435 = vmatpush1.bf16.msra.mxu0 %v3616
    %5436 = vmatprep.subr.bf16.mxu0 %v3625
    %5437 = vmatpush1.bf16.msra.mxu0 %v3624
    %5438 = vmatprep.subr.bf16.mxu0 %v3633
    %5439 = vmatpush1.bf16.msra.mxu0 %v3632
    %5440 = vmatprep.subr.bf16.mxu0 %v3641
    %5441 = vmatpush1.bf16.msra.mxu0 %v3640
    %5442 = vmatprep.subr.bf16.mxu0 %v3649
    %5443 = vmatpush1.bf16.msra.mxu0 %v3648
    %5444 = vmatprep.subr.bf16.mxu0 %v3657
    %5445 = vmatpush1.bf16.msra.mxu0 %v3656
    %5446 = vmatprep.subr.bf16.mxu0 %v3665
    %5447 = vmatpush1.bf16.msra.mxu0 %v3664
    %5448 = vmatprep.subr.bf16.mxu0 %v3673
    %5449 = vmatpush1.bf16.msra.mxu0 %v3672
    %5450 = vmatprep.subr.bf16.mxu0 %v3681
    %5451 = vmatpush1.bf16.msra.mxu0 %v3680
    %5452 = vmatprep.subr.bf16.mxu0 %v3689
    %5453 = vmatpush1.bf16.msra.mxu0 %v3688
    %5454 = vmatprep.subr.bf16.mxu0 %v3697
    %5455 = vmatpush1.bf16.msra.mxu0 %v3696
    %5456 = vmatprep.subr.bf16.mxu0 %v3705
    %5457 = vmatpush1.bf16.msra.mxu0 %v3704
    %5458 = vmatprep.subr.bf16.mxu0 %v3713
    %5459 = vmatpush1.bf16.msra.mxu0 %v3712
    %5460 = vmatprep.mubr.bf16.mxu0 %v949
    %5461 = vmatmul.mubr.bf16.gmra.mrb[0].mxu0 %v948
    %v5462 = vpop.f32.mrb[0].mxu0
    %v5463 = vadd.f32 %v5420, %v5462
    %v5464 = vpop.f32.mrb[0].mxu0
    %v5465 = vadd.f32 %v5422, %v5464
    %v5466 = vpop.f32.mrb[0].mxu0
    %v5467 = vadd.f32 %v5424, %v5466
    %v5468 = vpop.f32.mrb[0].mxu0
    %v5469 = vadd.f32 %v5426, %v5468
    %5470 = vdwg.mxu0
    %5471 = vmatprep.subr.bf16.mxu0 %v3721
    %5472 = vmatpush1.bf16.msra.mxu0 %v3720
    %5473 = vmatprep.subr.bf16.mxu0 %v3729
    %5474 = vmatpush1.bf16.msra.mxu0 %v3728
    %5475 = vmatprep.subr.bf16.mxu0 %v3737
    %5476 = vmatpush1.bf16.msra.mxu0 %v3736
    %5477 = vmatprep.subr.bf16.mxu0 %v3745
    %5478 = vmatpush1.bf16.msra.mxu0 %v3744
    %5479 = vmatprep.subr.bf16.mxu0 %v3753
    %5480 = vmatpush1.bf16.msra.mxu0 %v3752
    %5481 = vmatprep.subr.bf16.mxu0 %v3761
    %5482 = vmatpush1.bf16.msra.mxu0 %v3760
    %5483 = vmatprep.subr.bf16.mxu0 %v3769
    %5484 = vmatpush1.bf16.msra.mxu0 %v3768
    %5485 = vmatprep.subr.bf16.mxu0 %v3777
    %5486 = vmatpush1.bf16.msra.mxu0 %v3776
    %5487 = vmatprep.subr.bf16.mxu0 0
    %5488 = vmatpush1.bf16.msra.mxu0 0
    %5489 = vmatprep.subr.bf16.mxu0 0
    %5490 = vmatpush1.bf16.msra.mxu0 0
    %5491 = vmatprep.subr.bf16.mxu0 0
    %5492 = vmatpush1.bf16.msra.mxu0 0
    %5493 = vmatprep.subr.bf16.mxu0 0
    %5494 = vmatpush1.bf16.msra.mxu0 0
    %5495 = vmatprep.subr.bf16.mxu0 0
    %5496 = vmatpush1.bf16.msra.mxu0 0
    %5497 = vmatprep.subr.bf16.mxu0 0
    %5498 = vmatpush1.bf16.msra.mxu0 0
    %5499 = vmatprep.subr.bf16.mxu0 0
    %5500 = vmatpush1.bf16.msra.mxu0 0
    %5501 = vmatprep.subr.bf16.mxu0 0
    %5502 = vmatpush1.bf16.msra.mxu0 0
    %5503 = vmatprep.mubr.bf16.mxu0 0
    %5504 = vmatmul.mubr.bf16.gmra.mrb[0].mxu0 %v950
    %v5505 = vpop.f32.mrb[0].mxu0
    %v5506 = vadd.f32 %v5463, %v5505
    %v5507 = vpop.f32.mrb[0].mxu0
    %v5508 = vadd.f32 %v5465, %v5507
    %v5509 = vpop.f32.mrb[0].mxu0
    %v5510 = vadd.f32 %v5467, %v5509
    %v5511 = vpop.f32.mrb[0].mxu0
    %v5512 = vadd.f32 %v5469, %v5511
    %5513 = vdwg.mxu0
    %v5514 = vmax.f32 %v4732, 0.0
    %v5515 = vmax.f32 %v4734, 0.0
    %v5516 = vmax.f32 %v4990, 0.0
    %v5517 = vmax.f32 %v4992, 0.0
    %v5518 = vmax.f32 %v5248, 0.0
    %v5519 = vmax.f32 %v5250, 0.0
    %v5520 = vmax.f32 %v5506, 0.0
    %v5521 = vmax.f32 %v5508, 0.0
    %v5522 = vmax.f32 %v4736, 0.0
    %v5523 = vmax.f32 %v4738, 0.0
    %v5524 = vmax.f32 %v4994, 0.0
    %v5525 = vmax.f32 %v4996, 0.0
    %v5526 = vmax.f32 %v5252, 0.0
    %v5527 = vmax.f32 %v5254, 0.0
    %v5528 = vmax.f32 %v5510, 0.0
    %v5529 = vmax.f32 %v5512, 0.0
    %v5530 = vpack.c.bf16 %v5522, %v5514
    %v5531 = vpack.c.bf16 %v5523, %v5515
    %v5532 = vpack.c.bf16 %v5524, %v5516
    %v5533 = vpack.c.bf16 %v5525, %v5517
    %v5534 = vpack.c.bf16 %v5526, %v5518
    %v5535 = vpack.c.bf16 %v5527, %v5519
    %v5536 = vpack.c.bf16 %v5528, %v5520
    %v5537 = vpack.c.bf16 %v5529, %v5521
    %v5538 = vld [vmem:[#allocation8] sm:$0xff]
    %v5539 = vld [vmem:[#allocation8 + $0x8] sm:$0xff]
    %v5540 = vld [vmem:[#allocation8 + $0x10] sm:$0xff]
    %v5541 = vld [vmem:[#allocation8 + $0x18] sm:$0xff]
    %v5542 = vld [vmem:[#allocation8 + $0x20] sm:$0xff]
    %v5543 = vld [vmem:[#allocation8 + $0x28] sm:$0xff]
    %v5544 = vld [vmem:[#allocation8 + $0x30] sm:$0xff]
    %v5545 = vld [vmem:[#allocation8 + $0x38] sm:$0xff]
    %v5546 = vld [vmem:[#allocation8 + $0x40] sm:$0xff]
    %v5547 = vld [vmem:[#allocation8 + $0x48] sm:$0xff]
    %v5548 = vld [vmem:[#allocation8 + $0x50] sm:$0xff]
    %v5549 = vld [vmem:[#allocation8 + $0x58] sm:$0xff]
    %v5550 = vld [vmem:[#allocation8 + $0x60] sm:$0xff]
    %v5551 = vld [vmem:[#allocation8 + $0x68] sm:$0xff]
    %v5552 = vld [vmem:[#allocation8 + $0x70] sm:$0xff]
    %v5553 = vld [vmem:[#allocation8 + $0x78] sm:$0xff]
    %v5554 = vld [vmem:[#allocation8 + $0x80] sm:$0xff]
    %v5555 = vld [vmem:[#allocation8 + $0x88] sm:$0xff]
    %v5556 = vld [vmem:[#allocation8 + $0x90] sm:$0xff]
    %v5557 = vld [vmem:[#allocation8 + $0x98] sm:$0xff]
    %v5558 = vld [vmem:[#allocation8 + $0xa0] sm:$0xff]
    %v5559 = vld [vmem:[#allocation8 + $0xa8] sm:$0xff]
    %v5560 = vld [vmem:[#allocation8 + $0xb0] sm:$0xff]
    %v5561 = vld [vmem:[#allocation8 + $0xb8] sm:$0xff]
    %v5562 = vld [vmem:[#allocation8 + $0xc0] sm:$0xff]
    %v5563 = vld [vmem:[#allocation8 + $0xc8] sm:$0xff]
    %v5564 = vld [vmem:[#allocation8 + $0xd0] sm:$0xff]
    %v5565 = vld [vmem:[#allocation8 + $0xd8] sm:$0xff]
    %v5566 = vld [vmem:[#allocation8 + $0xe0] sm:$0xff]
    %v5567 = vld [vmem:[#allocation8 + $0xe8] sm:$0xff]
    %v5568 = vld [vmem:[#allocation8 + $0xf0] sm:$0xff]
    %v5569 = vld [vmem:[#allocation8 + $0xf8] sm:$0xff]
    %v5570 = vld [vmem:[#allocation8 + $0x100] sm:$0xff]
    %v5571 = vld [vmem:[#allocation8 + $0x108] sm:$0xff]
    %v5572 = vld [vmem:[#allocation8 + $0x110] sm:$0xff]
    %v5573 = vld [vmem:[#allocation8 + $0x118] sm:$0xff]
    %v5574 = vld [vmem:[#allocation8 + $0x120] sm:$0xff]
    %v5575 = vld [vmem:[#allocation8 + $0x128] sm:$0xff]
    %v5576 = vld [vmem:[#allocation8 + $0x130] sm:$0xff]
    %v5577 = vld [vmem:[#allocation8 + $0x138] sm:$0xff]
    %v5578 = vld [vmem:[#allocation8 + $0x140] sm:$0xff]
    %v5579 = vld [vmem:[#allocation8 + $0x148] sm:$0xff]
    %v5580 = vld [vmem:[#allocation8 + $0x150] sm:$0xff]
    %v5581 = vld [vmem:[#allocation8 + $0x158] sm:$0xff]
    %v5582 = vld [vmem:[#allocation8 + $0x160] sm:$0xff]
    %v5583 = vld [vmem:[#allocation8 + $0x168] sm:$0xff]
    %v5584 = vld [vmem:[#allocation8 + $0x170] sm:$0xff]
    %v5585 = vld [vmem:[#allocation8 + $0x178] sm:$0xff]
    %v5586 = vld [vmem:[#allocation8 + $0x180] sm:$0xff]
    %v5587 = vld [vmem:[#allocation8 + $0x188] sm:$0xff]
    %v5588 = vld [vmem:[#allocation8 + $0x190] sm:$0xff]
    %v5589 = vld [vmem:[#allocation8 + $0x198] sm:$0xff]
    %v5590 = vld [vmem:[#allocation8 + $0x1a0] sm:$0xff]
    %v5591 = vld [vmem:[#allocation8 + $0x1a8] sm:$0xff]
    %v5592 = vld [vmem:[#allocation8 + $0x1b0] sm:$0xff]
    %v5593 = vld [vmem:[#allocation8 + $0x1b8] sm:$0xff]
    %v5594 = vld [vmem:[#allocation8 + $0x1c0] sm:$0xff]
    %v5595 = vld [vmem:[#allocation8 + $0x1c8] sm:$0xff]
    %v5596 = vld [vmem:[#allocation8 + $0x1d0] sm:$0xff]
    %v5597 = vld [vmem:[#allocation8 + $0x1d8] sm:$0xff]
    %v5598 = vld [vmem:[#allocation8 + $0x1e0] sm:$0xff]
    %v5599 = vld [vmem:[#allocation8 + $0x1e8] sm:$0xff]
    %v5600 = vld [vmem:[#allocation8 + $0x1f0] sm:$0xff]
    %v5601 = vld [vmem:[#allocation8 + $0x1f8] sm:$0xff]
    %v5602 = vld [vmem:[#allocation8 + $0x200] sm:$0xff]
    %v5603 = vld [vmem:[#allocation8 + $0x208] sm:$0xff]
    %v5604 = vld [vmem:[#allocation8 + $0x210] sm:$0xff]
    %v5605 = vld [vmem:[#allocation8 + $0x218] sm:$0xff]
    %v5606 = vld [vmem:[#allocation8 + $0x220] sm:$0xff]
    %v5607 = vld [vmem:[#allocation8 + $0x228] sm:$0xff]
    %v5608 = vld [vmem:[#allocation8 + $0x230] sm:$0xff]
    %v5609 = vld [vmem:[#allocation8 + $0x238] sm:$0xff]
    %v5610 = vld [vmem:[#allocation8 + $0x240] sm:$0xff]
    %v5611 = vld [vmem:[#allocation8 + $0x248] sm:$0xff]
    %v5612 = vld [vmem:[#allocation8 + $0x250] sm:$0xff]
    %v5613 = vld [vmem:[#allocation8 + $0x258] sm:$0xff]
    %v5614 = vld [vmem:[#allocation8 + $0x260] sm:$0xff]
    %v5615 = vld [vmem:[#allocation8 + $0x268] sm:$0xff]
    %v5616 = vld [vmem:[#allocation8 + $0x270] sm:$0xff]
    %v5617 = vld [vmem:[#allocation8 + $0x278] sm:$0xff]
    %v5618 = vld [vmem:[#allocation8 + $0x280] sm:$0xff]
    %v5619 = vld [vmem:[#allocation8 + $0x288] sm:$0xff]
    %v5620 = vld [vmem:[#allocation8 + $0x290] sm:$0xff]
    %v5621 = vld [vmem:[#allocation8 + $0x298] sm:$0xff]
    %v5622 = vld [vmem:[#allocation8 + $0x2a0] sm:$0xff]
    %v5623 = vld [vmem:[#allocation8 + $0x2a8] sm:$0xff]
    %v5624 = vld [vmem:[#allocation8 + $0x2b0] sm:$0xff]
    %v5625 = vld [vmem:[#allocation8 + $0x2b8] sm:$0xff]
    %v5626 = vld [vmem:[#allocation8 + $0x2c0] sm:$0xff]
    %v5627 = vld [vmem:[#allocation8 + $0x2c8] sm:$0xff]
    %v5628 = vld [vmem:[#allocation8 + $0x2d0] sm:$0xff]
    %v5629 = vld [vmem:[#allocation8 + $0x2d8] sm:$0xff]
    %v5630 = vld [vmem:[#allocation8 + $0x2e0] sm:$0xff]
    %v5631 = vld [vmem:[#allocation8 + $0x2e8] sm:$0xff]
    %v5632 = vld [vmem:[#allocation8 + $0x2f0] sm:$0xff]
    %v5633 = vld [vmem:[#allocation8 + $0x2f8] sm:$0xff]
    %v5634 = vld [vmem:[#allocation8 + $0x300] sm:$0xff]
    %v5635 = vld [vmem:[#allocation8 + $0x308] sm:$0xff]
    %v5636 = vld [vmem:[#allocation8 + $0x310] sm:$0xff]
    %v5637 = vld [vmem:[#allocation8 + $0x318] sm:$0xff]
    %v5638 = vld [vmem:[#allocation8 + $0x320] sm:$0xff]
    %v5639 = vld [vmem:[#allocation8 + $0x328] sm:$0xff]
    %v5640 = vld [vmem:[#allocation8 + $0x330] sm:$0xff]
    %v5641 = vld [vmem:[#allocation8 + $0x338] sm:$0xff]
    %v5642 = vld [vmem:[#allocation8 + $0x340] sm:$0xff]
    %v5643 = vld [vmem:[#allocation8 + $0x348] sm:$0xff]
    %v5644 = vld [vmem:[#allocation8 + $0x350] sm:$0xff]
    %v5645 = vld [vmem:[#allocation8 + $0x358] sm:$0xff]
    %v5646 = vld [vmem:[#allocation8 + $0x360] sm:$0xff]
    %v5647 = vld [vmem:[#allocation8 + $0x368] sm:$0xff]
    %v5648 = vld [vmem:[#allocation8 + $0x370] sm:$0xff]
    %v5649 = vld [vmem:[#allocation8 + $0x378] sm:$0xff]
    %v5650 = vld [vmem:[#allocation8 + $0x380] sm:$0xff]
    %v5651 = vld [vmem:[#allocation8 + $0x388] sm:$0xff]
    %v5652 = vld [vmem:[#allocation8 + $0x390] sm:$0xff]
    %v5653 = vld [vmem:[#allocation8 + $0x398] sm:$0xff]
    %v5654 = vld [vmem:[#allocation8 + $0x3a0] sm:$0xff]
    %v5655 = vld [vmem:[#allocation8 + $0x3a8] sm:$0xff]
    %v5656 = vld [vmem:[#allocation8 + $0x3b0] sm:$0xff]
    %v5657 = vld [vmem:[#allocation8 + $0x3b8] sm:$0xff]
    %v5658 = vld [vmem:[#allocation8 + $0x3c0] sm:$0xff]
    %v5659 = vld [vmem:[#allocation8 + $0x3c8] sm:$0xff]
    %v5660 = vld [vmem:[#allocation8 + $0x3d0] sm:$0xff]
    %v5661 = vld [vmem:[#allocation8 + $0x3d8] sm:$0xff]
    %v5662 = vld [vmem:[#allocation8 + $0x3e0] sm:$0xff]
    %v5663 = vld [vmem:[#allocation8 + $0x3e8] sm:$0xff]
    %v5664 = vld [vmem:[#allocation8 + $0x3f0] sm:$0xff]
    %v5665 = vld [vmem:[#allocation8 + $0x3f8] sm:$0xff]
    %v5666 = vld [vmem:[#allocation8 + $0x400] sm:$0xff]
    %v5667 = vld [vmem:[#allocation8 + $0x408] sm:$0xff]
    %v5668 = vld [vmem:[#allocation8 + $0x410] sm:$0xff]
    %v5669 = vld [vmem:[#allocation8 + $0x418] sm:$0xff]
    %v5670 = vld [vmem:[#allocation8 + $0x420] sm:$0xff]
    %v5671 = vld [vmem:[#allocation8 + $0x428] sm:$0xff]
    %v5672 = vld [vmem:[#allocation8 + $0x430] sm:$0xff]
    %v5673 = vld [vmem:[#allocation8 + $0x438] sm:$0xff]
    %v5674 = vld [vmem:[#allocation8 + $0x440] sm:$0xff]
    %v5675 = vld [vmem:[#allocation8 + $0x448] sm:$0xff]
    %v5676 = vld [vmem:[#allocation8 + $0x450] sm:$0xff]
    %v5677 = vld [vmem:[#allocation8 + $0x458] sm:$0xff]
    %v5678 = vld [vmem:[#allocation8 + $0x460] sm:$0xff]
    %v5679 = vld [vmem:[#allocation8 + $0x468] sm:$0xff]
    %v5680 = vld [vmem:[#allocation8 + $0x470] sm:$0xff]
    %v5681 = vld [vmem:[#allocation8 + $0x478] sm:$0xff]
    %v5682 = vld [vmem:[#allocation8 + $0x480] sm:$0xff]
    %v5683 = vld [vmem:[#allocation8 + $0x488] sm:$0xff]
    %v5684 = vld [vmem:[#allocation8 + $0x490] sm:$0xff]
    %v5685 = vld [vmem:[#allocation8 + $0x498] sm:$0xff]
    %v5686 = vld [vmem:[#allocation8 + $0x4a0] sm:$0xff]
    %v5687 = vld [vmem:[#allocation8 + $0x4a8] sm:$0xff]
    %v5688 = vld [vmem:[#allocation8 + $0x4b0] sm:$0xff]
    %v5689 = vld [vmem:[#allocation8 + $0x4b8] sm:$0xff]
    %v5690 = vld [vmem:[#allocation8 + $0x4c0] sm:$0xff]
    %v5691 = vld [vmem:[#allocation8 + $0x4c8] sm:$0xff]
    %v5692 = vld [vmem:[#allocation8 + $0x4d0] sm:$0xff]
    %v5693 = vld [vmem:[#allocation8 + $0x4d8] sm:$0xff]
    %v5694 = vld [vmem:[#allocation8 + $0x4e0] sm:$0xff]
    %v5695 = vld [vmem:[#allocation8 + $0x4e8] sm:$0xff]
    %v5696 = vld [vmem:[#allocation8 + $0x4f0] sm:$0xff]
    %v5697 = vld [vmem:[#allocation8 + $0x4f8] sm:$0xff]
    %v5698 = vld [vmem:[#allocation8 + $0x500] sm:$0xff]
    %v5699 = vld [vmem:[#allocation8 + $0x508] sm:$0xff]
    %v5700 = vld [vmem:[#allocation8 + $0x510] sm:$0xff]
    %v5701 = vld [vmem:[#allocation8 + $0x518] sm:$0xff]
    %v5702 = vld [vmem:[#allocation8 + $0x520] sm:$0xff]
    %v5703 = vld [vmem:[#allocation8 + $0x528] sm:$0xff]
    %v5704 = vld [vmem:[#allocation8 + $0x530] sm:$0xff]
    %v5705 = vld [vmem:[#allocation8 + $0x538] sm:$0xff]
    %v5706 = vld [vmem:[#allocation8 + $0x540] sm:$0xff]
    %v5707 = vld [vmem:[#allocation8 + $0x548] sm:$0xff]
    %v5708 = vld [vmem:[#allocation8 + $0x550] sm:$0xff]
    %v5709 = vld [vmem:[#allocation8 + $0x558] sm:$0xff]
    %v5710 = vld [vmem:[#allocation8 + $0x560] sm:$0xff]
    %v5711 = vld [vmem:[#allocation8 + $0x568] sm:$0xff]
    %v5712 = vld [vmem:[#allocation8 + $0x570] sm:$0xff]
    %v5713 = vld [vmem:[#allocation8 + $0x578] sm:$0xff]
    %v5714 = vld [vmem:[#allocation8 + $0x580] sm:$0xff]
    %v5715 = vld [vmem:[#allocation8 + $0x588] sm:$0xff]
    %v5716 = vld [vmem:[#allocation8 + $0x590] sm:$0xff]
    %v5717 = vld [vmem:[#allocation8 + $0x598] sm:$0xff]
    %v5718 = vld [vmem:[#allocation8 + $0x5a0] sm:$0xff]
    %v5719 = vld [vmem:[#allocation8 + $0x5a8] sm:$0xff]
    %v5720 = vld [vmem:[#allocation8 + $0x5b0] sm:$0xff]
    %v5721 = vld [vmem:[#allocation8 + $0x5b8] sm:$0xff]
    %v5722 = vld [vmem:[#allocation8 + $0x5c0] sm:$0xff]
    %v5723 = vld [vmem:[#allocation8 + $0x5c8] sm:$0xff]
    %v5724 = vld [vmem:[#allocation8 + $0x5d0] sm:$0xff]
    %v5725 = vld [vmem:[#allocation8 + $0x5d8] sm:$0xff]
    %v5726 = vld [vmem:[#allocation8 + $0x5e0] sm:$0xff]
    %v5727 = vld [vmem:[#allocation8 + $0x5e8] sm:$0xff]
    %v5728 = vld [vmem:[#allocation8 + $0x5f0] sm:$0xff]
    %v5729 = vld [vmem:[#allocation8 + $0x5f8] sm:$0xff]
    %v5730 = vld [vmem:[#allocation8 + $0x600] sm:$0xff]
    %v5731 = vld [vmem:[#allocation8 + $0x608] sm:$0xff]
    %v5732 = vld [vmem:[#allocation8 + $0x610] sm:$0xff]
    %v5733 = vld [vmem:[#allocation8 + $0x618] sm:$0xff]
    %v5734 = vld [vmem:[#allocation8 + $0x620] sm:$0xff]
    %v5735 = vld [vmem:[#allocation8 + $0x628] sm:$0xff]
    %v5736 = vld [vmem:[#allocation8 + $0x630] sm:$0xff]
    %v5737 = vld [vmem:[#allocation8 + $0x638] sm:$0xff]
    %v5738 = vld [vmem:[#allocation8 + $0x640] sm:$0xff]
    %v5739 = vld [vmem:[#allocation8 + $0x648] sm:$0xff]
    %v5740 = vld [vmem:[#allocation8 + $0x650] sm:$0xff]
    %v5741 = vld [vmem:[#allocation8 + $0x658] sm:$0xff]
    %v5742 = vld [vmem:[#allocation8 + $0x660] sm:$0xff]
    %v5743 = vld [vmem:[#allocation8 + $0x668] sm:$0xff]
    %v5744 = vld [vmem:[#allocation8 + $0x670] sm:$0xff]
    %v5745 = vld [vmem:[#allocation8 + $0x678] sm:$0xff]
    %v5746 = vld [vmem:[#allocation8 + $0x680] sm:$0xff]
    %v5747 = vld [vmem:[#allocation8 + $0x688] sm:$0xff]
    %v5748 = vld [vmem:[#allocation8 + $0x690] sm:$0xff]
    %v5749 = vld [vmem:[#allocation8 + $0x698] sm:$0xff]
    %v5750 = vld [vmem:[#allocation8 + $0x6a0] sm:$0xff]
    %v5751 = vld [vmem:[#allocation8 + $0x6a8] sm:$0xff]
    %v5752 = vld [vmem:[#allocation8 + $0x6b0] sm:$0xff]
    %v5753 = vld [vmem:[#allocation8 + $0x6b8] sm:$0xff]
    %v5754 = vld [vmem:[#allocation8 + $0x6c0] sm:$0xff]
    %v5755 = vld [vmem:[#allocation8 + $0x6c8] sm:$0xff]
    %v5756 = vld [vmem:[#allocation8 + $0x6d0] sm:$0xff]
    %v5757 = vld [vmem:[#allocation8 + $0x6d8] sm:$0xff]
    %v5758 = vld [vmem:[#allocation8 + $0x6e0] sm:$0xff]
    %v5759 = vld [vmem:[#allocation8 + $0x6e8] sm:$0xff]
    %v5760 = vld [vmem:[#allocation8 + $0x6f0] sm:$0xff]
    %v5761 = vld [vmem:[#allocation8 + $0x6f8] sm:$0xff]
    %v5762 = vld [vmem:[#allocation8 + $0x700] sm:$0xff]
    %v5763 = vld [vmem:[#allocation8 + $0x708] sm:$0xff]
    %v5764 = vld [vmem:[#allocation8 + $0x710] sm:$0xff]
    %v5765 = vld [vmem:[#allocation8 + $0x718] sm:$0xff]
    %v5766 = vld [vmem:[#allocation8 + $0x720] sm:$0xff]
    %v5767 = vld [vmem:[#allocation8 + $0x728] sm:$0xff]
    %v5768 = vld [vmem:[#allocation8 + $0x730] sm:$0xff]
    %v5769 = vld [vmem:[#allocation8 + $0x738] sm:$0xff]
    %v5770 = vld [vmem:[#allocation8 + $0x740] sm:$0xff]
    %v5771 = vld [vmem:[#allocation8 + $0x748] sm:$0xff]
    %v5772 = vld [vmem:[#allocation8 + $0x750] sm:$0xff]
    %v5773 = vld [vmem:[#allocation8 + $0x758] sm:$0xff]
    %v5774 = vld [vmem:[#allocation8 + $0x760] sm:$0xff]
    %v5775 = vld [vmem:[#allocation8 + $0x768] sm:$0xff]
    %v5776 = vld [vmem:[#allocation8 + $0x770] sm:$0xff]
    %v5777 = vld [vmem:[#allocation8 + $0x778] sm:$0xff]
    %v5778 = vld [vmem:[#allocation8 + $0x780] sm:$0xff]
    %v5779 = vld [vmem:[#allocation8 + $0x788] sm:$0xff]
    %v5780 = vld [vmem:[#allocation8 + $0x790] sm:$0xff]
    %v5781 = vld [vmem:[#allocation8 + $0x798] sm:$0xff]
    %v5782 = vld [vmem:[#allocation8 + $0x7a0] sm:$0xff]
    %v5783 = vld [vmem:[#allocation8 + $0x7a8] sm:$0xff]
    %v5784 = vld [vmem:[#allocation8 + $0x7b0] sm:$0xff]
    %v5785 = vld [vmem:[#allocation8 + $0x7b8] sm:$0xff]
    %v5786 = vld [vmem:[#allocation8 + $0x7c0] sm:$0xff]
    %v5787 = vld [vmem:[#allocation8 + $0x7c8] sm:$0xff]
    %v5788 = vld [vmem:[#allocation8 + $0x7d0] sm:$0xff]
    %v5789 = vld [vmem:[#allocation8 + $0x7d8] sm:$0xff]
    %v5790 = vld [vmem:[#allocation8 + $0x7e0] sm:$0xff]
    %v5791 = vld [vmem:[#allocation8 + $0x7e8] sm:$0xff]
    %v5792 = vld [vmem:[#allocation8 + $0x7f0] sm:$0xff]
    %v5793 = vld [vmem:[#allocation8 + $0x7f8] sm:$0xff]
    %v5794 = vld [vmem:[#allocation10] sm:$0xf]
    %v5796 = vlaneseq
    %v5797 = vshrl.u32 %v5796, 7
    %v5798 = vsub.s32 0, %v5797
    %v5799 = vrot.slane %v5794, %v5798
    %v5800 = vlaneseq
    %v5801 = vshrl.u32 %v5800, 7
    %v5802 = vsub.s32 1, %v5801
    %v5803 = vrot.slane %v5794, %v5802
    %v5804 = vlaneseq
    %v5805 = vshrl.u32 %v5804, 7
    %v5806 = vsub.s32 2, %v5805
    %v5807 = vrot.slane %v5794, %v5806
    %v5808 = vlaneseq
    %v5809 = vshrl.u32 %v5808, 7
    %v5810 = vsub.s32 3, %v5809
    %v5811 = vrot.slane %v5794, %v5810
    %v6072 = vunpack.c.l.b16 %v5538
    %v6073 = vunpack.c.h.b16 %v5538
    %v6074 = vunpack.c.l.b16 %v5539
    %v6075 = vunpack.c.h.b16 %v5539
    %v6076 = vunpack.c.l.b16 %v5540
    %v6077 = vunpack.c.h.b16 %v5540
    %v6078 = vunpack.c.l.b16 %v5541
    %v6079 = vunpack.c.h.b16 %v5541
    %v6080 = vunpack.c.l.b16 %v5542
    %v6081 = vunpack.c.h.b16 %v5542
    %v6082 = vunpack.c.l.b16 %v5543
    %v6083 = vunpack.c.h.b16 %v5543
    %v6084 = vunpack.c.l.b16 %v5544
    %v6085 = vunpack.c.h.b16 %v5544
    %v6086 = vunpack.c.l.b16 %v5545
    %v6087 = vunpack.c.h.b16 %v5545
    %v6088 = vunpack.c.l.b16 %v5546
    %v6089 = vunpack.c.h.b16 %v5546
    %v6090 = vunpack.c.l.b16 %v5547
    %v6091 = vunpack.c.h.b16 %v5547
    %v6092 = vunpack.c.l.b16 %v5548
    %v6093 = vunpack.c.h.b16 %v5548
    %v6094 = vunpack.c.l.b16 %v5549
    %v6095 = vunpack.c.h.b16 %v5549
    %v6096 = vunpack.c.l.b16 %v5550
    %v6097 = vunpack.c.h.b16 %v5550
    %v6098 = vunpack.c.l.b16 %v5551
    %v6099 = vunpack.c.h.b16 %v5551
    %v6100 = vunpack.c.l.b16 %v5552
    %v6101 = vunpack.c.h.b16 %v5552
    %v6102 = vunpack.c.l.b16 %v5553
    %v6103 = vunpack.c.h.b16 %v5553
    %v6104 = vunpack.c.l.b16 %v5554
    %v6105 = vunpack.c.h.b16 %v5554
    %v6106 = vunpack.c.l.b16 %v5555
    %v6107 = vunpack.c.h.b16 %v5555
    %v6108 = vunpack.c.l.b16 %v5556
    %v6109 = vunpack.c.h.b16 %v5556
    %v6110 = vunpack.c.l.b16 %v5557
    %v6111 = vunpack.c.h.b16 %v5557
    %v6112 = vunpack.c.l.b16 %v5558
    %v6113 = vunpack.c.h.b16 %v5558
    %v6114 = vunpack.c.l.b16 %v5559
    %v6115 = vunpack.c.h.b16 %v5559
    %v6116 = vunpack.c.l.b16 %v5560
    %v6117 = vunpack.c.h.b16 %v5560
    %v6118 = vunpack.c.l.b16 %v5561
    %v6119 = vunpack.c.h.b16 %v5561
    %v6120 = vunpack.c.l.b16 %v5562
    %v6121 = vunpack.c.h.b16 %v5562
    %v6122 = vunpack.c.l.b16 %v5563
    %v6123 = vunpack.c.h.b16 %v5563
    %v6124 = vunpack.c.l.b16 %v5564
    %v6125 = vunpack.c.h.b16 %v5564
    %v6126 = vunpack.c.l.b16 %v5565
    %v6127 = vunpack.c.h.b16 %v5565
    %v6128 = vunpack.c.l.b16 %v5566
    %v6129 = vunpack.c.h.b16 %v5566
    %v6130 = vunpack.c.l.b16 %v5567
    %v6131 = vunpack.c.h.b16 %v5567
    %v6132 = vunpack.c.l.b16 %v5568
    %v6133 = vunpack.c.h.b16 %v5568
    %v6134 = vunpack.c.l.b16 %v5569
    %v6135 = vunpack.c.h.b16 %v5569
    %v6136 = vunpack.c.l.b16 %v5570
    %v6137 = vunpack.c.h.b16 %v5570
    %v6138 = vunpack.c.l.b16 %v5571
    %v6139 = vunpack.c.h.b16 %v5571
    %v6140 = vunpack.c.l.b16 %v5572
    %v6141 = vunpack.c.h.b16 %v5572
    %v6142 = vunpack.c.l.b16 %v5573
    %v6143 = vunpack.c.h.b16 %v5573
    %v6144 = vunpack.c.l.b16 %v5574
    %v6145 = vunpack.c.h.b16 %v5574
    %v6146 = vunpack.c.l.b16 %v5575
    %v6147 = vunpack.c.h.b16 %v5575
    %v6148 = vunpack.c.l.b16 %v5576
    %v6149 = vunpack.c.h.b16 %v5576
    %v6150 = vunpack.c.l.b16 %v5577
    %v6151 = vunpack.c.h.b16 %v5577
    %v6152 = vunpack.c.l.b16 %v5578
    %v6153 = vunpack.c.h.b16 %v5578
    %v6154 = vunpack.c.l.b16 %v5579
    %v6155 = vunpack.c.h.b16 %v5579
    %v6156 = vunpack.c.l.b16 %v5580
    %v6157 = vunpack.c.h.b16 %v5580
    %v6158 = vunpack.c.l.b16 %v5581
    %v6159 = vunpack.c.h.b16 %v5581
    %v6160 = vunpack.c.l.b16 %v5582
    %v6161 = vunpack.c.h.b16 %v5582
    %v6162 = vunpack.c.l.b16 %v5583
    %v6163 = vunpack.c.h.b16 %v5583
    %v6164 = vunpack.c.l.b16 %v5584
    %v6165 = vunpack.c.h.b16 %v5584
    %v6166 = vunpack.c.l.b16 %v5585
    %v6167 = vunpack.c.h.b16 %v5585
    %v6168 = vunpack.c.l.b16 %v5586
    %v6169 = vunpack.c.h.b16 %v5586
    %v6170 = vunpack.c.l.b16 %v5587
    %v6171 = vunpack.c.h.b16 %v5587
    %v6172 = vunpack.c.l.b16 %v5588
    %v6173 = vunpack.c.h.b16 %v5588
    %v6174 = vunpack.c.l.b16 %v5589
    %v6175 = vunpack.c.h.b16 %v5589
    %v6176 = vunpack.c.l.b16 %v5590
    %v6177 = vunpack.c.h.b16 %v5590
    %v6178 = vunpack.c.l.b16 %v5591
    %v6179 = vunpack.c.h.b16 %v5591
    %v6180 = vunpack.c.l.b16 %v5592
    %v6181 = vunpack.c.h.b16 %v5592
    %v6182 = vunpack.c.l.b16 %v5593
    %v6183 = vunpack.c.h.b16 %v5593
    %v6184 = vunpack.c.l.b16 %v5594
    %v6185 = vunpack.c.h.b16 %v5594
    %v6186 = vunpack.c.l.b16 %v5595
    %v6187 = vunpack.c.h.b16 %v5595
    %v6188 = vunpack.c.l.b16 %v5596
    %v6189 = vunpack.c.h.b16 %v5596
    %v6190 = vunpack.c.l.b16 %v5597
    %v6191 = vunpack.c.h.b16 %v5597
    %v6192 = vunpack.c.l.b16 %v5598
    %v6193 = vunpack.c.h.b16 %v5598
    %v6194 = vunpack.c.l.b16 %v5599
    %v6195 = vunpack.c.h.b16 %v5599
    %v6196 = vunpack.c.l.b16 %v5600
    %v6197 = vunpack.c.h.b16 %v5600
    %v6198 = vunpack.c.l.b16 %v5601
    %v6199 = vunpack.c.h.b16 %v5601
    %v6200 = vunpack.c.l.b16 %v5602
    %v6201 = vunpack.c.h.b16 %v5602
    %v6202 = vunpack.c.l.b16 %v5603
    %v6203 = vunpack.c.h.b16 %v5603
    %v6204 = vunpack.c.l.b16 %v5604
    %v6205 = vunpack.c.h.b16 %v5604
    %v6206 = vunpack.c.l.b16 %v5605
    %v6207 = vunpack.c.h.b16 %v5605
    %v6208 = vunpack.c.l.b16 %v5606
    %v6209 = vunpack.c.h.b16 %v5606
    %v6210 = vunpack.c.l.b16 %v5607
    %v6211 = vunpack.c.h.b16 %v5607
    %v6212 = vunpack.c.l.b16 %v5608
    %v6213 = vunpack.c.h.b16 %v5608
    %v6214 = vunpack.c.l.b16 %v5609
    %v6215 = vunpack.c.h.b16 %v5609
    %v6216 = vunpack.c.l.b16 %v5610
    %v6217 = vunpack.c.h.b16 %v5610
    %v6218 = vunpack.c.l.b16 %v5611
    %v6219 = vunpack.c.h.b16 %v5611
    %v6220 = vunpack.c.l.b16 %v5612
    %v6221 = vunpack.c.h.b16 %v5612
    %v6222 = vunpack.c.l.b16 %v5613
    %v6223 = vunpack.c.h.b16 %v5613
    %v6224 = vunpack.c.l.b16 %v5614
    %v6225 = vunpack.c.h.b16 %v5614
    %v6226 = vunpack.c.l.b16 %v5615
    %v6227 = vunpack.c.h.b16 %v5615
    %v6228 = vunpack.c.l.b16 %v5616
    %v6229 = vunpack.c.h.b16 %v5616
    %v6230 = vunpack.c.l.b16 %v5617
    %v6231 = vunpack.c.h.b16 %v5617
    %v6232 = vunpack.c.l.b16 %v5618
    %v6233 = vunpack.c.h.b16 %v5618
    %v6234 = vunpack.c.l.b16 %v5619
    %v6235 = vunpack.c.h.b16 %v5619
    %v6236 = vunpack.c.l.b16 %v5620
    %v6237 = vunpack.c.h.b16 %v5620
    %v6238 = vunpack.c.l.b16 %v5621
    %v6239 = vunpack.c.h.b16 %v5621
    %v6240 = vunpack.c.l.b16 %v5622
    %v6241 = vunpack.c.h.b16 %v5622
    %v6242 = vunpack.c.l.b16 %v5623
    %v6243 = vunpack.c.h.b16 %v5623
    %v6244 = vunpack.c.l.b16 %v5624
    %v6245 = vunpack.c.h.b16 %v5624
    %v6246 = vunpack.c.l.b16 %v5625
    %v6247 = vunpack.c.h.b16 %v5625
    %v6248 = vunpack.c.l.b16 %v5626
    %v6249 = vunpack.c.h.b16 %v5626
    %v6250 = vunpack.c.l.b16 %v5627
    %v6251 = vunpack.c.h.b16 %v5627
    %v6252 = vunpack.c.l.b16 %v5628
    %v6253 = vunpack.c.h.b16 %v5628
    %v6254 = vunpack.c.l.b16 %v5629
    %v6255 = vunpack.c.h.b16 %v5629
    %v6256 = vunpack.c.l.b16 %v5630
    %v6257 = vunpack.c.h.b16 %v5630
    %v6258 = vunpack.c.l.b16 %v5631
    %v6259 = vunpack.c.h.b16 %v5631
    %v6260 = vunpack.c.l.b16 %v5632
    %v6261 = vunpack.c.h.b16 %v5632
    %v6262 = vunpack.c.l.b16 %v5633
    %v6263 = vunpack.c.h.b16 %v5633
    %v6264 = vunpack.c.l.b16 %v5634
    %v6265 = vunpack.c.h.b16 %v5634
    %v6266 = vunpack.c.l.b16 %v5635
    %v6267 = vunpack.c.h.b16 %v5635
    %v6268 = vunpack.c.l.b16 %v5636
    %v6269 = vunpack.c.h.b16 %v5636
    %v6270 = vunpack.c.l.b16 %v5637
    %v6271 = vunpack.c.h.b16 %v5637
    %v6272 = vunpack.c.l.b16 %v5638
    %v6273 = vunpack.c.h.b16 %v5638
    %v6274 = vunpack.c.l.b16 %v5639
    %v6275 = vunpack.c.h.b16 %v5639
    %v6276 = vunpack.c.l.b16 %v5640
    %v6277 = vunpack.c.h.b16 %v5640
    %v6278 = vunpack.c.l.b16 %v5641
    %v6279 = vunpack.c.h.b16 %v5641
    %v6280 = vunpack.c.l.b16 %v5642
    %v6281 = vunpack.c.h.b16 %v5642
    %v6282 = vunpack.c.l.b16 %v5643
    %v6283 = vunpack.c.h.b16 %v5643
    %v6284 = vunpack.c.l.b16 %v5644
    %v6285 = vunpack.c.h.b16 %v5644
    %v6286 = vunpack.c.l.b16 %v5645
    %v6287 = vunpack.c.h.b16 %v5645
    %v6288 = vunpack.c.l.b16 %v5646
    %v6289 = vunpack.c.h.b16 %v5646
    %v6290 = vunpack.c.l.b16 %v5647
    %v6291 = vunpack.c.h.b16 %v5647
    %v6292 = vunpack.c.l.b16 %v5648
    %v6293 = vunpack.c.h.b16 %v5648
    %v6294 = vunpack.c.l.b16 %v5649
    %v6295 = vunpack.c.h.b16 %v5649
    %v6296 = vunpack.c.l.b16 %v5650
    %v6297 = vunpack.c.h.b16 %v5650
    %v6298 = vunpack.c.l.b16 %v5651
    %v6299 = vunpack.c.h.b16 %v5651
    %v6300 = vunpack.c.l.b16 %v5652
    %v6301 = vunpack.c.h.b16 %v5652
    %v6302 = vunpack.c.l.b16 %v5653
    %v6303 = vunpack.c.h.b16 %v5653
    %v6304 = vunpack.c.l.b16 %v5654
    %v6305 = vunpack.c.h.b16 %v5654
    %v6306 = vunpack.c.l.b16 %v5655
    %v6307 = vunpack.c.h.b16 %v5655
    %v6308 = vunpack.c.l.b16 %v5656
    %v6309 = vunpack.c.h.b16 %v5656
    %v6310 = vunpack.c.l.b16 %v5657
    %v6311 = vunpack.c.h.b16 %v5657
    %v6312 = vunpack.c.l.b16 %v5658
    %v6313 = vunpack.c.h.b16 %v5658
    %v6314 = vunpack.c.l.b16 %v5659
    %v6315 = vunpack.c.h.b16 %v5659
    %v6316 = vunpack.c.l.b16 %v5660
    %v6317 = vunpack.c.h.b16 %v5660
    %v6318 = vunpack.c.l.b16 %v5661
    %v6319 = vunpack.c.h.b16 %v5661
    %v6320 = vunpack.c.l.b16 %v5662
    %v6321 = vunpack.c.h.b16 %v5662
    %v6322 = vunpack.c.l.b16 %v5663
    %v6323 = vunpack.c.h.b16 %v5663
    %v6324 = vunpack.c.l.b16 %v5664
    %v6325 = vunpack.c.h.b16 %v5664
    %v6326 = vunpack.c.l.b16 %v5665
    %v6327 = vunpack.c.h.b16 %v5665
    %v6328 = vunpack.c.l.b16 %v5666
    %v6329 = vunpack.c.h.b16 %v5666
    %v6330 = vunpack.c.l.b16 %v5667
    %v6331 = vunpack.c.h.b16 %v5667
    %v6332 = vunpack.c.l.b16 %v5668
    %v6333 = vunpack.c.h.b16 %v5668
    %v6334 = vunpack.c.l.b16 %v5669
    %v6335 = vunpack.c.h.b16 %v5669
    %v6336 = vunpack.c.l.b16 %v5670
    %v6337 = vunpack.c.h.b16 %v5670
    %v6338 = vunpack.c.l.b16 %v5671
    %v6339 = vunpack.c.h.b16 %v5671
    %v6340 = vunpack.c.l.b16 %v5672
    %v6341 = vunpack.c.h.b16 %v5672
    %v6342 = vunpack.c.l.b16 %v5673
    %v6343 = vunpack.c.h.b16 %v5673
    %v6344 = vunpack.c.l.b16 %v5674
    %v6345 = vunpack.c.h.b16 %v5674
    %v6346 = vunpack.c.l.b16 %v5675
    %v6347 = vunpack.c.h.b16 %v5675
    %v6348 = vunpack.c.l.b16 %v5676
    %v6349 = vunpack.c.h.b16 %v5676
    %v6350 = vunpack.c.l.b16 %v5677
    %v6351 = vunpack.c.h.b16 %v5677
    %v6352 = vunpack.c.l.b16 %v5678
    %v6353 = vunpack.c.h.b16 %v5678
    %v6354 = vunpack.c.l.b16 %v5679
    %v6355 = vunpack.c.h.b16 %v5679
    %v6356 = vunpack.c.l.b16 %v5680
    %v6357 = vunpack.c.h.b16 %v5680
    %v6358 = vunpack.c.l.b16 %v5681
    %v6359 = vunpack.c.h.b16 %v5681
    %v6360 = vunpack.c.l.b16 %v5682
    %v6361 = vunpack.c.h.b16 %v5682
    %v6362 = vunpack.c.l.b16 %v5683
    %v6363 = vunpack.c.h.b16 %v5683
    %v6364 = vunpack.c.l.b16 %v5684
    %v6365 = vunpack.c.h.b16 %v5684
    %v6366 = vunpack.c.l.b16 %v5685
    %v6367 = vunpack.c.h.b16 %v5685
    %v6368 = vunpack.c.l.b16 %v5686
    %v6369 = vunpack.c.h.b16 %v5686
    %v6370 = vunpack.c.l.b16 %v5687
    %v6371 = vunpack.c.h.b16 %v5687
    %v6372 = vunpack.c.l.b16 %v5688
    %v6373 = vunpack.c.h.b16 %v5688
    %v6374 = vunpack.c.l.b16 %v5689
    %v6375 = vunpack.c.h.b16 %v5689
    %v6376 = vunpack.c.l.b16 %v5690
    %v6377 = vunpack.c.h.b16 %v5690
    %v6378 = vunpack.c.l.b16 %v5691
    %v6379 = vunpack.c.h.b16 %v5691
    %v6380 = vunpack.c.l.b16 %v5692
    %v6381 = vunpack.c.h.b16 %v5692
    %v6382 = vunpack.c.l.b16 %v5693
    %v6383 = vunpack.c.h.b16 %v5693
    %v6384 = vunpack.c.l.b16 %v5694
    %v6385 = vunpack.c.h.b16 %v5694
    %v6386 = vunpack.c.l.b16 %v5695
    %v6387 = vunpack.c.h.b16 %v5695
    %v6388 = vunpack.c.l.b16 %v5696
    %v6389 = vunpack.c.h.b16 %v5696
    %v6390 = vunpack.c.l.b16 %v5697
    %v6391 = vunpack.c.h.b16 %v5697
    %v6392 = vunpack.c.l.b16 %v5698
    %v6393 = vunpack.c.h.b16 %v5698
    %v6394 = vunpack.c.l.b16 %v5699
    %v6395 = vunpack.c.h.b16 %v5699
    %v6396 = vunpack.c.l.b16 %v5700
    %v6397 = vunpack.c.h.b16 %v5700
    %v6398 = vunpack.c.l.b16 %v5701
    %v6399 = vunpack.c.h.b16 %v5701
    %v6400 = vunpack.c.l.b16 %v5702
    %v6401 = vunpack.c.h.b16 %v5702
    %v6402 = vunpack.c.l.b16 %v5703
    %v6403 = vunpack.c.h.b16 %v5703
    %v6404 = vunpack.c.l.b16 %v5704
    %v6405 = vunpack.c.h.b16 %v5704
    %v6406 = vunpack.c.l.b16 %v5705
    %v6407 = vunpack.c.h.b16 %v5705
    %v6408 = vunpack.c.l.b16 %v5706
    %v6409 = vunpack.c.h.b16 %v5706
    %v6410 = vunpack.c.l.b16 %v5707
    %v6411 = vunpack.c.h.b16 %v5707
    %v6412 = vunpack.c.l.b16 %v5708
    %v6413 = vunpack.c.h.b16 %v5708
    %v6414 = vunpack.c.l.b16 %v5709
    %v6415 = vunpack.c.h.b16 %v5709
    %v6416 = vunpack.c.l.b16 %v5710
    %v6417 = vunpack.c.h.b16 %v5710
    %v6418 = vunpack.c.l.b16 %v5711
    %v6419 = vunpack.c.h.b16 %v5711
    %v6420 = vunpack.c.l.b16 %v5712
    %v6421 = vunpack.c.h.b16 %v5712
    %v6422 = vunpack.c.l.b16 %v5713
    %v6423 = vunpack.c.h.b16 %v5713
    %v6424 = vunpack.c.l.b16 %v5714
    %v6425 = vunpack.c.h.b16 %v5714
    %v6426 = vunpack.c.l.b16 %v5715
    %v6427 = vunpack.c.h.b16 %v5715
    %v6428 = vunpack.c.l.b16 %v5716
    %v6429 = vunpack.c.h.b16 %v5716
    %v6430 = vunpack.c.l.b16 %v5717
    %v6431 = vunpack.c.h.b16 %v5717
    %v6432 = vunpack.c.l.b16 %v5718
    %v6433 = vunpack.c.h.b16 %v5718
    %v6434 = vunpack.c.l.b16 %v5719
    %v6435 = vunpack.c.h.b16 %v5719
    %v6436 = vunpack.c.l.b16 %v5720
    %v6437 = vunpack.c.h.b16 %v5720
    %v6438 = vunpack.c.l.b16 %v5721
    %v6439 = vunpack.c.h.b16 %v5721
    %v6440 = vunpack.c.l.b16 %v5722
    %v6441 = vunpack.c.h.b16 %v5722
    %v6442 = vunpack.c.l.b16 %v5723
    %v6443 = vunpack.c.h.b16 %v5723
    %v6444 = vunpack.c.l.b16 %v5724
    %v6445 = vunpack.c.h.b16 %v5724
    %v6446 = vunpack.c.l.b16 %v5725
    %v6447 = vunpack.c.h.b16 %v5725
    %v6448 = vunpack.c.l.b16 %v5726
    %v6449 = vunpack.c.h.b16 %v5726
    %v6450 = vunpack.c.l.b16 %v5727
    %v6451 = vunpack.c.h.b16 %v5727
    %v6452 = vunpack.c.l.b16 %v5728
    %v6453 = vunpack.c.h.b16 %v5728
    %v6454 = vunpack.c.l.b16 %v5729
    %v6455 = vunpack.c.h.b16 %v5729
    %v6456 = vunpack.c.l.b16 %v5730
    %v6457 = vunpack.c.h.b16 %v5730
    %v6458 = vunpack.c.l.b16 %v5731
    %v6459 = vunpack.c.h.b16 %v5731
    %v6460 = vunpack.c.l.b16 %v5732
    %v6461 = vunpack.c.h.b16 %v5732
    %v6462 = vunpack.c.l.b16 %v5733
    %v6463 = vunpack.c.h.b16 %v5733
    %v6464 = vunpack.c.l.b16 %v5734
    %v6465 = vunpack.c.h.b16 %v5734
    %v6466 = vunpack.c.l.b16 %v5735
    %v6467 = vunpack.c.h.b16 %v5735
    %v6468 = vunpack.c.l.b16 %v5736
    %v6469 = vunpack.c.h.b16 %v5736
    %v6470 = vunpack.c.l.b16 %v5737
    %v6471 = vunpack.c.h.b16 %v5737
    %v6472 = vunpack.c.l.b16 %v5738
    %v6473 = vunpack.c.h.b16 %v5738
    %v6474 = vunpack.c.l.b16 %v5739
    %v6475 = vunpack.c.h.b16 %v5739
    %v6476 = vunpack.c.l.b16 %v5740
    %v6477 = vunpack.c.h.b16 %v5740
    %v6478 = vunpack.c.l.b16 %v5741
    %v6479 = vunpack.c.h.b16 %v5741
    %v6480 = vunpack.c.l.b16 %v5742
    %v6481 = vunpack.c.h.b16 %v5742
    %v6482 = vunpack.c.l.b16 %v5743
    %v6483 = vunpack.c.h.b16 %v5743
    %v6484 = vunpack.c.l.b16 %v5744
    %v6485 = vunpack.c.h.b16 %v5744
    %v6486 = vunpack.c.l.b16 %v5745
    %v6487 = vunpack.c.h.b16 %v5745
    %v6488 = vunpack.c.l.b16 %v5746
    %v6489 = vunpack.c.h.b16 %v5746
    %v6490 = vunpack.c.l.b16 %v5747
    %v6491 = vunpack.c.h.b16 %v5747
    %v6492 = vunpack.c.l.b16 %v5748
    %v6493 = vunpack.c.h.b16 %v5748
    %v6494 = vunpack.c.l.b16 %v5749
    %v6495 = vunpack.c.h.b16 %v5749
    %v6496 = vunpack.c.l.b16 %v5750
    %v6497 = vunpack.c.h.b16 %v5750
    %v6498 = vunpack.c.l.b16 %v5751
    %v6499 = vunpack.c.h.b16 %v5751
    %v6500 = vunpack.c.l.b16 %v5752
    %v6501 = vunpack.c.h.b16 %v5752
    %v6502 = vunpack.c.l.b16 %v5753
    %v6503 = vunpack.c.h.b16 %v5753
    %v6504 = vunpack.c.l.b16 %v5754
    %v6505 = vunpack.c.h.b16 %v5754
    %v6506 = vunpack.c.l.b16 %v5755
    %v6507 = vunpack.c.h.b16 %v5755
    %v6508 = vunpack.c.l.b16 %v5756
    %v6509 = vunpack.c.h.b16 %v5756
    %v6510 = vunpack.c.l.b16 %v5757
    %v6511 = vunpack.c.h.b16 %v5757
    %v6512 = vunpack.c.l.b16 %v5758
    %v6513 = vunpack.c.h.b16 %v5758
    %v6514 = vunpack.c.l.b16 %v5759
    %v6515 = vunpack.c.h.b16 %v5759
    %v6516 = vunpack.c.l.b16 %v5760
    %v6517 = vunpack.c.h.b16 %v5760
    %v6518 = vunpack.c.l.b16 %v5761
    %v6519 = vunpack.c.h.b16 %v5761
    %v6520 = vunpack.c.l.b16 %v5762
    %v6521 = vunpack.c.h.b16 %v5762
    %v6522 = vunpack.c.l.b16 %v5763
    %v6523 = vunpack.c.h.b16 %v5763
    %v6524 = vunpack.c.l.b16 %v5764
    %v6525 = vunpack.c.h.b16 %v5764
    %v6526 = vunpack.c.l.b16 %v5765
    %v6527 = vunpack.c.h.b16 %v5765
    %v6528 = vunpack.c.l.b16 %v5766
    %v6529 = vunpack.c.h.b16 %v5766
    %v6530 = vunpack.c.l.b16 %v5767
    %v6531 = vunpack.c.h.b16 %v5767
    %v6532 = vunpack.c.l.b16 %v5768
    %v6533 = vunpack.c.h.b16 %v5768
    %v6534 = vunpack.c.l.b16 %v5769
    %v6535 = vunpack.c.h.b16 %v5769
    %v6536 = vunpack.c.l.b16 %v5770
    %v6537 = vunpack.c.h.b16 %v5770
    %v6538 = vunpack.c.l.b16 %v5771
    %v6539 = vunpack.c.h.b16 %v5771
    %v6540 = vunpack.c.l.b16 %v5772
    %v6541 = vunpack.c.h.b16 %v5772
    %v6542 = vunpack.c.l.b16 %v5773
    %v6543 = vunpack.c.h.b16 %v5773
    %v6544 = vunpack.c.l.b16 %v5774
    %v6545 = vunpack.c.h.b16 %v5774
    %v6546 = vunpack.c.l.b16 %v5775
    %v6547 = vunpack.c.h.b16 %v5775
    %v6548 = vunpack.c.l.b16 %v5776
    %v6549 = vunpack.c.h.b16 %v5776
    %v6550 = vunpack.c.l.b16 %v5777
    %v6551 = vunpack.c.h.b16 %v5777
    %v6552 = vunpack.c.l.b16 %v5778
    %v6553 = vunpack.c.h.b16 %v5778
    %v6554 = vunpack.c.l.b16 %v5779
    %v6555 = vunpack.c.h.b16 %v5779
    %v6556 = vunpack.c.l.b16 %v5780
    %v6557 = vunpack.c.h.b16 %v5780
    %v6558 = vunpack.c.l.b16 %v5781
    %v6559 = vunpack.c.h.b16 %v5781
    %v6560 = vunpack.c.l.b16 %v5782
    %v6561 = vunpack.c.h.b16 %v5782
    %v6562 = vunpack.c.l.b16 %v5783
    %v6563 = vunpack.c.h.b16 %v5783
    %v6564 = vunpack.c.l.b16 %v5784
    %v6565 = vunpack.c.h.b16 %v5784
    %v6566 = vunpack.c.l.b16 %v5785
    %v6567 = vunpack.c.h.b16 %v5785
    %v6568 = vunpack.c.l.b16 %v5786
    %v6569 = vunpack.c.h.b16 %v5786
    %v6570 = vunpack.c.l.b16 %v5787
    %v6571 = vunpack.c.h.b16 %v5787
    %v6572 = vunpack.c.l.b16 %v5788
    %v6573 = vunpack.c.h.b16 %v5788
    %v6574 = vunpack.c.l.b16 %v5789
    %v6575 = vunpack.c.h.b16 %v5789
    %v6576 = vunpack.c.l.b16 %v5790
    %v6577 = vunpack.c.h.b16 %v5790
    %v6578 = vunpack.c.l.b16 %v5791
    %v6579 = vunpack.c.h.b16 %v5791
    %v6580 = vunpack.c.l.b16 %v5792
    %v6581 = vunpack.c.h.b16 %v5792
    %v6582 = vunpack.c.l.b16 %v5793
    %v6583 = vunpack.c.h.b16 %v5793
    %v6584 = vpack.c.b16 %v6076, %v6072
    %v6585 = vpack.c.b16 %v6077, %v6073
    %v6586 = vpack.c.b16 %v6078, %v6074
    %v6587 = vpack.c.b16 %v6079, %v6075
    %v6588 = vpack.c.b16 %v6084, %v6080
    %v6589 = vpack.c.b16 %v6085, %v6081
    %v6590 = vpack.c.b16 %v6086, %v6082
    %v6591 = vpack.c.b16 %v6087, %v6083
    %v6592 = vpack.c.b16 %v6092, %v6088
    %v6593 = vpack.c.b16 %v6093, %v6089
    %v6594 = vpack.c.b16 %v6094, %v6090
    %v6595 = vpack.c.b16 %v6095, %v6091
    %v6596 = vpack.c.b16 %v6100, %v6096
    %v6597 = vpack.c.b16 %v6101, %v6097
    %v6598 = vpack.c.b16 %v6102, %v6098
    %v6599 = vpack.c.b16 %v6103, %v6099
    %v6600 = vpack.c.b16 %v6108, %v6104
    %v6601 = vpack.c.b16 %v6109, %v6105
    %v6602 = vpack.c.b16 %v6110, %v6106
    %v6603 = vpack.c.b16 %v6111, %v6107
    %v6604 = vpack.c.b16 %v6116, %v6112
    %v6605 = vpack.c.b16 %v6117, %v6113
    %v6606 = vpack.c.b16 %v6118, %v6114
    %v6607 = vpack.c.b16 %v6119, %v6115
    %v6608 = vpack.c.b16 %v6124, %v6120
    %v6609 = vpack.c.b16 %v6125, %v6121
    %v6610 = vpack.c.b16 %v6126, %v6122
    %v6611 = vpack.c.b16 %v6127, %v6123
    %v6612 = vpack.c.b16 %v6132, %v6128
    %v6613 = vpack.c.b16 %v6133, %v6129
    %v6614 = vpack.c.b16 %v6134, %v6130
    %v6615 = vpack.c.b16 %v6135, %v6131
    %v6616 = vpack.c.b16 %v6140, %v6136
    %v6617 = vpack.c.b16 %v6141, %v6137
    %v6618 = vpack.c.b16 %v6142, %v6138
    %v6619 = vpack.c.b16 %v6143, %v6139
    %v6620 = vpack.c.b16 %v6148, %v6144
    %v6621 = vpack.c.b16 %v6149, %v6145
    %v6622 = vpack.c.b16 %v6150, %v6146
    %v6623 = vpack.c.b16 %v6151, %v6147
    %v6624 = vpack.c.b16 %v6156, %v6152
    %v6625 = vpack.c.b16 %v6157, %v6153
    %v6626 = vpack.c.b16 %v6158, %v6154
    %v6627 = vpack.c.b16 %v6159, %v6155
    %v6628 = vpack.c.b16 %v6164, %v6160
    %v6629 = vpack.c.b16 %v6165, %v6161
    %v6630 = vpack.c.b16 %v6166, %v6162
    %v6631 = vpack.c.b16 %v6167, %v6163
    %v6632 = vpack.c.b16 %v6172, %v6168
    %v6633 = vpack.c.b16 %v6173, %v6169
    %v6634 = vpack.c.b16 %v6174, %v6170
    %v6635 = vpack.c.b16 %v6175, %v6171
    %v6636 = vpack.c.b16 %v6180, %v6176
    %v6637 = vpack.c.b16 %v6181, %v6177
    %v6638 = vpack.c.b16 %v6182, %v6178
    %v6639 = vpack.c.b16 %v6183, %v6179
    %v6640 = vpack.c.b16 %v6188, %v6184
    %v6641 = vpack.c.b16 %v6189, %v6185
    %v6642 = vpack.c.b16 %v6190, %v6186
    %v6643 = vpack.c.b16 %v6191, %v6187
    %v6644 = vpack.c.b16 %v6196, %v6192
    %v6645 = vpack.c.b16 %v6197, %v6193
    %v6646 = vpack.c.b16 %v6198, %v6194
    %v6647 = vpack.c.b16 %v6199, %v6195
    %v6648 = vpack.c.b16 %v6204, %v6200
    %v6649 = vpack.c.b16 %v6205, %v6201
    %v6650 = vpack.c.b16 %v6206, %v6202
    %v6651 = vpack.c.b16 %v6207, %v6203
    %v6652 = vpack.c.b16 %v6212, %v6208
    %v6653 = vpack.c.b16 %v6213, %v6209
    %v6654 = vpack.c.b16 %v6214, %v6210
    %v6655 = vpack.c.b16 %v6215, %v6211
    %v6656 = vpack.c.b16 %v6220, %v6216
    %v6657 = vpack.c.b16 %v6221, %v6217
    %v6658 = vpack.c.b16 %v6222, %v6218
    %v6659 = vpack.c.b16 %v6223, %v6219
    %v6660 = vpack.c.b16 %v6228, %v6224
    %v6661 = vpack.c.b16 %v6229, %v6225
    %v6662 = vpack.c.b16 %v6230, %v6226
    %v6663 = vpack.c.b16 %v6231, %v6227
    %v6664 = vpack.c.b16 %v6236, %v6232
    %v6665 = vpack.c.b16 %v6237, %v6233
    %v6666 = vpack.c.b16 %v6238, %v6234
    %v6667 = vpack.c.b16 %v6239, %v6235
    %v6668 = vpack.c.b16 %v6244, %v6240
    %v6669 = vpack.c.b16 %v6245, %v6241
    %v6670 = vpack.c.b16 %v6246, %v6242
    %v6671 = vpack.c.b16 %v6247, %v6243
    %v6672 = vpack.c.b16 %v6252, %v6248
    %v6673 = vpack.c.b16 %v6253, %v6249
    %v6674 = vpack.c.b16 %v6254, %v6250
    %v6675 = vpack.c.b16 %v6255, %v6251
    %v6676 = vpack.c.b16 %v6260, %v6256
    %v6677 = vpack.c.b16 %v6261, %v6257
    %v6678 = vpack.c.b16 %v6262, %v6258
    %v6679 = vpack.c.b16 %v6263, %v6259
    %v6680 = vpack.c.b16 %v6268, %v6264
    %v6681 = vpack.c.b16 %v6269, %v6265
    %v6682 = vpack.c.b16 %v6270, %v6266
    %v6683 = vpack.c.b16 %v6271, %v6267
    %v6684 = vpack.c.b16 %v6276, %v6272
    %v6685 = vpack.c.b16 %v6277, %v6273
    %v6686 = vpack.c.b16 %v6278, %v6274
    %v6687 = vpack.c.b16 %v6279, %v6275
    %v6688 = vpack.c.b16 %v6284, %v6280
    %v6689 = vpack.c.b16 %v6285, %v6281
    %v6690 = vpack.c.b16 %v6286, %v6282
    %v6691 = vpack.c.b16 %v6287, %v6283
    %v6692 = vpack.c.b16 %v6292, %v6288
    %v6693 = vpack.c.b16 %v6293, %v6289
    %v6694 = vpack.c.b16 %v6294, %v6290
    %v6695 = vpack.c.b16 %v6295, %v6291
    %v6696 = vpack.c.b16 %v6300, %v6296
    %v6697 = vpack.c.b16 %v6301, %v6297
    %v6698 = vpack.c.b16 %v6302, %v6298
    %v6699 = vpack.c.b16 %v6303, %v6299
    %v6700 = vpack.c.b16 %v6308, %v6304
    %v6701 = vpack.c.b16 %v6309, %v6305
    %v6702 = vpack.c.b16 %v6310, %v6306
    %v6703 = vpack.c.b16 %v6311, %v6307
    %v6704 = vpack.c.b16 %v6316, %v6312
    %v6705 = vpack.c.b16 %v6317, %v6313
    %v6706 = vpack.c.b16 %v6318, %v6314
    %v6707 = vpack.c.b16 %v6319, %v6315
    %v6708 = vpack.c.b16 %v6324, %v6320
    %v6709 = vpack.c.b16 %v6325, %v6321
    %v6710 = vpack.c.b16 %v6326, %v6322
    %v6711 = vpack.c.b16 %v6327, %v6323
    %v6712 = vpack.c.b16 %v6332, %v6328
    %v6713 = vpack.c.b16 %v6333, %v6329
    %v6714 = vpack.c.b16 %v6334, %v6330
    %v6715 = vpack.c.b16 %v6335, %v6331
    %v6716 = vpack.c.b16 %v6340, %v6336
    %v6717 = vpack.c.b16 %v6341, %v6337
    %v6718 = vpack.c.b16 %v6342, %v6338
    %v6719 = vpack.c.b16 %v6343, %v6339
    %v6720 = vpack.c.b16 %v6348, %v6344
    %v6721 = vpack.c.b16 %v6349, %v6345
    %v6722 = vpack.c.b16 %v6350, %v6346
    %v6723 = vpack.c.b16 %v6351, %v6347
    %v6724 = vpack.c.b16 %v6356, %v6352
    %v6725 = vpack.c.b16 %v6357, %v6353
    %v6726 = vpack.c.b16 %v6358, %v6354
    %v6727 = vpack.c.b16 %v6359, %v6355
    %v6728 = vpack.c.b16 %v6364, %v6360
    %v6729 = vpack.c.b16 %v6365, %v6361
    %v6730 = vpack.c.b16 %v6366, %v6362
    %v6731 = vpack.c.b16 %v6367, %v6363
    %v6732 = vpack.c.b16 %v6372, %v6368
    %v6733 = vpack.c.b16 %v6373, %v6369
    %v6734 = vpack.c.b16 %v6374, %v6370
    %v6735 = vpack.c.b16 %v6375, %v6371
    %v6736 = vpack.c.b16 %v6380, %v6376
    %v6737 = vpack.c.b16 %v6381, %v6377
    %v6738 = vpack.c.b16 %v6382, %v6378
    %v6739 = vpack.c.b16 %v6383, %v6379
    %v6740 = vpack.c.b16 %v6388, %v6384
    %v6741 = vpack.c.b16 %v6389, %v6385
    %v6742 = vpack.c.b16 %v6390, %v6386
    %v6743 = vpack.c.b16 %v6391, %v6387
    %v6744 = vpack.c.b16 %v6396, %v6392
    %v6745 = vpack.c.b16 %v6397, %v6393
    %v6746 = vpack.c.b16 %v6398, %v6394
    %v6747 = vpack.c.b16 %v6399, %v6395
    %v6748 = vpack.c.b16 %v6404, %v6400
    %v6749 = vpack.c.b16 %v6405, %v6401
    %v6750 = vpack.c.b16 %v6406, %v6402
    %v6751 = vpack.c.b16 %v6407, %v6403
    %v6752 = vpack.c.b16 %v6412, %v6408
    %v6753 = vpack.c.b16 %v6413, %v6409
    %v6754 = vpack.c.b16 %v6414, %v6410
    %v6755 = vpack.c.b16 %v6415, %v6411
    %v6756 = vpack.c.b16 %v6420, %v6416
    %v6757 = vpack.c.b16 %v6421, %v6417
    %v6758 = vpack.c.b16 %v6422, %v6418
    %v6759 = vpack.c.b16 %v6423, %v6419
    %v6760 = vpack.c.b16 %v6428, %v6424
    %v6761 = vpack.c.b16 %v6429, %v6425
    %v6762 = vpack.c.b16 %v6430, %v6426
    %v6763 = vpack.c.b16 %v6431, %v6427
    %v6764 = vpack.c.b16 %v6436, %v6432
    %v6765 = vpack.c.b16 %v6437, %v6433
    %v6766 = vpack.c.b16 %v6438, %v6434
    %v6767 = vpack.c.b16 %v6439, %v6435
    %v6768 = vpack.c.b16 %v6444, %v6440
    %v6769 = vpack.c.b16 %v6445, %v6441
    %v6770 = vpack.c.b16 %v6446, %v6442
    %v6771 = vpack.c.b16 %v6447, %v6443
    %v6772 = vpack.c.b16 %v6452, %v6448
    %v6773 = vpack.c.b16 %v6453, %v6449
    %v6774 = vpack.c.b16 %v6454, %v6450
    %v6775 = vpack.c.b16 %v6455, %v6451
    %v6776 = vpack.c.b16 %v6460, %v6456
    %v6777 = vpack.c.b16 %v6461, %v6457
    %v6778 = vpack.c.b16 %v6462, %v6458
    %v6779 = vpack.c.b16 %v6463, %v6459
    %v6780 = vpack.c.b16 %v6468, %v6464
    %v6781 = vpack.c.b16 %v6469, %v6465
    %v6782 = vpack.c.b16 %v6470, %v6466
    %v6783 = vpack.c.b16 %v6471, %v6467
    %v6784 = vpack.c.b16 %v6476, %v6472
    %v6785 = vpack.c.b16 %v6477, %v6473
    %v6786 = vpack.c.b16 %v6478, %v6474
    %v6787 = vpack.c.b16 %v6479, %v6475
    %v6788 = vpack.c.b16 %v6484, %v6480
    %v6789 = vpack.c.b16 %v6485, %v6481
    %v6790 = vpack.c.b16 %v6486, %v6482
    %v6791 = vpack.c.b16 %v6487, %v6483
    %v6792 = vpack.c.b16 %v6492, %v6488
    %v6793 = vpack.c.b16 %v6493, %v6489
    %v6794 = vpack.c.b16 %v6494, %v6490
    %v6795 = vpack.c.b16 %v6495, %v6491
    %v6796 = vpack.c.b16 %v6500, %v6496
    %v6797 = vpack.c.b16 %v6501, %v6497
    %v6798 = vpack.c.b16 %v6502, %v6498
    %v6799 = vpack.c.b16 %v6503, %v6499
    %v6800 = vpack.c.b16 %v6508, %v6504
    %v6801 = vpack.c.b16 %v6509, %v6505
    %v6802 = vpack.c.b16 %v6510, %v6506
    %v6803 = vpack.c.b16 %v6511, %v6507
    %v6804 = vpack.c.b16 %v6516, %v6512
    %v6805 = vpack.c.b16 %v6517, %v6513
    %v6806 = vpack.c.b16 %v6518, %v6514
    %v6807 = vpack.c.b16 %v6519, %v6515
    %v6808 = vpack.c.b16 %v6524, %v6520
    %v6809 = vpack.c.b16 %v6525, %v6521
    %v6810 = vpack.c.b16 %v6526, %v6522
    %v6811 = vpack.c.b16 %v6527, %v6523
    %v6812 = vpack.c.b16 %v6532, %v6528
    %v6813 = vpack.c.b16 %v6533, %v6529
    %v6814 = vpack.c.b16 %v6534, %v6530
    %v6815 = vpack.c.b16 %v6535, %v6531
    %v6816 = vpack.c.b16 %v6540, %v6536
    %v6817 = vpack.c.b16 %v6541, %v6537
    %v6818 = vpack.c.b16 %v6542, %v6538
    %v6819 = vpack.c.b16 %v6543, %v6539
    %v6820 = vpack.c.b16 %v6548, %v6544
    %v6821 = vpack.c.b16 %v6549, %v6545
    %v6822 = vpack.c.b16 %v6550, %v6546
    %v6823 = vpack.c.b16 %v6551, %v6547
    %v6824 = vpack.c.b16 %v6556, %v6552
    %v6825 = vpack.c.b16 %v6557, %v6553
    %v6826 = vpack.c.b16 %v6558, %v6554
    %v6827 = vpack.c.b16 %v6559, %v6555
    %v6828 = vpack.c.b16 %v6564, %v6560
    %v6829 = vpack.c.b16 %v6565, %v6561
    %v6830 = vpack.c.b16 %v6566, %v6562
    %v6831 = vpack.c.b16 %v6567, %v6563
    %v6832 = vpack.c.b16 %v6572, %v6568
    %v6833 = vpack.c.b16 %v6573, %v6569
    %v6834 = vpack.c.b16 %v6574, %v6570
    %v6835 = vpack.c.b16 %v6575, %v6571
    %v6836 = vpack.c.b16 %v6580, %v6576
    %v6837 = vpack.c.b16 %v6581, %v6577
    %v6838 = vpack.c.b16 %v6582, %v6578
    %v6839 = vpack.c.b16 %v6583, %v6579
    %7096 = vmatprep.subr.bf16.mxu0 %v6585
    %7097 = vmatpush1.bf16.msra.mxu0 %v6584
    %7098 = vmatprep.subr.bf16.mxu0 %v6589
    %7099 = vmatpush1.bf16.msra.mxu0 %v6588
    %7100 = vmatprep.subr.bf16.mxu0 %v6593
    %7101 = vmatpush1.bf16.msra.mxu0 %v6592
    %7102 = vmatprep.subr.bf16.mxu0 %v6597
    %7103 = vmatpush1.bf16.msra.mxu0 %v6596
    %7104 = vmatprep.subr.bf16.mxu0 %v6601
    %7105 = vmatpush1.bf16.msra.mxu0 %v6600
    %7106 = vmatprep.subr.bf16.mxu0 %v6605
    %7107 = vmatpush1.bf16.msra.mxu0 %v6604
    %7108 = vmatprep.subr.bf16.mxu0 %v6609
    %7109 = vmatpush1.bf16.msra.mxu0 %v6608
    %7110 = vmatprep.subr.bf16.mxu0 %v6613
    %7111 = vmatpush1.bf16.msra.mxu0 %v6612
    %7112 = vmatprep.subr.bf16.mxu0 %v6617
    %7113 = vmatpush1.bf16.msra.mxu0 %v6616
    %7114 = vmatprep.subr.bf16.mxu0 %v6621
    %7115 = vmatpush1.bf16.msra.mxu0 %v6620
    %7116 = vmatprep.subr.bf16.mxu0 %v6625
    %7117 = vmatpush1.bf16.msra.mxu0 %v6624
    %7118 = vmatprep.subr.bf16.mxu0 %v6629
    %7119 = vmatpush1.bf16.msra.mxu0 %v6628
    %7120 = vmatprep.subr.bf16.mxu0 %v6633
    %7121 = vmatpush1.bf16.msra.mxu0 %v6632
    %7122 = vmatprep.subr.bf16.mxu0 %v6637
    %7123 = vmatpush1.bf16.msra.mxu0 %v6636
    %7124 = vmatprep.subr.bf16.mxu0 %v6641
    %7125 = vmatpush1.bf16.msra.mxu0 %v6640
    %7126 = vmatprep.subr.bf16.mxu0 %v6645
    %7127 = vmatpush1.bf16.msra.mxu0 %v6644
    %7128 = vmatprep.mubr.bf16.mxu0 %v5531
    %7129 = vmatmul.mubr.bf16.gmra.mrb[0].mxu0 %v5530
    %v7130 = vpop.f32.mrb[0].mxu0
    %v7131 = vadd.f32 %v5799, %v7130
    %v7132 = vpop.f32.mrb[0].mxu0
    %v7133 = vadd.f32 %v5803, %v7132
    %v7134 = vpop.f32.mrb[0].mxu0
    %v7135 = vadd.f32 %v5799, %v7134
    %v7136 = vpop.f32.mrb[0].mxu0
    %v7137 = vadd.f32 %v5803, %v7136
    %7138 = vdwg.mxu0
    %7139 = vmatprep.subr.bf16.mxu0 %v6649
    %7140 = vmatpush1.bf16.msra.mxu0 %v6648
    %7141 = vmatprep.subr.bf16.mxu0 %v6653
    %7142 = vmatpush1.bf16.msra.mxu0 %v6652
    %7143 = vmatprep.subr.bf16.mxu0 %v6657
    %7144 = vmatpush1.bf16.msra.mxu0 %v6656
    %7145 = vmatprep.subr.bf16.mxu0 %v6661
    %7146 = vmatpush1.bf16.msra.mxu0 %v6660
    %7147 = vmatprep.subr.bf16.mxu0 %v6665
    %7148 = vmatpush1.bf16.msra.mxu0 %v6664
    %7149 = vmatprep.subr.bf16.mxu0 %v6669
    %7150 = vmatpush1.bf16.msra.mxu0 %v6668
    %7151 = vmatprep.subr.bf16.mxu0 %v6673
    %7152 = vmatpush1.bf16.msra.mxu0 %v6672
    %7153 = vmatprep.subr.bf16.mxu0 %v6677
    %7154 = vmatpush1.bf16.msra.mxu0 %v6676
    %7155 = vmatprep.subr.bf16.mxu0 %v6681
    %7156 = vmatpush1.bf16.msra.mxu0 %v6680
    %7157 = vmatprep.subr.bf16.mxu0 %v6685
    %7158 = vmatpush1.bf16.msra.mxu0 %v6684
    %7159 = vmatprep.subr.bf16.mxu0 %v6689
    %7160 = vmatpush1.bf16.msra.mxu0 %v6688
    %7161 = vmatprep.subr.bf16.mxu0 %v6693
    %7162 = vmatpush1.bf16.msra.mxu0 %v6692
    %7163 = vmatprep.subr.bf16.mxu0 %v6697
    %7164 = vmatpush1.bf16.msra.mxu0 %v6696
    %7165 = vmatprep.subr.bf16.mxu0 %v6701
    %7166 = vmatpush1.bf16.msra.mxu0 %v6700
    %7167 = vmatprep.subr.bf16.mxu0 %v6705
    %7168 = vmatpush1.bf16.msra.mxu0 %v6704
    %7169 = vmatprep.subr.bf16.mxu0 %v6709
    %7170 = vmatpush1.bf16.msra.mxu0 %v6708
    %7171 = vmatprep.mubr.bf16.mxu0 %v5533
    %7172 = vmatmul.mubr.bf16.gmra.mrb[0].mxu0 %v5532
    %v7173 = vpop.f32.mrb[0].mxu0
    %v7174 = vadd.f32 %v7131, %v7173
    %v7175 = vpop.f32.mrb[0].mxu0
    %v7176 = vadd.f32 %v7133, %v7175
    %v7177 = vpop.f32.mrb[0].mxu0
    %v7178 = vadd.f32 %v7135, %v7177
    %v7179 = vpop.f32.mrb[0].mxu0
    %v7180 = vadd.f32 %v7137, %v7179
    %7181 = vdwg.mxu0
    %7182 = vmatprep.subr.bf16.mxu0 %v6713
    %7183 = vmatpush1.bf16.msra.mxu0 %v6712
    %7184 = vmatprep.subr.bf16.mxu0 %v6717
    %7185 = vmatpush1.bf16.msra.mxu0 %v6716
    %7186 = vmatprep.subr.bf16.mxu0 %v6721
    %7187 = vmatpush1.bf16.msra.mxu0 %v6720
    %7188 = vmatprep.subr.bf16.mxu0 %v6725
    %7189 = vmatpush1.bf16.msra.mxu0 %v6724
    %7190 = vmatprep.subr.bf16.mxu0 %v6729
    %7191 = vmatpush1.bf16.msra.mxu0 %v6728
    %7192 = vmatprep.subr.bf16.mxu0 %v6733
    %7193 = vmatpush1.bf16.msra.mxu0 %v6732
    %7194 = vmatprep.subr.bf16.mxu0 %v6737
    %7195 = vmatpush1.bf16.msra.mxu0 %v6736
    %7196 = vmatprep.subr.bf16.mxu0 %v6741
    %7197 = vmatpush1.bf16.msra.mxu0 %v6740
    %7198 = vmatprep.subr.bf16.mxu0 %v6745
    %7199 = vmatpush1.bf16.msra.mxu0 %v6744
    %7200 = vmatprep.subr.bf16.mxu0 %v6749
    %7201 = vmatpush1.bf16.msra.mxu0 %v6748
    %7202 = vmatprep.subr.bf16.mxu0 %v6753
    %7203 = vmatpush1.bf16.msra.mxu0 %v6752
    %7204 = vmatprep.subr.bf16.mxu0 %v6757
    %7205 = vmatpush1.bf16.msra.mxu0 %v6756
    %7206 = vmatprep.subr.bf16.mxu0 %v6761
    %7207 = vmatpush1.bf16.msra.mxu0 %v6760
    %7208 = vmatprep.subr.bf16.mxu0 %v6765
    %7209 = vmatpush1.bf16.msra.mxu0 %v6764
    %7210 = vmatprep.subr.bf16.mxu0 %v6769
    %7211 = vmatpush1.bf16.msra.mxu0 %v6768
    %7212 = vmatprep.subr.bf16.mxu0 %v6773
    %7213 = vmatpush1.bf16.msra.mxu0 %v6772
    %7214 = vmatprep.mubr.bf16.mxu0 %v5535
    %7215 = vmatmul.mubr.bf16.gmra.mrb[0].mxu0 %v5534
    %v7216 = vpop.f32.mrb[0].mxu0
    %v7217 = vadd.f32 %v7174, %v7216
    %v7218 = vpop.f32.mrb[0].mxu0
    %v7219 = vadd.f32 %v7176, %v7218
    %v7220 = vpop.f32.mrb[0].mxu0
    %v7221 = vadd.f32 %v7178, %v7220
    %v7222 = vpop.f32.mrb[0].mxu0
    %v7223 = vadd.f32 %v7180, %v7222
    %7224 = vdwg.mxu0
    %7225 = vmatprep.subr.bf16.mxu0 %v6777
    %7226 = vmatpush1.bf16.msra.mxu0 %v6776
    %7227 = vmatprep.subr.bf16.mxu0 %v6781
    %7228 = vmatpush1.bf16.msra.mxu0 %v6780
    %7229 = vmatprep.subr.bf16.mxu0 %v6785
    %7230 = vmatpush1.bf16.msra.mxu0 %v6784
    %7231 = vmatprep.subr.bf16.mxu0 %v6789
    %7232 = vmatpush1.bf16.msra.mxu0 %v6788
    %7233 = vmatprep.subr.bf16.mxu0 %v6793
    %7234 = vmatpush1.bf16.msra.mxu0 %v6792
    %7235 = vmatprep.subr.bf16.mxu0 %v6797
    %7236 = vmatpush1.bf16.msra.mxu0 %v6796
    %7237 = vmatprep.subr.bf16.mxu0 %v6801
    %7238 = vmatpush1.bf16.msra.mxu0 %v6800
    %7239 = vmatprep.subr.bf16.mxu0 %v6805
    %7240 = vmatpush1.bf16.msra.mxu0 %v6804
    %7241 = vmatprep.subr.bf16.mxu0 %v6809
    %7242 = vmatpush1.bf16.msra.mxu0 %v6808
    %7243 = vmatprep.subr.bf16.mxu0 %v6813
    %7244 = vmatpush1.bf16.msra.mxu0 %v6812
    %7245 = vmatprep.subr.bf16.mxu0 %v6817
    %7246 = vmatpush1.bf16.msra.mxu0 %v6816
    %7247 = vmatprep.subr.bf16.mxu0 %v6821
    %7248 = vmatpush1.bf16.msra.mxu0 %v6820
    %7249 = vmatprep.subr.bf16.mxu0 %v6825
    %7250 = vmatpush1.bf16.msra.mxu0 %v6824
    %7251 = vmatprep.subr.bf16.mxu0 %v6829
    %7252 = vmatpush1.bf16.msra.mxu0 %v6828
    %7253 = vmatprep.subr.bf16.mxu0 %v6833
    %7254 = vmatpush1.bf16.msra.mxu0 %v6832
    %7255 = vmatprep.subr.bf16.mxu0 %v6837
    %7256 = vmatpush1.bf16.msra.mxu0 %v6836
    %7257 = vmatprep.mubr.bf16.mxu0 %v5537
    %7258 = vmatmul.mubr.bf16.gmra.mrb[0].mxu0 %v5536
    %v7259 = vpop.f32.mrb[0].mxu0
    %v7260 = vadd.f32 %v7217, %v7259
    %v7261 = vpop.f32.mrb[0].mxu0
    %v7262 = vadd.f32 %v7219, %v7261
    %v7263 = vpop.f32.mrb[0].mxu0
    %v7264 = vadd.f32 %v7221, %v7263
    %v7265 = vpop.f32.mrb[0].mxu0
    %v7266 = vadd.f32 %v7223, %v7265
    %7267 = vdwg.mxu0
    %7268 = vmatprep.subr.bf16.mxu0 %v6587
    %7269 = vmatpush1.bf16.msra.mxu0 %v6586
    %7270 = vmatprep.subr.bf16.mxu0 %v6591
    %7271 = vmatpush1.bf16.msra.mxu0 %v6590
    %7272 = vmatprep.subr.bf16.mxu0 %v6595
    %7273 = vmatpush1.bf16.msra.mxu0 %v6594
    %7274 = vmatprep.subr.bf16.mxu0 %v6599
    %7275 = vmatpush1.bf16.msra.mxu0 %v6598
    %7276 = vmatprep.subr.bf16.mxu0 %v6603
    %7277 = vmatpush1.bf16.msra.mxu0 %v6602
    %7278 = vmatprep.subr.bf16.mxu0 %v6607
    %7279 = vmatpush1.bf16.msra.mxu0 %v6606
    %7280 = vmatprep.subr.bf16.mxu0 %v6611
    %7281 = vmatpush1.bf16.msra.mxu0 %v6610
    %7282 = vmatprep.subr.bf16.mxu0 %v6615
    %7283 = vmatpush1.bf16.msra.mxu0 %v6614
    %7284 = vmatprep.subr.bf16.mxu0 %v6619
    %7285 = vmatpush1.bf16.msra.mxu0 %v6618
    %7286 = vmatprep.subr.bf16.mxu0 %v6623
    %7287 = vmatpush1.bf16.msra.mxu0 %v6622
    %7288 = vmatprep.subr.bf16.mxu0 %v6627
    %7289 = vmatpush1.bf16.msra.mxu0 %v6626
    %7290 = vmatprep.subr.bf16.mxu0 %v6631
    %7291 = vmatpush1.bf16.msra.mxu0 %v6630
    %7292 = vmatprep.subr.bf16.mxu0 %v6635
    %7293 = vmatpush1.bf16.msra.mxu0 %v6634
    %7294 = vmatprep.subr.bf16.mxu0 %v6639
    %7295 = vmatpush1.bf16.msra.mxu0 %v6638
    %7296 = vmatprep.subr.bf16.mxu0 %v6643
    %7297 = vmatpush1.bf16.msra.mxu0 %v6642
    %7298 = vmatprep.subr.bf16.mxu0 %v6647
    %7299 = vmatpush1.bf16.msra.mxu0 %v6646
    %7300 = vmatprep.mubr.bf16.mxu0 %v5531
    %7301 = vmatmul.mubr.bf16.gmra.mrb[0].mxu0 %v5530
    %v7302 = vpop.f32.mrb[0].mxu0
    %v7303 = vadd.f32 %v5807, %v7302
    %v7304 = vpop.f32.mrb[0].mxu0
    %v7305 = vadd.f32 %v5811, %v7304
    %v7306 = vpop.f32.mrb[0].mxu0
    %v7307 = vadd.f32 %v5807, %v7306
    %v7308 = vpop.f32.mrb[0].mxu0
    %v7309 = vadd.f32 %v5811, %v7308
    %7310 = vdwg.mxu0
    %7311 = vmatprep.subr.bf16.mxu0 %v6651
    %7312 = vmatpush1.bf16.msra.mxu0 %v6650
    %7313 = vmatprep.subr.bf16.mxu0 %v6655
    %7314 = vmatpush1.bf16.msra.mxu0 %v6654
    %7315 = vmatprep.subr.bf16.mxu0 %v6659
    %7316 = vmatpush1.bf16.msra.mxu0 %v6658
    %7317 = vmatprep.subr.bf16.mxu0 %v6663
    %7318 = vmatpush1.bf16.msra.mxu0 %v6662
    %7319 = vmatprep.subr.bf16.mxu0 %v6667
    %7320 = vmatpush1.bf16.msra.mxu0 %v6666
    %7321 = vmatprep.subr.bf16.mxu0 %v6671
    %7322 = vmatpush1.bf16.msra.mxu0 %v6670
    %7323 = vmatprep.subr.bf16.mxu0 %v6675
    %7324 = vmatpush1.bf16.msra.mxu0 %v6674
    %7325 = vmatprep.subr.bf16.mxu0 %v6679
    %7326 = vmatpush1.bf16.msra.mxu0 %v6678
    %7327 = vmatprep.subr.bf16.mxu0 %v6683
    %7328 = vmatpush1.bf16.msra.mxu0 %v6682
    %7329 = vmatprep.subr.bf16.mxu0 %v6687
    %7330 = vmatpush1.bf16.msra.mxu0 %v6686
    %7331 = vmatprep.subr.bf16.mxu0 %v6691
    %7332 = vmatpush1.bf16.msra.mxu0 %v6690
    %7333 = vmatprep.subr.bf16.mxu0 %v6695
    %7334 = vmatpush1.bf16.msra.mxu0 %v6694
    %7335 = vmatprep.subr.bf16.mxu0 %v6699
    %7336 = vmatpush1.bf16.msra.mxu0 %v6698
    %7337 = vmatprep.subr.bf16.mxu0 %v6703
    %7338 = vmatpush1.bf16.msra.mxu0 %v6702
    %7339 = vmatprep.subr.bf16.mxu0 %v6707
    %7340 = vmatpush1.bf16.msra.mxu0 %v6706
    %7341 = vmatprep.subr.bf16.mxu0 %v6711
    %7342 = vmatpush1.bf16.msra.mxu0 %v6710
    %7343 = vmatprep.mubr.bf16.mxu0 %v5533
    %7344 = vmatmul.mubr.bf16.gmra.mrb[0].mxu0 %v5532
    %v7345 = vpop.f32.mrb[0].mxu0
    %v7346 = vadd.f32 %v7303, %v7345
    %v7347 = vpop.f32.mrb[0].mxu0
    %v7348 = vadd.f32 %v7305, %v7347
    %v7349 = vpop.f32.mrb[0].mxu0
    %v7350 = vadd.f32 %v7307, %v7349
    %v7351 = vpop.f32.mrb[0].mxu0
    %v7352 = vadd.f32 %v7309, %v7351
    %7353 = vdwg.mxu0
    %7354 = vmatprep.subr.bf16.mxu0 %v6715
    %7355 = vmatpush1.bf16.msra.mxu0 %v6714
    %7356 = vmatprep.subr.bf16.mxu0 %v6719
    %7357 = vmatpush1.bf16.msra.mxu0 %v6718
    %7358 = vmatprep.subr.bf16.mxu0 %v6723
    %7359 = vmatpush1.bf16.msra.mxu0 %v6722
    %7360 = vmatprep.subr.bf16.mxu0 %v6727
    %7361 = vmatpush1.bf16.msra.mxu0 %v6726
    %7362 = vmatprep.subr.bf16.mxu0 %v6731
    %7363 = vmatpush1.bf16.msra.mxu0 %v6730
    %7364 = vmatprep.subr.bf16.mxu0 %v6735
    %7365 = vmatpush1.bf16.msra.mxu0 %v6734
    %7366 = vmatprep.subr.bf16.mxu0 %v6739
    %7367 = vmatpush1.bf16.msra.mxu0 %v6738
    %7368 = vmatprep.subr.bf16.mxu0 %v6743
    %7369 = vmatpush1.bf16.msra.mxu0 %v6742
    %7370 = vmatprep.subr.bf16.mxu0 %v6747
    %7371 = vmatpush1.bf16.msra.mxu0 %v6746
    %7372 = vmatprep.subr.bf16.mxu0 %v6751
    %7373 = vmatpush1.bf16.msra.mxu0 %v6750
    %7374 = vmatprep.subr.bf16.mxu0 %v6755
    %7375 = vmatpush1.bf16.msra.mxu0 %v6754
    %7376 = vmatprep.subr.bf16.mxu0 %v6759
    %7377 = vmatpush1.bf16.msra.mxu0 %v6758
    %7378 = vmatprep.subr.bf16.mxu0 %v6763
    %7379 = vmatpush1.bf16.msra.mxu0 %v6762
    %7380 = vmatprep.subr.bf16.mxu0 %v6767
    %7381 = vmatpush1.bf16.msra.mxu0 %v6766
    %7382 = vmatprep.subr.bf16.mxu0 %v6771
    %7383 = vmatpush1.bf16.msra.mxu0 %v6770
    %7384 = vmatprep.subr.bf16.mxu0 %v6775
    %7385 = vmatpush1.bf16.msra.mxu0 %v6774
    %7386 = vmatprep.mubr.bf16.mxu0 %v5535
    %7387 = vmatmul.mubr.bf16.gmra.mrb[0].mxu0 %v5534
    %v7388 = vpop.f32.mrb[0].mxu0
    %v7389 = vadd.f32 %v7346, %v7388
    %v7390 = vpop.f32.mrb[0].mxu0
    %v7391 = vadd.f32 %v7348, %v7390
    %v7392 = vpop.f32.mrb[0].mxu0
    %v7393 = vadd.f32 %v7350, %v7392
    %v7394 = vpop.f32.mrb[0].mxu0
    %v7395 = vadd.f32 %v7352, %v7394
    %7396 = vdwg.mxu0
    %7397 = vmatprep.subr.bf16.mxu0 %v6779
    %7398 = vmatpush1.bf16.msra.mxu0 %v6778
    %7399 = vmatprep.subr.bf16.mxu0 %v6783
    %7400 = vmatpush1.bf16.msra.mxu0 %v6782
    %7401 = vmatprep.subr.bf16.mxu0 %v6787
    %7402 = vmatpush1.bf16.msra.mxu0 %v6786
    %7403 = vmatprep.subr.bf16.mxu0 %v6791
    %7404 = vmatpush1.bf16.msra.mxu0 %v6790
    %7405 = vmatprep.subr.bf16.mxu0 %v6795
    %7406 = vmatpush1.bf16.msra.mxu0 %v6794
    %7407 = vmatprep.subr.bf16.mxu0 %v6799
    %7408 = vmatpush1.bf16.msra.mxu0 %v6798
    %7409 = vmatprep.subr.bf16.mxu0 %v6803
    %7410 = vmatpush1.bf16.msra.mxu0 %v6802
    %7411 = vmatprep.subr.bf16.mxu0 %v6807
    %7412 = vmatpush1.bf16.msra.mxu0 %v6806
    %7413 = vmatprep.subr.bf16.mxu0 %v6811
    %7414 = vmatpush1.bf16.msra.mxu0 %v6810
    %7415 = vmatprep.subr.bf16.mxu0 %v6815
    %7416 = vmatpush1.bf16.msra.mxu0 %v6814
    %7417 = vmatprep.subr.bf16.mxu0 %v6819
    %7418 = vmatpush1.bf16.msra.mxu0 %v6818
    %7419 = vmatprep.subr.bf16.mxu0 %v6823
    %7420 = vmatpush1.bf16.msra.mxu0 %v6822
    %7421 = vmatprep.subr.bf16.mxu0 %v6827
    %7422 = vmatpush1.bf16.msra.mxu0 %v6826
    %7423 = vmatprep.subr.bf16.mxu0 %v6831
    %7424 = vmatpush1.bf16.msra.mxu0 %v6830
    %7425 = vmatprep.subr.bf16.mxu0 %v6835
    %7426 = vmatpush1.bf16.msra.mxu0 %v6834
    %7427 = vmatprep.subr.bf16.mxu0 %v6839
    %7428 = vmatpush1.bf16.msra.mxu0 %v6838
    %7429 = vmatprep.mubr.bf16.mxu0 %v5537
    %7430 = vmatmul.mubr.bf16.gmra.mrb[0].mxu0 %v5536
    %v7431 = vpop.f32.mrb[0].mxu0
    %v7432 = vadd.f32 %v7389, %v7431
    %v7433 = vpop.f32.mrb[0].mxu0
    %v7434 = vadd.f32 %v7391, %v7433
    %v7435 = vpop.f32.mrb[0].mxu0
    %v7436 = vadd.f32 %v7393, %v7435
    %v7437 = vpop.f32.mrb[0].mxu0
    %v7438 = vadd.f32 %v7395, %v7437
    %7439 = vdwg.mxu0
    %v7440 = vmax.f32 %v7260, 0.0
    %v7441 = vmax.f32 %v7262, 0.0
    %v7442 = vmax.f32 %v7432, 0.0
    %v7443 = vmax.f32 %v7434, 0.0
    %v7444 = vmax.f32 %v7264, 0.0
    %v7445 = vmax.f32 %v7266, 0.0
    %v7446 = vmax.f32 %v7436, 0.0
    %v7447 = vmax.f32 %v7438, 0.0
    %v7448 = vpack.c.bf16 %v7444, %v7440
    %v7449 = vpack.c.bf16 %v7445, %v7441
    %v7450 = vpack.c.bf16 %v7446, %v7442
    %v7451 = vpack.c.bf16 %v7447, %v7443
    %v7452 = vld [vmem:[#allocation11] sm:$0xff]
    %v7453 = vld [vmem:[#allocation11 + $0x8] sm:$0xff]
    %v7454 = vld [vmem:[#allocation11 + $0x10] sm:$0xff]
    %v7455 = vld [vmem:[#allocation11 + $0x18] sm:$0xff]
    %v7456 = vld [vmem:[#allocation11 + $0x20] sm:$0xff]
    %v7457 = vld [vmem:[#allocation11 + $0x28] sm:$0xff]
    %v7458 = vld [vmem:[#allocation11 + $0x30] sm:$0xff]
    %v7459 = vld [vmem:[#allocation11 + $0x38] sm:$0xff]
    %v7460 = vld [vmem:[#allocation11 + $0x40] sm:$0xff]
    %v7461 = vld [vmem:[#allocation11 + $0x48] sm:$0xff]
    %v7462 = vld [vmem:[#allocation11 + $0x50] sm:$0xff]
    %v7463 = vld [vmem:[#allocation11 + $0x58] sm:$0xff]
    %v7464 = vld [vmem:[#allocation11 + $0x60] sm:$0xff]
    %v7465 = vld [vmem:[#allocation11 + $0x68] sm:$0xff]
    %v7466 = vld [vmem:[#allocation11 + $0x70] sm:$0xff]
    %v7467 = vld [vmem:[#allocation11 + $0x78] sm:$0xff]
    %v7468 = vld [vmem:[#allocation11 + $0x80] sm:$0xff]
    %v7469 = vld [vmem:[#allocation11 + $0x88] sm:$0xff]
    %v7470 = vld [vmem:[#allocation11 + $0x90] sm:$0xff]
    %v7471 = vld [vmem:[#allocation11 + $0x98] sm:$0xff]
    %v7472 = vld [vmem:[#allocation11 + $0xa0] sm:$0xff]
    %v7473 = vld [vmem:[#allocation11 + $0xa8] sm:$0xff]
    %v7474 = vld [vmem:[#allocation11 + $0xb0] sm:$0xff]
    %v7475 = vld [vmem:[#allocation11 + $0xb8] sm:$0xff]
    %v7476 = vld [vmem:[#allocation11 + $0xc0] sm:$0xff]
    %v7477 = vld [vmem:[#allocation11 + $0xc8] sm:$0xff]
    %v7478 = vld [vmem:[#allocation11 + $0xd0] sm:$0xff]
    %v7479 = vld [vmem:[#allocation11 + $0xd8] sm:$0xff]
    %v7480 = vld [vmem:[#allocation11 + $0xe0] sm:$0xff]
    %v7481 = vld [vmem:[#allocation11 + $0xe8] sm:$0xff]
    %v7482 = vld [vmem:[#allocation11 + $0xf0] sm:$0xff]
    %v7483 = vld [vmem:[#allocation11 + $0xf8] sm:$0xff]
    %v7484 = vld [vmem:[#allocation11 + $0x100] sm:$0xff]
    %v7485 = vld [vmem:[#allocation11 + $0x108] sm:$0xff]
    %v7486 = vld [vmem:[#allocation11 + $0x110] sm:$0xff]
    %v7487 = vld [vmem:[#allocation11 + $0x118] sm:$0xff]
    %v7488 = vld [vmem:[#allocation11 + $0x120] sm:$0xff]
    %v7489 = vld [vmem:[#allocation11 + $0x128] sm:$0xff]
    %v7490 = vld [vmem:[#allocation11 + $0x130] sm:$0xff]
    %v7491 = vld [vmem:[#allocation11 + $0x138] sm:$0xff]
    %v7492 = vld [vmem:[#allocation11 + $0x140] sm:$0xff]
    %v7493 = vld [vmem:[#allocation11 + $0x148] sm:$0xff]
    %v7494 = vld [vmem:[#allocation11 + $0x150] sm:$0xff]
    %v7495 = vld [vmem:[#allocation11 + $0x158] sm:$0xff]
    %v7496 = vld [vmem:[#allocation11 + $0x160] sm:$0xff]
    %v7497 = vld [vmem:[#allocation11 + $0x168] sm:$0xff]
    %v7498 = vld [vmem:[#allocation11 + $0x170] sm:$0xff]
    %v7499 = vld [vmem:[#allocation11 + $0x178] sm:$0xff]
    %v7500 = vld [vmem:[#allocation11 + $0x180] sm:$0xff]
    %v7501 = vld [vmem:[#allocation11 + $0x188] sm:$0xff]
    %v7502 = vld [vmem:[#allocation11 + $0x190] sm:$0xff]
    %v7503 = vld [vmem:[#allocation11 + $0x198] sm:$0xff]
    %v7504 = vld [vmem:[#allocation11 + $0x1a0] sm:$0xff]
    %v7505 = vld [vmem:[#allocation11 + $0x1a8] sm:$0xff]
    %v7506 = vld [vmem:[#allocation11 + $0x1b0] sm:$0xff]
    %v7507 = vld [vmem:[#allocation11 + $0x1b8] sm:$0xff]
    %v7508 = vld [vmem:[#allocation11 + $0x1c0] sm:$0xff]
    %v7509 = vld [vmem:[#allocation11 + $0x1c8] sm:$0xff]
    %v7510 = vld [vmem:[#allocation11 + $0x1d0] sm:$0xff]
    %v7511 = vld [vmem:[#allocation11 + $0x1d8] sm:$0xff]
    %v7512 = vld [vmem:[#allocation11 + $0x1e0] sm:$0xff]
    %v7513 = vld [vmem:[#allocation11 + $0x1e8] sm:$0xff]
    %v7514 = vld [vmem:[#allocation11 + $0x1f0] sm:$0xff]
    %v7515 = vld [vmem:[#allocation11 + $0x1f8] sm:$0xff]
    %v7516 = vld [vmem:[#allocation13] sm:$0x3]
    %v7518 = vlaneseq
    %v7519 = vshrl.u32 %v7518, 7
    %v7520 = vsub.s32 0, %v7519
    %v7521 = vrot.slane %v7516, %v7520
    %v7522 = vlaneseq
    %v7523 = vshrl.u32 %v7522, 7
    %v7524 = vsub.s32 1, %v7523
    %v7525 = vrot.slane %v7516, %v7524
    %v7592 = vunpack.c.l.b16 %v7452
    %v7593 = vunpack.c.h.b16 %v7452
    %v7594 = vunpack.c.l.b16 %v7453
    %v7595 = vunpack.c.h.b16 %v7453
    %v7596 = vunpack.c.l.b16 %v7454
    %v7597 = vunpack.c.h.b16 %v7454
    %v7598 = vunpack.c.l.b16 %v7455
    %v7599 = vunpack.c.h.b16 %v7455
    %v7600 = vunpack.c.l.b16 %v7456
    %v7601 = vunpack.c.h.b16 %v7456
    %v7602 = vunpack.c.l.b16 %v7457
    %v7603 = vunpack.c.h.b16 %v7457
    %v7604 = vunpack.c.l.b16 %v7458
    %v7605 = vunpack.c.h.b16 %v7458
    %v7606 = vunpack.c.l.b16 %v7459
    %v7607 = vunpack.c.h.b16 %v7459
    %v7608 = vunpack.c.l.b16 %v7460
    %v7609 = vunpack.c.h.b16 %v7460
    %v7610 = vunpack.c.l.b16 %v7461
    %v7611 = vunpack.c.h.b16 %v7461
    %v7612 = vunpack.c.l.b16 %v7462
    %v7613 = vunpack.c.h.b16 %v7462
    %v7614 = vunpack.c.l.b16 %v7463
    %v7615 = vunpack.c.h.b16 %v7463
    %v7616 = vunpack.c.l.b16 %v7464
    %v7617 = vunpack.c.h.b16 %v7464
    %v7618 = vunpack.c.l.b16 %v7465
    %v7619 = vunpack.c.h.b16 %v7465
    %v7620 = vunpack.c.l.b16 %v7466
    %v7621 = vunpack.c.h.b16 %v7466
    %v7622 = vunpack.c.l.b16 %v7467
    %v7623 = vunpack.c.h.b16 %v7467
    %v7624 = vunpack.c.l.b16 %v7468
    %v7625 = vunpack.c.h.b16 %v7468
    %v7626 = vunpack.c.l.b16 %v7469
    %v7627 = vunpack.c.h.b16 %v7469
    %v7628 = vunpack.c.l.b16 %v7470
    %v7629 = vunpack.c.h.b16 %v7470
    %v7630 = vunpack.c.l.b16 %v7471
    %v7631 = vunpack.c.h.b16 %v7471
    %v7632 = vunpack.c.l.b16 %v7472
    %v7633 = vunpack.c.h.b16 %v7472
    %v7634 = vunpack.c.l.b16 %v7473
    %v7635 = vunpack.c.h.b16 %v7473
    %v7636 = vunpack.c.l.b16 %v7474
    %v7637 = vunpack.c.h.b16 %v7474
    %v7638 = vunpack.c.l.b16 %v7475
    %v7639 = vunpack.c.h.b16 %v7475
    %v7640 = vunpack.c.l.b16 %v7476
    %v7641 = vunpack.c.h.b16 %v7476
    %v7642 = vunpack.c.l.b16 %v7477
    %v7643 = vunpack.c.h.b16 %v7477
    %v7644 = vunpack.c.l.b16 %v7478
    %v7645 = vunpack.c.h.b16 %v7478
    %v7646 = vunpack.c.l.b16 %v7479
    %v7647 = vunpack.c.h.b16 %v7479
    %v7648 = vunpack.c.l.b16 %v7480
    %v7649 = vunpack.c.h.b16 %v7480
    %v7650 = vunpack.c.l.b16 %v7481
    %v7651 = vunpack.c.h.b16 %v7481
    %v7652 = vunpack.c.l.b16 %v7482
    %v7653 = vunpack.c.h.b16 %v7482
    %v7654 = vunpack.c.l.b16 %v7483
    %v7655 = vunpack.c.h.b16 %v7483
    %v7656 = vunpack.c.l.b16 %v7484
    %v7657 = vunpack.c.h.b16 %v7484
    %v7658 = vunpack.c.l.b16 %v7485
    %v7659 = vunpack.c.h.b16 %v7485
    %v7660 = vunpack.c.l.b16 %v7486
    %v7661 = vunpack.c.h.b16 %v7486
    %v7662 = vunpack.c.l.b16 %v7487
    %v7663 = vunpack.c.h.b16 %v7487
    %v7664 = vunpack.c.l.b16 %v7488
    %v7665 = vunpack.c.h.b16 %v7488
    %v7666 = vunpack.c.l.b16 %v7489
    %v7667 = vunpack.c.h.b16 %v7489
    %v7668 = vunpack.c.l.b16 %v7490
    %v7669 = vunpack.c.h.b16 %v7490
    %v7670 = vunpack.c.l.b16 %v7491
    %v7671 = vunpack.c.h.b16 %v7491
    %v7672 = vunpack.c.l.b16 %v7492
    %v7673 = vunpack.c.h.b16 %v7492
    %v7674 = vunpack.c.l.b16 %v7493
    %v7675 = vunpack.c.h.b16 %v7493
    %v7676 = vunpack.c.l.b16 %v7494
    %v7677 = vunpack.c.h.b16 %v7494
    %v7678 = vunpack.c.l.b16 %v7495
    %v7679 = vunpack.c.h.b16 %v7495
    %v7680 = vunpack.c.l.b16 %v7496
    %v7681 = vunpack.c.h.b16 %v7496
    %v7682 = vunpack.c.l.b16 %v7497
    %v7683 = vunpack.c.h.b16 %v7497
    %v7684 = vunpack.c.l.b16 %v7498
    %v7685 = vunpack.c.h.b16 %v7498
    %v7686 = vunpack.c.l.b16 %v7499
    %v7687 = vunpack.c.h.b16 %v7499
    %v7688 = vunpack.c.l.b16 %v7500
    %v7689 = vunpack.c.h.b16 %v7500
    %v7690 = vunpack.c.l.b16 %v7501
    %v7691 = vunpack.c.h.b16 %v7501
    %v7692 = vunpack.c.l.b16 %v7502
    %v7693 = vunpack.c.h.b16 %v7502
    %v7694 = vunpack.c.l.b16 %v7503
    %v7695 = vunpack.c.h.b16 %v7503
    %v7696 = vunpack.c.l.b16 %v7504
    %v7697 = vunpack.c.h.b16 %v7504
    %v7698 = vunpack.c.l.b16 %v7505
    %v7699 = vunpack.c.h.b16 %v7505
    %v7700 = vunpack.c.l.b16 %v7506
    %v7701 = vunpack.c.h.b16 %v7506
    %v7702 = vunpack.c.l.b16 %v7507
    %v7703 = vunpack.c.h.b16 %v7507
    %v7704 = vunpack.c.l.b16 %v7508
    %v7705 = vunpack.c.h.b16 %v7508
    %v7706 = vunpack.c.l.b16 %v7509
    %v7707 = vunpack.c.h.b16 %v7509
    %v7708 = vunpack.c.l.b16 %v7510
    %v7709 = vunpack.c.h.b16 %v7510
    %v7710 = vunpack.c.l.b16 %v7511
    %v7711 = vunpack.c.h.b16 %v7511
    %v7712 = vunpack.c.l.b16 %v7512
    %v7713 = vunpack.c.h.b16 %v7512
    %v7714 = vunpack.c.l.b16 %v7513
    %v7715 = vunpack.c.h.b16 %v7513
    %v7716 = vunpack.c.l.b16 %v7514
    %v7717 = vunpack.c.h.b16 %v7514
    %v7718 = vunpack.c.l.b16 %v7515
    %v7719 = vunpack.c.h.b16 %v7515
    %v7720 = vpack.c.b16 %v7594, %v7592
    %v7721 = vpack.c.b16 %v7595, %v7593
    %v7722 = vpack.c.b16 %v7598, %v7596
    %v7723 = vpack.c.b16 %v7599, %v7597
    %v7724 = vpack.c.b16 %v7602, %v7600
    %v7725 = vpack.c.b16 %v7603, %v7601
    %v7726 = vpack.c.b16 %v7606, %v7604
    %v7727 = vpack.c.b16 %v7607, %v7605
    %v7728 = vpack.c.b16 %v7610, %v7608
    %v7729 = vpack.c.b16 %v7611, %v7609
    %v7730 = vpack.c.b16 %v7614, %v7612
    %v7731 = vpack.c.b16 %v7615, %v7613
    %v7732 = vpack.c.b16 %v7618, %v7616
    %v7733 = vpack.c.b16 %v7619, %v7617
    %v7734 = vpack.c.b16 %v7622, %v7620
    %v7735 = vpack.c.b16 %v7623, %v7621
    %v7736 = vpack.c.b16 %v7626, %v7624
    %v7737 = vpack.c.b16 %v7627, %v7625
    %v7738 = vpack.c.b16 %v7630, %v7628
    %v7739 = vpack.c.b16 %v7631, %v7629
    %v7740 = vpack.c.b16 %v7634, %v7632
    %v7741 = vpack.c.b16 %v7635, %v7633
    %v7742 = vpack.c.b16 %v7638, %v7636
    %v7743 = vpack.c.b16 %v7639, %v7637
    %v7744 = vpack.c.b16 %v7642, %v7640
    %v7745 = vpack.c.b16 %v7643, %v7641
    %v7746 = vpack.c.b16 %v7646, %v7644
    %v7747 = vpack.c.b16 %v7647, %v7645
    %v7748 = vpack.c.b16 %v7650, %v7648
    %v7749 = vpack.c.b16 %v7651, %v7649
    %v7750 = vpack.c.b16 %v7654, %v7652
    %v7751 = vpack.c.b16 %v7655, %v7653
    %v7752 = vpack.c.b16 %v7658, %v7656
    %v7753 = vpack.c.b16 %v7659, %v7657
    %v7754 = vpack.c.b16 %v7662, %v7660
    %v7755 = vpack.c.b16 %v7663, %v7661
    %v7756 = vpack.c.b16 %v7666, %v7664
    %v7757 = vpack.c.b16 %v7667, %v7665
    %v7758 = vpack.c.b16 %v7670, %v7668
    %v7759 = vpack.c.b16 %v7671, %v7669
    %v7760 = vpack.c.b16 %v7674, %v7672
    %v7761 = vpack.c.b16 %v7675, %v7673
    %v7762 = vpack.c.b16 %v7678, %v7676
    %v7763 = vpack.c.b16 %v7679, %v7677
    %v7764 = vpack.c.b16 %v7682, %v7680
    %v7765 = vpack.c.b16 %v7683, %v7681
    %v7766 = vpack.c.b16 %v7686, %v7684
    %v7767 = vpack.c.b16 %v7687, %v7685
    %v7768 = vpack.c.b16 %v7690, %v7688
    %v7769 = vpack.c.b16 %v7691, %v7689
    %v7770 = vpack.c.b16 %v7694, %v7692
    %v7771 = vpack.c.b16 %v7695, %v7693
    %v7772 = vpack.c.b16 %v7698, %v7696
    %v7773 = vpack.c.b16 %v7699, %v7697
    %v7774 = vpack.c.b16 %v7702, %v7700
    %v7775 = vpack.c.b16 %v7703, %v7701
    %v7776 = vpack.c.b16 %v7706, %v7704
    %v7777 = vpack.c.b16 %v7707, %v7705
    %v7778 = vpack.c.b16 %v7710, %v7708
    %v7779 = vpack.c.b16 %v7711, %v7709
    %v7780 = vpack.c.b16 %v7714, %v7712
    %v7781 = vpack.c.b16 %v7715, %v7713
    %v7782 = vpack.c.b16 %v7718, %v7716
    %v7783 = vpack.c.b16 %v7719, %v7717
    %7848 = vmatprep.subr.bf16.mxu0 %v7721
    %7849 = vmatpush1.bf16.msra.mxu0 %v7720
    %7850 = vmatprep.subr.bf16.mxu0 %v7723
    %7851 = vmatpush1.bf16.msra.mxu0 %v7722
    %7852 = vmatprep.subr.bf16.mxu0 %v7725
    %7853 = vmatpush1.bf16.msra.mxu0 %v7724
    %7854 = vmatprep.subr.bf16.mxu0 %v7727
    %7855 = vmatpush1.bf16.msra.mxu0 %v7726
    %7856 = vmatprep.subr.bf16.mxu0 %v7729
    %7857 = vmatpush1.bf16.msra.mxu0 %v7728
    %7858 = vmatprep.subr.bf16.mxu0 %v7731
    %7859 = vmatpush1.bf16.msra.mxu0 %v7730
    %7860 = vmatprep.subr.bf16.mxu0 %v7733
    %7861 = vmatpush1.bf16.msra.mxu0 %v7732
    %7862 = vmatprep.subr.bf16.mxu0 %v7735
    %7863 = vmatpush1.bf16.msra.mxu0 %v7734
    %7864 = vmatprep.subr.bf16.mxu0 %v7737
    %7865 = vmatpush1.bf16.msra.mxu0 %v7736
    %7866 = vmatprep.subr.bf16.mxu0 %v7739
    %7867 = vmatpush1.bf16.msra.mxu0 %v7738
    %7868 = vmatprep.subr.bf16.mxu0 %v7741
    %7869 = vmatpush1.bf16.msra.mxu0 %v7740
    %7870 = vmatprep.subr.bf16.mxu0 %v7743
    %7871 = vmatpush1.bf16.msra.mxu0 %v7742
    %7872 = vmatprep.subr.bf16.mxu0 %v7745
    %7873 = vmatpush1.bf16.msra.mxu0 %v7744
    %7874 = vmatprep.subr.bf16.mxu0 %v7747
    %7875 = vmatpush1.bf16.msra.mxu0 %v7746
    %7876 = vmatprep.subr.bf16.mxu0 %v7749
    %7877 = vmatpush1.bf16.msra.mxu0 %v7748
    %7878 = vmatprep.subr.bf16.mxu0 %v7751
    %7879 = vmatpush1.bf16.msra.mxu0 %v7750
    %7880 = vmatprep.mubr.bf16.mxu0 %v7449
    %7881 = vmatmul.mubr.bf16.gmra.mrb[0].mxu0 %v7448
    %v7882 = vpop.f32.mrb[0].mxu0
    %v7883 = vadd.f32 %v7521, %v7882
    %v7884 = vpop.f32.mrb[0].mxu0
    %v7885 = vadd.f32 %v7525, %v7884
    %v7886 = vpop.f32.mrb[0].mxu0
    %v7887 = vadd.f32 %v7521, %v7886
    %v7888 = vpop.f32.mrb[0].mxu0
    %v7889 = vadd.f32 %v7525, %v7888
    %7890 = vdwg.mxu0
    %7891 = vmatprep.subr.bf16.mxu0 %v7753
    %7892 = vmatpush1.bf16.msra.mxu0 %v7752
    %7893 = vmatprep.subr.bf16.mxu0 %v7755
    %7894 = vmatpush1.bf16.msra.mxu0 %v7754
    %7895 = vmatprep.subr.bf16.mxu0 %v7757
    %7896 = vmatpush1.bf16.msra.mxu0 %v7756
    %7897 = vmatprep.subr.bf16.mxu0 %v7759
    %7898 = vmatpush1.bf16.msra.mxu0 %v7758
    %7899 = vmatprep.subr.bf16.mxu0 %v7761
    %7900 = vmatpush1.bf16.msra.mxu0 %v7760
    %7901 = vmatprep.subr.bf16.mxu0 %v7763
    %7902 = vmatpush1.bf16.msra.mxu0 %v7762
    %7903 = vmatprep.subr.bf16.mxu0 %v7765
    %7904 = vmatpush1.bf16.msra.mxu0 %v7764
    %7905 = vmatprep.subr.bf16.mxu0 %v7767
    %7906 = vmatpush1.bf16.msra.mxu0 %v7766
    %7907 = vmatprep.subr.bf16.mxu0 %v7769
    %7908 = vmatpush1.bf16.msra.mxu0 %v7768
    %7909 = vmatprep.subr.bf16.mxu0 %v7771
    %7910 = vmatpush1.bf16.msra.mxu0 %v7770
    %7911 = vmatprep.subr.bf16.mxu0 %v7773
    %7912 = vmatpush1.bf16.msra.mxu0 %v7772
    %7913 = vmatprep.subr.bf16.mxu0 %v7775
    %7914 = vmatpush1.bf16.msra.mxu0 %v7774
    %7915 = vmatprep.subr.bf16.mxu0 %v7777
    %7916 = vmatpush1.bf16.msra.mxu0 %v7776
    %7917 = vmatprep.subr.bf16.mxu0 %v7779
    %7918 = vmatpush1.bf16.msra.mxu0 %v7778
    %7919 = vmatprep.subr.bf16.mxu0 %v7781
    %7920 = vmatpush1.bf16.msra.mxu0 %v7780
    %7921 = vmatprep.subr.bf16.mxu0 %v7783
    %7922 = vmatpush1.bf16.msra.mxu0 %v7782
    %7923 = vmatprep.mubr.bf16.mxu0 %v7451
    %7924 = vmatmul.mubr.bf16.gmra.mrb[0].mxu0 %v7450
    %v7925 = vpop.f32.mrb[0].mxu0
    %v7926 = vadd.f32 %v7883, %v7925
    %v7927 = vpop.f32.mrb[0].mxu0
    %v7928 = vadd.f32 %v7885, %v7927
    %v7929 = vpop.f32.mrb[0].mxu0
    %v7930 = vadd.f32 %v7887, %v7929
    %v7931 = vpop.f32.mrb[0].mxu0
    %v7932 = vadd.f32 %v7889, %v7931
    %7933 = vdwg.mxu0
    %v7934 = vmax.f32 %v7926, 0.0
    %v7935 = vmax.f32 %v7928, 0.0
    %v7936 = vmax.f32 %v7930, 0.0
    %v7937 = vmax.f32 %v7932, 0.0
    %v7938 = vpack.c.bf16 %v7936, %v7934
    %v7939 = vpack.c.bf16 %v7937, %v7935
    %v7940 = vld [vmem:[#allocation14] sm:$0xf]
    %v7941 = vld [vmem:[#allocation14 + $0x4] sm:$0xf]
    %v7942 = vld [vmem:[#allocation14 + $0x8] sm:$0xf]
    %v7943 = vld [vmem:[#allocation14 + $0xc] sm:$0xf]
    %v7944 = vld [vmem:[#allocation14 + $0x10] sm:$0xf]
    %v7945 = vld [vmem:[#allocation14 + $0x14] sm:$0xf]
    %v7946 = vld [vmem:[#allocation14 + $0x18] sm:$0xf]
    %v7947 = vld [vmem:[#allocation14 + $0x1c] sm:$0xf]
    %v7948 = vld [vmem:[#allocation14 + $0x20] sm:$0xf]
    %v7949 = vld [vmem:[#allocation14 + $0x24] sm:$0xf]
    %v7950 = vld [vmem:[#allocation14 + $0x28] sm:$0xf]
    %v7951 = vld [vmem:[#allocation14 + $0x2c] sm:$0xf]
    %v7952 = vld [vmem:[#allocation14 + $0x30] sm:$0xf]
    %v7953 = vld [vmem:[#allocation14 + $0x34] sm:$0xf]
    %v7954 = vld [vmem:[#allocation14 + $0x38] sm:$0xf]
    %v7955 = vld [vmem:[#allocation14 + $0x3c] sm:$0xf]
    %v7956 = vld [vmem:[#allocation14 + $0x40] sm:$0xf]
    %v7957 = vld [vmem:[#allocation14 + $0x44] sm:$0xf]
    %v7958 = vld [vmem:[#allocation14 + $0x48] sm:$0xf]
    %v7959 = vld [vmem:[#allocation14 + $0x4c] sm:$0xf]
    %v7960 = vld [vmem:[#allocation14 + $0x50] sm:$0xf]
    %v7961 = vld [vmem:[#allocation14 + $0x54] sm:$0xf]
    %v7962 = vld [vmem:[#allocation14 + $0x58] sm:$0xf]
    %v7963 = vld [vmem:[#allocation14 + $0x5c] sm:$0xf]
    %v7964 = vld [vmem:[#allocation14 + $0x60] sm:$0xf]
    %v7965 = vld [vmem:[#allocation14 + $0x64] sm:$0xf]
    %v7966 = vld [vmem:[#allocation14 + $0x68] sm:$0xf]
    %v7967 = vld [vmem:[#allocation14 + $0x6c] sm:$0xf]
    %v7968 = vld [vmem:[#allocation14 + $0x70] sm:$0xf]
    %v7969 = vld [vmem:[#allocation14 + $0x74] sm:$0xf]
    %v7970 = vld [vmem:[#allocation14 + $0x78] sm:$0xf]
    %v7971 = vld [vmem:[#allocation14 + $0x7c] sm:$0xf]
    %v7972 = vld [vmem:[#allocation16] sm:$0x1]
    %v7974 = vlaneseq
    %v7975 = vshrl.u32 %v7974, 7
    %v7976 = vsub.s32 0, %v7975
    %v7977 = vrot.slane %v7972, %v7976
    %v8011 = vunpack.c.l.b16 %v7940
    %v8012 = vunpack.c.l.b16 %v7941
    %v8013 = vunpack.c.l.b16 %v7942
    %v8014 = vunpack.c.l.b16 %v7943
    %v8015 = vunpack.c.l.b16 %v7944
    %v8016 = vunpack.c.l.b16 %v7945
    %v8017 = vunpack.c.l.b16 %v7946
    %v8018 = vunpack.c.l.b16 %v7947
    %v8019 = vunpack.c.l.b16 %v7948
    %v8020 = vunpack.c.l.b16 %v7949
    %v8021 = vunpack.c.l.b16 %v7950
    %v8022 = vunpack.c.l.b16 %v7951
    %v8023 = vunpack.c.l.b16 %v7952
    %v8024 = vunpack.c.l.b16 %v7953
    %v8025 = vunpack.c.l.b16 %v7954
    %v8026 = vunpack.c.l.b16 %v7955
    %v8027 = vunpack.c.l.b16 %v7956
    %v8028 = vunpack.c.l.b16 %v7957
    %v8029 = vunpack.c.l.b16 %v7958
    %v8030 = vunpack.c.l.b16 %v7959
    %v8031 = vunpack.c.l.b16 %v7960
    %v8032 = vunpack.c.l.b16 %v7961
    %v8033 = vunpack.c.l.b16 %v7962
    %v8034 = vunpack.c.l.b16 %v7963
    %v8035 = vunpack.c.l.b16 %v7964
    %v8036 = vunpack.c.l.b16 %v7965
    %v8037 = vunpack.c.l.b16 %v7966
    %v8038 = vunpack.c.l.b16 %v7967
    %v8039 = vunpack.c.l.b16 %v7968
    %v8040 = vunpack.c.l.b16 %v7969
    %v8041 = vunpack.c.l.b16 %v7970
    %v8042 = vunpack.c.l.b16 %v7971
    %v8043 = vpack.c.b16 %v8012, %v8011
    %v8044 = vpack.c.b16 %v8014, %v8013
    %v8045 = vpack.c.b16 %v8016, %v8015
    %v8046 = vpack.c.b16 %v8018, %v8017
    %v8047 = vpack.c.b16 %v8020, %v8019
    %v8048 = vpack.c.b16 %v8022, %v8021
    %v8049 = vpack.c.b16 %v8024, %v8023
    %v8050 = vpack.c.b16 %v8026, %v8025
    %v8051 = vpack.c.b16 %v8028, %v8027
    %v8052 = vpack.c.b16 %v8030, %v8029
    %v8053 = vpack.c.b16 %v8032, %v8031
    %v8054 = vpack.c.b16 %v8034, %v8033
    %v8055 = vpack.c.b16 %v8036, %v8035
    %v8056 = vpack.c.b16 %v8038, %v8037
    %v8057 = vpack.c.b16 %v8040, %v8039
    %v8058 = vpack.c.b16 %v8042, %v8041
    %8075 = vmatprep.subr.bf16.mxu0 0
    %8076 = vmatpush1.bf16.msra.mxu0 %v8043
    %8077 = vmatprep.subr.bf16.mxu0 0
    %8078 = vmatpush1.bf16.msra.mxu0 %v8044
    %8079 = vmatprep.subr.bf16.mxu0 0
    %8080 = vmatpush1.bf16.msra.mxu0 %v8045
    %8081 = vmatprep.subr.bf16.mxu0 0
    %8082 = vmatpush1.bf16.msra.mxu0 %v8046
    %8083 = vmatprep.subr.bf16.mxu0 0
    %8084 = vmatpush1.bf16.msra.mxu0 %v8047
    %8085 = vmatprep.subr.bf16.mxu0 0
    %8086 = vmatpush1.bf16.msra.mxu0 %v8048
    %8087 = vmatprep.subr.bf16.mxu0 0
    %8088 = vmatpush1.bf16.msra.mxu0 %v8049
    %8089 = vmatprep.subr.bf16.mxu0 0
    %8090 = vmatpush1.bf16.msra.mxu0 %v8050
    %8091 = vmatprep.subr.bf16.mxu0 0
    %8092 = vmatpush1.bf16.msra.mxu0 %v8051
    %8093 = vmatprep.subr.bf16.mxu0 0
    %8094 = vmatpush1.bf16.msra.mxu0 %v8052
    %8095 = vmatprep.subr.bf16.mxu0 0
    %8096 = vmatpush1.bf16.msra.mxu0 %v8053
    %8097 = vmatprep.subr.bf16.mxu0 0
    %8098 = vmatpush1.bf16.msra.mxu0 %v8054
    %8099 = vmatprep.subr.bf16.mxu0 0
    %8100 = vmatpush1.bf16.msra.mxu0 %v8055
    %8101 = vmatprep.subr.bf16.mxu0 0
    %8102 = vmatpush1.bf16.msra.mxu0 %v8056
    %8103 = vmatprep.subr.bf16.mxu0 0
    %8104 = vmatpush1.bf16.msra.mxu0 %v8057
    %8105 = vmatprep.subr.bf16.mxu0 0
    %8106 = vmatpush1.bf16.msra.mxu0 %v8058
    %8107 = vmatprep.mubr.bf16.mxu0 %v7939
    %8108 = vmatmul.mubr.bf16.gmra.mrb[0].mxu0 %v7938
    %v8109 = vpop.f32.mrb[0].mxu0
    %v8110 = vadd.f32 %v7977, %v8109
    %v8111 = vpop.f32.mrb[0].mxu0
    %v8112 = vpop.f32.mrb[0].mxu0
    %v8113 = vadd.f32 %v7977, %v8112
    %v8114 = vpop.f32.mrb[0].mxu0
    %8115 = vdwg.mxu0
    %8116 = vst [vmem:[#allocation17] sm:$0xff] %v8110
    %8117 = vst [vmem:[#allocation17 + $0x8] sm:$0xff] %v8113
    // Predicated region
    $region74: #{tpu_custom_call.1} parent=1 // pred_check
      _
    $region75: #{tpu_custom_call.1} parent=1 // pred_check_branch
      %8119 = sbr.rel (0) target = $region77
    $region76: #{tpu_custom_call.1} parent=1 // pred_region
      %s8121 = ssub.s32 256, 256
      %8122 = vsyncadd [#allocation4], %s8121
      %s8123 = sshll.u32 [#allocation17], 4
      %s8124 = int_to_ptr.vmem [resolvable:$true] %s8123
      %8129 = dma.vmem_to_hbm [thread:$0]  %s8124, 256, %s9, [#allocation4], 128, 128, 8
    $region77: #{tpu_custom_call.1} parent=1 // pred_fallthru
      _
    // Predicated region
    $region78: #{tpu_custom_call.1} parent=1 // pred_check
      _
    $region79: #{tpu_custom_call.1} parent=1 // pred_check_branch
      %8131 = sbr.rel (0) target = $region81
    $region80: #{tpu_custom_call.1} parent=1 // pred_region
      %8132 = dma.done [#allocation4], 256
    $region81: #{tpu_custom_call.1} parent=1 // pred_fallthru
      _
    %8133 = vsyncpa [#allocation3], 1
    %8134 = vsyncpa [#allocation6], 1
    %8135 = vsyncpa [#allocation9], 1
    %8136 = vsyncpa [#allocation12], 1
    %8137 = vsyncpa [#allocation15], 1
    %8138 = vsyncpa [#allocation4], 1

</llo_original>
